<compile_context>
chip_gen: v6e
topology: v6e:2x2x1
jax: 0.10.0
libtpu: 0.0.40
codegen_flags: <defaults>
</compile_context>

<pallas_src>
import jax
import jax.numpy as jnp
import numpy as np
from jax.experimental import pallas as pl
from jax.experimental.pallas import tpu as pltpu


# ------------------------------ fused kernel --------------------------------

def _cnn_fused_kernel(x_ref, w1_ref, w2_ref, w3_ref, b1_ref, b2_ref, b3_ref,
                      sr1_ref, sc1_ref, sr2_ref, sc2_ref, wfc_ref, bfc_ref,
                      o_ref, pad1, pad2, pad3, p2buf):
    f32 = jnp.float32

    def fill_padded(pad_ref, interior, h):
        # Vertically zero-padded activation buffer: rows [1, h] hold the data.
        zrow = jnp.zeros((1, pad_ref.shape[1]), f32)
        pad_ref[pl.ds(0, 1), :] = zrow
        pad_ref[pl.ds(h + 1, 1), :] = zrow
        pad_ref[pl.ds(1, h), :] = interior

    def conv3x3_relu(pad_ref, w_ref, b_ref, h):
        # 3x3 conv (stride 1, pad 1) as 3 banded matmuls over (H, W*Cin) rows.
        acc = jnp.dot(pad_ref[pl.ds(0, h), :], w_ref[0],
                      preferred_element_type=f32)
        acc = acc + jnp.dot(pad_ref[pl.ds(1, h), :], w_ref[1],
                            preferred_element_type=f32)
        acc = acc + jnp.dot(pad_ref[pl.ds(2, h), :], w_ref[2],
                            preferred_element_type=f32)
        return jnp.maximum(acc + b_ref[...], 0.0)

    def maxpool2x2(y, sr_ref, sc_ref):
        # 2x2 / stride 2 max-pool via exact 0/1 selection matmuls + max.
        r = jnp.maximum(jnp.dot(sr_ref[0], y, preferred_element_type=f32),
                        jnp.dot(sr_ref[1], y, preferred_element_type=f32))
        return jnp.maximum(jnp.dot(r, sc_ref[0], preferred_element_type=f32),
                           jnp.dot(r, sc_ref[1], preferred_element_type=f32))

    # conv1: (28, 28*1) -> (28, 28*8)
    fill_padded(pad1, x_ref[0], 28)
    y1 = conv3x3_relu(pad1, w1_ref, b1_ref, 28)
    # conv2: -> (28, 28*16)
    fill_padded(pad2, y1, 28)
    y2 = conv3x3_relu(pad2, w2_ref, b2_ref, 28)
    # pool1: -> (14, 14*16)
    p1 = maxpool2x2(y2, sr1_ref, sc1_ref)
    # conv3: -> (14, 14*32)
    fill_padded(pad3, p1, 14)
    y3 = conv3x3_relu(pad3, w3_ref, b3_ref, 14)
    # pool2: -> (7, 7*32)
    p2buf[...] = maxpool2x2(y3, sr2_ref, sc2_ref)
    # fc1: (7, 224) x (7, 224, 10) contraction -> (1, 10)
    acc = bfc_ref[...]
    for h in range(7):
        acc = acc + jnp.dot(p2buf[pl.ds(h, 1), :], wfc_ref[h],
                            preferred_element_type=f32)
    o_ref[0] = acc


# --------------------------- host-side weight prep --------------------------

def _banded_conv_weights(w_hwio, width):
    """HWIO (3,3,Cin,Cout) -> (3, width*Cin, width*Cout) banded matmul weights
    (one per vertical tap ky). Horizontal SAME padding is encoded in the band
    structure; vertical padding is the zero rows written at runtime."""
    _, _, cin, cout = w_hwio.shape
    wnp = np.asarray(w_hwio, dtype=np.float32)
    big = np.zeros((3, width * cin, width * cout), np.float32)
    for ky in range(3):
        for wo in range(width):
            for kx in range(3):
                wi = wo + kx - 1
                if 0 <= wi < width:
                    big[ky, wi * cin:(wi + 1) * cin,
                        wo * cout:(wo + 1) * cout] = wnp[ky, kx]
    return jnp.asarray(big)


def _pool_select_matrices(height, width, chans):
    """0/1 matrices implementing 2x2/stride-2 max-pool on (H, W*C) rows."""
    ho, wo = height // 2, width // 2
    sr = np.zeros((2, ho, height), np.float32)
    for h2 in range(ho):
        sr[0, h2, 2 * h2] = 1.0
        sr[1, h2, 2 * h2 + 1] = 1.0
    sc = np.zeros((2, width * chans, wo * chans), np.float32)
    for w2 in range(wo):
        for c in range(chans):
            sc[0, (2 * w2) * chans + c, w2 * chans + c] = 1.0
            sc[1, (2 * w2 + 1) * chans + c, w2 * chans + c] = 1.0
    return jnp.asarray(sr), jnp.asarray(sc)


def _fc_weights_hwc(wfc, chans, ho, wo):
    """Permute fc1 rows from torch's NCHW flatten order (c,h,w) to the
    kernel's per-row (h, w*C + c) layout -> (ho, wo*chans, num_classes)."""
    ncls = wfc.shape[1]
    w = wfc.reshape(chans, ho, wo, ncls)      # (c, h, w, o)
    w = jnp.transpose(w, (1, 2, 0, 3))        # (h, w, c, o)
    return w.reshape(ho, wo * chans, ncls)


def prepare_kernel_params(params):
    w1, b1, w2, b2, w3, b3, wfc, bfc = params
    sr1, sc1 = _pool_select_matrices(28, 28, 16)
    sr2, sc2 = _pool_select_matrices(14, 14, 32)
    return (
        _banded_conv_weights(w1, 28),         # (3, 28, 224)
        _banded_conv_weights(w2, 28),         # (3, 224, 448)
        _banded_conv_weights(w3, 14),         # (3, 224, 448)
        jnp.tile(b1, 28)[None, :],            # (1, 224)
        jnp.tile(b2, 28)[None, :],            # (1, 448)
        jnp.tile(b3, 14)[None, :],            # (1, 448)
        sr1, sc1, sr2, sc2,
        _fc_weights_hwc(wfc, 32, 7, 7),       # (7, 224, 10)
        bfc[None, :],                         # (1, 10)
    )


# ------------------------------- forward call --------------------------------

def cnn_forward_pallas(x_nchw, kp):
    (w1, w2, w3, b1r, b2r, b3r, sr1, sc1, sr2, sc2, wfc3, bfcr) = kp
    n = x_nchw.shape[0]
    x2d = x_nchw.reshape(n, 28, 28)           # Cin = 1

    grid_spec = pltpu.PrefetchScalarGridSpec(
        num_scalar_prefetch=0,
        grid=(n,),
        in_specs=[
            pl.BlockSpec((1, 28, 28), lambda i: (i, 0, 0)),   # image
            pl.BlockSpec(w1.shape, lambda i: (0, 0, 0)),
            pl.BlockSpec(w2.shape, lambda i: (0, 0, 0)),
            pl.BlockSpec(w3.shape, lambda i: (0, 0, 0)),
            pl.BlockSpec(b1r.shape, lambda i: (0, 0)),
            pl.BlockSpec(b2r.shape, lambda i: (0, 0)),
            pl.BlockSpec(b3r.shape, lambda i: (0, 0)),
            pl.BlockSpec(sr1.shape, lambda i: (0, 0, 0)),
            pl.BlockSpec(sc1.shape, lambda i: (0, 0, 0)),
            pl.BlockSpec(sr2.shape, lambda i: (0, 0, 0)),
            pl.BlockSpec(sc2.shape, lambda i: (0, 0, 0)),
            pl.BlockSpec(wfc3.shape, lambda i: (0, 0, 0)),
            pl.BlockSpec(bfcr.shape, lambda i: (0, 0)),
        ],
        out_specs=pl.BlockSpec((1, 1, 10), lambda i: (i, 0, 0)),
        scratch_shapes=[
            pltpu.VMEM((30, 28), jnp.float32),    # conv1 input (v-padded)
            pltpu.VMEM((30, 224), jnp.float32),   # conv2 input (v-padded)
            pltpu.VMEM((16, 224), jnp.float32),   # conv3 input (v-padded)
            pltpu.VMEM((7, 224), jnp.float32),    # fc input
        ],
    )
    out = pl.pallas_call(
        _cnn_fused_kernel,
        out_shape=jax.ShapeDtypeStruct((n, 1, 10), jnp.float32),
        grid_spec=grid_spec,
        compiler_params=pltpu.CompilerParams(
            dimension_semantics=("parallel",),
            vmem_limit_bytes=32 * 1024 * 1024,
        ),
    )(x2d, w1, w2, w3, b1r, b2r, b3r, sr1, sc1, sr2, sc2, wfc3, bfcr)
    return out.reshape(n, 10)


# ----------------------------- pure-JAX reference ----------------------------

def cnn_forward_reference(x_nchw, params):
    (w1, b1, w2, b2, w3, b3, wfc, bfc) = params

    def conv(x, w, b):
        wo = jnp.transpose(w, (3, 2, 0, 1))   # HWIO -> OIHW
        y = jax.lax.conv_general_dilated(
            x, wo, window_strides=(1, 1), padding=((1, 1), (1, 1)),
            dimension_numbers=('NCHW', 'OIHW', 'NCHW'))
        return y + b.reshape(1, -1, 1, 1)

    def pool(x):
        return jax.lax.reduce_window(x, -jnp.inf, jax.lax.max,
                                     (1, 1, 2, 2), (1, 1, 2, 2), 'VALID')

    x = jax.nn.relu(conv(x_nchw, w1, b1))
    x = jax.nn.relu(conv(x, w2, b2))
    x = pool(x)
    x = jax.nn.relu(conv(x, w3, b3))
    x = pool(x)
    x = x.reshape(x.shape[0], -1)
    return x @ wfc + bfc.reshape(1, -1)


# ----------------------------------- main ------------------------------------

if __name__ == "__main__":
    key = jax.random.PRNGKey(0)
    ks = jax.random.split(key, 9)

    # Shapes from CNN.__init__ (HWIO conv layout), deterministic synthetic params.
    w1 = jax.random.normal(ks[0], (3, 3, 1, 8), jnp.float32) * 0.10
    b1 = jax.random.normal(ks[1], (8,), jnp.float32) * 0.01
    w2 = jax.random.normal(ks[2], (3, 3, 8, 16), jnp.float32) * 0.05
    b2 = jax.random.normal(ks[3], (16,), jnp.float32) * 0.01
    w3 = jax.random.normal(ks[4], (3, 3, 16, 32), jnp.float32) * 0.05
    b3 = jax.random.normal(ks[5], (32,), jnp.float32) * 0.01
    wfc = jax.random.normal(ks[6], (32 * 7 * 7, 10), jnp.float32) * 0.02
    bfc = jax.random.normal(ks[7], (10,), jnp.float32) * 0.01
    params = (w1, b1, w2, b2, w3, b3, wfc, bfc)

    # fc1 expects 32*7*7 features => 28x28 input (MNIST-like), batch=2.
    x = jax.random.normal(ks[8], (2, 1, 28, 28), jnp.float32)

    kp = prepare_kernel_params(params)
    fwd = jax.jit(cnn_forward_pallas)
    out = jax.block_until_ready(fwd(x, kp))
    assert out.shape == (2, 10) and out.dtype == jnp.float32

    ref = jax.block_until_ready(cnn_forward_reference(x, params))
    assert jnp.allclose(out, ref, rtol=1e-3, atol=1e-4), (
        f"max abs diff {float(jnp.max(jnp.abs(out - ref)))}")

    print("KERNEL_OK")
</pallas_src>

<mosaic_0001>
module attributes {stable_mosaic.version = 11 : i64} {
  func.func @_cnn_fused_kernel(%arg0: i32, %arg1: memref<1x28x28xf32, #tpu.memory_space<vmem>>, %arg2: memref<3x28x224xf32, #tpu.memory_space<vmem>>, %arg3: memref<3x224x448xf32, #tpu.memory_space<vmem>>, %arg4: memref<3x224x448xf32, #tpu.memory_space<vmem>>, %arg5: memref<1x224xf32, #tpu.memory_space<vmem>>, %arg6: memref<1x448xf32, #tpu.memory_space<vmem>>, %arg7: memref<1x448xf32, #tpu.memory_space<vmem>>, %arg8: memref<2x14x28xf32, #tpu.memory_space<vmem>>, %arg9: memref<2x448x224xf32, #tpu.memory_space<vmem>>, %arg10: memref<2x7x14xf32, #tpu.memory_space<vmem>>, %arg11: memref<2x448x224xf32, #tpu.memory_space<vmem>>, %arg12: memref<7x224x10xf32, #tpu.memory_space<vmem>>, %arg13: memref<1x10xf32, #tpu.memory_space<vmem>>, %arg14: memref<1x1x10xf32, #tpu.memory_space<vmem>>, %arg15: memref<30x28xf32, #tpu.memory_space<vmem>>, %arg16: memref<30x224xf32, #tpu.memory_space<vmem>>, %arg17: memref<16x224xf32, #tpu.memory_space<vmem>>, %arg18: memref<7x224xf32, #tpu.memory_space<vmem>>) attributes {dimension_semantics = [#tpu.dimension_semantics<parallel>], iteration_bounds = array<i64: 2>, scalar_prefetch = 0 : i64, scratch_operands = 4 : i64, tpu.core_type = #tpu.core_type<tc>, window_params = [{transform_indices = @transform_0, window_bounds = array<i64: 1, 28, 28>}, {pipeline_mode = #tpu.pipeline_mode<synchronous>, transform_indices = @transform_1, window_bounds = array<i64: 3, 28, 224>}, {pipeline_mode = #tpu.pipeline_mode<synchronous>, transform_indices = @transform_2, window_bounds = array<i64: 3, 224, 448>}, {pipeline_mode = #tpu.pipeline_mode<synchronous>, transform_indices = @transform_3, window_bounds = array<i64: 3, 224, 448>}, {pipeline_mode = #tpu.pipeline_mode<synchronous>, transform_indices = @transform_4, window_bounds = array<i64: 1, 224>}, {pipeline_mode = #tpu.pipeline_mode<synchronous>, transform_indices = @transform_5, window_bounds = array<i64: 1, 448>}, {pipeline_mode = #tpu.pipeline_mode<synchronous>, transform_indices = @transform_6, window_bounds = array<i64: 1, 448>}, {pipeline_mode = #tpu.pipeline_mode<synchronous>, transform_indices = @transform_7, window_bounds = array<i64: 2, 14, 28>}, {pipeline_mode = #tpu.pipeline_mode<synchronous>, transform_indices = @transform_8, window_bounds = array<i64: 2, 448, 224>}, {pipeline_mode = #tpu.pipeline_mode<synchronous>, transform_indices = @transform_9, window_bounds = array<i64: 2, 7, 14>}, {pipeline_mode = #tpu.pipeline_mode<synchronous>, transform_indices = @transform_10, window_bounds = array<i64: 2, 448, 224>}, {pipeline_mode = #tpu.pipeline_mode<synchronous>, transform_indices = @transform_11, window_bounds = array<i64: 7, 224, 10>}, {pipeline_mode = #tpu.pipeline_mode<synchronous>, transform_indices = @transform_12, window_bounds = array<i64: 1, 10>}, {transform_indices = @transform_13, window_bounds = array<i64: 1, 1, 10>}]} {
    %c0 = arith.constant 0 : index
    %c0_0 = arith.constant 0 : index
    %c0_1 = arith.constant 0 : index
    %0 = vector.load %arg1[%c0, %c0_0, %c0_1] : memref<1x28x28xf32, #tpu.memory_space<vmem>>, vector<1x28x28xf32>
    %1 = vector.shape_cast %0 : vector<1x28x28xf32> to vector<28x28xf32>
    %cst = arith.constant 0.000000e+00 : f32
    %2 = vector.broadcast %cst : f32 to vector<1x28xf32>
    %c0_2 = arith.constant 0 : index
    %c0_3 = arith.constant 0 : index
    %3 = vector.load %arg15[%c0_2, %c0_3] : memref<30x28xf32, #tpu.memory_space<vmem>>, vector<1x28xf32>
    tpu.vector_store %arg15[%c0_2, %c0_3], %2 {strides = array<i32>} : memref<30x28xf32, #tpu.memory_space<vmem>>, vector<1x28xf32>,
    %c29 = arith.constant 29 : index
    %c0_4 = arith.constant 0 : index
    %4 = vector.load %arg15[%c29, %c0_4] : memref<30x28xf32, #tpu.memory_space<vmem>>, vector<1x28xf32>
    tpu.vector_store %arg15[%c29, %c0_4], %2 {strides = array<i32>} : memref<30x28xf32, #tpu.memory_space<vmem>>, vector<1x28xf32>,
    %c1 = arith.constant 1 : index
    %c0_5 = arith.constant 0 : index
    %5 = vector.load %arg15[%c1, %c0_5] : memref<30x28xf32, #tpu.memory_space<vmem>>, vector<28x28xf32>
    tpu.vector_store %arg15[%c1, %c0_5], %1 {strides = array<i32>} : memref<30x28xf32, #tpu.memory_space<vmem>>, vector<28x28xf32>,
    %c0_6 = arith.constant 0 : index
    %c0_7 = arith.constant 0 : index
    %6 = vector.load %arg15[%c0_6, %c0_7] : memref<30x28xf32, #tpu.memory_space<vmem>>, vector<28x28xf32>
    %c0_8 = arith.constant 0 : index
    %c0_9 = arith.constant 0 : index
    %c0_10 = arith.constant 0 : index
    %7 = vector.load %arg2[%c0_8, %c0_9, %c0_10] : memref<3x28x224xf32, #tpu.memory_space<vmem>>, vector<1x28x224xf32>
    %8 = vector.shape_cast %7 : vector<1x28x224xf32> to vector<28x224xf32>
    %cst_11 = arith.constant dense<0.000000e+00> : vector<28x224xf32>
    %9 = tpu.matmul %6, %8, %cst_11 {dimension_numbers = #tpu.dot_dimension_numbers<[1], [0], [0], [1], [0, 0, 1, 1], [], []>} : vector<28x28xf32>, vector<28x224xf32>, vector<28x224xf32> -> vector<28x224xf32>
    %c1_12 = arith.constant 1 : index
    %c0_13 = arith.constant 0 : index
    %10 = vector.load %arg15[%c1_12, %c0_13] : memref<30x28xf32, #tpu.memory_space<vmem>>, vector<28x28xf32>
    %c1_14 = arith.constant 1 : index
    %c0_15 = arith.constant 0 : index
    %c0_16 = arith.constant 0 : index
    %11 = vector.load %arg2[%c1_14, %c0_15, %c0_16] : memref<3x28x224xf32, #tpu.memory_space<vmem>>, vector<1x28x224xf32>
    %12 = vector.shape_cast %11 : vector<1x28x224xf32> to vector<28x224xf32>
    %cst_17 = arith.constant dense<0.000000e+00> : vector<28x224xf32>
    %13 = tpu.matmul %10, %12, %cst_17 {dimension_numbers = #tpu.dot_dimension_numbers<[1], [0], [0], [1], [0, 0, 1, 1], [], []>} : vector<28x28xf32>, vector<28x224xf32>, vector<28x224xf32> -> vector<28x224xf32>
    %14 = arith.addf %9, %13 : vector<28x224xf32>
    %c2 = arith.constant 2 : index
    %c0_18 = arith.constant 0 : index
    %15 = vector.load %arg15[%c2, %c0_18] : memref<30x28xf32, #tpu.memory_space<vmem>>, vector<28x28xf32>
    %c2_19 = arith.constant 2 : index
    %c0_20 = arith.constant 0 : index
    %c0_21 = arith.constant 0 : index
    %16 = vector.load %arg2[%c2_19, %c0_20, %c0_21] : memref<3x28x224xf32, #tpu.memory_space<vmem>>, vector<1x28x224xf32>
    %17 = vector.shape_cast %16 : vector<1x28x224xf32> to vector<28x224xf32>
    %cst_22 = arith.constant dense<0.000000e+00> : vector<28x224xf32>
    %18 = tpu.matmul %15, %17, %cst_22 {dimension_numbers = #tpu.dot_dimension_numbers<[1], [0], [0], [1], [0, 0, 1, 1], [], []>} : vector<28x28xf32>, vector<28x224xf32>, vector<28x224xf32> -> vector<28x224xf32>
    %19 = arith.addf %14, %18 : vector<28x224xf32>
    %c0_23 = arith.constant 0 : index
    %c0_24 = arith.constant 0 : index
    %20 = vector.load %arg5[%c0_23, %c0_24] : memref<1x224xf32, #tpu.memory_space<vmem>>, vector<1x224xf32>
    %21 = vector.broadcast %20 : vector<1x224xf32> to vector<28x224xf32>
    %22 = arith.addf %19, %21 : vector<28x224xf32>
    %cst_25 = arith.constant 0.000000e+00 : f32
    %23 = vector.broadcast %cst_25 : f32 to vector<28x224xf32>
    %24 = arith.maximumf %22, %23 : vector<28x224xf32>
    %cst_26 = arith.constant 0.000000e+00 : f32
    %25 = vector.broadcast %cst_26 : f32 to vector<1x224xf32>
    %c0_27 = arith.constant 0 : index
    %c0_28 = arith.constant 0 : index
    %26 = vector.load %arg16[%c0_27, %c0_28] : memref<30x224xf32, #tpu.memory_space<vmem>>, vector<1x224xf32>
    tpu.vector_store %arg16[%c0_27, %c0_28], %25 {strides = array<i32>} : memref<30x224xf32, #tpu.memory_space<vmem>>, vector<1x224xf32>,
    %c29_29 = arith.constant 29 : index
    %c0_30 = arith.constant 0 : index
    %27 = vector.load %arg16[%c29_29, %c0_30] : memref<30x224xf32, #tpu.memory_space<vmem>>, vector<1x224xf32>
    tpu.vector_store %arg16[%c29_29, %c0_30], %25 {strides = array<i32>} : memref<30x224xf32, #tpu.memory_space<vmem>>, vector<1x224xf32>,
    %c1_31 = arith.constant 1 : index
    %c0_32 = arith.constant 0 : index
    %28 = vector.load %arg16[%c1_31, %c0_32] : memref<30x224xf32, #tpu.memory_space<vmem>>, vector<28x224xf32>
    tpu.vector_store %arg16[%c1_31, %c0_32], %24 {strides = array<i32>} : memref<30x224xf32, #tpu.memory_space<vmem>>, vector<28x224xf32>,
    %c0_33 = arith.constant 0 : index
    %c0_34 = arith.constant 0 : index
    %29 = vector.load %arg16[%c0_33, %c0_34] : memref<30x224xf32, #tpu.memory_space<vmem>>, vector<28x224xf32>
    %c0_35 = arith.constant 0 : index
    %c0_36 = arith.constant 0 : index
    %c0_37 = arith.constant 0 : index
    %30 = vector.load %arg3[%c0_35, %c0_36, %c0_37] : memref<3x224x448xf32, #tpu.memory_space<vmem>>, vector<1x224x448xf32>
    %31 = vector.shape_cast %30 : vector<1x224x448xf32> to vector<224x448xf32>
    %cst_38 = arith.constant dense<0.000000e+00> : vector<28x448xf32>
    %32 = tpu.matmul %29, %31, %cst_38 {dimension_numbers = #tpu.dot_dimension_numbers<[1], [0], [0], [1], [0, 0, 1, 1], [], []>} : vector<28x224xf32>, vector<224x448xf32>, vector<28x448xf32> -> vector<28x448xf32>
    %c1_39 = arith.constant 1 : index
    %c0_40 = arith.constant 0 : index
    %33 = vector.load %arg16[%c1_39, %c0_40] : memref<30x224xf32, #tpu.memory_space<vmem>>, vector<28x224xf32>
    %c1_41 = arith.constant 1 : index
    %c0_42 = arith.constant 0 : index
    %c0_43 = arith.constant 0 : index
    %34 = vector.load %arg3[%c1_41, %c0_42, %c0_43] : memref<3x224x448xf32, #tpu.memory_space<vmem>>, vector<1x224x448xf32>
    %35 = vector.shape_cast %34 : vector<1x224x448xf32> to vector<224x448xf32>
    %cst_44 = arith.constant dense<0.000000e+00> : vector<28x448xf32>
    %36 = tpu.matmul %33, %35, %cst_44 {dimension_numbers = #tpu.dot_dimension_numbers<[1], [0], [0], [1], [0, 0, 1, 1], [], []>} : vector<28x224xf32>, vector<224x448xf32>, vector<28x448xf32> -> vector<28x448xf32>
    %37 = arith.addf %32, %36 : vector<28x448xf32>
    %c2_45 = arith.constant 2 : index
    %c0_46 = arith.constant 0 : index
    %38 = vector.load %arg16[%c2_45, %c0_46] : memref<30x224xf32, #tpu.memory_space<vmem>>, vector<28x224xf32>
    %c2_47 = arith.constant 2 : index
    %c0_48 = arith.constant 0 : index
    %c0_49 = arith.constant 0 : index
    %39 = vector.load %arg3[%c2_47, %c0_48, %c0_49] : memref<3x224x448xf32, #tpu.memory_space<vmem>>, vector<1x224x448xf32>
    %40 = vector.shape_cast %39 : vector<1x224x448xf32> to vector<224x448xf32>
    %cst_50 = arith.constant dense<0.000000e+00> : vector<28x448xf32>
    %41 = tpu.matmul %38, %40, %cst_50 {dimension_numbers = #tpu.dot_dimension_numbers<[1], [0], [0], [1], [0, 0, 1, 1], [], []>} : vector<28x224xf32>, vector<224x448xf32>, vector<28x448xf32> -> vector<28x448xf32>
    %42 = arith.addf %37, %41 : vector<28x448xf32>
    %c0_51 = arith.constant 0 : index
    %c0_52 = arith.constant 0 : index
    %43 = vector.load %arg6[%c0_51, %c0_52] : memref<1x448xf32, #tpu.memory_space<vmem>>, vector<1x448xf32>
    %44 = vector.broadcast %43 : vector<1x448xf32> to vector<28x448xf32>
    %45 = arith.addf %42, %44 : vector<28x448xf32>
    %cst_53 = arith.constant 0.000000e+00 : f32
    %46 = vector.broadcast %cst_53 : f32 to vector<28x448xf32>
    %47 = arith.maximumf %45, %46 : vector<28x448xf32>
    %c0_54 = arith.constant 0 : index
    %c0_55 = arith.constant 0 : index
    %c0_56 = arith.constant 0 : index
    %48 = vector.load %arg8[%c0_54, %c0_55, %c0_56] : memref<2x14x28xf32, #tpu.memory_space<vmem>>, vector<1x14x28xf32>
    %49 = vector.shape_cast %48 : vector<1x14x28xf32> to vector<14x28xf32>
    %cst_57 = arith.constant dense<0.000000e+00> : vector<14x448xf32>
    %50 = tpu.matmul %49, %47, %cst_57 {dimension_numbers = #tpu.dot_dimension_numbers<[1], [0], [0], [1], [0, 0, 1, 1], [], []>} : vector<14x28xf32>, vector<28x448xf32>, vector<14x448xf32> -> vector<14x448xf32>
    %c1_58 = arith.constant 1 : index
    %c0_59 = arith.constant 0 : index
    %c0_60 = arith.constant 0 : index
    %51 = vector.load %arg8[%c1_58, %c0_59, %c0_60] : memref<2x14x28xf32, #tpu.memory_space<vmem>>, vector<1x14x28xf32>
    %52 = vector.shape_cast %51 : vector<1x14x28xf32> to vector<14x28xf32>
    %cst_61 = arith.constant dense<0.000000e+00> : vector<14x448xf32>
    %53 = tpu.matmul %52, %47, %cst_61 {dimension_numbers = #tpu.dot_dimension_numbers<[1], [0], [0], [1], [0, 0, 1, 1], [], []>} : vector<14x28xf32>, vector<28x448xf32>, vector<14x448xf32> -> vector<14x448xf32>
    %54 = arith.maximumf %50, %53 : vector<14x448xf32>
    %c0_62 = arith.constant 0 : index
    %c0_63 = arith.constant 0 : index
    %c0_64 = arith.constant 0 : index
    %55 = vector.load %arg9[%c0_62, %c0_63, %c0_64] : memref<2x448x224xf32, #tpu.memory_space<vmem>>, vector<1x448x224xf32>
    %56 = vector.shape_cast %55 : vector<1x448x224xf32> to vector<448x224xf32>
    %cst_65 = arith.constant dense<0.000000e+00> : vector<14x224xf32>
    %57 = tpu.matmul %54, %56, %cst_65 {dimension_numbers = #tpu.dot_dimension_numbers<[1], [0], [0], [1], [0, 0, 1, 1], [], []>} : vector<14x448xf32>, vector<448x224xf32>, vector<14x224xf32> -> vector<14x224xf32>
    %c1_66 = arith.constant 1 : index
    %c0_67 = arith.constant 0 : index
    %c0_68 = arith.constant 0 : index
    %58 = vector.load %arg9[%c1_66, %c0_67, %c0_68] : memref<2x448x224xf32, #tpu.memory_space<vmem>>, vector<1x448x224xf32>
    %59 = vector.shape_cast %58 : vector<1x448x224xf32> to vector<448x224xf32>
    %cst_69 = arith.constant dense<0.000000e+00> : vector<14x224xf32>
    %60 = tpu.matmul %54, %59, %cst_69 {dimension_numbers = #tpu.dot_dimension_numbers<[1], [0], [0], [1], [0, 0, 1, 1], [], []>} : vector<14x448xf32>, vector<448x224xf32>, vector<14x224xf32> -> vector<14x224xf32>
    %61 = arith.maximumf %57, %60 : vector<14x224xf32>
    %cst_70 = arith.constant 0.000000e+00 : f32
    %62 = vector.broadcast %cst_70 : f32 to vector<1x224xf32>
    %c0_71 = arith.constant 0 : index
    %c0_72 = arith.constant 0 : index
    %63 = vector.load %arg17[%c0_71, %c0_72] : memref<16x224xf32, #tpu.memory_space<vmem>>, vector<1x224xf32>
    tpu.vector_store %arg17[%c0_71, %c0_72], %62 {strides = array<i32>} : memref<16x224xf32, #tpu.memory_space<vmem>>, vector<1x224xf32>,
    %c15 = arith.constant 15 : index
    %c0_73 = arith.constant 0 : index
    %64 = vector.load %arg17[%c15, %c0_73] : memref<16x224xf32, #tpu.memory_space<vmem>>, vector<1x224xf32>
    tpu.vector_store %arg17[%c15, %c0_73], %62 {strides = array<i32>} : memref<16x224xf32, #tpu.memory_space<vmem>>, vector<1x224xf32>,
    %c1_74 = arith.constant 1 : index
    %c0_75 = arith.constant 0 : index
    %65 = vector.load %arg17[%c1_74, %c0_75] : memref<16x224xf32, #tpu.memory_space<vmem>>, vector<14x224xf32>
    tpu.vector_store %arg17[%c1_74, %c0_75], %61 {strides = array<i32>} : memref<16x224xf32, #tpu.memory_space<vmem>>, vector<14x224xf32>,
    %c0_76 = arith.constant 0 : index
    %c0_77 = arith.constant 0 : index
    %66 = vector.load %arg17[%c0_76, %c0_77] : memref<16x224xf32, #tpu.memory_space<vmem>>, vector<14x224xf32>
    %c0_78 = arith.constant 0 : index
    %c0_79 = arith.constant 0 : index
    %c0_80 = arith.constant 0 : index
    %67 = vector.load %arg4[%c0_78, %c0_79, %c0_80] : memref<3x224x448xf32, #tpu.memory_space<vmem>>, vector<1x224x448xf32>
    %68 = vector.shape_cast %67 : vector<1x224x448xf32> to vector<224x448xf32>
    %cst_81 = arith.constant dense<0.000000e+00> : vector<14x448xf32>
    %69 = tpu.matmul %66, %68, %cst_81 {dimension_numbers = #tpu.dot_dimension_numbers<[1], [0], [0], [1], [0, 0, 1, 1], [], []>} : vector<14x224xf32>, vector<224x448xf32>, vector<14x448xf32> -> vector<14x448xf32>
    %c1_82 = arith.constant 1 : index
    %c0_83 = arith.constant 0 : index
    %70 = vector.load %arg17[%c1_82, %c0_83] : memref<16x224xf32, #tpu.memory_space<vmem>>, vector<14x224xf32>
    %c1_84 = arith.constant 1 : index
    %c0_85 = arith.constant 0 : index
    %c0_86 = arith.constant 0 : index
    %71 = vector.load %arg4[%c1_84, %c0_85, %c0_86] : memref<3x224x448xf32, #tpu.memory_space<vmem>>, vector<1x224x448xf32>
    %72 = vector.shape_cast %71 : vector<1x224x448xf32> to vector<224x448xf32>
    %cst_87 = arith.constant dense<0.000000e+00> : vector<14x448xf32>
    %73 = tpu.matmul %70, %72, %cst_87 {dimension_numbers = #tpu.dot_dimension_numbers<[1], [0], [0], [1], [0, 0, 1, 1], [], []>} : vector<14x224xf32>, vector<224x448xf32>, vector<14x448xf32> -> vector<14x448xf32>
    %74 = arith.addf %69, %73 : vector<14x448xf32>
    %c2_88 = arith.constant 2 : index
    %c0_89 = arith.constant 0 : index
    %75 = vector.load %arg17[%c2_88, %c0_89] : memref<16x224xf32, #tpu.memory_space<vmem>>, vector<14x224xf32>
    %c2_90 = arith.constant 2 : index
    %c0_91 = arith.constant 0 : index
    %c0_92 = arith.constant 0 : index
    %76 = vector.load %arg4[%c2_90, %c0_91, %c0_92] : memref<3x224x448xf32, #tpu.memory_space<vmem>>, vector<1x224x448xf32>
    %77 = vector.shape_cast %76 : vector<1x224x448xf32> to vector<224x448xf32>
    %cst_93 = arith.constant dense<0.000000e+00> : vector<14x448xf32>
    %78 = tpu.matmul %75, %77, %cst_93 {dimension_numbers = #tpu.dot_dimension_numbers<[1], [0], [0], [1], [0, 0, 1, 1], [], []>} : vector<14x224xf32>, vector<224x448xf32>, vector<14x448xf32> -> vector<14x448xf32>
    %79 = arith.addf %74, %78 : vector<14x448xf32>
    %c0_94 = arith.constant 0 : index
    %c0_95 = arith.constant 0 : index
    %80 = vector.load %arg7[%c0_94, %c0_95] : memref<1x448xf32, #tpu.memory_space<vmem>>, vector<1x448xf32>
    %81 = vector.broadcast %80 : vector<1x448xf32> to vector<14x448xf32>
    %82 = arith.addf %79, %81 : vector<14x448xf32>
    %cst_96 = arith.constant 0.000000e+00 : f32
    %83 = vector.broadcast %cst_96 : f32 to vector<14x448xf32>
    %84 = arith.maximumf %82, %83 : vector<14x448xf32>
    %c0_97 = arith.constant 0 : index
    %c0_98 = arith.constant 0 : index
    %c0_99 = arith.constant 0 : index
    %85 = vector.load %arg10[%c0_97, %c0_98, %c0_99] : memref<2x7x14xf32, #tpu.memory_space<vmem>>, vector<1x7x14xf32>
    %86 = vector.shape_cast %85 : vector<1x7x14xf32> to vector<7x14xf32>
    %cst_100 = arith.constant dense<0.000000e+00> : vector<7x448xf32>
    %87 = tpu.matmul %86, %84, %cst_100 {dimension_numbers = #tpu.dot_dimension_numbers<[1], [0], [0], [1], [0, 0, 1, 1], [], []>} : vector<7x14xf32>, vector<14x448xf32>, vector<7x448xf32> -> vector<7x448xf32>
    %c1_101 = arith.constant 1 : index
    %c0_102 = arith.constant 0 : index
    %c0_103 = arith.constant 0 : index
    %88 = vector.load %arg10[%c1_101, %c0_102, %c0_103] : memref<2x7x14xf32, #tpu.memory_space<vmem>>, vector<1x7x14xf32>
    %89 = vector.shape_cast %88 : vector<1x7x14xf32> to vector<7x14xf32>
    %cst_104 = arith.constant dense<0.000000e+00> : vector<7x448xf32>
    %90 = tpu.matmul %89, %84, %cst_104 {dimension_numbers = #tpu.dot_dimension_numbers<[1], [0], [0], [1], [0, 0, 1, 1], [], []>} : vector<7x14xf32>, vector<14x448xf32>, vector<7x448xf32> -> vector<7x448xf32>
    %91 = arith.maximumf %87, %90 : vector<7x448xf32>
    %c0_105 = arith.constant 0 : index
    %c0_106 = arith.constant 0 : index
    %c0_107 = arith.constant 0 : index
    %92 = vector.load %arg11[%c0_105, %c0_106, %c0_107] : memref<2x448x224xf32, #tpu.memory_space<vmem>>, vector<1x448x224xf32>
    %93 = vector.shape_cast %92 : vector<1x448x224xf32> to vector<448x224xf32>
    %cst_108 = arith.constant dense<0.000000e+00> : vector<7x224xf32>
    %94 = tpu.matmul %91, %93, %cst_108 {dimension_numbers = #tpu.dot_dimension_numbers<[1], [0], [0], [1], [0, 0, 1, 1], [], []>} : vector<7x448xf32>, vector<448x224xf32>, vector<7x224xf32> -> vector<7x224xf32>
    %c1_109 = arith.constant 1 : index
    %c0_110 = arith.constant 0 : index
    %c0_111 = arith.constant 0 : index
    %95 = vector.load %arg11[%c1_109, %c0_110, %c0_111] : memref<2x448x224xf32, #tpu.memory_space<vmem>>, vector<1x448x224xf32>
    %96 = vector.shape_cast %95 : vector<1x448x224xf32> to vector<448x224xf32>
    %cst_112 = arith.constant dense<0.000000e+00> : vector<7x224xf32>
    %97 = tpu.matmul %91, %96, %cst_112 {dimension_numbers = #tpu.dot_dimension_numbers<[1], [0], [0], [1], [0, 0, 1, 1], [], []>} : vector<7x448xf32>, vector<448x224xf32>, vector<7x224xf32> -> vector<7x224xf32>
    %98 = arith.maximumf %94, %97 : vector<7x224xf32>
    %c0_113 = arith.constant 0 : index
    %c0_114 = arith.constant 0 : index
    %99 = vector.load %arg18[%c0_113, %c0_114] : memref<7x224xf32, #tpu.memory_space<vmem>>, vector<7x224xf32>
    tpu.vector_store %arg18[%c0_113, %c0_114], %98 {strides = array<i32>} : memref<7x224xf32, #tpu.memory_space<vmem>>, vector<7x224xf32>,
    %c0_115 = arith.constant 0 : index
    %c0_116 = arith.constant 0 : index
    %100 = vector.load %arg13[%c0_115, %c0_116] : memref<1x10xf32, #tpu.memory_space<vmem>>, vector<1x10xf32>
    %c0_117 = arith.constant 0 : index
    %c0_118 = arith.constant 0 : index
    %101 = vector.load %arg18[%c0_117, %c0_118] : memref<7x224xf32, #tpu.memory_space<vmem>>, vector<1x224xf32>
    %c0_119 = arith.constant 0 : index
    %c0_120 = arith.constant 0 : index
    %c0_121 = arith.constant 0 : index
    %102 = vector.load %arg12[%c0_119, %c0_120, %c0_121] : memref<7x224x10xf32, #tpu.memory_space<vmem>>, vector<1x224x10xf32>
    %103 = vector.shape_cast %102 : vector<1x224x10xf32> to vector<224x10xf32>
    %cst_122 = arith.constant dense<0.000000e+00> : vector<1x10xf32>
    %104 = tpu.matmul %101, %103, %cst_122 {dimension_numbers = #tpu.dot_dimension_numbers<[1], [0], [0], [1], [0, 0, 1, 1], [], []>} : vector<1x224xf32>, vector<224x10xf32>, vector<1x10xf32> -> vector<1x10xf32>
    %105 = arith.addf %100, %104 : vector<1x10xf32>
    %c1_123 = arith.constant 1 : index
    %c0_124 = arith.constant 0 : index
    %106 = vector.load %arg18[%c1_123, %c0_124] : memref<7x224xf32, #tpu.memory_space<vmem>>, vector<1x224xf32>
    %c1_125 = arith.constant 1 : index
    %c0_126 = arith.constant 0 : index
    %c0_127 = arith.constant 0 : index
    %107 = vector.load %arg12[%c1_125, %c0_126, %c0_127] : memref<7x224x10xf32, #tpu.memory_space<vmem>>, vector<1x224x10xf32>
    %108 = vector.shape_cast %107 : vector<1x224x10xf32> to vector<224x10xf32>
    %cst_128 = arith.constant dense<0.000000e+00> : vector<1x10xf32>
    %109 = tpu.matmul %106, %108, %cst_128 {dimension_numbers = #tpu.dot_dimension_numbers<[1], [0], [0], [1], [0, 0, 1, 1], [], []>} : vector<1x224xf32>, vector<224x10xf32>, vector<1x10xf32> -> vector<1x10xf32>
    %110 = arith.addf %105, %109 : vector<1x10xf32>
    %c2_129 = arith.constant 2 : index
    %c0_130 = arith.constant 0 : index
    %111 = vector.load %arg18[%c2_129, %c0_130] : memref<7x224xf32, #tpu.memory_space<vmem>>, vector<1x224xf32>
    %c2_131 = arith.constant 2 : index
    %c0_132 = arith.constant 0 : index
    %c0_133 = arith.constant 0 : index
    %112 = vector.load %arg12[%c2_131, %c0_132, %c0_133] : memref<7x224x10xf32, #tpu.memory_space<vmem>>, vector<1x224x10xf32>
    %113 = vector.shape_cast %112 : vector<1x224x10xf32> to vector<224x10xf32>
    %cst_134 = arith.constant dense<0.000000e+00> : vector<1x10xf32>
    %114 = tpu.matmul %111, %113, %cst_134 {dimension_numbers = #tpu.dot_dimension_numbers<[1], [0], [0], [1], [0, 0, 1, 1], [], []>} : vector<1x224xf32>, vector<224x10xf32>, vector<1x10xf32> -> vector<1x10xf32>
    %115 = arith.addf %110, %114 : vector<1x10xf32>
    %c3 = arith.constant 3 : index
    %c0_135 = arith.constant 0 : index
    %116 = vector.load %arg18[%c3, %c0_135] : memref<7x224xf32, #tpu.memory_space<vmem>>, vector<1x224xf32>
    %c3_136 = arith.constant 3 : index
    %c0_137 = arith.constant 0 : index
    %c0_138 = arith.constant 0 : index
    %117 = vector.load %arg12[%c3_136, %c0_137, %c0_138] : memref<7x224x10xf32, #tpu.memory_space<vmem>>, vector<1x224x10xf32>
    %118 = vector.shape_cast %117 : vector<1x224x10xf32> to vector<224x10xf32>
    %cst_139 = arith.constant dense<0.000000e+00> : vector<1x10xf32>
    %119 = tpu.matmul %116, %118, %cst_139 {dimension_numbers = #tpu.dot_dimension_numbers<[1], [0], [0], [1], [0, 0, 1, 1], [], []>} : vector<1x224xf32>, vector<224x10xf32>, vector<1x10xf32> -> vector<1x10xf32>
    %120 = arith.addf %115, %119 : vector<1x10xf32>
    %c4 = arith.constant 4 : index
    %c0_140 = arith.constant 0 : index
    %121 = vector.load %arg18[%c4, %c0_140] : memref<7x224xf32, #tpu.memory_space<vmem>>, vector<1x224xf32>
    %c4_141 = arith.constant 4 : index
    %c0_142 = arith.constant 0 : index
    %c0_143 = arith.constant 0 : index
    %122 = vector.load %arg12[%c4_141, %c0_142, %c0_143] : memref<7x224x10xf32, #tpu.memory_space<vmem>>, vector<1x224x10xf32>
    %123 = vector.shape_cast %122 : vector<1x224x10xf32> to vector<224x10xf32>
    %cst_144 = arith.constant dense<0.000000e+00> : vector<1x10xf32>
    %124 = tpu.matmul %121, %123, %cst_144 {dimension_numbers = #tpu.dot_dimension_numbers<[1], [0], [0], [1], [0, 0, 1, 1], [], []>} : vector<1x224xf32>, vector<224x10xf32>, vector<1x10xf32> -> vector<1x10xf32>
    %125 = arith.addf %120, %124 : vector<1x10xf32>
    %c5 = arith.constant 5 : index
    %c0_145 = arith.constant 0 : index
    %126 = vector.load %arg18[%c5, %c0_145] : memref<7x224xf32, #tpu.memory_space<vmem>>, vector<1x224xf32>
    %c5_146 = arith.constant 5 : index
    %c0_147 = arith.constant 0 : index
    %c0_148 = arith.constant 0 : index
    %127 = vector.load %arg12[%c5_146, %c0_147, %c0_148] : memref<7x224x10xf32, #tpu.memory_space<vmem>>, vector<1x224x10xf32>
    %128 = vector.shape_cast %127 : vector<1x224x10xf32> to vector<224x10xf32>
    %cst_149 = arith.constant dense<0.000000e+00> : vector<1x10xf32>
    %129 = tpu.matmul %126, %128, %cst_149 {dimension_numbers = #tpu.dot_dimension_numbers<[1], [0], [0], [1], [0, 0, 1, 1], [], []>} : vector<1x224xf32>, vector<224x10xf32>, vector<1x10xf32> -> vector<1x10xf32>
    %130 = arith.addf %125, %129 : vector<1x10xf32>
    %c6 = arith.constant 6 : index
    %c0_150 = arith.constant 0 : index
    %131 = vector.load %arg18[%c6, %c0_150] : memref<7x224xf32, #tpu.memory_space<vmem>>, vector<1x224xf32>
    %c6_151 = arith.constant 6 : index
    %c0_152 = arith.constant 0 : index
    %c0_153 = arith.constant 0 : index
    %132 = vector.load %arg12[%c6_151, %c0_152, %c0_153] : memref<7x224x10xf32, #tpu.memory_space<vmem>>, vector<1x224x10xf32>
    %133 = vector.shape_cast %132 : vector<1x224x10xf32> to vector<224x10xf32>
    %cst_154 = arith.constant dense<0.000000e+00> : vector<1x10xf32>
    %134 = tpu.matmul %131, %133, %cst_154 {dimension_numbers = #tpu.dot_dimension_numbers<[1], [0], [0], [1], [0, 0, 1, 1], [], []>} : vector<1x224xf32>, vector<224x10xf32>, vector<1x10xf32> -> vector<1x10xf32>
    %135 = arith.addf %130, %134 : vector<1x10xf32>
    %c0_155 = arith.constant 0 : index
    %c0_156 = arith.constant 0 : index
    %c0_157 = arith.constant 0 : index
    %136 = vector.load %arg14[%c0_155, %c0_156, %c0_157] : memref<1x1x10xf32, #tpu.memory_space<vmem>>, vector<1x1x10xf32>
    %137 = vector.shape_cast %136 : vector<1x1x10xf32> to vector<1x10xf32>
    %138 = vector.shape_cast %135 : vector<1x10xf32> to vector<1x1x10xf32>
    tpu.vector_store %arg14[%c0_155, %c0_156, %c0_157], %138 {strides = array<i32>} : memref<1x1x10xf32, #tpu.memory_space<vmem>>, vector<1x1x10xf32>,
    return
  }
  func.func @transform_0(%arg0: i32) -> (i32, i32, i32) {
    %c0_i32 = arith.constant 0 : i32
    %c0_i32_0 = arith.constant 0 : i32
    %c0_i32_1 = arith.constant 0 : i32
    return %arg0, %c0_i32, %c0_i32_0 : i32, i32, i32
  }
  func.func @transform_1(%arg0: i32) -> (i32, i32, i32) {
    %c0_i32 = arith.constant 0 : i32
    %c0_i32_0 = arith.constant 0 : i32
    %c0_i32_1 = arith.constant 0 : i32
    %c0_i32_2 = arith.constant 0 : i32
    return %c0_i32, %c0_i32_0, %c0_i32_1 : i32, i32, i32
  }
  func.func @transform_2(%arg0: i32) -> (i32, i32, i32) {
    %c0_i32 = arith.constant 0 : i32
    %c0_i32_0 = arith.constant 0 : i32
    %c0_i32_1 = arith.constant 0 : i32
    %c0_i32_2 = arith.constant 0 : i32
    return %c0_i32, %c0_i32_0, %c0_i32_1 : i32, i32, i32
  }
  func.func @transform_3(%arg0: i32) -> (i32, i32, i32) {
    %c0_i32 = arith.constant 0 : i32
    %c0_i32_0 = arith.constant 0 : i32
    %c0_i32_1 = arith.constant 0 : i32
    %c0_i32_2 = arith.constant 0 : i32
    return %c0_i32, %c0_i32_0, %c0_i32_1 : i32, i32, i32
  }
  func.func @transform_4(%arg0: i32) -> (i32, i32) {
    %c0_i32 = arith.constant 0 : i32
    %c0_i32_0 = arith.constant 0 : i32
    %c0_i32_1 = arith.constant 0 : i32
    return %c0_i32, %c0_i32_0 : i32, i32
  }
  func.func @transform_5(%arg0: i32) -> (i32, i32) {
    %c0_i32 = arith.constant 0 : i32
    %c0_i32_0 = arith.constant 0 : i32
    %c0_i32_1 = arith.constant 0 : i32
    return %c0_i32, %c0_i32_0 : i32, i32
  }
  func.func @transform_6(%arg0: i32) -> (i32, i32) {
    %c0_i32 = arith.constant 0 : i32
    %c0_i32_0 = arith.constant 0 : i32
    %c0_i32_1 = arith.constant 0 : i32
    return %c0_i32, %c0_i32_0 : i32, i32
  }
  func.func @transform_7(%arg0: i32) -> (i32, i32, i32) {
    %c0_i32 = arith.constant 0 : i32
    %c0_i32_0 = arith.constant 0 : i32
    %c0_i32_1 = arith.constant 0 : i32
    %c0_i32_2 = arith.constant 0 : i32
    return %c0_i32, %c0_i32_0, %c0_i32_1 : i32, i32, i32
  }
  func.func @transform_8(%arg0: i32) -> (i32, i32, i32) {
    %c0_i32 = arith.constant 0 : i32
    %c0_i32_0 = arith.constant 0 : i32
    %c0_i32_1 = arith.constant 0 : i32
    %c0_i32_2 = arith.constant 0 : i32
    return %c0_i32, %c0_i32_0, %c0_i32_1 : i32, i32, i32
  }
  func.func @transform_9(%arg0: i32) -> (i32, i32, i32) {
    %c0_i32 = arith.constant 0 : i32
    %c0_i32_0 = arith.constant 0 : i32
    %c0_i32_1 = arith.constant 0 : i32
    %c0_i32_2 = arith.constant 0 : i32
    return %c0_i32, %c0_i32_0, %c0_i32_1 : i32, i32, i32
  }
  func.func @transform_10(%arg0: i32) -> (i32, i32, i32) {
    %c0_i32 = arith.constant 0 : i32
    %c0_i32_0 = arith.constant 0 : i32
    %c0_i32_1 = arith.constant 0 : i32
    %c0_i32_2 = arith.constant 0 : i32
    return %c0_i32, %c0_i32_0, %c0_i32_1 : i32, i32, i32
  }
  func.func @transform_11(%arg0: i32) -> (i32, i32, i32) {
    %c0_i32 = arith.constant 0 : i32
    %c0_i32_0 = arith.constant 0 : i32
    %c0_i32_1 = arith.constant 0 : i32
    %c0_i32_2 = arith.constant 0 : i32
    return %c0_i32, %c0_i32_0, %c0_i32_1 : i32, i32, i32
  }
  func.func @transform_12(%arg0: i32) -> (i32, i32) {
    %c0_i32 = arith.constant 0 : i32
    %c0_i32_0 = arith.constant 0 : i32
    %c0_i32_1 = arith.constant 0 : i32
    return %c0_i32, %c0_i32_0 : i32, i32
  }
  func.func @transform_13(%arg0: i32) -> (i32, i32, i32) {
    %c0_i32 = arith.constant 0 : i32
    %c0_i32_0 = arith.constant 0 : i32
    %c0_i32_1 = arith.constant 0 : i32
    return %arg0, %c0_i32, %c0_i32_0 : i32, i32, i32
  }
}

</mosaic_0001>

<llo_original>
// kernel: cnn_forward_pallas.1
$region0: #{cnn_forward_pallas.1}
  #allocation0 [shape = 'u32[]', space=smem, size = 0x4, offset = 0x4, fixed_abs, tag = 'smem constant byte address 0x4 - core index']
  #allocation1 [shape = 'u32[144,128]{1,0:T(1,128)}', space=vmem, size = 0x12000, scoped, tag = 'internal scratch']
  #allocation2 [shape = 'f32[30,28]{1,0:T(8,128)}', space=vmem, size = 0x4000, scoped, tag = 'scratch operand']
  #allocation3 [shape = 'f32[30,224]{1,0:T(8,128)}', space=vmem, size = 0x8000, scoped, tag = 'scratch operand']
  #allocation4 [shape = 'f32[16,224]{1,0:T(8,128)}', space=vmem, size = 0x4000, scoped, tag = 'scratch operand']
  #allocation5 [shape = 'f32[7,224]{1,0:T(8,128)}', space=vmem, size = 0x2000, scoped, tag = 'scratch operand']
  %s0 = inlined_call_operand.vmem [shape: f32[2,28,28], index: 0, kind: input, shape index: {}]
  %s1 = inlined_call_operand.hbm [shape: f32[3,28,224], index: 1, kind: input, shape index: {}]
  %s2 = inlined_call_operand.hbm [shape: f32[3,224,448], index: 2, kind: input, shape index: {}]
  %s3 = inlined_call_operand.hbm [shape: f32[3,224,448], index: 3, kind: input, shape index: {}]
  %s4 = inlined_call_operand.hbm [shape: f32[1,224], index: 4, kind: input, shape index: {}]
  %s5 = inlined_call_operand.hbm [shape: f32[1,448], index: 5, kind: input, shape index: {}]
  %s6 = inlined_call_operand.hbm [shape: f32[1,448], index: 6, kind: input, shape index: {}]
  %s7 = inlined_call_operand.vmem [shape: f32[2,14,28], index: 7, kind: input, shape index: {}]
  %s8 = inlined_call_operand.vmem [shape: f32[2,448,224], index: 8, kind: input, shape index: {}]
  %s9 = inlined_call_operand.vmem [shape: f32[2,7,14], index: 9, kind: input, shape index: {}]
  %s10 = inlined_call_operand.hbm [shape: f32[2,448,224], index: 10, kind: input, shape index: {}]
  %s11 = inlined_call_operand.vmem [shape: f32[7,224,10], index: 11, kind: input, shape index: {}]
  %s12 = inlined_call_operand.hbm [shape: f32[1,10], index: 12, kind: input, shape index: {}]
  %s13 = inlined_call_operand.hbm [shape: f32[2,1,10], index: 13, kind: output, shape index: {}]
  %s14 = sld [smem:[#allocation0]]
  $region117: #{cnn_forward_pallas.1} parent=0
    _
  %s16 = ssub.s32 1, %s14
  %s17 = scalar_select 0, %s16, %s14
  $region1: #{cnn_forward_pallas.1} parent=0
    #allocation6 [shape = 'u8[98304]{0}', space=vmem, size = 0x18000, scoped, tag = 'input window, operand 1, single buffered']
    #allocation7 [shape = 's32[2]{0}', space=sflag, size = 0x8, scoped, tag = 'scoped memory for cnn_forward_pallas.1']
    #allocation8 [shape = 's32[2]{0}', space=sflag, size = 0x8, scoped, tag = 'scoped memory for cnn_forward_pallas.1']
    #allocation9 [shape = 'u8[1376256]{0}', space=vmem, size = 0x150000, scoped, tag = 'input window, operand 2, single buffered']
    #allocation10 [shape = 's32[1]{0}', space=sflag, size = 0x4, scoped, tag = 'scoped memory for cnn_forward_pallas.1']
    #allocation11 [shape = 'u8[1376256]{0}', space=vmem, size = 0x150000, scoped, tag = 'input window, operand 3, single buffered']
    #allocation12 [shape = 'u8[1024]{0}', space=vmem, size = 0x400, scoped, tag = 'input window, operand 4, single buffered']
    #allocation13 [shape = 's32[1]{0}', space=sflag, size = 0x4, scoped, tag = 'scoped memory for cnn_forward_pallas.1']
    #allocation14 [shape = 'u8[2048]{0}', space=vmem, size = 0x800, scoped, tag = 'input window, operand 5, single buffered']
    #allocation15 [shape = 'u8[2048]{0}', space=vmem, size = 0x800, scoped, tag = 'input window, operand 6, single buffered']
    #allocation16 [shape = 's32[1]{0}', space=sflag, size = 0x4, scoped, tag = 'scoped memory for cnn_forward_pallas.1']
    #allocation17 [shape = 'u8[917504]{0}', space=vmem, size = 0xe0000, scoped, tag = 'input window, operand 10, single buffered']
    #allocation18 [shape = 'u8[512]{0}', space=vmem, size = 0x400, scoped, tag = 'input window, operand 12, single buffered']
    #allocation19 [shape = 's32[1]{0}', space=sflag, size = 0x4, scoped, tag = 'scoped memory for cnn_forward_pallas.1']
    #allocation20 [shape = 'u8[1024]{0}', space=vmem, size = 0x400, scoped, tag = 'output window, operand 0']
    %18 = vsyncpa [#allocation7], 0
    %19 = vsyncpa [#allocation10], 0
    %20 = vsyncpa [#allocation13], 0
    %21 = vsyncpa [#allocation16], 0
    %22 = vsyncpa [#allocation19], 0
    %23 = vsyncpa [#allocation8], 0
    %s24 = scalar_lea.sflag [#allocation8], 1
    %25 = vsyncpa %s24, 0
    loop: start=0, step=1, limit=4
    $region2: #{cnn_forward_pallas.1} parent=1 // loop_pre_header
      _
    $region3: #{cnn_forward_pallas.1} parent=1 // loop_header
      %s27 = sphi 0, %s31
      %p28 = scmp.ge.s32.totalorder %s27, 4
      %s37 = sphi 0, %s39
      %s40 = sphi 0, %s37
      %s41 = sphi 0, %s40
      %s57 = sphi 0, %s41
      %s61 = sphi 0, %s61
      %s63 = sphi 0, %s61
      %s64 = sphi 0, %s63
      %s78 = sphi 0, %s64
      %s82 = sphi 0, %s82
      %s84 = sphi 0, %s82
      %s85 = sphi 0, %s84
      %s99 = sphi 0, %s85
      %s103 = sphi 0, %s103
      %s105 = sphi 0, %s103
      %s106 = sphi 0, %s105
      %s120 = sphi 0, %s106
      %s124 = sphi 0, %s124
      %s126 = sphi 0, %s124
      %s127 = sphi 0, %s126
      %s141 = sphi 0, %s127
      %s145 = sphi 0, %s145
      %s147 = sphi 0, %s145
      %s148 = sphi 0, %s147
      %s162 = sphi 0, %s148
      %s166 = sphi 0, %s166
      %s168 = sphi 0, %s166
      %s169 = sphi 0, %s168
      %s183 = sphi 0, %s169
      %s187 = sphi 0, %s187
      %s189 = sphi 0, %s187
      %s190 = sphi 0, %s189
      %s204 = sphi 0, %s190
      %s208 = sphi 0, %s208
      %s210 = sphi 0, %s208
      %s211 = sphi 0, %s210
      %s225 = sphi 0, %s211
      %s229 = sphi 0, %s229
      %s231 = sphi 0, %s229
      %s232 = sphi 0, %s231
      %s246 = sphi 0, %s232
      %s250 = sphi 0, %s250
      %s252 = sphi 0, %s250
      %s253 = sphi 0, %s252
      %s267 = sphi 0, %s253
      %s271 = sphi 0, %s271
      %s273 = sphi 0, %s271
      %s274 = sphi 0, %s273
      %s288 = sphi 0, %s274
      %s292 = sphi 0, %s292
      %s294 = sphi 0, %s292
      %s295 = sphi 0, %s294
      %s309 = sphi 0, %s295
      %s315 = sphi 0, %s317
      %s318 = sphi 0, %s315
      %s319 = sphi 0, %s318
      %s335 = sphi 0, %s319
    $region4: #{cnn_forward_pallas.1} parent=1 // loop_header_branch
      %30 = sbr.rel (%p28) target = $region8
    $region5: #{cnn_forward_pallas.1} parent=1 // loop_body
      %s32 = ssub.s32 %s27, 1
      %s33 = ssub.s32 %s27, 2
      %s34 = sadd.s32 %s27, 1
      %s35 = ssub.s32 %s27, %s34
      %p36 = scmp.eq.s32.totalorder %s35, 0
      %s38 = sadd.s32 %s37, 1
      %s39 = scalar_select %p36, %s37, %s38
      %p42 = pneg %p36
      %p43 = scmp.eq.s32.totalorder %s27, 1
      %p44 = por %p42, %p43
      %p45 = scmp.ne.s32.totalorder %s37, %s40
      %p46 = scmp.eq.s32.totalorder %s27, 0
      %p47 = por %p45, %p46
      %p48 = scmp.ne.s32.totalorder %s37, %s40
      %p49 = scmp.eq.s32.totalorder %s32, 1
      %p50 = por %p48, %p49
      %p51 = scmp.ne.s32.totalorder %s40, %s41
      %p52 = scmp.eq.s32.totalorder %s32, 0
      %p53 = por %p51, %p52
      %p54 = scmp.ne.s32.totalorder %s40, %s41
      %p55 = scmp.eq.s32.totalorder %s33, 1
      %p56 = por %p54, %p55
      %p58 = scmp.ne.s32.totalorder %s41, %s57
      %p59 = scmp.eq.s32.totalorder %s33, 0
      %p60 = por %p58, %p59
      %s62 = sadd.s32 %s61, 1
      %p65 = scmp.eq.s32.totalorder %s27, 1
      %p66 = scmp.ne.s32.totalorder %s61, %s63
      %p67 = scmp.eq.s32.totalorder %s27, 0
      %p68 = por %p66, %p67
      %p69 = scmp.ne.s32.totalorder %s61, %s63
      %p70 = scmp.eq.s32.totalorder %s32, 1
      %p71 = por %p69, %p70
      %p72 = scmp.ne.s32.totalorder %s63, %s64
      %p73 = scmp.eq.s32.totalorder %s32, 0
      %p74 = por %p72, %p73
      %p75 = scmp.ne.s32.totalorder %s63, %s64
      %p76 = scmp.eq.s32.totalorder %s33, 1
      %p77 = por %p75, %p76
      %p79 = scmp.ne.s32.totalorder %s64, %s78
      %p80 = scmp.eq.s32.totalorder %s33, 0
      %p81 = por %p79, %p80
      %s83 = sadd.s32 %s82, 1
      %p86 = scmp.eq.s32.totalorder %s27, 1
      %p87 = scmp.ne.s32.totalorder %s82, %s84
      %p88 = scmp.eq.s32.totalorder %s27, 0
      %p89 = por %p87, %p88
      %p90 = scmp.ne.s32.totalorder %s82, %s84
      %p91 = scmp.eq.s32.totalorder %s32, 1
      %p92 = por %p90, %p91
      %p93 = scmp.ne.s32.totalorder %s84, %s85
      %p94 = scmp.eq.s32.totalorder %s32, 0
      %p95 = por %p93, %p94
      %p96 = scmp.ne.s32.totalorder %s84, %s85
      %p97 = scmp.eq.s32.totalorder %s33, 1
      %p98 = por %p96, %p97
      %p100 = scmp.ne.s32.totalorder %s85, %s99
      %p101 = scmp.eq.s32.totalorder %s33, 0
      %p102 = por %p100, %p101
      %s104 = sadd.s32 %s103, 1
      %p107 = scmp.eq.s32.totalorder %s27, 1
      %p108 = scmp.ne.s32.totalorder %s103, %s105
      %p109 = scmp.eq.s32.totalorder %s27, 0
      %p110 = por %p108, %p109
      %p111 = scmp.ne.s32.totalorder %s103, %s105
      %p112 = scmp.eq.s32.totalorder %s32, 1
      %p113 = por %p111, %p112
      %p114 = scmp.ne.s32.totalorder %s105, %s106
      %p115 = scmp.eq.s32.totalorder %s32, 0
      %p116 = por %p114, %p115
      %p117 = scmp.ne.s32.totalorder %s105, %s106
      %p118 = scmp.eq.s32.totalorder %s33, 1
      %p119 = por %p117, %p118
      %p121 = scmp.ne.s32.totalorder %s106, %s120
      %p122 = scmp.eq.s32.totalorder %s33, 0
      %p123 = por %p121, %p122
      %s125 = sadd.s32 %s124, 1
      %p128 = scmp.eq.s32.totalorder %s27, 1
      %p129 = scmp.ne.s32.totalorder %s124, %s126
      %p130 = scmp.eq.s32.totalorder %s27, 0
      %p131 = por %p129, %p130
      %p132 = scmp.ne.s32.totalorder %s124, %s126
      %p133 = scmp.eq.s32.totalorder %s32, 1
      %p134 = por %p132, %p133
      %p135 = scmp.ne.s32.totalorder %s126, %s127
      %p136 = scmp.eq.s32.totalorder %s32, 0
      %p137 = por %p135, %p136
      %p138 = scmp.ne.s32.totalorder %s126, %s127
      %p139 = scmp.eq.s32.totalorder %s33, 1
      %p140 = por %p138, %p139
      %p142 = scmp.ne.s32.totalorder %s127, %s141
      %p143 = scmp.eq.s32.totalorder %s33, 0
      %p144 = por %p142, %p143
      %s146 = sadd.s32 %s145, 1
      %p149 = scmp.eq.s32.totalorder %s27, 1
      %p150 = scmp.ne.s32.totalorder %s145, %s147
      %p151 = scmp.eq.s32.totalorder %s27, 0
      %p152 = por %p150, %p151
      %p153 = scmp.ne.s32.totalorder %s145, %s147
      %p154 = scmp.eq.s32.totalorder %s32, 1
      %p155 = por %p153, %p154
      %p156 = scmp.ne.s32.totalorder %s147, %s148
      %p157 = scmp.eq.s32.totalorder %s32, 0
      %p158 = por %p156, %p157
      %p159 = scmp.ne.s32.totalorder %s147, %s148
      %p160 = scmp.eq.s32.totalorder %s33, 1
      %p161 = por %p159, %p160
      %p163 = scmp.ne.s32.totalorder %s148, %s162
      %p164 = scmp.eq.s32.totalorder %s33, 0
      %p165 = por %p163, %p164
      %s167 = sadd.s32 %s166, 1
      %p170 = scmp.eq.s32.totalorder %s27, 1
      %p171 = scmp.ne.s32.totalorder %s166, %s168
      %p172 = scmp.eq.s32.totalorder %s27, 0
      %p173 = por %p171, %p172
      %p174 = scmp.ne.s32.totalorder %s166, %s168
      %p175 = scmp.eq.s32.totalorder %s32, 1
      %p176 = por %p174, %p175
      %p177 = scmp.ne.s32.totalorder %s168, %s169
      %p178 = scmp.eq.s32.totalorder %s32, 0
      %p179 = por %p177, %p178
      %p180 = scmp.ne.s32.totalorder %s168, %s169
      %p181 = scmp.eq.s32.totalorder %s33, 1
      %p182 = por %p180, %p181
      %p184 = scmp.ne.s32.totalorder %s169, %s183
      %p185 = scmp.eq.s32.totalorder %s33, 0
      %p186 = por %p184, %p185
      %s188 = sadd.s32 %s187, 1
      %p191 = scmp.eq.s32.totalorder %s27, 1
      %p192 = scmp.ne.s32.totalorder %s187, %s189
      %p193 = scmp.eq.s32.totalorder %s27, 0
      %p194 = por %p192, %p193
      %p195 = scmp.ne.s32.totalorder %s187, %s189
      %p196 = scmp.eq.s32.totalorder %s32, 1
      %p197 = por %p195, %p196
      %p198 = scmp.ne.s32.totalorder %s189, %s190
      %p199 = scmp.eq.s32.totalorder %s32, 0
      %p200 = por %p198, %p199
      %p201 = scmp.ne.s32.totalorder %s189, %s190
      %p202 = scmp.eq.s32.totalorder %s33, 1
      %p203 = por %p201, %p202
      %p205 = scmp.ne.s32.totalorder %s190, %s204
      %p206 = scmp.eq.s32.totalorder %s33, 0
      %p207 = por %p205, %p206
      %s209 = sadd.s32 %s208, 1
      %p212 = scmp.eq.s32.totalorder %s27, 1
      %p213 = scmp.ne.s32.totalorder %s208, %s210
      %p214 = scmp.eq.s32.totalorder %s27, 0
      %p215 = por %p213, %p214
      %p216 = scmp.ne.s32.totalorder %s208, %s210
      %p217 = scmp.eq.s32.totalorder %s32, 1
      %p218 = por %p216, %p217
      %p219 = scmp.ne.s32.totalorder %s210, %s211
      %p220 = scmp.eq.s32.totalorder %s32, 0
      %p221 = por %p219, %p220
      %p222 = scmp.ne.s32.totalorder %s210, %s211
      %p223 = scmp.eq.s32.totalorder %s33, 1
      %p224 = por %p222, %p223
      %p226 = scmp.ne.s32.totalorder %s211, %s225
      %p227 = scmp.eq.s32.totalorder %s33, 0
      %p228 = por %p226, %p227
      %s230 = sadd.s32 %s229, 1
      %p233 = scmp.eq.s32.totalorder %s27, 1
      %p234 = scmp.ne.s32.totalorder %s229, %s231
      %p235 = scmp.eq.s32.totalorder %s27, 0
      %p236 = por %p234, %p235
      %p237 = scmp.ne.s32.totalorder %s229, %s231
      %p238 = scmp.eq.s32.totalorder %s32, 1
      %p239 = por %p237, %p238
      %p240 = scmp.ne.s32.totalorder %s231, %s232
      %p241 = scmp.eq.s32.totalorder %s32, 0
      %p242 = por %p240, %p241
      %p243 = scmp.ne.s32.totalorder %s231, %s232
      %p244 = scmp.eq.s32.totalorder %s33, 1
      %p245 = por %p243, %p244
      %p247 = scmp.ne.s32.totalorder %s232, %s246
      %p248 = scmp.eq.s32.totalorder %s33, 0
      %p249 = por %p247, %p248
      %s251 = sadd.s32 %s250, 1
      %p254 = scmp.eq.s32.totalorder %s27, 1
      %p255 = scmp.ne.s32.totalorder %s250, %s252
      %p256 = scmp.eq.s32.totalorder %s27, 0
      %p257 = por %p255, %p256
      %p258 = scmp.ne.s32.totalorder %s250, %s252
      %p259 = scmp.eq.s32.totalorder %s32, 1
      %p260 = por %p258, %p259
      %p261 = scmp.ne.s32.totalorder %s252, %s253
      %p262 = scmp.eq.s32.totalorder %s32, 0
      %p263 = por %p261, %p262
      %p264 = scmp.ne.s32.totalorder %s252, %s253
      %p265 = scmp.eq.s32.totalorder %s33, 1
      %p266 = por %p264, %p265
      %p268 = scmp.ne.s32.totalorder %s253, %s267
      %p269 = scmp.eq.s32.totalorder %s33, 0
      %p270 = por %p268, %p269
      %s272 = sadd.s32 %s271, 1
      %p275 = scmp.eq.s32.totalorder %s27, 1
      %p276 = scmp.ne.s32.totalorder %s271, %s273
      %p277 = scmp.eq.s32.totalorder %s27, 0
      %p278 = por %p276, %p277
      %p279 = scmp.ne.s32.totalorder %s271, %s273
      %p280 = scmp.eq.s32.totalorder %s32, 1
      %p281 = por %p279, %p280
      %p282 = scmp.ne.s32.totalorder %s273, %s274
      %p283 = scmp.eq.s32.totalorder %s32, 0
      %p284 = por %p282, %p283
      %p285 = scmp.ne.s32.totalorder %s273, %s274
      %p286 = scmp.eq.s32.totalorder %s33, 1
      %p287 = por %p285, %p286
      %p289 = scmp.ne.s32.totalorder %s274, %s288
      %p290 = scmp.eq.s32.totalorder %s33, 0
      %p291 = por %p289, %p290
      %s293 = sadd.s32 %s292, 1
      %p296 = scmp.eq.s32.totalorder %s27, 1
      %p297 = scmp.ne.s32.totalorder %s292, %s294
      %p298 = scmp.eq.s32.totalorder %s27, 0
      %p299 = por %p297, %p298
      %p300 = scmp.ne.s32.totalorder %s292, %s294
      %p301 = scmp.eq.s32.totalorder %s32, 1
      %p302 = por %p300, %p301
      %p303 = scmp.ne.s32.totalorder %s294, %s295
      %p304 = scmp.eq.s32.totalorder %s32, 0
      %p305 = por %p303, %p304
      %p306 = scmp.ne.s32.totalorder %s294, %s295
      %p307 = scmp.eq.s32.totalorder %s33, 1
      %p308 = por %p306, %p307
      %p310 = scmp.ne.s32.totalorder %s295, %s309
      %p311 = scmp.eq.s32.totalorder %s33, 0
      %p312 = por %p310, %p311
      %s313 = ssub.s32 %s27, %s34
      %p314 = scmp.eq.s32.totalorder %s313, 0
      %s316 = sadd.s32 %s315, 1
      %s317 = scalar_select %p314, %s315, %s316
      %p320 = pneg %p314
      %p321 = scmp.eq.s32.totalorder %s27, 1
      %p322 = por %p320, %p321
      %p323 = scmp.ne.s32.totalorder %s315, %s318
      %p324 = scmp.eq.s32.totalorder %s27, 0
      %p325 = por %p323, %p324
      %p326 = scmp.ne.s32.totalorder %s315, %s318
      %p327 = scmp.eq.s32.totalorder %s32, 1
      %p328 = por %p326, %p327
      %p329 = scmp.ne.s32.totalorder %s318, %s319
      %p330 = scmp.eq.s32.totalorder %s32, 0
      %p331 = por %p329, %p330
      %p332 = scmp.ne.s32.totalorder %s318, %s319
      %p333 = scmp.eq.s32.totalorder %s33, 1
      %p334 = por %p332, %p333
      %p336 = scmp.ne.s32.totalorder %s319, %s335
      %p337 = scmp.eq.s32.totalorder %s33, 0
      %p338 = por %p336, %p337
      %p339 = scmp.le.s32.totalorder 1, %s27
      %p340 = scmp.lt.s32.totalorder %s27, 3
      %p341 = pnand %p339, %p340
      %p342 = pneg %p341
      // Predicated region
      $region9: #{cnn_forward_pallas.1} parent=5 // pred_check
        _
      $region10: #{cnn_forward_pallas.1} parent=5 // pred_check_branch
        %344 = sbr.rel (%p341) target = $region12
      $region11: #{cnn_forward_pallas.1} parent=5 // pred_region
        %s345 = ssub.s32 %s27, 1
        // Predicated region
        $region13: #{cnn_forward_pallas.1} parent=11 // pred_check
          %p346 = pneg %p74
        $region14: #{cnn_forward_pallas.1} parent=11 // pred_check_branch
          %348 = sbr.rel (%p346) target = $region16
        $region15: #{cnn_forward_pallas.1} parent=11 // pred_region
          %s350 = ssub.s32 3072, 3072
          %351 = vsyncadd [#allocation7], %s350
          %s352 = sshll.u32 [#allocation6], 4
          %s353 = int_to_ptr.vmem [resolvable:$true] %s352
          %358 = dma.hbm_to_vmem [thread:$0]  %s1, 3072, %s353, [#allocation7], 256, 256, 16
        $region16: #{cnn_forward_pallas.1} parent=11 // pred_fallthru
          _
        // Predicated region
        $region17: #{cnn_forward_pallas.1} parent=11 // pred_check
          %p359 = pneg %p95
        $region18: #{cnn_forward_pallas.1} parent=11 // pred_check_branch
          %361 = sbr.rel (%p359) target = $region20
        $region19: #{cnn_forward_pallas.1} parent=11 // pred_region
          %s363 = ssub.s32 43008, 43008
          %364 = vsyncadd [#allocation10], %s363
          %s365 = sshll.u32 [#allocation9], 4
          %s366 = int_to_ptr.vmem [resolvable:$true] %s365
          %371 = dma.hbm_to_vmem [thread:$0]  %s2, 43008, %s366, [#allocation10], 512, 512, 32
        $region20: #{cnn_forward_pallas.1} parent=11 // pred_fallthru
          _
        // Predicated region
        $region21: #{cnn_forward_pallas.1} parent=11 // pred_check
          %p372 = pneg %p116
        $region22: #{cnn_forward_pallas.1} parent=11 // pred_check_branch
          %374 = sbr.rel (%p372) target = $region24
        $region23: #{cnn_forward_pallas.1} parent=11 // pred_region
          %s376 = ssub.s32 43008, 43008
          %377 = vsyncadd [#allocation10], %s376
          %s378 = sshll.u32 [#allocation11], 4
          %s379 = int_to_ptr.vmem [resolvable:$true] %s378
          %384 = dma.hbm_to_vmem [thread:$0]  %s3, 43008, %s379, [#allocation10], 512, 512, 32
        $region24: #{cnn_forward_pallas.1} parent=11 // pred_fallthru
          _
        // Predicated region
        $region25: #{cnn_forward_pallas.1} parent=11 // pred_check
          %p385 = pneg %p137
        $region26: #{cnn_forward_pallas.1} parent=11 // pred_check_branch
          %387 = sbr.rel (%p385) target = $region28
        $region27: #{cnn_forward_pallas.1} parent=11 // pred_region
          %s389 = ssub.s32 32, 32
          %390 = vsyncadd [#allocation13], %s389
          %s392 = sshll.u32 [#allocation12], 4
          %s393 = int_to_ptr.vmem [resolvable:$true] %s392
          %395 = dma.hbm_to_vmem [thread:$0]  %s4, 32, %s393, [#allocation13]
        $region28: #{cnn_forward_pallas.1} parent=11 // pred_fallthru
          _
        // Predicated region
        $region29: #{cnn_forward_pallas.1} parent=11 // pred_check
          %p396 = pneg %p158
        $region30: #{cnn_forward_pallas.1} parent=11 // pred_check_branch
          %398 = sbr.rel (%p396) target = $region32
        $region31: #{cnn_forward_pallas.1} parent=11 // pred_region
          %s400 = ssub.s32 64, 64
          %401 = vsyncadd [#allocation13], %s400
          %s403 = sshll.u32 [#allocation14], 4
          %s404 = int_to_ptr.vmem [resolvable:$true] %s403
          %406 = dma.hbm_to_vmem [thread:$0]  %s5, 64, %s404, [#allocation13]
        $region32: #{cnn_forward_pallas.1} parent=11 // pred_fallthru
          _
        // Predicated region
        $region33: #{cnn_forward_pallas.1} parent=11 // pred_check
          %p407 = pneg %p179
        $region34: #{cnn_forward_pallas.1} parent=11 // pred_check_branch
          %409 = sbr.rel (%p407) target = $region36
        $region35: #{cnn_forward_pallas.1} parent=11 // pred_region
          %s411 = ssub.s32 64, 64
          %412 = vsyncadd [#allocation16], %s411
          %s414 = sshll.u32 [#allocation15], 4
          %s415 = int_to_ptr.vmem [resolvable:$true] %s414
          %417 = dma.hbm_to_vmem [thread:$0]  %s6, 64, %s415, [#allocation16]
        $region36: #{cnn_forward_pallas.1} parent=11 // pred_fallthru
          _
        // Predicated region
        $region37: #{cnn_forward_pallas.1} parent=11 // pred_check
          %p418 = pneg %p200
        $region38: #{cnn_forward_pallas.1} parent=11 // pred_check_branch
          %420 = sbr.rel (%p418) target = $region40
        $region39: #{cnn_forward_pallas.1} parent=11 // pred_region
          _
        $region40: #{cnn_forward_pallas.1} parent=11 // pred_fallthru
          _
        // Predicated region
        $region41: #{cnn_forward_pallas.1} parent=11 // pred_check
          %p421 = pneg %p221
        $region42: #{cnn_forward_pallas.1} parent=11 // pred_check_branch
          %423 = sbr.rel (%p421) target = $region44
        $region43: #{cnn_forward_pallas.1} parent=11 // pred_region
          _
        $region44: #{cnn_forward_pallas.1} parent=11 // pred_fallthru
          _
        // Predicated region
        $region45: #{cnn_forward_pallas.1} parent=11 // pred_check
          %p424 = pneg %p242
        $region46: #{cnn_forward_pallas.1} parent=11 // pred_check_branch
          %426 = sbr.rel (%p424) target = $region48
        $region47: #{cnn_forward_pallas.1} parent=11 // pred_region
          _
        $region48: #{cnn_forward_pallas.1} parent=11 // pred_fallthru
          _
        // Predicated region
        $region49: #{cnn_forward_pallas.1} parent=11 // pred_check
          %p427 = pneg %p263
        $region50: #{cnn_forward_pallas.1} parent=11 // pred_check_branch
          %429 = sbr.rel (%p427) target = $region52
        $region51: #{cnn_forward_pallas.1} parent=11 // pred_region
          %s431 = ssub.s32 28672, 28672
          %432 = vsyncadd [#allocation16], %s431
          %s433 = sshll.u32 [#allocation17], 4
          %s434 = int_to_ptr.vmem [resolvable:$true] %s433
          %439 = dma.hbm_to_vmem [thread:$0]  %s10, 28672, %s434, [#allocation16], 256, 256, 16
        $region52: #{cnn_forward_pallas.1} parent=11 // pred_fallthru
          _
        // Predicated region
        $region53: #{cnn_forward_pallas.1} parent=11 // pred_check
          %p440 = pneg %p284
        $region54: #{cnn_forward_pallas.1} parent=11 // pred_check_branch
          %442 = sbr.rel (%p440) target = $region56
        $region55: #{cnn_forward_pallas.1} parent=11 // pred_region
          _
        $region56: #{cnn_forward_pallas.1} parent=11 // pred_fallthru
          _
        // Predicated region
        $region57: #{cnn_forward_pallas.1} parent=11 // pred_check
          %p443 = pneg %p305
        $region58: #{cnn_forward_pallas.1} parent=11 // pred_check_branch
          %445 = sbr.rel (%p443) target = $region60
        $region59: #{cnn_forward_pallas.1} parent=11 // pred_region
          %s447 = ssub.s32 16, 16
          %448 = vsyncadd [#allocation19], %s447
          %s450 = sshll.u32 [#allocation18], 4
          %s451 = int_to_ptr.vmem [resolvable:$true] %s450
          %453 = dma.hbm_to_vmem [thread:$0]  %s12, 16, %s451, [#allocation19]
        $region60: #{cnn_forward_pallas.1} parent=11 // pred_fallthru
          _
      $region12: #{cnn_forward_pallas.1} parent=5 // pred_fallthru
        _
      %p454 = scmp.lt.s32.totalorder %s27, 2
      // Predicated region
      $region61: #{cnn_forward_pallas.1} parent=5 // pred_check
        %p455 = pneg %p454
      $region62: #{cnn_forward_pallas.1} parent=5 // pred_check_branch
        %457 = sbr.rel (%p455) target = $region64
      $region63: #{cnn_forward_pallas.1} parent=5 // pred_region
        // Predicated region
        $region65: #{cnn_forward_pallas.1} parent=63 // pred_check
          %p458 = pneg %p47
        $region66: #{cnn_forward_pallas.1} parent=63 // pred_check_branch
          %460 = sbr.rel (%p458) target = $region68
        $region67: #{cnn_forward_pallas.1} parent=63 // pred_region
          %p461 = scmp.lt.s32.totalorder %s27, 1
          %s462 = scalar_select %p461, %s27, 1
          %s463 = smul.addr %s462, 4
          %s464 = smul.addr %s463, 8
          %s465 = scalar_lea.vmem %s0, %s464
        $region68: #{cnn_forward_pallas.1} parent=63 // pred_fallthru
          _
      $region64: #{cnn_forward_pallas.1} parent=5 // pred_fallthru
        _
      %p466 = scmp.le.s32.totalorder 1, %s27
      %p467 = scmp.lt.s32.totalorder %s27, 3
      %p468 = pnand %p466, %p467
      %p469 = pneg %p468
      // Predicated region
      $region69: #{cnn_forward_pallas.1} parent=5 // pred_check
        _
      $region70: #{cnn_forward_pallas.1} parent=5 // pred_check_branch
        %471 = sbr.rel (%p468) target = $region72
      $region71: #{cnn_forward_pallas.1} parent=5 // pred_region
        %s472 = ssub.s32 %s27, 1
        // Predicated region
        $region73: #{cnn_forward_pallas.1} parent=71 // pred_check
          %p473 = pneg %p74
        $region74: #{cnn_forward_pallas.1} parent=71 // pred_check_branch
          %475 = sbr.rel (%p473) target = $region76
        $region75: #{cnn_forward_pallas.1} parent=71 // pred_region
          %476 = dma.done [#allocation7], 3072
        $region76: #{cnn_forward_pallas.1} parent=71 // pred_fallthru
          _
        // Predicated region
        $region77: #{cnn_forward_pallas.1} parent=71 // pred_check
          %p477 = pneg %p95
        $region78: #{cnn_forward_pallas.1} parent=71 // pred_check_branch
          %479 = sbr.rel (%p477) target = $region80
        $region79: #{cnn_forward_pallas.1} parent=71 // pred_region
          %480 = dma.done [#allocation10], 43008
        $region80: #{cnn_forward_pallas.1} parent=71 // pred_fallthru
          _
        // Predicated region
        $region81: #{cnn_forward_pallas.1} parent=71 // pred_check
          %p481 = pneg %p116
        $region82: #{cnn_forward_pallas.1} parent=71 // pred_check_branch
          %483 = sbr.rel (%p481) target = $region84
        $region83: #{cnn_forward_pallas.1} parent=71 // pred_region
          %484 = dma.done [#allocation10], 43008
        $region84: #{cnn_forward_pallas.1} parent=71 // pred_fallthru
          _
        // Predicated region
        $region85: #{cnn_forward_pallas.1} parent=71 // pred_check
          %p485 = pneg %p137
        $region86: #{cnn_forward_pallas.1} parent=71 // pred_check_branch
          %487 = sbr.rel (%p485) target = $region88
        $region87: #{cnn_forward_pallas.1} parent=71 // pred_region
          %488 = dma.done [#allocation13], 32
        $region88: #{cnn_forward_pallas.1} parent=71 // pred_fallthru
          _
        // Predicated region
        $region89: #{cnn_forward_pallas.1} parent=71 // pred_check
          %p489 = pneg %p158
        $region90: #{cnn_forward_pallas.1} parent=71 // pred_check_branch
          %491 = sbr.rel (%p489) target = $region92
        $region91: #{cnn_forward_pallas.1} parent=71 // pred_region
          %492 = dma.done [#allocation13], 64
        $region92: #{cnn_forward_pallas.1} parent=71 // pred_fallthru
          _
        // Predicated region
        $region93: #{cnn_forward_pallas.1} parent=71 // pred_check
          %p493 = pneg %p179
        $region94: #{cnn_forward_pallas.1} parent=71 // pred_check_branch
          %495 = sbr.rel (%p493) target = $region96
        $region95: #{cnn_forward_pallas.1} parent=71 // pred_region
          %496 = dma.done [#allocation16], 64
        $region96: #{cnn_forward_pallas.1} parent=71 // pred_fallthru
          _
        // Predicated region
        $region97: #{cnn_forward_pallas.1} parent=71 // pred_check
          %p497 = pneg %p263
        $region98: #{cnn_forward_pallas.1} parent=71 // pred_check_branch
          %499 = sbr.rel (%p497) target = $region100
        $region99: #{cnn_forward_pallas.1} parent=71 // pred_region
          %500 = dma.done [#allocation16], 28672
        $region100: #{cnn_forward_pallas.1} parent=71 // pred_fallthru
          _
        // Predicated region
        $region101: #{cnn_forward_pallas.1} parent=71 // pred_check
          %p501 = pneg %p305
        $region102: #{cnn_forward_pallas.1} parent=71 // pred_check_branch
          %503 = sbr.rel (%p501) target = $region104
        $region103: #{cnn_forward_pallas.1} parent=71 // pred_region
          %504 = dma.done [#allocation19], 16
        $region104: #{cnn_forward_pallas.1} parent=71 // pred_fallthru
          _
        %p505 = scmp.lt.s32.totalorder %s32, 1
        %s506 = scalar_select %p505, %s32, 1
        %s507 = smul.addr %s506, 4
        %s508 = smul.addr %s507, 8
        %s509 = scalar_lea.vmem %s0, %s508
        %p510 = pneg %p53
        %p511 = pneg %p50
        %p512 = pneg %p74
        %p513 = pneg %p71
        %p514 = pneg %p95
        %p515 = pneg %p92
        %p516 = pneg %p116
        %p517 = pneg %p113
        %p518 = pneg %p137
        %p519 = pneg %p134
        %p520 = pneg %p158
        %p521 = pneg %p155
        %p522 = pneg %p179
        %p523 = pneg %p176
        %p524 = pneg %p200
        %p525 = pneg %p197
        %p526 = pneg %p221
        %p527 = pneg %p218
        %p528 = pneg %p242
        %p529 = pneg %p239
        %p530 = pneg %p263
        %p531 = pneg %p260
        %p532 = pneg %p284
        %p533 = pneg %p281
        %p534 = pneg %p305
        %p535 = pneg %p302
        %p536 = pneg %p331
        %p537 = pneg %p328
        %s538 = sand.u32 %s318, 1
        %s539 = scalar_lea.sflag [#allocation8], %s538
        %s540 = sand.u32 %s318, 1
        %s541 = scalar_lea.vmem [#allocation20], %s540
        %p542 = scmp.lt.s32.totalorder %s32, 1
        %s543 = scalar_select %p542, %s32, 1
        %s544 = smul.addr %s543, 4
        %s545 = smul.addr %s544, 8
        %s546 = scalar_lea.vmem %s0, %s545
        %v547 = vld [vmem:[%s546] sm:$0xff]
        %v548 = vld [vmem:[%s546 + $0x8] sm:$0xff]
        %v549 = vld [vmem:[%s546 + $0x10] sm:$0xff]
        %v550 = vld [vmem:[%s546 + $0x18] sm:$0xf]
        %vm551 = vcmask 221184
        %552 = vst.msk [vmem:[#allocation2] sm:$0x1] %vm551, 0.0
        %553 = vst.msk [vmem:[#allocation2 + $0x1d] sm:$0x1] %vm551, 0.0
        %vm554 = vcmask 228352
        %555 = vst.msk [vmem:[#allocation2 + $0x1] sm:$0xff] %vm554, %v547
        %556 = vst.msk [vmem:[#allocation2 + $0x9] sm:$0xff] %vm554, %v548
        %557 = vst.msk [vmem:[#allocation2 + $0x11] sm:$0xff] %vm554, %v549
        %vm558 = vcmask 224256
        %559 = vst.msk [vmem:[#allocation2 + $0x19] sm:$0xf] %vm558, %v550
        %v560 = vld [vmem:[#allocation2] sm:$0xff]
        %v561 = vld [vmem:[#allocation2 + $0x8] sm:$0xff]
        %v562 = vld [vmem:[#allocation2 + $0x10] sm:$0xff]
        %v563 = vld [vmem:[#allocation2 + $0x18] sm:$0xf]
        %v564 = vld [vmem:[#allocation6] sm:$0xff]
        %v565 = vld [vmem:[#allocation6 + $0x8] sm:$0xff]
        %v566 = vld [vmem:[#allocation6 + $0x10] sm:$0xff]
        %v567 = vld [vmem:[#allocation6 + $0x18] sm:$0xff]
        %v568 = vld [vmem:[#allocation6 + $0x20] sm:$0xff]
        %v569 = vld [vmem:[#allocation6 + $0x28] sm:$0xff]
        %v570 = vld [vmem:[#allocation6 + $0x30] sm:$0xf]
        %v571 = vld [vmem:[#allocation6 + $0x38] sm:$0xf]
        %v572 = vld [vmem:[#allocation2 + $0x1] sm:$0xff]
        %v573 = vld [vmem:[#allocation2 + $0x9] sm:$0xff]
        %v574 = vld [vmem:[#allocation2 + $0x11] sm:$0xff]
        %v575 = vld [vmem:[#allocation2 + $0x19] sm:$0xf]
        %s576 = scalar_lea.vmem [#allocation6], 64
        %v577 = vld [vmem:[%s576] sm:$0xff]
        %v578 = vld [vmem:[%s576 + $0x8] sm:$0xff]
        %v579 = vld [vmem:[%s576 + $0x10] sm:$0xff]
        %v580 = vld [vmem:[%s576 + $0x18] sm:$0xff]
        %v581 = vld [vmem:[%s576 + $0x20] sm:$0xff]
        %v582 = vld [vmem:[%s576 + $0x28] sm:$0xff]
        %v583 = vld [vmem:[%s576 + $0x30] sm:$0xf]
        %v584 = vld [vmem:[%s576 + $0x38] sm:$0xf]
        %v586 = vsel %vm554, %v572, 0
        %v589 = vsel %vm554, %v573, 0
        %v592 = vsel %vm554, %v574, 0
        %v595 = vsel %vm554, %v575, 0
        %vm597 = vcmask 1043456
        %v599 = vsel %vm597, %v583, 0
        %v602 = vsel %vm597, %v584, 0
        %604 = vmatprep.subr.mxu0 0.0
        %605 = vmatpush1.msra.mxu0 0.0
        %606 = vmatprep.subr.mxu0 0.0
        %607 = vmatpush1.msra.mxu0 0.0
        %608 = vmatprep.subr.mxu0 0.0
        %609 = vmatpush1.msra.mxu0 0.0
        %610 = vmatprep.subr.mxu0 0.0
        %611 = vmatpush1.msra.mxu0 0.0
        %612 = vmatprep.subr.mxu0 0.0
        %613 = vmatpush1.msra.mxu0 0.0
        %614 = vmatprep.subr.mxu0 0.0
        %615 = vmatpush1.msra.mxu0 0.0
        %616 = vmatprep.subr.mxu0 0.0
        %617 = vmatpush1.msra.mxu0 0.0
        %618 = vmatprep.subr.mxu0 0.0
        %619 = vmatpush1.msra.mxu0 0.0
        %620 = vmatprep.subr.mxu0 0.0
        %621 = vmatpush1.msra.mxu0 0.0
        %622 = vmatprep.subr.mxu0 0.0
        %623 = vmatpush1.msra.mxu0 0.0
        %624 = vmatprep.subr.mxu0 0.0
        %625 = vmatpush1.msra.mxu0 0.0
        %626 = vmatprep.subr.mxu0 0.0
        %627 = vmatpush1.msra.mxu0 0.0
        %628 = vmatprep.subr.mxu0 %v602
        %629 = vmatpush1.msra.mxu0 %v599
        %630 = vmatprep.subr.mxu0 %v582
        %631 = vmatpush1.msra.mxu0 %v581
        %632 = vmatprep.subr.mxu0 %v580
        %633 = vmatpush1.msra.mxu0 %v579
        %634 = vmatprep.subr.mxu0 %v578
        %635 = vmatpush1.msra.mxu0 %v577
        %636 = vmatprep.subr.mxu0 0.0
        %637 = vmatpush2.msra.mxu0 0.0
        %638 = vmatprep.subr.mxu0 0.0
        %639 = vmatpush2.msra.mxu0 0.0
        %640 = vmatprep.subr.mxu0 0.0
        %641 = vmatpush2.msra.mxu0 0.0
        %642 = vmatprep.subr.mxu0 0.0
        %643 = vmatpush2.msra.mxu0 0.0
        %644 = vmatprep.subr.mxu0 0.0
        %645 = vmatpush2.msra.mxu0 0.0
        %646 = vmatprep.subr.mxu0 0.0
        %647 = vmatpush2.msra.mxu0 0.0
        %648 = vmatprep.subr.mxu0 0.0
        %649 = vmatpush2.msra.mxu0 0.0
        %650 = vmatprep.subr.mxu0 0.0
        %651 = vmatpush2.msra.mxu0 0.0
        %652 = vmatprep.subr.mxu0 0.0
        %653 = vmatpush2.msra.mxu0 0.0
        %654 = vmatprep.subr.mxu0 0.0
        %655 = vmatpush2.msra.mxu0 0.0
        %656 = vmatprep.subr.mxu0 0.0
        %657 = vmatpush2.msra.mxu0 0.0
        %658 = vmatprep.subr.mxu0 0.0
        %659 = vmatpush2.msra.mxu0 0.0
        %660 = vmatprep.subr.mxu0 0.0
        %661 = vmatpush2.msra.mxu0 0.0
        %662 = vmatprep.subr.mxu0 0.0
        %663 = vmatpush2.msra.mxu0 0.0
        %664 = vmatprep.subr.mxu0 0.0
        %665 = vmatpush2.msra.mxu0 0.0
        %666 = vmatprep.subr.mxu0 0.0
        %667 = vmatpush2.msra.mxu0 0.0
        %668 = vmatprep.mubr.f32.mxu0 0.0
        %669 = vmatmul.mubr.f32.gmra.mxu0 %v586
        %v670 = vpop.f32.mrf.mxu0
        %v671 = vadd.f32 0.0, %v670
        %v672 = vpop.f32.mrf.mxu0
        %v673 = vadd.f32 0.0, %v672
        %674 = vmatprep.mubr.f32.mxu0 0.0
        %675 = vmatmul.mubr.f32.gmra.mxu0 %v589
        %v676 = vpop.f32.mrf.mxu0
        %v677 = vadd.f32 0.0, %v676
        %v678 = vpop.f32.mrf.mxu0
        %v679 = vadd.f32 0.0, %v678
        %680 = vmatprep.mubr.f32.mxu0 0.0
        %681 = vmatmul.mubr.f32.gmra.mxu0 %v592
        %v682 = vpop.f32.mrf.mxu0
        %v683 = vadd.f32 0.0, %v682
        %v684 = vpop.f32.mrf.mxu0
        %v685 = vadd.f32 0.0, %v684
        %686 = vmatprep.mubr.f32.mxu0 0.0
        %687 = vmatmul.mubr.f32.gmra.mxu0 %v595
        %v688 = vpop.f32.mrf.mxu0
        %v689 = vadd.f32 0.0, %v688
        %v690 = vpop.f32.mrf.mxu0
        %v691 = vadd.f32 0.0, %v690
        %692 = vdwg.mxu0
        %v694 = vsel %vm554, %v560, 0
        %v697 = vsel %vm554, %v561, 0
        %v700 = vsel %vm554, %v562, 0
        %v703 = vsel %vm554, %v563, 0
        %v706 = vsel %vm597, %v570, 0
        %v709 = vsel %vm597, %v571, 0
        %711 = vmatprep.subr.mxu0 0.0
        %712 = vmatpush1.msra.mxu0 0.0
        %713 = vmatprep.subr.mxu0 0.0
        %714 = vmatpush1.msra.mxu0 0.0
        %715 = vmatprep.subr.mxu0 0.0
        %716 = vmatpush1.msra.mxu0 0.0
        %717 = vmatprep.subr.mxu0 0.0
        %718 = vmatpush1.msra.mxu0 0.0
        %719 = vmatprep.subr.mxu0 0.0
        %720 = vmatpush1.msra.mxu0 0.0
        %721 = vmatprep.subr.mxu0 0.0
        %722 = vmatpush1.msra.mxu0 0.0
        %723 = vmatprep.subr.mxu0 0.0
        %724 = vmatpush1.msra.mxu0 0.0
        %725 = vmatprep.subr.mxu0 0.0
        %726 = vmatpush1.msra.mxu0 0.0
        %727 = vmatprep.subr.mxu0 0.0
        %728 = vmatpush1.msra.mxu0 0.0
        %729 = vmatprep.subr.mxu0 0.0
        %730 = vmatpush1.msra.mxu0 0.0
        %731 = vmatprep.subr.mxu0 0.0
        %732 = vmatpush1.msra.mxu0 0.0
        %733 = vmatprep.subr.mxu0 0.0
        %734 = vmatpush1.msra.mxu0 0.0
        %735 = vmatprep.subr.mxu0 %v709
        %736 = vmatpush1.msra.mxu0 %v706
        %737 = vmatprep.subr.mxu0 %v569
        %738 = vmatpush1.msra.mxu0 %v568
        %739 = vmatprep.subr.mxu0 %v567
        %740 = vmatpush1.msra.mxu0 %v566
        %741 = vmatprep.subr.mxu0 %v565
        %742 = vmatpush1.msra.mxu0 %v564
        %743 = vmatprep.subr.mxu0 0.0
        %744 = vmatpush2.msra.mxu0 0.0
        %745 = vmatprep.subr.mxu0 0.0
        %746 = vmatpush2.msra.mxu0 0.0
        %747 = vmatprep.subr.mxu0 0.0
        %748 = vmatpush2.msra.mxu0 0.0
        %749 = vmatprep.subr.mxu0 0.0
        %750 = vmatpush2.msra.mxu0 0.0
        %751 = vmatprep.subr.mxu0 0.0
        %752 = vmatpush2.msra.mxu0 0.0
        %753 = vmatprep.subr.mxu0 0.0
        %754 = vmatpush2.msra.mxu0 0.0
        %755 = vmatprep.subr.mxu0 0.0
        %756 = vmatpush2.msra.mxu0 0.0
        %757 = vmatprep.subr.mxu0 0.0
        %758 = vmatpush2.msra.mxu0 0.0
        %759 = vmatprep.subr.mxu0 0.0
        %760 = vmatpush2.msra.mxu0 0.0
        %761 = vmatprep.subr.mxu0 0.0
        %762 = vmatpush2.msra.mxu0 0.0
        %763 = vmatprep.subr.mxu0 0.0
        %764 = vmatpush2.msra.mxu0 0.0
        %765 = vmatprep.subr.mxu0 0.0
        %766 = vmatpush2.msra.mxu0 0.0
        %767 = vmatprep.subr.mxu0 0.0
        %768 = vmatpush2.msra.mxu0 0.0
        %769 = vmatprep.subr.mxu0 0.0
        %770 = vmatpush2.msra.mxu0 0.0
        %771 = vmatprep.subr.mxu0 0.0
        %772 = vmatpush2.msra.mxu0 0.0
        %773 = vmatprep.subr.mxu0 0.0
        %774 = vmatpush2.msra.mxu0 0.0
        %775 = vmatprep.mubr.f32.mxu0 0.0
        %776 = vmatmul.mubr.f32.gmra.mxu0 %v694
        %v777 = vpop.f32.mrf.mxu0
        %v778 = vadd.f32 %v671, %v777
        %v779 = vpop.f32.mrf.mxu0
        %v780 = vadd.f32 %v673, %v779
        %781 = vmatprep.mubr.f32.mxu0 0.0
        %782 = vmatmul.mubr.f32.gmra.mxu0 %v697
        %v783 = vpop.f32.mrf.mxu0
        %v784 = vadd.f32 %v677, %v783
        %v785 = vpop.f32.mrf.mxu0
        %v786 = vadd.f32 %v679, %v785
        %787 = vmatprep.mubr.f32.mxu0 0.0
        %788 = vmatmul.mubr.f32.gmra.mxu0 %v700
        %v789 = vpop.f32.mrf.mxu0
        %v790 = vadd.f32 %v683, %v789
        %v791 = vpop.f32.mrf.mxu0
        %v792 = vadd.f32 %v685, %v791
        %793 = vmatprep.mubr.f32.mxu0 0.0
        %794 = vmatmul.mubr.f32.gmra.mxu0 %v703
        %v795 = vpop.f32.mrf.mxu0
        %v796 = vadd.f32 %v689, %v795
        %v797 = vpop.f32.mrf.mxu0
        %v798 = vadd.f32 %v691, %v797
        %799 = vdwg.mxu0
        %v800 = vld [vmem:[#allocation2 + $0x2] sm:$0xff]
        %v801 = vld [vmem:[#allocation2 + $0xa] sm:$0xff]
        %v802 = vld [vmem:[#allocation2 + $0x12] sm:$0xff]
        %v803 = vld [vmem:[#allocation2 + $0x1a] sm:$0xf]
        %s804 = scalar_lea.vmem [#allocation6], 128
        %v805 = vld [vmem:[%s804] sm:$0xff]
        %v806 = vld [vmem:[%s804 + $0x8] sm:$0xff]
        %v807 = vld [vmem:[%s804 + $0x10] sm:$0xff]
        %v808 = vld [vmem:[%s804 + $0x18] sm:$0xff]
        %v809 = vld [vmem:[%s804 + $0x20] sm:$0xff]
        %v810 = vld [vmem:[%s804 + $0x28] sm:$0xff]
        %v811 = vld [vmem:[%s804 + $0x30] sm:$0xf]
        %v812 = vld [vmem:[%s804 + $0x38] sm:$0xf]
        %v814 = vsel %vm554, %v800, 0
        %v817 = vsel %vm554, %v801, 0
        %v820 = vsel %vm554, %v802, 0
        %v823 = vsel %vm554, %v803, 0
        %v826 = vsel %vm597, %v811, 0
        %v829 = vsel %vm597, %v812, 0
        %831 = vmatprep.subr.mxu0 0.0
        %832 = vmatpush1.msra.mxu0 0.0
        %833 = vmatprep.subr.mxu0 0.0
        %834 = vmatpush1.msra.mxu0 0.0
        %835 = vmatprep.subr.mxu0 0.0
        %836 = vmatpush1.msra.mxu0 0.0
        %837 = vmatprep.subr.mxu0 0.0
        %838 = vmatpush1.msra.mxu0 0.0
        %839 = vmatprep.subr.mxu0 0.0
        %840 = vmatpush1.msra.mxu0 0.0
        %841 = vmatprep.subr.mxu0 0.0
        %842 = vmatpush1.msra.mxu0 0.0
        %843 = vmatprep.subr.mxu0 0.0
        %844 = vmatpush1.msra.mxu0 0.0
        %845 = vmatprep.subr.mxu0 0.0
        %846 = vmatpush1.msra.mxu0 0.0
        %847 = vmatprep.subr.mxu0 0.0
        %848 = vmatpush1.msra.mxu0 0.0
        %849 = vmatprep.subr.mxu0 0.0
        %850 = vmatpush1.msra.mxu0 0.0
        %851 = vmatprep.subr.mxu0 0.0
        %852 = vmatpush1.msra.mxu0 0.0
        %853 = vmatprep.subr.mxu0 0.0
        %854 = vmatpush1.msra.mxu0 0.0
        %855 = vmatprep.subr.mxu0 %v829
        %856 = vmatpush1.msra.mxu0 %v826
        %857 = vmatprep.subr.mxu0 %v810
        %858 = vmatpush1.msra.mxu0 %v809
        %859 = vmatprep.subr.mxu0 %v808
        %860 = vmatpush1.msra.mxu0 %v807
        %861 = vmatprep.subr.mxu0 %v806
        %862 = vmatpush1.msra.mxu0 %v805
        %863 = vmatprep.subr.mxu0 0.0
        %864 = vmatpush2.msra.mxu0 0.0
        %865 = vmatprep.subr.mxu0 0.0
        %866 = vmatpush2.msra.mxu0 0.0
        %867 = vmatprep.subr.mxu0 0.0
        %868 = vmatpush2.msra.mxu0 0.0
        %869 = vmatprep.subr.mxu0 0.0
        %870 = vmatpush2.msra.mxu0 0.0
        %871 = vmatprep.subr.mxu0 0.0
        %872 = vmatpush2.msra.mxu0 0.0
        %873 = vmatprep.subr.mxu0 0.0
        %874 = vmatpush2.msra.mxu0 0.0
        %875 = vmatprep.subr.mxu0 0.0
        %876 = vmatpush2.msra.mxu0 0.0
        %877 = vmatprep.subr.mxu0 0.0
        %878 = vmatpush2.msra.mxu0 0.0
        %879 = vmatprep.subr.mxu0 0.0
        %880 = vmatpush2.msra.mxu0 0.0
        %881 = vmatprep.subr.mxu0 0.0
        %882 = vmatpush2.msra.mxu0 0.0
        %883 = vmatprep.subr.mxu0 0.0
        %884 = vmatpush2.msra.mxu0 0.0
        %885 = vmatprep.subr.mxu0 0.0
        %886 = vmatpush2.msra.mxu0 0.0
        %887 = vmatprep.subr.mxu0 0.0
        %888 = vmatpush2.msra.mxu0 0.0
        %889 = vmatprep.subr.mxu0 0.0
        %890 = vmatpush2.msra.mxu0 0.0
        %891 = vmatprep.subr.mxu0 0.0
        %892 = vmatpush2.msra.mxu0 0.0
        %893 = vmatprep.subr.mxu0 0.0
        %894 = vmatpush2.msra.mxu0 0.0
        %895 = vmatprep.mubr.f32.mxu0 0.0
        %896 = vmatmul.mubr.f32.gmra.mxu0 %v814
        %v897 = vpop.f32.mrf.mxu0
        %v898 = vadd.f32 0.0, %v897
        %v899 = vpop.f32.mrf.mxu0
        %v900 = vadd.f32 0.0, %v899
        %901 = vmatprep.mubr.f32.mxu0 0.0
        %902 = vmatmul.mubr.f32.gmra.mxu0 %v817
        %v903 = vpop.f32.mrf.mxu0
        %v904 = vadd.f32 0.0, %v903
        %v905 = vpop.f32.mrf.mxu0
        %v906 = vadd.f32 0.0, %v905
        %907 = vmatprep.mubr.f32.mxu0 0.0
        %908 = vmatmul.mubr.f32.gmra.mxu0 %v820
        %v909 = vpop.f32.mrf.mxu0
        %v910 = vadd.f32 0.0, %v909
        %v911 = vpop.f32.mrf.mxu0
        %v912 = vadd.f32 0.0, %v911
        %913 = vmatprep.mubr.f32.mxu0 0.0
        %914 = vmatmul.mubr.f32.gmra.mxu0 %v823
        %v915 = vpop.f32.mrf.mxu0
        %v916 = vadd.f32 0.0, %v915
        %v917 = vpop.f32.mrf.mxu0
        %v918 = vadd.f32 0.0, %v917
        %919 = vdwg.mxu0
        %v920 = vadd.f32 %v778, %v898
        %v921 = vadd.f32 %v780, %v900
        %v922 = vadd.f32 %v784, %v904
        %v923 = vadd.f32 %v786, %v906
        %v924 = vadd.f32 %v790, %v910
        %v925 = vadd.f32 %v792, %v912
        %v926 = vadd.f32 %v796, %v916
        %v927 = vadd.f32 %v798, %v918
        %v928 = vld [vmem:[#allocation12] sm:$0x3]
        %v930 = vlaneseq
        %v931 = vshrl.u32 %v930, 7
        %v932 = vsub.s32 0, %v931
        %v933 = vrot.slane %v928, %v932
        %v934 = vlaneseq
        %v935 = vshrl.u32 %v934, 7
        %v936 = vsub.s32 1, %v935
        %v937 = vrot.slane %v928, %v936
        %v940 = vadd.f32 %v920, %v933
        %v941 = vadd.f32 %v921, %v937
        %v942 = vadd.f32 %v922, %v933
        %v943 = vadd.f32 %v923, %v937
        %v944 = vadd.f32 %v924, %v933
        %v945 = vadd.f32 %v925, %v937
        %v946 = vadd.f32 %v926, %v933
        %v947 = vadd.f32 %v927, %v937
        %v948 = vmax.f32 %v940, 0.0
        %v949 = vmax.f32 %v941, 0.0
        %v950 = vmax.f32 %v942, 0.0
        %v951 = vmax.f32 %v943, 0.0
        %v952 = vmax.f32 %v944, 0.0
        %v953 = vmax.f32 %v945, 0.0
        %v954 = vmax.f32 %v946, 0.0
        %v955 = vmax.f32 %v947, 0.0
        %v956 = vlaneseq
        %vm957 = vcmp.ge.s32.totalorder %v956, 0
        %vm958 = vcmp.lt.s32.totalorder %v956, 224
        %vm959 = vmand %vm957, %vm958
        %960 = vst.msk [vmem:[#allocation3] ss:$8 sm:$0x3] %vm959, 0.0
        %961 = vst.msk [vmem:[#allocation3] ss:$8 sm:$0x0] %vm959, 0.0
        %s962 = scalar_lea.vmem [#allocation3], 53
        %963 = vst.msk [vmem:[%s962] ss:$8 sm:$0x3] %vm959, 0.0
        %964 = vst.msk [vmem:[%s962] ss:$8 sm:$0x0] %vm959, 0.0
        %vm973 = vcmask 1040384
        %v974 = vrot.slane %v948, 7
        %v975 = vrot.slane %v949, 7
        %v976 = vrot.slane %v950, 7
        %v977 = vsel %vm973, %v974, %v976
        %v978 = vrot.slane %v951, 7
        %v979 = vsel %vm973, %v975, %v978
        %v980 = vrot.slane %v952, 7
        %v981 = vsel %vm973, %v976, %v980
        %v982 = vrot.slane %v953, 7
        %v983 = vsel %vm973, %v978, %v982
        %v984 = vrot.slane %v954, 7
        %v985 = vsel %vm973, %v980, %v984
        %v986 = vrot.slane %v955, 7
        %v987 = vsel %vm973, %v982, %v986
        %996 = vst [vmem:[#allocation3] sm:$0xfe] %v974
        %vm997 = vcmask 785409
        %998 = vst.msk [vmem:[#allocation3 + $0x8] sm:$0xfe] %vm997, %v975
        %999 = vst [vmem:[#allocation3 + $0x10] sm:$0xff] %v977
        %vm1000 = vcmask 785408
        %1001 = vst.msk [vmem:[#allocation3 + $0x18] sm:$0xff] %vm1000, %v979
        %1002 = vst [vmem:[#allocation3 + $0x20] sm:$0xff] %v981
        %1003 = vst.msk [vmem:[#allocation3 + $0x28] sm:$0xff] %vm1000, %v983
        %1004 = vst [vmem:[#allocation3 + $0x30] sm:$0x1f] %v985
        %vm1005 = vcmask 782336
        %1006 = vst.msk [vmem:[#allocation3 + $0x38] sm:$0x1f] %vm1005, %v987
        %v1007 = vld [vmem:[#allocation3] sm:$0xff]
        %v1008 = vld [vmem:[#allocation3 + $0x8] sm:$0xff]
        %v1009 = vld [vmem:[#allocation3 + $0x10] sm:$0xff]
        %v1010 = vld [vmem:[#allocation3 + $0x18] sm:$0xff]
        %v1011 = vld [vmem:[#allocation3 + $0x20] sm:$0xff]
        %v1012 = vld [vmem:[#allocation3 + $0x28] sm:$0xff]
        %v1013 = vld [vmem:[#allocation3 + $0x30] sm:$0xf]
        %v1014 = vld [vmem:[#allocation3 + $0x38] sm:$0xf]
        %v1015 = vld [vmem:[#allocation9] sm:$0xff]
        %v1016 = vld [vmem:[#allocation9 + $0x8] sm:$0xff]
        %v1017 = vld [vmem:[#allocation9 + $0x10] sm:$0xff]
        %v1018 = vld [vmem:[#allocation9 + $0x18] sm:$0xff]
        %v1019 = vld [vmem:[#allocation9 + $0x20] sm:$0xff]
        %v1020 = vld [vmem:[#allocation9 + $0x28] sm:$0xff]
        %v1021 = vld [vmem:[#allocation9 + $0x30] sm:$0xff]
        %v1022 = vld [vmem:[#allocation9 + $0x38] sm:$0xff]
        %v1023 = vld [vmem:[#allocation9 + $0x40] sm:$0xff]
        %v1024 = vld [vmem:[#allocation9 + $0x48] sm:$0xff]
        %v1025 = vld [vmem:[#allocation9 + $0x50] sm:$0xff]
        %v1026 = vld [vmem:[#allocation9 + $0x58] sm:$0xff]
        %v1027 = vld [vmem:[#allocation9 + $0x60] sm:$0xff]
        %v1028 = vld [vmem:[#allocation9 + $0x68] sm:$0xff]
        %v1029 = vld [vmem:[#allocation9 + $0x70] sm:$0xff]
        %v1030 = vld [vmem:[#allocation9 + $0x78] sm:$0xff]
        %v1031 = vld [vmem:[#allocation9 + $0x80] sm:$0xff]
        %v1032 = vld [vmem:[#allocation9 + $0x88] sm:$0xff]
        %v1033 = vld [vmem:[#allocation9 + $0x90] sm:$0xff]
        %v1034 = vld [vmem:[#allocation9 + $0x98] sm:$0xff]
        %v1035 = vld [vmem:[#allocation9 + $0xa0] sm:$0xff]
        %v1036 = vld [vmem:[#allocation9 + $0xa8] sm:$0xff]
        %v1037 = vld [vmem:[#allocation9 + $0xb0] sm:$0xff]
        %v1038 = vld [vmem:[#allocation9 + $0xb8] sm:$0xff]
        %v1039 = vld [vmem:[#allocation9 + $0xc0] sm:$0xff]
        %v1040 = vld [vmem:[#allocation9 + $0xc8] sm:$0xff]
        %v1041 = vld [vmem:[#allocation9 + $0xd0] sm:$0xff]
        %v1042 = vld [vmem:[#allocation9 + $0xd8] sm:$0xff]
        %v1043 = vld [vmem:[#allocation9 + $0xe0] sm:$0xff]
        %v1044 = vld [vmem:[#allocation9 + $0xe8] sm:$0xff]
        %v1045 = vld [vmem:[#allocation9 + $0xf0] sm:$0xff]
        %v1046 = vld [vmem:[#allocation9 + $0xf8] sm:$0xff]
        %v1047 = vld [vmem:[#allocation9 + $0x100] sm:$0xff]
        %v1048 = vld [vmem:[#allocation9 + $0x108] sm:$0xff]
        %v1049 = vld [vmem:[#allocation9 + $0x110] sm:$0xff]
        %v1050 = vld [vmem:[#allocation9 + $0x118] sm:$0xff]
        %v1051 = vld [vmem:[#allocation9 + $0x120] sm:$0xff]
        %v1052 = vld [vmem:[#allocation9 + $0x128] sm:$0xff]
        %v1053 = vld [vmem:[#allocation9 + $0x130] sm:$0xff]
        %v1054 = vld [vmem:[#allocation9 + $0x138] sm:$0xff]
        %v1055 = vld [vmem:[#allocation9 + $0x140] sm:$0xff]
        %v1056 = vld [vmem:[#allocation9 + $0x148] sm:$0xff]
        %v1057 = vld [vmem:[#allocation9 + $0x150] sm:$0xff]
        %v1058 = vld [vmem:[#allocation9 + $0x158] sm:$0xff]
        %v1059 = vld [vmem:[#allocation9 + $0x160] sm:$0xff]
        %v1060 = vld [vmem:[#allocation9 + $0x168] sm:$0xff]
        %v1061 = vld [vmem:[#allocation9 + $0x170] sm:$0xff]
        %v1062 = vld [vmem:[#allocation9 + $0x178] sm:$0xff]
        %v1063 = vld [vmem:[#allocation9 + $0x180] sm:$0xff]
        %v1064 = vld [vmem:[#allocation9 + $0x188] sm:$0xff]
        %v1065 = vld [vmem:[#allocation9 + $0x190] sm:$0xff]
        %v1066 = vld [vmem:[#allocation9 + $0x198] sm:$0xff]
        %v1067 = vld [vmem:[#allocation9 + $0x1a0] sm:$0xff]
        %v1068 = vld [vmem:[#allocation9 + $0x1a8] sm:$0xff]
        %v1069 = vld [vmem:[#allocation9 + $0x1b0] sm:$0xff]
        %v1070 = vld [vmem:[#allocation9 + $0x1b8] sm:$0xff]
        %v1071 = vld [vmem:[#allocation9 + $0x1c0] sm:$0xff]
        %v1072 = vld [vmem:[#allocation9 + $0x1c8] sm:$0xff]
        %v1073 = vld [vmem:[#allocation9 + $0x1d0] sm:$0xff]
        %v1074 = vld [vmem:[#allocation9 + $0x1d8] sm:$0xff]
        %v1075 = vld [vmem:[#allocation9 + $0x1e0] sm:$0xff]
        %v1076 = vld [vmem:[#allocation9 + $0x1e8] sm:$0xff]
        %v1077 = vld [vmem:[#allocation9 + $0x1f0] sm:$0xff]
        %v1078 = vld [vmem:[#allocation9 + $0x1f8] sm:$0xff]
        %v1079 = vld [vmem:[#allocation9 + $0x200] sm:$0xff]
        %v1080 = vld [vmem:[#allocation9 + $0x208] sm:$0xff]
        %v1081 = vld [vmem:[#allocation9 + $0x210] sm:$0xff]
        %v1082 = vld [vmem:[#allocation9 + $0x218] sm:$0xff]
        %v1083 = vld [vmem:[#allocation9 + $0x220] sm:$0xff]
        %v1084 = vld [vmem:[#allocation9 + $0x228] sm:$0xff]
        %v1085 = vld [vmem:[#allocation9 + $0x230] sm:$0xff]
        %v1086 = vld [vmem:[#allocation9 + $0x238] sm:$0xff]
        %v1087 = vld [vmem:[#allocation9 + $0x240] sm:$0xff]
        %v1088 = vld [vmem:[#allocation9 + $0x248] sm:$0xff]
        %v1089 = vld [vmem:[#allocation9 + $0x250] sm:$0xff]
        %v1090 = vld [vmem:[#allocation9 + $0x258] sm:$0xff]
        %v1091 = vld [vmem:[#allocation9 + $0x260] sm:$0xff]
        %v1092 = vld [vmem:[#allocation9 + $0x268] sm:$0xff]
        %v1093 = vld [vmem:[#allocation9 + $0x270] sm:$0xff]
        %v1094 = vld [vmem:[#allocation9 + $0x278] sm:$0xff]
        %v1095 = vld [vmem:[#allocation9 + $0x280] sm:$0xff]
        %v1096 = vld [vmem:[#allocation9 + $0x288] sm:$0xff]
        %v1097 = vld [vmem:[#allocation9 + $0x290] sm:$0xff]
        %v1098 = vld [vmem:[#allocation9 + $0x298] sm:$0xff]
        %v1099 = vld [vmem:[#allocation9 + $0x2a0] sm:$0xff]
        %v1100 = vld [vmem:[#allocation9 + $0x2a8] sm:$0xff]
        %v1101 = vld [vmem:[#allocation9 + $0x2b0] sm:$0xff]
        %v1102 = vld [vmem:[#allocation9 + $0x2b8] sm:$0xff]
        %v1103 = vld [vmem:[#allocation9 + $0x2c0] sm:$0xff]
        %v1104 = vld [vmem:[#allocation9 + $0x2c8] sm:$0xff]
        %v1105 = vld [vmem:[#allocation9 + $0x2d0] sm:$0xff]
        %v1106 = vld [vmem:[#allocation9 + $0x2d8] sm:$0xff]
        %v1107 = vld [vmem:[#allocation9 + $0x2e0] sm:$0xff]
        %v1108 = vld [vmem:[#allocation9 + $0x2e8] sm:$0xff]
        %v1109 = vld [vmem:[#allocation9 + $0x2f0] sm:$0xff]
        %v1110 = vld [vmem:[#allocation9 + $0x2f8] sm:$0xff]
        %v1111 = vld [vmem:[#allocation9 + $0x300] sm:$0xff]
        %v1112 = vld [vmem:[#allocation9 + $0x308] sm:$0xff]
        %v1113 = vld [vmem:[#allocation9 + $0x310] sm:$0xff]
        %v1114 = vld [vmem:[#allocation9 + $0x318] sm:$0xff]
        %v1115 = vld [vmem:[#allocation9 + $0x320] sm:$0xff]
        %v1116 = vld [vmem:[#allocation9 + $0x328] sm:$0xff]
        %v1117 = vld [vmem:[#allocation9 + $0x330] sm:$0xff]
        %v1118 = vld [vmem:[#allocation9 + $0x338] sm:$0xff]
        %v1119 = vld [vmem:[#allocation9 + $0x340] sm:$0xff]
        %v1120 = vld [vmem:[#allocation9 + $0x348] sm:$0xff]
        %v1121 = vld [vmem:[#allocation9 + $0x350] sm:$0xff]
        %v1122 = vld [vmem:[#allocation9 + $0x358] sm:$0xff]
        %v1123 = vld [vmem:[#allocation9 + $0x360] sm:$0xff]
        %v1124 = vld [vmem:[#allocation9 + $0x368] sm:$0xff]
        %v1125 = vld [vmem:[#allocation9 + $0x370] sm:$0xff]
        %v1126 = vld [vmem:[#allocation9 + $0x378] sm:$0xff]
        %v1127 = vld [vmem:[#allocation3] sm:$0xfe]
        %v1128 = vld [vmem:[#allocation3 + $0x8] sm:$0xfe]
        %v1129 = vld [vmem:[#allocation3 + $0x30] sm:$0x1f]
        %v1130 = vld [vmem:[#allocation3 + $0x38] sm:$0x1f]
        %s1131 = scalar_lea.vmem [#allocation9], 896
        %v1132 = vld [vmem:[%s1131] sm:$0xff]
        %v1133 = vld [vmem:[%s1131 + $0x8] sm:$0xff]
        %v1134 = vld [vmem:[%s1131 + $0x10] sm:$0xff]
        %v1135 = vld [vmem:[%s1131 + $0x18] sm:$0xff]
        %v1136 = vld [vmem:[%s1131 + $0x20] sm:$0xff]
        %v1137 = vld [vmem:[%s1131 + $0x28] sm:$0xff]
        %v1138 = vld [vmem:[%s1131 + $0x30] sm:$0xff]
        %v1139 = vld [vmem:[%s1131 + $0x38] sm:$0xff]
        %v1140 = vld [vmem:[%s1131 + $0x40] sm:$0xff]
        %v1141 = vld [vmem:[%s1131 + $0x48] sm:$0xff]
        %v1142 = vld [vmem:[%s1131 + $0x50] sm:$0xff]
        %v1143 = vld [vmem:[%s1131 + $0x58] sm:$0xff]
        %v1144 = vld [vmem:[%s1131 + $0x60] sm:$0xff]
        %v1145 = vld [vmem:[%s1131 + $0x68] sm:$0xff]
        %v1146 = vld [vmem:[%s1131 + $0x70] sm:$0xff]
        %v1147 = vld [vmem:[%s1131 + $0x78] sm:$0xff]
        %v1148 = vld [vmem:[%s1131 + $0x80] sm:$0xff]
        %v1149 = vld [vmem:[%s1131 + $0x88] sm:$0xff]
        %v1150 = vld [vmem:[%s1131 + $0x90] sm:$0xff]
        %v1151 = vld [vmem:[%s1131 + $0x98] sm:$0xff]
        %v1152 = vld [vmem:[%s1131 + $0xa0] sm:$0xff]
        %v1153 = vld [vmem:[%s1131 + $0xa8] sm:$0xff]
        %v1154 = vld [vmem:[%s1131 + $0xb0] sm:$0xff]
        %v1155 = vld [vmem:[%s1131 + $0xb8] sm:$0xff]
        %v1156 = vld [vmem:[%s1131 + $0xc0] sm:$0xff]
        %v1157 = vld [vmem:[%s1131 + $0xc8] sm:$0xff]
        %v1158 = vld [vmem:[%s1131 + $0xd0] sm:$0xff]
        %v1159 = vld [vmem:[%s1131 + $0xd8] sm:$0xff]
        %v1160 = vld [vmem:[%s1131 + $0xe0] sm:$0xff]
        %v1161 = vld [vmem:[%s1131 + $0xe8] sm:$0xff]
        %v1162 = vld [vmem:[%s1131 + $0xf0] sm:$0xff]
        %v1163 = vld [vmem:[%s1131 + $0xf8] sm:$0xff]
        %v1164 = vld [vmem:[%s1131 + $0x100] sm:$0xff]
        %v1165 = vld [vmem:[%s1131 + $0x108] sm:$0xff]
        %v1166 = vld [vmem:[%s1131 + $0x110] sm:$0xff]
        %v1167 = vld [vmem:[%s1131 + $0x118] sm:$0xff]
        %v1168 = vld [vmem:[%s1131 + $0x120] sm:$0xff]
        %v1169 = vld [vmem:[%s1131 + $0x128] sm:$0xff]
        %v1170 = vld [vmem:[%s1131 + $0x130] sm:$0xff]
        %v1171 = vld [vmem:[%s1131 + $0x138] sm:$0xff]
        %v1172 = vld [vmem:[%s1131 + $0x140] sm:$0xff]
        %v1173 = vld [vmem:[%s1131 + $0x148] sm:$0xff]
        %v1174 = vld [vmem:[%s1131 + $0x150] sm:$0xff]
        %v1175 = vld [vmem:[%s1131 + $0x158] sm:$0xff]
        %v1176 = vld [vmem:[%s1131 + $0x160] sm:$0xff]
        %v1177 = vld [vmem:[%s1131 + $0x168] sm:$0xff]
        %v1178 = vld [vmem:[%s1131 + $0x170] sm:$0xff]
        %v1179 = vld [vmem:[%s1131 + $0x178] sm:$0xff]
        %v1180 = vld [vmem:[%s1131 + $0x180] sm:$0xff]
        %v1181 = vld [vmem:[%s1131 + $0x188] sm:$0xff]
        %v1182 = vld [vmem:[%s1131 + $0x190] sm:$0xff]
        %v1183 = vld [vmem:[%s1131 + $0x198] sm:$0xff]
        %v1184 = vld [vmem:[%s1131 + $0x1a0] sm:$0xff]
        %v1185 = vld [vmem:[%s1131 + $0x1a8] sm:$0xff]
        %v1186 = vld [vmem:[%s1131 + $0x1b0] sm:$0xff]
        %v1187 = vld [vmem:[%s1131 + $0x1b8] sm:$0xff]
        %v1188 = vld [vmem:[%s1131 + $0x1c0] sm:$0xff]
        %v1189 = vld [vmem:[%s1131 + $0x1c8] sm:$0xff]
        %v1190 = vld [vmem:[%s1131 + $0x1d0] sm:$0xff]
        %v1191 = vld [vmem:[%s1131 + $0x1d8] sm:$0xff]
        %v1192 = vld [vmem:[%s1131 + $0x1e0] sm:$0xff]
        %v1193 = vld [vmem:[%s1131 + $0x1e8] sm:$0xff]
        %v1194 = vld [vmem:[%s1131 + $0x1f0] sm:$0xff]
        %v1195 = vld [vmem:[%s1131 + $0x1f8] sm:$0xff]
        %v1196 = vld [vmem:[%s1131 + $0x200] sm:$0xff]
        %v1197 = vld [vmem:[%s1131 + $0x208] sm:$0xff]
        %v1198 = vld [vmem:[%s1131 + $0x210] sm:$0xff]
        %v1199 = vld [vmem:[%s1131 + $0x218] sm:$0xff]
        %v1200 = vld [vmem:[%s1131 + $0x220] sm:$0xff]
        %v1201 = vld [vmem:[%s1131 + $0x228] sm:$0xff]
        %v1202 = vld [vmem:[%s1131 + $0x230] sm:$0xff]
        %v1203 = vld [vmem:[%s1131 + $0x238] sm:$0xff]
        %v1204 = vld [vmem:[%s1131 + $0x240] sm:$0xff]
        %v1205 = vld [vmem:[%s1131 + $0x248] sm:$0xff]
        %v1206 = vld [vmem:[%s1131 + $0x250] sm:$0xff]
        %v1207 = vld [vmem:[%s1131 + $0x258] sm:$0xff]
        %v1208 = vld [vmem:[%s1131 + $0x260] sm:$0xff]
        %v1209 = vld [vmem:[%s1131 + $0x268] sm:$0xff]
        %v1210 = vld [vmem:[%s1131 + $0x270] sm:$0xff]
        %v1211 = vld [vmem:[%s1131 + $0x278] sm:$0xff]
        %v1212 = vld [vmem:[%s1131 + $0x280] sm:$0xff]
        %v1213 = vld [vmem:[%s1131 + $0x288] sm:$0xff]
        %v1214 = vld [vmem:[%s1131 + $0x290] sm:$0xff]
        %v1215 = vld [vmem:[%s1131 + $0x298] sm:$0xff]
        %v1216 = vld [vmem:[%s1131 + $0x2a0] sm:$0xff]
        %v1217 = vld [vmem:[%s1131 + $0x2a8] sm:$0xff]
        %v1218 = vld [vmem:[%s1131 + $0x2b0] sm:$0xff]
        %v1219 = vld [vmem:[%s1131 + $0x2b8] sm:$0xff]
        %v1220 = vld [vmem:[%s1131 + $0x2c0] sm:$0xff]
        %v1221 = vld [vmem:[%s1131 + $0x2c8] sm:$0xff]
        %v1222 = vld [vmem:[%s1131 + $0x2d0] sm:$0xff]
        %v1223 = vld [vmem:[%s1131 + $0x2d8] sm:$0xff]
        %v1224 = vld [vmem:[%s1131 + $0x2e0] sm:$0xff]
        %v1225 = vld [vmem:[%s1131 + $0x2e8] sm:$0xff]
        %v1226 = vld [vmem:[%s1131 + $0x2f0] sm:$0xff]
        %v1227 = vld [vmem:[%s1131 + $0x2f8] sm:$0xff]
        %v1228 = vld [vmem:[%s1131 + $0x300] sm:$0xff]
        %v1229 = vld [vmem:[%s1131 + $0x308] sm:$0xff]
        %v1230 = vld [vmem:[%s1131 + $0x310] sm:$0xff]
        %v1231 = vld [vmem:[%s1131 + $0x318] sm:$0xff]
        %v1232 = vld [vmem:[%s1131 + $0x320] sm:$0xff]
        %v1233 = vld [vmem:[%s1131 + $0x328] sm:$0xff]
        %v1234 = vld [vmem:[%s1131 + $0x330] sm:$0xff]
        %v1235 = vld [vmem:[%s1131 + $0x338] sm:$0xff]
        %v1236 = vld [vmem:[%s1131 + $0x340] sm:$0xff]
        %v1237 = vld [vmem:[%s1131 + $0x348] sm:$0xff]
        %v1238 = vld [vmem:[%s1131 + $0x350] sm:$0xff]
        %v1239 = vld [vmem:[%s1131 + $0x358] sm:$0xff]
        %v1240 = vld [vmem:[%s1131 + $0x360] sm:$0xff]
        %v1241 = vld [vmem:[%s1131 + $0x368] sm:$0xff]
        %v1242 = vld [vmem:[%s1131 + $0x370] sm:$0xff]
        %v1243 = vld [vmem:[%s1131 + $0x378] sm:$0xff]
        %vm1252 = vcmask 1046528
        %v1253 = vrot.slane %v1127, 1
        %v1254 = vrot.slane %v1009, 1
        %v1255 = vsel %vm1252, %v1253, %v1254
        %v1256 = vrot.slane %v1128, 1
        %v1257 = vrot.slane %v1010, 1
        %v1258 = vsel %vm1252, %v1256, %v1257
        %v1259 = vrot.slane %v1011, 1
        %v1260 = vsel %vm1252, %v1254, %v1259
        %v1261 = vrot.slane %v1012, 1
        %v1262 = vsel %vm1252, %v1257, %v1261
        %v1263 = vrot.slane %v1129, 1
        %v1264 = vsel %vm1252, %v1259, %v1263
        %v1265 = vrot.slane %v1130, 1
        %v1266 = vsel %vm1252, %v1261, %v1265
        %v1271 = vsel %vm1000, %v1258, 0
        %v1273 = vsel %vm1000, %v1262, 0
        %v1275 = vsel %vm1000, %v1266, 0
        %v1277 = vsel %vm1000, %v1265, 0
        %1279 = vmatprep.subr.mxu0 %v1193
        %1280 = vmatpush1.msra.mxu0 %v1192
        %1281 = vmatprep.subr.mxu0 %v1189
        %1282 = vmatpush1.msra.mxu0 %v1188
        %1283 = vmatprep.subr.mxu0 %v1185
        %1284 = vmatpush1.msra.mxu0 %v1184
        %1285 = vmatprep.subr.mxu0 %v1181
        %1286 = vmatpush1.msra.mxu0 %v1180
        %1287 = vmatprep.subr.mxu0 %v1177
        %1288 = vmatpush1.msra.mxu0 %v1176
        %1289 = vmatprep.subr.mxu0 %v1173
        %1290 = vmatpush1.msra.mxu0 %v1172
        %1291 = vmatprep.subr.mxu0 %v1169
        %1292 = vmatpush1.msra.mxu0 %v1168
        %1293 = vmatprep.subr.mxu0 %v1165
        %1294 = vmatpush1.msra.mxu0 %v1164
        %1295 = vmatprep.subr.mxu0 %v1161
        %1296 = vmatpush1.msra.mxu0 %v1160
        %1297 = vmatprep.subr.mxu0 %v1157
        %1298 = vmatpush1.msra.mxu0 %v1156
        %1299 = vmatprep.subr.mxu0 %v1153
        %1300 = vmatpush1.msra.mxu0 %v1152
        %1301 = vmatprep.subr.mxu0 %v1149
        %1302 = vmatpush1.msra.mxu0 %v1148
        %1303 = vmatprep.subr.mxu0 %v1145
        %1304 = vmatpush1.msra.mxu0 %v1144
        %1305 = vmatprep.subr.mxu0 %v1141
        %1306 = vmatpush1.msra.mxu0 %v1140
        %1307 = vmatprep.subr.mxu0 %v1137
        %1308 = vmatpush1.msra.mxu0 %v1136
        %1309 = vmatprep.subr.mxu0 %v1133
        %1310 = vmatpush1.msra.mxu0 %v1132
        %1311 = vmatprep.subr.mxu0 0.0
        %1312 = vmatpush2.msra.mxu0 0.0
        %1313 = vmatprep.subr.mxu0 0.0
        %1314 = vmatpush2.msra.mxu0 0.0
        %1315 = vmatprep.subr.mxu0 0.0
        %1316 = vmatpush2.msra.mxu0 0.0
        %1317 = vmatprep.subr.mxu0 0.0
        %1318 = vmatpush2.msra.mxu0 0.0
        %1319 = vmatprep.subr.mxu0 %v1241
        %1320 = vmatpush2.msra.mxu0 %v1240
        %1321 = vmatprep.subr.mxu0 %v1237
        %1322 = vmatpush2.msra.mxu0 %v1236
        %1323 = vmatprep.subr.mxu0 %v1233
        %1324 = vmatpush2.msra.mxu0 %v1232
        %1325 = vmatprep.subr.mxu0 %v1229
        %1326 = vmatpush2.msra.mxu0 %v1228
        %1327 = vmatprep.subr.mxu0 %v1225
        %1328 = vmatpush2.msra.mxu0 %v1224
        %1329 = vmatprep.subr.mxu0 %v1221
        %1330 = vmatpush2.msra.mxu0 %v1220
        %1331 = vmatprep.subr.mxu0 %v1217
        %1332 = vmatpush2.msra.mxu0 %v1216
        %1333 = vmatprep.subr.mxu0 %v1213
        %1334 = vmatpush2.msra.mxu0 %v1212
        %1335 = vmatprep.subr.mxu0 %v1209
        %1336 = vmatpush2.msra.mxu0 %v1208
        %1337 = vmatprep.subr.mxu0 %v1205
        %1338 = vmatpush2.msra.mxu0 %v1204
        %1339 = vmatprep.subr.mxu0 %v1201
        %1340 = vmatpush2.msra.mxu0 %v1200
        %1341 = vmatprep.subr.mxu0 %v1197
        %1342 = vmatpush2.msra.mxu0 %v1196
        %1343 = vmatprep.mubr.f32.mxu0 %v1271
        %1344 = vmatmul.mubr.f32.gmra.mxu0 %v1255
        %v1345 = vpop.f32.mrf.mxu0
        %v1346 = vadd.f32 0.0, %v1345
        %v1347 = vpop.f32.mrf.mxu0
        %v1348 = vadd.f32 0.0, %v1347
        %1349 = vmatprep.mubr.f32.mxu0 %v1273
        %1350 = vmatmul.mubr.f32.gmra.mxu0 %v1260
        %v1351 = vpop.f32.mrf.mxu0
        %v1352 = vadd.f32 0.0, %v1351
        %v1353 = vpop.f32.mrf.mxu0
        %v1354 = vadd.f32 0.0, %v1353
        %1355 = vmatprep.mubr.f32.mxu0 %v1275
        %1356 = vmatmul.mubr.f32.gmra.mxu0 %v1264
        %v1357 = vpop.f32.mrf.mxu0
        %v1358 = vadd.f32 0.0, %v1357
        %v1359 = vpop.f32.mrf.mxu0
        %v1360 = vadd.f32 0.0, %v1359
        %1361 = vmatprep.mubr.f32.mxu0 %v1277
        %1362 = vmatmul.mubr.f32.gmra.mxu0 %v1263
        %v1363 = vpop.f32.mrf.mxu0
        %v1364 = vadd.f32 0.0, %v1363
        %v1365 = vpop.f32.mrf.mxu0
        %v1366 = vadd.f32 0.0, %v1365
        %1367 = vdwg.mxu0
        %1368 = vmatprep.subr.mxu0 %v1195
        %1369 = vmatpush1.msra.mxu0 %v1194
        %1370 = vmatprep.subr.mxu0 %v1191
        %1371 = vmatpush1.msra.mxu0 %v1190
        %1372 = vmatprep.subr.mxu0 %v1187
        %1373 = vmatpush1.msra.mxu0 %v1186
        %1374 = vmatprep.subr.mxu0 %v1183
        %1375 = vmatpush1.msra.mxu0 %v1182
        %1376 = vmatprep.subr.mxu0 %v1179
        %1377 = vmatpush1.msra.mxu0 %v1178
        %1378 = vmatprep.subr.mxu0 %v1175
        %1379 = vmatpush1.msra.mxu0 %v1174
        %1380 = vmatprep.subr.mxu0 %v1171
        %1381 = vmatpush1.msra.mxu0 %v1170
        %1382 = vmatprep.subr.mxu0 %v1167
        %1383 = vmatpush1.msra.mxu0 %v1166
        %1384 = vmatprep.subr.mxu0 %v1163
        %1385 = vmatpush1.msra.mxu0 %v1162
        %1386 = vmatprep.subr.mxu0 %v1159
        %1387 = vmatpush1.msra.mxu0 %v1158
        %1388 = vmatprep.subr.mxu0 %v1155
        %1389 = vmatpush1.msra.mxu0 %v1154
        %1390 = vmatprep.subr.mxu0 %v1151
        %1391 = vmatpush1.msra.mxu0 %v1150
        %1392 = vmatprep.subr.mxu0 %v1147
        %1393 = vmatpush1.msra.mxu0 %v1146
        %1394 = vmatprep.subr.mxu0 %v1143
        %1395 = vmatpush1.msra.mxu0 %v1142
        %1396 = vmatprep.subr.mxu0 %v1139
        %1397 = vmatpush1.msra.mxu0 %v1138
        %1398 = vmatprep.subr.mxu0 %v1135
        %1399 = vmatpush1.msra.mxu0 %v1134
        %1400 = vmatprep.subr.mxu0 0.0
        %1401 = vmatpush2.msra.mxu0 0.0
        %1402 = vmatprep.subr.mxu0 0.0
        %1403 = vmatpush2.msra.mxu0 0.0
        %1404 = vmatprep.subr.mxu0 0.0
        %1405 = vmatpush2.msra.mxu0 0.0
        %1406 = vmatprep.subr.mxu0 0.0
        %1407 = vmatpush2.msra.mxu0 0.0
        %1408 = vmatprep.subr.mxu0 %v1243
        %1409 = vmatpush2.msra.mxu0 %v1242
        %1410 = vmatprep.subr.mxu0 %v1239
        %1411 = vmatpush2.msra.mxu0 %v1238
        %1412 = vmatprep.subr.mxu0 %v1235
        %1413 = vmatpush2.msra.mxu0 %v1234
        %1414 = vmatprep.subr.mxu0 %v1231
        %1415 = vmatpush2.msra.mxu0 %v1230
        %1416 = vmatprep.subr.mxu0 %v1227
        %1417 = vmatpush2.msra.mxu0 %v1226
        %1418 = vmatprep.subr.mxu0 %v1223
        %1419 = vmatpush2.msra.mxu0 %v1222
        %1420 = vmatprep.subr.mxu0 %v1219
        %1421 = vmatpush2.msra.mxu0 %v1218
        %1422 = vmatprep.subr.mxu0 %v1215
        %1423 = vmatpush2.msra.mxu0 %v1214
        %1424 = vmatprep.subr.mxu0 %v1211
        %1425 = vmatpush2.msra.mxu0 %v1210
        %1426 = vmatprep.subr.mxu0 %v1207
        %1427 = vmatpush2.msra.mxu0 %v1206
        %1428 = vmatprep.subr.mxu0 %v1203
        %1429 = vmatpush2.msra.mxu0 %v1202
        %1430 = vmatprep.subr.mxu0 %v1199
        %1431 = vmatpush2.msra.mxu0 %v1198
        %1432 = vmatprep.mubr.f32.mxu0 %v1271
        %1433 = vmatmul.mubr.f32.gmra.mxu0 %v1255
        %v1434 = vpop.f32.mrf.mxu0
        %v1435 = vadd.f32 0.0, %v1434
        %v1436 = vpop.f32.mrf.mxu0
        %v1437 = vadd.f32 0.0, %v1436
        %1438 = vmatprep.mubr.f32.mxu0 %v1273
        %1439 = vmatmul.mubr.f32.gmra.mxu0 %v1260
        %v1440 = vpop.f32.mrf.mxu0
        %v1441 = vadd.f32 0.0, %v1440
        %v1442 = vpop.f32.mrf.mxu0
        %v1443 = vadd.f32 0.0, %v1442
        %1444 = vmatprep.mubr.f32.mxu0 %v1275
        %1445 = vmatmul.mubr.f32.gmra.mxu0 %v1264
        %v1446 = vpop.f32.mrf.mxu0
        %v1447 = vadd.f32 0.0, %v1446
        %v1448 = vpop.f32.mrf.mxu0
        %v1449 = vadd.f32 0.0, %v1448
        %1450 = vmatprep.mubr.f32.mxu0 %v1277
        %1451 = vmatmul.mubr.f32.gmra.mxu0 %v1263
        %v1452 = vpop.f32.mrf.mxu0
        %v1453 = vadd.f32 0.0, %v1452
        %v1454 = vpop.f32.mrf.mxu0
        %v1455 = vadd.f32 0.0, %v1454
        %1456 = vdwg.mxu0
        %v1458 = vsel %vm1000, %v1008, 0
        %v1460 = vsel %vm1000, %v1010, 0
        %v1462 = vsel %vm1000, %v1012, 0
        %v1465 = vsel %vm1000, %v1014, 0
        %1467 = vmatprep.subr.mxu0 %v1076
        %1468 = vmatpush1.msra.mxu0 %v1075
        %1469 = vmatprep.subr.mxu0 %v1072
        %1470 = vmatpush1.msra.mxu0 %v1071
        %1471 = vmatprep.subr.mxu0 %v1068
        %1472 = vmatpush1.msra.mxu0 %v1067
        %1473 = vmatprep.subr.mxu0 %v1064
        %1474 = vmatpush1.msra.mxu0 %v1063
        %1475 = vmatprep.subr.mxu0 %v1060
        %1476 = vmatpush1.msra.mxu0 %v1059
        %1477 = vmatprep.subr.mxu0 %v1056
        %1478 = vmatpush1.msra.mxu0 %v1055
        %1479 = vmatprep.subr.mxu0 %v1052
        %1480 = vmatpush1.msra.mxu0 %v1051
        %1481 = vmatprep.subr.mxu0 %v1048
        %1482 = vmatpush1.msra.mxu0 %v1047
        %1483 = vmatprep.subr.mxu0 %v1044
        %1484 = vmatpush1.msra.mxu0 %v1043
        %1485 = vmatprep.subr.mxu0 %v1040
        %1486 = vmatpush1.msra.mxu0 %v1039
        %1487 = vmatprep.subr.mxu0 %v1036
        %1488 = vmatpush1.msra.mxu0 %v1035
        %1489 = vmatprep.subr.mxu0 %v1032
        %1490 = vmatpush1.msra.mxu0 %v1031
        %1491 = vmatprep.subr.mxu0 %v1028
        %1492 = vmatpush1.msra.mxu0 %v1027
        %1493 = vmatprep.subr.mxu0 %v1024
        %1494 = vmatpush1.msra.mxu0 %v1023
        %1495 = vmatprep.subr.mxu0 %v1020
        %1496 = vmatpush1.msra.mxu0 %v1019
        %1497 = vmatprep.subr.mxu0 %v1016
        %1498 = vmatpush1.msra.mxu0 %v1015
        %1499 = vmatprep.subr.mxu0 0.0
        %1500 = vmatpush2.msra.mxu0 0.0
        %1501 = vmatprep.subr.mxu0 0.0
        %1502 = vmatpush2.msra.mxu0 0.0
        %1503 = vmatprep.subr.mxu0 0.0
        %1504 = vmatpush2.msra.mxu0 0.0
        %1505 = vmatprep.subr.mxu0 0.0
        %1506 = vmatpush2.msra.mxu0 0.0
        %1507 = vmatprep.subr.mxu0 %v1124
        %1508 = vmatpush2.msra.mxu0 %v1123
        %1509 = vmatprep.subr.mxu0 %v1120
        %1510 = vmatpush2.msra.mxu0 %v1119
        %1511 = vmatprep.subr.mxu0 %v1116
        %1512 = vmatpush2.msra.mxu0 %v1115
        %1513 = vmatprep.subr.mxu0 %v1112
        %1514 = vmatpush2.msra.mxu0 %v1111
        %1515 = vmatprep.subr.mxu0 %v1108
        %1516 = vmatpush2.msra.mxu0 %v1107
        %1517 = vmatprep.subr.mxu0 %v1104
        %1518 = vmatpush2.msra.mxu0 %v1103
        %1519 = vmatprep.subr.mxu0 %v1100
        %1520 = vmatpush2.msra.mxu0 %v1099
        %1521 = vmatprep.subr.mxu0 %v1096
        %1522 = vmatpush2.msra.mxu0 %v1095
        %1523 = vmatprep.subr.mxu0 %v1092
        %1524 = vmatpush2.msra.mxu0 %v1091
        %1525 = vmatprep.subr.mxu0 %v1088
        %1526 = vmatpush2.msra.mxu0 %v1087
        %1527 = vmatprep.subr.mxu0 %v1084
        %1528 = vmatpush2.msra.mxu0 %v1083
        %1529 = vmatprep.subr.mxu0 %v1080
        %1530 = vmatpush2.msra.mxu0 %v1079
        %1531 = vmatprep.mubr.f32.mxu0 %v1458
        %1532 = vmatmul.mubr.f32.gmra.mxu0 %v1007
        %v1533 = vpop.f32.mrf.mxu0
        %v1534 = vadd.f32 %v1346, %v1533
        %v1535 = vpop.f32.mrf.mxu0
        %v1536 = vadd.f32 %v1348, %v1535
        %1537 = vmatprep.mubr.f32.mxu0 %v1460
        %1538 = vmatmul.mubr.f32.gmra.mxu0 %v1009
        %v1539 = vpop.f32.mrf.mxu0
        %v1540 = vadd.f32 %v1352, %v1539
        %v1541 = vpop.f32.mrf.mxu0
        %v1542 = vadd.f32 %v1354, %v1541
        %1543 = vmatprep.mubr.f32.mxu0 %v1462
        %1544 = vmatmul.mubr.f32.gmra.mxu0 %v1011
        %v1545 = vpop.f32.mrf.mxu0
        %v1546 = vadd.f32 %v1358, %v1545
        %v1547 = vpop.f32.mrf.mxu0
        %v1548 = vadd.f32 %v1360, %v1547
        %1549 = vmatprep.mubr.f32.mxu0 %v1465
        %1550 = vmatmul.mubr.f32.gmra.mxu0 %v1013
        %v1551 = vpop.f32.mrf.mxu0
        %v1552 = vadd.f32 %v1364, %v1551
        %v1553 = vpop.f32.mrf.mxu0
        %v1554 = vadd.f32 %v1366, %v1553
        %1555 = vdwg.mxu0
        %1556 = vmatprep.subr.mxu0 %v1078
        %1557 = vmatpush1.msra.mxu0 %v1077
        %1558 = vmatprep.subr.mxu0 %v1074
        %1559 = vmatpush1.msra.mxu0 %v1073
        %1560 = vmatprep.subr.mxu0 %v1070
        %1561 = vmatpush1.msra.mxu0 %v1069
        %1562 = vmatprep.subr.mxu0 %v1066
        %1563 = vmatpush1.msra.mxu0 %v1065
        %1564 = vmatprep.subr.mxu0 %v1062
        %1565 = vmatpush1.msra.mxu0 %v1061
        %1566 = vmatprep.subr.mxu0 %v1058
        %1567 = vmatpush1.msra.mxu0 %v1057
        %1568 = vmatprep.subr.mxu0 %v1054
        %1569 = vmatpush1.msra.mxu0 %v1053
        %1570 = vmatprep.subr.mxu0 %v1050
        %1571 = vmatpush1.msra.mxu0 %v1049
        %1572 = vmatprep.subr.mxu0 %v1046
        %1573 = vmatpush1.msra.mxu0 %v1045
        %1574 = vmatprep.subr.mxu0 %v1042
        %1575 = vmatpush1.msra.mxu0 %v1041
        %1576 = vmatprep.subr.mxu0 %v1038
        %1577 = vmatpush1.msra.mxu0 %v1037
        %1578 = vmatprep.subr.mxu0 %v1034
        %1579 = vmatpush1.msra.mxu0 %v1033
        %1580 = vmatprep.subr.mxu0 %v1030
        %1581 = vmatpush1.msra.mxu0 %v1029
        %1582 = vmatprep.subr.mxu0 %v1026
        %1583 = vmatpush1.msra.mxu0 %v1025
        %1584 = vmatprep.subr.mxu0 %v1022
        %1585 = vmatpush1.msra.mxu0 %v1021
        %1586 = vmatprep.subr.mxu0 %v1018
        %1587 = vmatpush1.msra.mxu0 %v1017
        %1588 = vmatprep.subr.mxu0 0.0
        %1589 = vmatpush2.msra.mxu0 0.0
        %1590 = vmatprep.subr.mxu0 0.0
        %1591 = vmatpush2.msra.mxu0 0.0
        %1592 = vmatprep.subr.mxu0 0.0
        %1593 = vmatpush2.msra.mxu0 0.0
        %1594 = vmatprep.subr.mxu0 0.0
        %1595 = vmatpush2.msra.mxu0 0.0
        %1596 = vmatprep.subr.mxu0 %v1126
        %1597 = vmatpush2.msra.mxu0 %v1125
        %1598 = vmatprep.subr.mxu0 %v1122
        %1599 = vmatpush2.msra.mxu0 %v1121
        %1600 = vmatprep.subr.mxu0 %v1118
        %1601 = vmatpush2.msra.mxu0 %v1117
        %1602 = vmatprep.subr.mxu0 %v1114
        %1603 = vmatpush2.msra.mxu0 %v1113
        %1604 = vmatprep.subr.mxu0 %v1110
        %1605 = vmatpush2.msra.mxu0 %v1109
        %1606 = vmatprep.subr.mxu0 %v1106
        %1607 = vmatpush2.msra.mxu0 %v1105
        %1608 = vmatprep.subr.mxu0 %v1102
        %1609 = vmatpush2.msra.mxu0 %v1101
        %1610 = vmatprep.subr.mxu0 %v1098
        %1611 = vmatpush2.msra.mxu0 %v1097
        %1612 = vmatprep.subr.mxu0 %v1094
        %1613 = vmatpush2.msra.mxu0 %v1093
        %1614 = vmatprep.subr.mxu0 %v1090
        %1615 = vmatpush2.msra.mxu0 %v1089
        %1616 = vmatprep.subr.mxu0 %v1086
        %1617 = vmatpush2.msra.mxu0 %v1085
        %1618 = vmatprep.subr.mxu0 %v1082
        %1619 = vmatpush2.msra.mxu0 %v1081
        %1620 = vmatprep.mubr.f32.mxu0 %v1458
        %1621 = vmatmul.mubr.f32.gmra.mxu0 %v1007
        %v1622 = vpop.f32.mrf.mxu0
        %v1623 = vadd.f32 %v1435, %v1622
        %v1624 = vpop.f32.mrf.mxu0
        %v1625 = vadd.f32 %v1437, %v1624
        %1626 = vmatprep.mubr.f32.mxu0 %v1460
        %1627 = vmatmul.mubr.f32.gmra.mxu0 %v1009
        %v1628 = vpop.f32.mrf.mxu0
        %v1629 = vadd.f32 %v1441, %v1628
        %v1630 = vpop.f32.mrf.mxu0
        %v1631 = vadd.f32 %v1443, %v1630
        %1632 = vmatprep.mubr.f32.mxu0 %v1462
        %1633 = vmatmul.mubr.f32.gmra.mxu0 %v1011
        %v1634 = vpop.f32.mrf.mxu0
        %v1635 = vadd.f32 %v1447, %v1634
        %v1636 = vpop.f32.mrf.mxu0
        %v1637 = vadd.f32 %v1449, %v1636
        %1638 = vmatprep.mubr.f32.mxu0 %v1465
        %1639 = vmatmul.mubr.f32.gmra.mxu0 %v1013
        %v1640 = vpop.f32.mrf.mxu0
        %v1641 = vadd.f32 %v1453, %v1640
        %v1642 = vpop.f32.mrf.mxu0
        %v1643 = vadd.f32 %v1455, %v1642
        %1644 = vdwg.mxu0
        %v1645 = vld [vmem:[#allocation3] sm:$0xfc]
        %v1646 = vld [vmem:[#allocation3 + $0x8] sm:$0xfc]
        %v1647 = vld [vmem:[#allocation3 + $0x30] sm:$0x3f]
        %v1648 = vld [vmem:[#allocation3 + $0x38] sm:$0x3f]
        %s1649 = scalar_lea.vmem [#allocation9], 1792
        %v1650 = vld [vmem:[%s1649] sm:$0xff]
        %v1651 = vld [vmem:[%s1649 + $0x8] sm:$0xff]
        %v1652 = vld [vmem:[%s1649 + $0x10] sm:$0xff]
        %v1653 = vld [vmem:[%s1649 + $0x18] sm:$0xff]
        %v1654 = vld [vmem:[%s1649 + $0x20] sm:$0xff]
        %v1655 = vld [vmem:[%s1649 + $0x28] sm:$0xff]
        %v1656 = vld [vmem:[%s1649 + $0x30] sm:$0xff]
        %v1657 = vld [vmem:[%s1649 + $0x38] sm:$0xff]
        %v1658 = vld [vmem:[%s1649 + $0x40] sm:$0xff]
        %v1659 = vld [vmem:[%s1649 + $0x48] sm:$0xff]
        %v1660 = vld [vmem:[%s1649 + $0x50] sm:$0xff]
        %v1661 = vld [vmem:[%s1649 + $0x58] sm:$0xff]
        %v1662 = vld [vmem:[%s1649 + $0x60] sm:$0xff]
        %v1663 = vld [vmem:[%s1649 + $0x68] sm:$0xff]
        %v1664 = vld [vmem:[%s1649 + $0x70] sm:$0xff]
        %v1665 = vld [vmem:[%s1649 + $0x78] sm:$0xff]
        %v1666 = vld [vmem:[%s1649 + $0x80] sm:$0xff]
        %v1667 = vld [vmem:[%s1649 + $0x88] sm:$0xff]
        %v1668 = vld [vmem:[%s1649 + $0x90] sm:$0xff]
        %v1669 = vld [vmem:[%s1649 + $0x98] sm:$0xff]
        %v1670 = vld [vmem:[%s1649 + $0xa0] sm:$0xff]
        %v1671 = vld [vmem:[%s1649 + $0xa8] sm:$0xff]
        %v1672 = vld [vmem:[%s1649 + $0xb0] sm:$0xff]
        %v1673 = vld [vmem:[%s1649 + $0xb8] sm:$0xff]
        %v1674 = vld [vmem:[%s1649 + $0xc0] sm:$0xff]
        %v1675 = vld [vmem:[%s1649 + $0xc8] sm:$0xff]
        %v1676 = vld [vmem:[%s1649 + $0xd0] sm:$0xff]
        %v1677 = vld [vmem:[%s1649 + $0xd8] sm:$0xff]
        %v1678 = vld [vmem:[%s1649 + $0xe0] sm:$0xff]
        %v1679 = vld [vmem:[%s1649 + $0xe8] sm:$0xff]
        %v1680 = vld [vmem:[%s1649 + $0xf0] sm:$0xff]
        %v1681 = vld [vmem:[%s1649 + $0xf8] sm:$0xff]
        %v1682 = vld [vmem:[%s1649 + $0x100] sm:$0xff]
        %v1683 = vld [vmem:[%s1649 + $0x108] sm:$0xff]
        %v1684 = vld [vmem:[%s1649 + $0x110] sm:$0xff]
        %v1685 = vld [vmem:[%s1649 + $0x118] sm:$0xff]
        %v1686 = vld [vmem:[%s1649 + $0x120] sm:$0xff]
        %v1687 = vld [vmem:[%s1649 + $0x128] sm:$0xff]
        %v1688 = vld [vmem:[%s1649 + $0x130] sm:$0xff]
        %v1689 = vld [vmem:[%s1649 + $0x138] sm:$0xff]
        %v1690 = vld [vmem:[%s1649 + $0x140] sm:$0xff]
        %v1691 = vld [vmem:[%s1649 + $0x148] sm:$0xff]
        %v1692 = vld [vmem:[%s1649 + $0x150] sm:$0xff]
        %v1693 = vld [vmem:[%s1649 + $0x158] sm:$0xff]
        %v1694 = vld [vmem:[%s1649 + $0x160] sm:$0xff]
        %v1695 = vld [vmem:[%s1649 + $0x168] sm:$0xff]
        %v1696 = vld [vmem:[%s1649 + $0x170] sm:$0xff]
        %v1697 = vld [vmem:[%s1649 + $0x178] sm:$0xff]
        %v1698 = vld [vmem:[%s1649 + $0x180] sm:$0xff]
        %v1699 = vld [vmem:[%s1649 + $0x188] sm:$0xff]
        %v1700 = vld [vmem:[%s1649 + $0x190] sm:$0xff]
        %v1701 = vld [vmem:[%s1649 + $0x198] sm:$0xff]
        %v1702 = vld [vmem:[%s1649 + $0x1a0] sm:$0xff]
        %v1703 = vld [vmem:[%s1649 + $0x1a8] sm:$0xff]
        %v1704 = vld [vmem:[%s1649 + $0x1b0] sm:$0xff]
        %v1705 = vld [vmem:[%s1649 + $0x1b8] sm:$0xff]
        %v1706 = vld [vmem:[%s1649 + $0x1c0] sm:$0xff]
        %v1707 = vld [vmem:[%s1649 + $0x1c8] sm:$0xff]
        %v1708 = vld [vmem:[%s1649 + $0x1d0] sm:$0xff]
        %v1709 = vld [vmem:[%s1649 + $0x1d8] sm:$0xff]
        %v1710 = vld [vmem:[%s1649 + $0x1e0] sm:$0xff]
        %v1711 = vld [vmem:[%s1649 + $0x1e8] sm:$0xff]
        %v1712 = vld [vmem:[%s1649 + $0x1f0] sm:$0xff]
        %v1713 = vld [vmem:[%s1649 + $0x1f8] sm:$0xff]
        %v1714 = vld [vmem:[%s1649 + $0x200] sm:$0xff]
        %v1715 = vld [vmem:[%s1649 + $0x208] sm:$0xff]
        %v1716 = vld [vmem:[%s1649 + $0x210] sm:$0xff]
        %v1717 = vld [vmem:[%s1649 + $0x218] sm:$0xff]
        %v1718 = vld [vmem:[%s1649 + $0x220] sm:$0xff]
        %v1719 = vld [vmem:[%s1649 + $0x228] sm:$0xff]
        %v1720 = vld [vmem:[%s1649 + $0x230] sm:$0xff]
        %v1721 = vld [vmem:[%s1649 + $0x238] sm:$0xff]
        %v1722 = vld [vmem:[%s1649 + $0x240] sm:$0xff]
        %v1723 = vld [vmem:[%s1649 + $0x248] sm:$0xff]
        %v1724 = vld [vmem:[%s1649 + $0x250] sm:$0xff]
        %v1725 = vld [vmem:[%s1649 + $0x258] sm:$0xff]
        %v1726 = vld [vmem:[%s1649 + $0x260] sm:$0xff]
        %v1727 = vld [vmem:[%s1649 + $0x268] sm:$0xff]
        %v1728 = vld [vmem:[%s1649 + $0x270] sm:$0xff]
        %v1729 = vld [vmem:[%s1649 + $0x278] sm:$0xff]
        %v1730 = vld [vmem:[%s1649 + $0x280] sm:$0xff]
        %v1731 = vld [vmem:[%s1649 + $0x288] sm:$0xff]
        %v1732 = vld [vmem:[%s1649 + $0x290] sm:$0xff]
        %v1733 = vld [vmem:[%s1649 + $0x298] sm:$0xff]
        %v1734 = vld [vmem:[%s1649 + $0x2a0] sm:$0xff]
        %v1735 = vld [vmem:[%s1649 + $0x2a8] sm:$0xff]
        %v1736 = vld [vmem:[%s1649 + $0x2b0] sm:$0xff]
        %v1737 = vld [vmem:[%s1649 + $0x2b8] sm:$0xff]
        %v1738 = vld [vmem:[%s1649 + $0x2c0] sm:$0xff]
        %v1739 = vld [vmem:[%s1649 + $0x2c8] sm:$0xff]
        %v1740 = vld [vmem:[%s1649 + $0x2d0] sm:$0xff]
        %v1741 = vld [vmem:[%s1649 + $0x2d8] sm:$0xff]
        %v1742 = vld [vmem:[%s1649 + $0x2e0] sm:$0xff]
        %v1743 = vld [vmem:[%s1649 + $0x2e8] sm:$0xff]
        %v1744 = vld [vmem:[%s1649 + $0x2f0] sm:$0xff]
        %v1745 = vld [vmem:[%s1649 + $0x2f8] sm:$0xff]
        %v1746 = vld [vmem:[%s1649 + $0x300] sm:$0xff]
        %v1747 = vld [vmem:[%s1649 + $0x308] sm:$0xff]
        %v1748 = vld [vmem:[%s1649 + $0x310] sm:$0xff]
        %v1749 = vld [vmem:[%s1649 + $0x318] sm:$0xff]
        %v1750 = vld [vmem:[%s1649 + $0x320] sm:$0xff]
        %v1751 = vld [vmem:[%s1649 + $0x328] sm:$0xff]
        %v1752 = vld [vmem:[%s1649 + $0x330] sm:$0xff]
        %v1753 = vld [vmem:[%s1649 + $0x338] sm:$0xff]
        %v1754 = vld [vmem:[%s1649 + $0x340] sm:$0xff]
        %v1755 = vld [vmem:[%s1649 + $0x348] sm:$0xff]
        %v1756 = vld [vmem:[%s1649 + $0x350] sm:$0xff]
        %v1757 = vld [vmem:[%s1649 + $0x358] sm:$0xff]
        %v1758 = vld [vmem:[%s1649 + $0x360] sm:$0xff]
        %v1759 = vld [vmem:[%s1649 + $0x368] sm:$0xff]
        %v1760 = vld [vmem:[%s1649 + $0x370] sm:$0xff]
        %v1761 = vld [vmem:[%s1649 + $0x378] sm:$0xff]
        %vm1766 = vcmask 1045504
        %v1767 = vrot.slane %v1645, 2
        %v1768 = vrot.slane %v1009, 2
        %v1769 = vsel %vm1766, %v1767, %v1768
        %v1770 = vrot.slane %v1646, 2
        %v1771 = vrot.slane %v1010, 2
        %v1772 = vsel %vm1766, %v1770, %v1771
        %v1773 = vrot.slane %v1011, 2
        %v1774 = vsel %vm1766, %v1768, %v1773
        %v1775 = vrot.slane %v1012, 2
        %v1776 = vsel %vm1766, %v1771, %v1775
        %v1777 = vrot.slane %v1647, 2
        %v1778 = vsel %vm1766, %v1773, %v1777
        %v1779 = vrot.slane %v1648, 2
        %v1780 = vsel %vm1766, %v1775, %v1779
        %v1785 = vsel %vm1000, %v1772, 0
        %v1787 = vsel %vm1000, %v1776, 0
        %v1789 = vsel %vm1000, %v1780, 0
        %v1791 = vsel %vm1000, %v1779, 0
        %1793 = vmatprep.subr.mxu0 %v1711
        %1794 = vmatpush1.msra.mxu0 %v1710
        %1795 = vmatprep.subr.mxu0 %v1707
        %1796 = vmatpush1.msra.mxu0 %v1706
        %1797 = vmatprep.subr.mxu0 %v1703
        %1798 = vmatpush1.msra.mxu0 %v1702
        %1799 = vmatprep.subr.mxu0 %v1699
        %1800 = vmatpush1.msra.mxu0 %v1698
        %1801 = vmatprep.subr.mxu0 %v1695
        %1802 = vmatpush1.msra.mxu0 %v1694
        %1803 = vmatprep.subr.mxu0 %v1691
        %1804 = vmatpush1.msra.mxu0 %v1690
        %1805 = vmatprep.subr.mxu0 %v1687
        %1806 = vmatpush1.msra.mxu0 %v1686
        %1807 = vmatprep.subr.mxu0 %v1683
        %1808 = vmatpush1.msra.mxu0 %v1682
        %1809 = vmatprep.subr.mxu0 %v1679
        %1810 = vmatpush1.msra.mxu0 %v1678
        %1811 = vmatprep.subr.mxu0 %v1675
        %1812 = vmatpush1.msra.mxu0 %v1674
        %1813 = vmatprep.subr.mxu0 %v1671
        %1814 = vmatpush1.msra.mxu0 %v1670
        %1815 = vmatprep.subr.mxu0 %v1667
        %1816 = vmatpush1.msra.mxu0 %v1666
        %1817 = vmatprep.subr.mxu0 %v1663
        %1818 = vmatpush1.msra.mxu0 %v1662
        %1819 = vmatprep.subr.mxu0 %v1659
        %1820 = vmatpush1.msra.mxu0 %v1658
        %1821 = vmatprep.subr.mxu0 %v1655
        %1822 = vmatpush1.msra.mxu0 %v1654
        %1823 = vmatprep.subr.mxu0 %v1651
        %1824 = vmatpush1.msra.mxu0 %v1650
        %1825 = vmatprep.subr.mxu0 0.0
        %1826 = vmatpush2.msra.mxu0 0.0
        %1827 = vmatprep.subr.mxu0 0.0
        %1828 = vmatpush2.msra.mxu0 0.0
        %1829 = vmatprep.subr.mxu0 0.0
        %1830 = vmatpush2.msra.mxu0 0.0
        %1831 = vmatprep.subr.mxu0 0.0
        %1832 = vmatpush2.msra.mxu0 0.0
        %1833 = vmatprep.subr.mxu0 %v1759
        %1834 = vmatpush2.msra.mxu0 %v1758
        %1835 = vmatprep.subr.mxu0 %v1755
        %1836 = vmatpush2.msra.mxu0 %v1754
        %1837 = vmatprep.subr.mxu0 %v1751
        %1838 = vmatpush2.msra.mxu0 %v1750
        %1839 = vmatprep.subr.mxu0 %v1747
        %1840 = vmatpush2.msra.mxu0 %v1746
        %1841 = vmatprep.subr.mxu0 %v1743
        %1842 = vmatpush2.msra.mxu0 %v1742
        %1843 = vmatprep.subr.mxu0 %v1739
        %1844 = vmatpush2.msra.mxu0 %v1738
        %1845 = vmatprep.subr.mxu0 %v1735
        %1846 = vmatpush2.msra.mxu0 %v1734
        %1847 = vmatprep.subr.mxu0 %v1731
        %1848 = vmatpush2.msra.mxu0 %v1730
        %1849 = vmatprep.subr.mxu0 %v1727
        %1850 = vmatpush2.msra.mxu0 %v1726
        %1851 = vmatprep.subr.mxu0 %v1723
        %1852 = vmatpush2.msra.mxu0 %v1722
        %1853 = vmatprep.subr.mxu0 %v1719
        %1854 = vmatpush2.msra.mxu0 %v1718
        %1855 = vmatprep.subr.mxu0 %v1715
        %1856 = vmatpush2.msra.mxu0 %v1714
        %1857 = vmatprep.mubr.f32.mxu0 %v1785
        %1858 = vmatmul.mubr.f32.gmra.mxu0 %v1769
        %v1859 = vpop.f32.mrf.mxu0
        %v1860 = vadd.f32 0.0, %v1859
        %v1861 = vpop.f32.mrf.mxu0
        %v1862 = vadd.f32 0.0, %v1861
        %1863 = vmatprep.mubr.f32.mxu0 %v1787
        %1864 = vmatmul.mubr.f32.gmra.mxu0 %v1774
        %v1865 = vpop.f32.mrf.mxu0
        %v1866 = vadd.f32 0.0, %v1865
        %v1867 = vpop.f32.mrf.mxu0
        %v1868 = vadd.f32 0.0, %v1867
        %1869 = vmatprep.mubr.f32.mxu0 %v1789
        %1870 = vmatmul.mubr.f32.gmra.mxu0 %v1778
        %v1871 = vpop.f32.mrf.mxu0
        %v1872 = vadd.f32 0.0, %v1871
        %v1873 = vpop.f32.mrf.mxu0
        %v1874 = vadd.f32 0.0, %v1873
        %1875 = vmatprep.mubr.f32.mxu0 %v1791
        %1876 = vmatmul.mubr.f32.gmra.mxu0 %v1777
        %v1877 = vpop.f32.mrf.mxu0
        %v1878 = vadd.f32 0.0, %v1877
        %v1879 = vpop.f32.mrf.mxu0
        %v1880 = vadd.f32 0.0, %v1879
        %1881 = vdwg.mxu0
        %1882 = vmatprep.subr.mxu0 %v1713
        %1883 = vmatpush1.msra.mxu0 %v1712
        %1884 = vmatprep.subr.mxu0 %v1709
        %1885 = vmatpush1.msra.mxu0 %v1708
        %1886 = vmatprep.subr.mxu0 %v1705
        %1887 = vmatpush1.msra.mxu0 %v1704
        %1888 = vmatprep.subr.mxu0 %v1701
        %1889 = vmatpush1.msra.mxu0 %v1700
        %1890 = vmatprep.subr.mxu0 %v1697
        %1891 = vmatpush1.msra.mxu0 %v1696
        %1892 = vmatprep.subr.mxu0 %v1693
        %1893 = vmatpush1.msra.mxu0 %v1692
        %1894 = vmatprep.subr.mxu0 %v1689
        %1895 = vmatpush1.msra.mxu0 %v1688
        %1896 = vmatprep.subr.mxu0 %v1685
        %1897 = vmatpush1.msra.mxu0 %v1684
        %1898 = vmatprep.subr.mxu0 %v1681
        %1899 = vmatpush1.msra.mxu0 %v1680
        %1900 = vmatprep.subr.mxu0 %v1677
        %1901 = vmatpush1.msra.mxu0 %v1676
        %1902 = vmatprep.subr.mxu0 %v1673
        %1903 = vmatpush1.msra.mxu0 %v1672
        %1904 = vmatprep.subr.mxu0 %v1669
        %1905 = vmatpush1.msra.mxu0 %v1668
        %1906 = vmatprep.subr.mxu0 %v1665
        %1907 = vmatpush1.msra.mxu0 %v1664
        %1908 = vmatprep.subr.mxu0 %v1661
        %1909 = vmatpush1.msra.mxu0 %v1660
        %1910 = vmatprep.subr.mxu0 %v1657
        %1911 = vmatpush1.msra.mxu0 %v1656
        %1912 = vmatprep.subr.mxu0 %v1653
        %1913 = vmatpush1.msra.mxu0 %v1652
        %1914 = vmatprep.subr.mxu0 0.0
        %1915 = vmatpush2.msra.mxu0 0.0
        %1916 = vmatprep.subr.mxu0 0.0
        %1917 = vmatpush2.msra.mxu0 0.0
        %1918 = vmatprep.subr.mxu0 0.0
        %1919 = vmatpush2.msra.mxu0 0.0
        %1920 = vmatprep.subr.mxu0 0.0
        %1921 = vmatpush2.msra.mxu0 0.0
        %1922 = vmatprep.subr.mxu0 %v1761
        %1923 = vmatpush2.msra.mxu0 %v1760
        %1924 = vmatprep.subr.mxu0 %v1757
        %1925 = vmatpush2.msra.mxu0 %v1756
        %1926 = vmatprep.subr.mxu0 %v1753
        %1927 = vmatpush2.msra.mxu0 %v1752
        %1928 = vmatprep.subr.mxu0 %v1749
        %1929 = vmatpush2.msra.mxu0 %v1748
        %1930 = vmatprep.subr.mxu0 %v1745
        %1931 = vmatpush2.msra.mxu0 %v1744
        %1932 = vmatprep.subr.mxu0 %v1741
        %1933 = vmatpush2.msra.mxu0 %v1740
        %1934 = vmatprep.subr.mxu0 %v1737
        %1935 = vmatpush2.msra.mxu0 %v1736
        %1936 = vmatprep.subr.mxu0 %v1733
        %1937 = vmatpush2.msra.mxu0 %v1732
        %1938 = vmatprep.subr.mxu0 %v1729
        %1939 = vmatpush2.msra.mxu0 %v1728
        %1940 = vmatprep.subr.mxu0 %v1725
        %1941 = vmatpush2.msra.mxu0 %v1724
        %1942 = vmatprep.subr.mxu0 %v1721
        %1943 = vmatpush2.msra.mxu0 %v1720
        %1944 = vmatprep.subr.mxu0 %v1717
        %1945 = vmatpush2.msra.mxu0 %v1716
        %1946 = vmatprep.mubr.f32.mxu0 %v1785
        %1947 = vmatmul.mubr.f32.gmra.mxu0 %v1769
        %v1948 = vpop.f32.mrf.mxu0
        %v1949 = vadd.f32 0.0, %v1948
        %v1950 = vpop.f32.mrf.mxu0
        %v1951 = vadd.f32 0.0, %v1950
        %1952 = vmatprep.mubr.f32.mxu0 %v1787
        %1953 = vmatmul.mubr.f32.gmra.mxu0 %v1774
        %v1954 = vpop.f32.mrf.mxu0
        %v1955 = vadd.f32 0.0, %v1954
        %v1956 = vpop.f32.mrf.mxu0
        %v1957 = vadd.f32 0.0, %v1956
        %1958 = vmatprep.mubr.f32.mxu0 %v1789
        %1959 = vmatmul.mubr.f32.gmra.mxu0 %v1778
        %v1960 = vpop.f32.mrf.mxu0
        %v1961 = vadd.f32 0.0, %v1960
        %v1962 = vpop.f32.mrf.mxu0
        %v1963 = vadd.f32 0.0, %v1962
        %1964 = vmatprep.mubr.f32.mxu0 %v1791
        %1965 = vmatmul.mubr.f32.gmra.mxu0 %v1777
        %v1966 = vpop.f32.mrf.mxu0
        %v1967 = vadd.f32 0.0, %v1966
        %v1968 = vpop.f32.mrf.mxu0
        %v1969 = vadd.f32 0.0, %v1968
        %1970 = vdwg.mxu0
        %v1971 = vadd.f32 %v1534, %v1860
        %v1972 = vadd.f32 %v1536, %v1862
        %v1973 = vadd.f32 %v1623, %v1949
        %v1974 = vadd.f32 %v1625, %v1951
        %v1975 = vadd.f32 %v1540, %v1866
        %v1976 = vadd.f32 %v1542, %v1868
        %v1977 = vadd.f32 %v1629, %v1955
        %v1978 = vadd.f32 %v1631, %v1957
        %v1979 = vadd.f32 %v1546, %v1872
        %v1980 = vadd.f32 %v1548, %v1874
        %v1981 = vadd.f32 %v1635, %v1961
        %v1982 = vadd.f32 %v1637, %v1963
        %v1983 = vadd.f32 %v1552, %v1878
        %v1984 = vadd.f32 %v1554, %v1880
        %v1985 = vadd.f32 %v1641, %v1967
        %v1986 = vadd.f32 %v1643, %v1969
        %v1987 = vld [vmem:[#allocation14] sm:$0xf]
        %v1989 = vlaneseq
        %v1990 = vshrl.u32 %v1989, 7
        %v1991 = vsub.s32 0, %v1990
        %v1992 = vrot.slane %v1987, %v1991
        %v1993 = vlaneseq
        %v1994 = vshrl.u32 %v1993, 7
        %v1995 = vsub.s32 1, %v1994
        %v1996 = vrot.slane %v1987, %v1995
        %v1997 = vlaneseq
        %v1998 = vshrl.u32 %v1997, 7
        %v1999 = vsub.s32 2, %v1998
        %v2000 = vrot.slane %v1987, %v1999
        %v2001 = vlaneseq
        %v2002 = vshrl.u32 %v2001, 7
        %v2003 = vsub.s32 3, %v2002
        %v2004 = vrot.slane %v1987, %v2003
        %v2009 = vadd.f32 %v1971, %v1992
        %v2010 = vadd.f32 %v1972, %v1996
        %v2011 = vadd.f32 %v1973, %v2000
        %v2012 = vadd.f32 %v1974, %v2004
        %v2013 = vadd.f32 %v1975, %v1992
        %v2014 = vadd.f32 %v1976, %v1996
        %v2015 = vadd.f32 %v1977, %v2000
        %v2016 = vadd.f32 %v1978, %v2004
        %v2017 = vadd.f32 %v1979, %v1992
        %v2018 = vadd.f32 %v1980, %v1996
        %v2019 = vadd.f32 %v1981, %v2000
        %v2020 = vadd.f32 %v1982, %v2004
        %v2021 = vadd.f32 %v1983, %v1992
        %v2022 = vadd.f32 %v1984, %v1996
        %v2023 = vadd.f32 %v1985, %v2000
        %v2024 = vadd.f32 %v1986, %v2004
        %v2025 = vmax.f32 %v2009, 0.0
        %v2026 = vmax.f32 %v2010, 0.0
        %v2027 = vmax.f32 %v2011, 0.0
        %v2028 = vmax.f32 %v2012, 0.0
        %v2029 = vmax.f32 %v2013, 0.0
        %v2030 = vmax.f32 %v2014, 0.0
        %v2031 = vmax.f32 %v2015, 0.0
        %v2032 = vmax.f32 %v2016, 0.0
        %v2033 = vmax.f32 %v2017, 0.0
        %v2034 = vmax.f32 %v2018, 0.0
        %v2035 = vmax.f32 %v2019, 0.0
        %v2036 = vmax.f32 %v2020, 0.0
        %v2037 = vmax.f32 %v2021, 0.0
        %v2038 = vmax.f32 %v2022, 0.0
        %v2039 = vmax.f32 %v2023, 0.0
        %v2040 = vmax.f32 %v2024, 0.0
        %v2041 = vld [vmem:[%s7] sm:$0xff]
        %v2042 = vld [vmem:[%s7 + $0x8] sm:$0x3f]
        %v2044 = vsel %vm554, %v2041, 0
        %v2047 = vsel %vm554, %v2042, 0
        %v2050 = vsel %vm597, %v2037, 0
        %v2053 = vsel %vm597, %v2038, 0
        %v2056 = vsel %vm597, %v2039, 0
        %v2059 = vsel %vm597, %v2040, 0
        %2061 = vmatprep.subr.mxu0 0.0
        %2062 = vmatpush1.msra.mxu0 0.0
        %2063 = vmatprep.subr.mxu0 0.0
        %2064 = vmatpush1.msra.mxu0 0.0
        %2065 = vmatprep.subr.mxu0 0.0
        %2066 = vmatpush1.msra.mxu0 0.0
        %2067 = vmatprep.subr.mxu0 0.0
        %2068 = vmatpush1.msra.mxu0 0.0
        %2069 = vmatprep.subr.mxu0 0.0
        %2070 = vmatpush1.msra.mxu0 0.0
        %2071 = vmatprep.subr.mxu0 0.0
        %2072 = vmatpush1.msra.mxu0 0.0
        %2073 = vmatprep.subr.mxu0 0.0
        %2074 = vmatpush1.msra.mxu0 0.0
        %2075 = vmatprep.subr.mxu0 0.0
        %2076 = vmatpush1.msra.mxu0 0.0
        %2077 = vmatprep.subr.mxu0 0.0
        %2078 = vmatpush1.msra.mxu0 0.0
        %2079 = vmatprep.subr.mxu0 0.0
        %2080 = vmatpush1.msra.mxu0 0.0
        %2081 = vmatprep.subr.mxu0 0.0
        %2082 = vmatpush1.msra.mxu0 0.0
        %2083 = vmatprep.subr.mxu0 0.0
        %2084 = vmatpush1.msra.mxu0 0.0
        %2085 = vmatprep.subr.mxu0 %v2053
        %2086 = vmatpush1.msra.mxu0 %v2050
        %2087 = vmatprep.subr.mxu0 %v2034
        %2088 = vmatpush1.msra.mxu0 %v2033
        %2089 = vmatprep.subr.mxu0 %v2030
        %2090 = vmatpush1.msra.mxu0 %v2029
        %2091 = vmatprep.subr.mxu0 %v2026
        %2092 = vmatpush1.msra.mxu0 %v2025
        %2093 = vmatprep.subr.mxu0 0.0
        %2094 = vmatpush2.msra.mxu0 0.0
        %2095 = vmatprep.subr.mxu0 0.0
        %2096 = vmatpush2.msra.mxu0 0.0
        %2097 = vmatprep.subr.mxu0 0.0
        %2098 = vmatpush2.msra.mxu0 0.0
        %2099 = vmatprep.subr.mxu0 0.0
        %2100 = vmatpush2.msra.mxu0 0.0
        %2101 = vmatprep.subr.mxu0 0.0
        %2102 = vmatpush2.msra.mxu0 0.0
        %2103 = vmatprep.subr.mxu0 0.0
        %2104 = vmatpush2.msra.mxu0 0.0
        %2105 = vmatprep.subr.mxu0 0.0
        %2106 = vmatpush2.msra.mxu0 0.0
        %2107 = vmatprep.subr.mxu0 0.0
        %2108 = vmatpush2.msra.mxu0 0.0
        %2109 = vmatprep.subr.mxu0 0.0
        %2110 = vmatpush2.msra.mxu0 0.0
        %2111 = vmatprep.subr.mxu0 0.0
        %2112 = vmatpush2.msra.mxu0 0.0
        %2113 = vmatprep.subr.mxu0 0.0
        %2114 = vmatpush2.msra.mxu0 0.0
        %2115 = vmatprep.subr.mxu0 0.0
        %2116 = vmatpush2.msra.mxu0 0.0
        %2117 = vmatprep.subr.mxu0 0.0
        %2118 = vmatpush2.msra.mxu0 0.0
        %2119 = vmatprep.subr.mxu0 0.0
        %2120 = vmatpush2.msra.mxu0 0.0
        %2121 = vmatprep.subr.mxu0 0.0
        %2122 = vmatpush2.msra.mxu0 0.0
        %2123 = vmatprep.subr.mxu0 0.0
        %2124 = vmatpush2.msra.mxu0 0.0
        %2125 = vmatprep.mubr.f32.mxu0 0.0
        %2126 = vmatmul.mubr.f32.gmra.mxu0 %v2044
        %v2127 = vpop.f32.mrf.mxu0
        %v2128 = vadd.f32 0.0, %v2127
        %v2129 = vpop.f32.mrf.mxu0
        %v2130 = vadd.f32 0.0, %v2129
        %2131 = vmatprep.mubr.f32.mxu0 0.0
        %2132 = vmatmul.mubr.f32.gmra.mxu0 %v2047
        %v2133 = vpop.f32.mrf.mxu0
        %v2134 = vadd.f32 0.0, %v2133
        %v2135 = vpop.f32.mrf.mxu0
        %v2136 = vadd.f32 0.0, %v2135
        %2137 = vdwg.mxu0
        %2138 = vmatprep.subr.mxu0 0.0
        %2139 = vmatpush1.msra.mxu0 0.0
        %2140 = vmatprep.subr.mxu0 0.0
        %2141 = vmatpush1.msra.mxu0 0.0
        %2142 = vmatprep.subr.mxu0 0.0
        %2143 = vmatpush1.msra.mxu0 0.0
        %2144 = vmatprep.subr.mxu0 0.0
        %2145 = vmatpush1.msra.mxu0 0.0
        %2146 = vmatprep.subr.mxu0 0.0
        %2147 = vmatpush1.msra.mxu0 0.0
        %2148 = vmatprep.subr.mxu0 0.0
        %2149 = vmatpush1.msra.mxu0 0.0
        %2150 = vmatprep.subr.mxu0 0.0
        %2151 = vmatpush1.msra.mxu0 0.0
        %2152 = vmatprep.subr.mxu0 0.0
        %2153 = vmatpush1.msra.mxu0 0.0
        %2154 = vmatprep.subr.mxu0 0.0
        %2155 = vmatpush1.msra.mxu0 0.0
        %2156 = vmatprep.subr.mxu0 0.0
        %2157 = vmatpush1.msra.mxu0 0.0
        %2158 = vmatprep.subr.mxu0 0.0
        %2159 = vmatpush1.msra.mxu0 0.0
        %2160 = vmatprep.subr.mxu0 0.0
        %2161 = vmatpush1.msra.mxu0 0.0
        %2162 = vmatprep.subr.mxu0 %v2059
        %2163 = vmatpush1.msra.mxu0 %v2056
        %2164 = vmatprep.subr.mxu0 %v2036
        %2165 = vmatpush1.msra.mxu0 %v2035
        %2166 = vmatprep.subr.mxu0 %v2032
        %2167 = vmatpush1.msra.mxu0 %v2031
        %2168 = vmatprep.subr.mxu0 %v2028
        %2169 = vmatpush1.msra.mxu0 %v2027
        %2170 = vmatprep.subr.mxu0 0.0
        %2171 = vmatpush2.msra.mxu0 0.0
        %2172 = vmatprep.subr.mxu0 0.0
        %2173 = vmatpush2.msra.mxu0 0.0
        %2174 = vmatprep.subr.mxu0 0.0
        %2175 = vmatpush2.msra.mxu0 0.0
        %2176 = vmatprep.subr.mxu0 0.0
        %2177 = vmatpush2.msra.mxu0 0.0
        %2178 = vmatprep.subr.mxu0 0.0
        %2179 = vmatpush2.msra.mxu0 0.0
        %2180 = vmatprep.subr.mxu0 0.0
        %2181 = vmatpush2.msra.mxu0 0.0
        %2182 = vmatprep.subr.mxu0 0.0
        %2183 = vmatpush2.msra.mxu0 0.0
        %2184 = vmatprep.subr.mxu0 0.0
        %2185 = vmatpush2.msra.mxu0 0.0
        %2186 = vmatprep.subr.mxu0 0.0
        %2187 = vmatpush2.msra.mxu0 0.0
        %2188 = vmatprep.subr.mxu0 0.0
        %2189 = vmatpush2.msra.mxu0 0.0
        %2190 = vmatprep.subr.mxu0 0.0
        %2191 = vmatpush2.msra.mxu0 0.0
        %2192 = vmatprep.subr.mxu0 0.0
        %2193 = vmatpush2.msra.mxu0 0.0
        %2194 = vmatprep.subr.mxu0 0.0
        %2195 = vmatpush2.msra.mxu0 0.0
        %2196 = vmatprep.subr.mxu0 0.0
        %2197 = vmatpush2.msra.mxu0 0.0
        %2198 = vmatprep.subr.mxu0 0.0
        %2199 = vmatpush2.msra.mxu0 0.0
        %2200 = vmatprep.subr.mxu0 0.0
        %2201 = vmatpush2.msra.mxu0 0.0
        %2202 = vmatprep.mubr.f32.mxu0 0.0
        %2203 = vmatmul.mubr.f32.gmra.mxu0 %v2044
        %v2204 = vpop.f32.mrf.mxu0
        %v2205 = vadd.f32 0.0, %v2204
        %v2206 = vpop.f32.mrf.mxu0
        %v2207 = vadd.f32 0.0, %v2206
        %2208 = vmatprep.mubr.f32.mxu0 0.0
        %2209 = vmatmul.mubr.f32.gmra.mxu0 %v2047
        %v2210 = vpop.f32.mrf.mxu0
        %v2211 = vadd.f32 0.0, %v2210
        %v2212 = vpop.f32.mrf.mxu0
        %v2213 = vadd.f32 0.0, %v2212
        %2214 = vdwg.mxu0
        %s2215 = scalar_lea.vmem %s7, 16
        %v2216 = vld [vmem:[%s2215] sm:$0xff]
        %v2217 = vld [vmem:[%s2215 + $0x8] sm:$0x3f]
        %v2219 = vsel %vm554, %v2216, 0
        %v2222 = vsel %vm554, %v2217, 0
        %2224 = vmatprep.subr.mxu0 0.0
        %2225 = vmatpush1.msra.mxu0 0.0
        %2226 = vmatprep.subr.mxu0 0.0
        %2227 = vmatpush1.msra.mxu0 0.0
        %2228 = vmatprep.subr.mxu0 0.0
        %2229 = vmatpush1.msra.mxu0 0.0
        %2230 = vmatprep.subr.mxu0 0.0
        %2231 = vmatpush1.msra.mxu0 0.0
        %2232 = vmatprep.subr.mxu0 0.0
        %2233 = vmatpush1.msra.mxu0 0.0
        %2234 = vmatprep.subr.mxu0 0.0
        %2235 = vmatpush1.msra.mxu0 0.0
        %2236 = vmatprep.subr.mxu0 0.0
        %2237 = vmatpush1.msra.mxu0 0.0
        %2238 = vmatprep.subr.mxu0 0.0
        %2239 = vmatpush1.msra.mxu0 0.0
        %2240 = vmatprep.subr.mxu0 0.0
        %2241 = vmatpush1.msra.mxu0 0.0
        %2242 = vmatprep.subr.mxu0 0.0
        %2243 = vmatpush1.msra.mxu0 0.0
        %2244 = vmatprep.subr.mxu0 0.0
        %2245 = vmatpush1.msra.mxu0 0.0
        %2246 = vmatprep.subr.mxu0 0.0
        %2247 = vmatpush1.msra.mxu0 0.0
        %2248 = vmatprep.subr.mxu0 %v2053
        %2249 = vmatpush1.msra.mxu0 %v2050
        %2250 = vmatprep.subr.mxu0 %v2034
        %2251 = vmatpush1.msra.mxu0 %v2033
        %2252 = vmatprep.subr.mxu0 %v2030
        %2253 = vmatpush1.msra.mxu0 %v2029
        %2254 = vmatprep.subr.mxu0 %v2026
        %2255 = vmatpush1.msra.mxu0 %v2025
        %2256 = vmatprep.subr.mxu0 0.0
        %2257 = vmatpush2.msra.mxu0 0.0
        %2258 = vmatprep.subr.mxu0 0.0
        %2259 = vmatpush2.msra.mxu0 0.0
        %2260 = vmatprep.subr.mxu0 0.0
        %2261 = vmatpush2.msra.mxu0 0.0
        %2262 = vmatprep.subr.mxu0 0.0
        %2263 = vmatpush2.msra.mxu0 0.0
        %2264 = vmatprep.subr.mxu0 0.0
        %2265 = vmatpush2.msra.mxu0 0.0
        %2266 = vmatprep.subr.mxu0 0.0
        %2267 = vmatpush2.msra.mxu0 0.0
        %2268 = vmatprep.subr.mxu0 0.0
        %2269 = vmatpush2.msra.mxu0 0.0
        %2270 = vmatprep.subr.mxu0 0.0
        %2271 = vmatpush2.msra.mxu0 0.0
        %2272 = vmatprep.subr.mxu0 0.0
        %2273 = vmatpush2.msra.mxu0 0.0
        %2274 = vmatprep.subr.mxu0 0.0
        %2275 = vmatpush2.msra.mxu0 0.0
        %2276 = vmatprep.subr.mxu0 0.0
        %2277 = vmatpush2.msra.mxu0 0.0
        %2278 = vmatprep.subr.mxu0 0.0
        %2279 = vmatpush2.msra.mxu0 0.0
        %2280 = vmatprep.subr.mxu0 0.0
        %2281 = vmatpush2.msra.mxu0 0.0
        %2282 = vmatprep.subr.mxu0 0.0
        %2283 = vmatpush2.msra.mxu0 0.0
        %2284 = vmatprep.subr.mxu0 0.0
        %2285 = vmatpush2.msra.mxu0 0.0
        %2286 = vmatprep.subr.mxu0 0.0
        %2287 = vmatpush2.msra.mxu0 0.0
        %2288 = vmatprep.mubr.f32.mxu0 0.0
        %2289 = vmatmul.mubr.f32.gmra.mxu0 %v2219
        %v2290 = vpop.f32.mrf.mxu0
        %v2291 = vadd.f32 0.0, %v2290
        %v2292 = vpop.f32.mrf.mxu0
        %v2293 = vadd.f32 0.0, %v2292
        %2294 = vmatprep.mubr.f32.mxu0 0.0
        %2295 = vmatmul.mubr.f32.gmra.mxu0 %v2222
        %v2296 = vpop.f32.mrf.mxu0
        %v2297 = vadd.f32 0.0, %v2296
        %v2298 = vpop.f32.mrf.mxu0
        %v2299 = vadd.f32 0.0, %v2298
        %2300 = vdwg.mxu0
        %2301 = vmatprep.subr.mxu0 0.0
        %2302 = vmatpush1.msra.mxu0 0.0
        %2303 = vmatprep.subr.mxu0 0.0
        %2304 = vmatpush1.msra.mxu0 0.0
        %2305 = vmatprep.subr.mxu0 0.0
        %2306 = vmatpush1.msra.mxu0 0.0
        %2307 = vmatprep.subr.mxu0 0.0
        %2308 = vmatpush1.msra.mxu0 0.0
        %2309 = vmatprep.subr.mxu0 0.0
        %2310 = vmatpush1.msra.mxu0 0.0
        %2311 = vmatprep.subr.mxu0 0.0
        %2312 = vmatpush1.msra.mxu0 0.0
        %2313 = vmatprep.subr.mxu0 0.0
        %2314 = vmatpush1.msra.mxu0 0.0
        %2315 = vmatprep.subr.mxu0 0.0
        %2316 = vmatpush1.msra.mxu0 0.0
        %2317 = vmatprep.subr.mxu0 0.0
        %2318 = vmatpush1.msra.mxu0 0.0
        %2319 = vmatprep.subr.mxu0 0.0
        %2320 = vmatpush1.msra.mxu0 0.0
        %2321 = vmatprep.subr.mxu0 0.0
        %2322 = vmatpush1.msra.mxu0 0.0
        %2323 = vmatprep.subr.mxu0 0.0
        %2324 = vmatpush1.msra.mxu0 0.0
        %2325 = vmatprep.subr.mxu0 %v2059
        %2326 = vmatpush1.msra.mxu0 %v2056
        %2327 = vmatprep.subr.mxu0 %v2036
        %2328 = vmatpush1.msra.mxu0 %v2035
        %2329 = vmatprep.subr.mxu0 %v2032
        %2330 = vmatpush1.msra.mxu0 %v2031
        %2331 = vmatprep.subr.mxu0 %v2028
        %2332 = vmatpush1.msra.mxu0 %v2027
        %2333 = vmatprep.subr.mxu0 0.0
        %2334 = vmatpush2.msra.mxu0 0.0
        %2335 = vmatprep.subr.mxu0 0.0
        %2336 = vmatpush2.msra.mxu0 0.0
        %2337 = vmatprep.subr.mxu0 0.0
        %2338 = vmatpush2.msra.mxu0 0.0
        %2339 = vmatprep.subr.mxu0 0.0
        %2340 = vmatpush2.msra.mxu0 0.0
        %2341 = vmatprep.subr.mxu0 0.0
        %2342 = vmatpush2.msra.mxu0 0.0
        %2343 = vmatprep.subr.mxu0 0.0
        %2344 = vmatpush2.msra.mxu0 0.0
        %2345 = vmatprep.subr.mxu0 0.0
        %2346 = vmatpush2.msra.mxu0 0.0
        %2347 = vmatprep.subr.mxu0 0.0
        %2348 = vmatpush2.msra.mxu0 0.0
        %2349 = vmatprep.subr.mxu0 0.0
        %2350 = vmatpush2.msra.mxu0 0.0
        %2351 = vmatprep.subr.mxu0 0.0
        %2352 = vmatpush2.msra.mxu0 0.0
        %2353 = vmatprep.subr.mxu0 0.0
        %2354 = vmatpush2.msra.mxu0 0.0
        %2355 = vmatprep.subr.mxu0 0.0
        %2356 = vmatpush2.msra.mxu0 0.0
        %2357 = vmatprep.subr.mxu0 0.0
        %2358 = vmatpush2.msra.mxu0 0.0
        %2359 = vmatprep.subr.mxu0 0.0
        %2360 = vmatpush2.msra.mxu0 0.0
        %2361 = vmatprep.subr.mxu0 0.0
        %2362 = vmatpush2.msra.mxu0 0.0
        %2363 = vmatprep.subr.mxu0 0.0
        %2364 = vmatpush2.msra.mxu0 0.0
        %2365 = vmatprep.mubr.f32.mxu0 0.0
        %2366 = vmatmul.mubr.f32.gmra.mxu0 %v2219
        %v2367 = vpop.f32.mrf.mxu0
        %v2368 = vadd.f32 0.0, %v2367
        %v2369 = vpop.f32.mrf.mxu0
        %v2370 = vadd.f32 0.0, %v2369
        %2371 = vmatprep.mubr.f32.mxu0 0.0
        %2372 = vmatmul.mubr.f32.gmra.mxu0 %v2222
        %v2373 = vpop.f32.mrf.mxu0
        %v2374 = vadd.f32 0.0, %v2373
        %v2375 = vpop.f32.mrf.mxu0
        %v2376 = vadd.f32 0.0, %v2375
        %2377 = vdwg.mxu0
        %v2378 = vmax.f32 %v2128, %v2291
        %v2379 = vmax.f32 %v2130, %v2293
        %v2380 = vmax.f32 %v2205, %v2368
        %v2381 = vmax.f32 %v2207, %v2370
        %v2382 = vmax.f32 %v2134, %v2297
        %v2383 = vmax.f32 %v2136, %v2299
        %v2384 = vmax.f32 %v2211, %v2374
        %v2385 = vmax.f32 %v2213, %v2376
        %v2386 = vld [vmem:[%s8] sm:$0xff]
        %v2387 = vld [vmem:[%s8 + $0x8] sm:$0xff]
        %v2388 = vld [vmem:[%s8 + $0x10] sm:$0xff]
        %v2389 = vld [vmem:[%s8 + $0x18] sm:$0xff]
        %v2390 = vld [vmem:[%s8 + $0x20] sm:$0xff]
        %v2391 = vld [vmem:[%s8 + $0x28] sm:$0xff]
        %v2392 = vld [vmem:[%s8 + $0x30] sm:$0xff]
        %v2393 = vld [vmem:[%s8 + $0x38] sm:$0xff]
        %v2394 = vld [vmem:[%s8 + $0x40] sm:$0xff]
        %v2395 = vld [vmem:[%s8 + $0x48] sm:$0xff]
        %v2396 = vld [vmem:[%s8 + $0x50] sm:$0xff]
        %v2397 = vld [vmem:[%s8 + $0x58] sm:$0xff]
        %v2398 = vld [vmem:[%s8 + $0x60] sm:$0xff]
        %v2399 = vld [vmem:[%s8 + $0x68] sm:$0xff]
        %v2400 = vld [vmem:[%s8 + $0x70] sm:$0xff]
        %v2401 = vld [vmem:[%s8 + $0x78] sm:$0xff]
        %v2402 = vld [vmem:[%s8 + $0x80] sm:$0xff]
        %v2403 = vld [vmem:[%s8 + $0x88] sm:$0xff]
        %v2404 = vld [vmem:[%s8 + $0x90] sm:$0xff]
        %v2405 = vld [vmem:[%s8 + $0x98] sm:$0xff]
        %v2406 = vld [vmem:[%s8 + $0xa0] sm:$0xff]
        %v2407 = vld [vmem:[%s8 + $0xa8] sm:$0xff]
        %v2408 = vld [vmem:[%s8 + $0xb0] sm:$0xff]
        %v2409 = vld [vmem:[%s8 + $0xb8] sm:$0xff]
        %v2410 = vld [vmem:[%s8 + $0xc0] sm:$0xff]
        %v2411 = vld [vmem:[%s8 + $0xc8] sm:$0xff]
        %v2412 = vld [vmem:[%s8 + $0xd0] sm:$0xff]
        %v2413 = vld [vmem:[%s8 + $0xd8] sm:$0xff]
        %v2414 = vld [vmem:[%s8 + $0xe0] sm:$0xff]
        %v2415 = vld [vmem:[%s8 + $0xe8] sm:$0xff]
        %v2416 = vld [vmem:[%s8 + $0xf0] sm:$0xff]
        %v2417 = vld [vmem:[%s8 + $0xf8] sm:$0xff]
        %v2418 = vld [vmem:[%s8 + $0x100] sm:$0xff]
        %v2419 = vld [vmem:[%s8 + $0x108] sm:$0xff]
        %v2420 = vld [vmem:[%s8 + $0x110] sm:$0xff]
        %v2421 = vld [vmem:[%s8 + $0x118] sm:$0xff]
        %v2422 = vld [vmem:[%s8 + $0x120] sm:$0xff]
        %v2423 = vld [vmem:[%s8 + $0x128] sm:$0xff]
        %v2424 = vld [vmem:[%s8 + $0x130] sm:$0xff]
        %v2425 = vld [vmem:[%s8 + $0x138] sm:$0xff]
        %v2426 = vld [vmem:[%s8 + $0x140] sm:$0xff]
        %v2427 = vld [vmem:[%s8 + $0x148] sm:$0xff]
        %v2428 = vld [vmem:[%s8 + $0x150] sm:$0xff]
        %v2429 = vld [vmem:[%s8 + $0x158] sm:$0xff]
        %v2430 = vld [vmem:[%s8 + $0x160] sm:$0xff]
        %v2431 = vld [vmem:[%s8 + $0x168] sm:$0xff]
        %v2432 = vld [vmem:[%s8 + $0x170] sm:$0xff]
        %v2433 = vld [vmem:[%s8 + $0x178] sm:$0xff]
        %v2434 = vld [vmem:[%s8 + $0x180] sm:$0xff]
        %v2435 = vld [vmem:[%s8 + $0x188] sm:$0xff]
        %v2436 = vld [vmem:[%s8 + $0x190] sm:$0xff]
        %v2437 = vld [vmem:[%s8 + $0x198] sm:$0xff]
        %v2438 = vld [vmem:[%s8 + $0x1a0] sm:$0xff]
        %v2439 = vld [vmem:[%s8 + $0x1a8] sm:$0xff]
        %v2440 = vld [vmem:[%s8 + $0x1b0] sm:$0xff]
        %v2441 = vld [vmem:[%s8 + $0x1b8] sm:$0xff]
        %v2442 = vld [vmem:[%s8 + $0x1c0] sm:$0xff]
        %v2443 = vld [vmem:[%s8 + $0x1c8] sm:$0xff]
        %v2444 = vld [vmem:[%s8 + $0x1d0] sm:$0xff]
        %v2445 = vld [vmem:[%s8 + $0x1d8] sm:$0xff]
        %v2446 = vld [vmem:[%s8 + $0x1e0] sm:$0xff]
        %v2447 = vld [vmem:[%s8 + $0x1e8] sm:$0xff]
        %v2448 = vld [vmem:[%s8 + $0x1f0] sm:$0xff]
        %v2449 = vld [vmem:[%s8 + $0x1f8] sm:$0xff]
        %v2450 = vld [vmem:[%s8 + $0x200] sm:$0xff]
        %v2451 = vld [vmem:[%s8 + $0x208] sm:$0xff]
        %v2452 = vld [vmem:[%s8 + $0x210] sm:$0xff]
        %v2453 = vld [vmem:[%s8 + $0x218] sm:$0xff]
        %v2454 = vld [vmem:[%s8 + $0x220] sm:$0xff]
        %v2455 = vld [vmem:[%s8 + $0x228] sm:$0xff]
        %v2456 = vld [vmem:[%s8 + $0x230] sm:$0xff]
        %v2457 = vld [vmem:[%s8 + $0x238] sm:$0xff]
        %v2458 = vld [vmem:[%s8 + $0x240] sm:$0xff]
        %v2459 = vld [vmem:[%s8 + $0x248] sm:$0xff]
        %v2460 = vld [vmem:[%s8 + $0x250] sm:$0xff]
        %v2461 = vld [vmem:[%s8 + $0x258] sm:$0xff]
        %v2462 = vld [vmem:[%s8 + $0x260] sm:$0xff]
        %v2463 = vld [vmem:[%s8 + $0x268] sm:$0xff]
        %v2464 = vld [vmem:[%s8 + $0x270] sm:$0xff]
        %v2465 = vld [vmem:[%s8 + $0x278] sm:$0xff]
        %v2466 = vld [vmem:[%s8 + $0x280] sm:$0xff]
        %v2467 = vld [vmem:[%s8 + $0x288] sm:$0xff]
        %v2468 = vld [vmem:[%s8 + $0x290] sm:$0xff]
        %v2469 = vld [vmem:[%s8 + $0x298] sm:$0xff]
        %v2470 = vld [vmem:[%s8 + $0x2a0] sm:$0xff]
        %v2471 = vld [vmem:[%s8 + $0x2a8] sm:$0xff]
        %v2472 = vld [vmem:[%s8 + $0x2b0] sm:$0xff]
        %v2473 = vld [vmem:[%s8 + $0x2b8] sm:$0xff]
        %v2474 = vld [vmem:[%s8 + $0x2c0] sm:$0xff]
        %v2475 = vld [vmem:[%s8 + $0x2c8] sm:$0xff]
        %v2476 = vld [vmem:[%s8 + $0x2d0] sm:$0xff]
        %v2477 = vld [vmem:[%s8 + $0x2d8] sm:$0xff]
        %v2478 = vld [vmem:[%s8 + $0x2e0] sm:$0xff]
        %v2479 = vld [vmem:[%s8 + $0x2e8] sm:$0xff]
        %v2480 = vld [vmem:[%s8 + $0x2f0] sm:$0xff]
        %v2481 = vld [vmem:[%s8 + $0x2f8] sm:$0xff]
        %v2482 = vld [vmem:[%s8 + $0x300] sm:$0xff]
        %v2483 = vld [vmem:[%s8 + $0x308] sm:$0xff]
        %v2484 = vld [vmem:[%s8 + $0x310] sm:$0xff]
        %v2485 = vld [vmem:[%s8 + $0x318] sm:$0xff]
        %v2486 = vld [vmem:[%s8 + $0x320] sm:$0xff]
        %v2487 = vld [vmem:[%s8 + $0x328] sm:$0xff]
        %v2488 = vld [vmem:[%s8 + $0x330] sm:$0xff]
        %v2489 = vld [vmem:[%s8 + $0x338] sm:$0xff]
        %v2490 = vld [vmem:[%s8 + $0x340] sm:$0xff]
        %v2491 = vld [vmem:[%s8 + $0x348] sm:$0xff]
        %v2492 = vld [vmem:[%s8 + $0x350] sm:$0xff]
        %v2493 = vld [vmem:[%s8 + $0x358] sm:$0xff]
        %v2494 = vld [vmem:[%s8 + $0x360] sm:$0xff]
        %v2495 = vld [vmem:[%s8 + $0x368] sm:$0xff]
        %v2496 = vld [vmem:[%s8 + $0x370] sm:$0xff]
        %v2497 = vld [vmem:[%s8 + $0x378] sm:$0xff]
        %vm2498 = vcmask 523264
        %v2500 = vsel %vm2498, %v2381, 0
        %v2503 = vsel %vm2498, %v2385, 0
        %2505 = vmatprep.subr.mxu0 %v2417
        %2506 = vmatpush1.msra.mxu0 %v2416
        %2507 = vmatprep.subr.mxu0 %v2415
        %2508 = vmatpush1.msra.mxu0 %v2414
        %2509 = vmatprep.subr.mxu0 %v2413
        %2510 = vmatpush1.msra.mxu0 %v2412
        %2511 = vmatprep.subr.mxu0 %v2411
        %2512 = vmatpush1.msra.mxu0 %v2410
        %2513 = vmatprep.subr.mxu0 %v2409
        %2514 = vmatpush1.msra.mxu0 %v2408
        %2515 = vmatprep.subr.mxu0 %v2407
        %2516 = vmatpush1.msra.mxu0 %v2406
        %2517 = vmatprep.subr.mxu0 %v2405
        %2518 = vmatpush1.msra.mxu0 %v2404
        %2519 = vmatprep.subr.mxu0 %v2403
        %2520 = vmatpush1.msra.mxu0 %v2402
        %2521 = vmatprep.subr.mxu0 %v2401
        %2522 = vmatpush1.msra.mxu0 %v2400
        %2523 = vmatprep.subr.mxu0 %v2399
        %2524 = vmatpush1.msra.mxu0 %v2398
        %2525 = vmatprep.subr.mxu0 %v2397
        %2526 = vmatpush1.msra.mxu0 %v2396
        %2527 = vmatprep.subr.mxu0 %v2395
        %2528 = vmatpush1.msra.mxu0 %v2394
        %2529 = vmatprep.subr.mxu0 %v2393
        %2530 = vmatpush1.msra.mxu0 %v2392
        %2531 = vmatprep.subr.mxu0 %v2391
        %2532 = vmatpush1.msra.mxu0 %v2390
        %2533 = vmatprep.subr.mxu0 %v2389
        %2534 = vmatpush1.msra.mxu0 %v2388
        %2535 = vmatprep.subr.mxu0 %v2387
        %2536 = vmatpush1.msra.mxu0 %v2386
        %2537 = vmatprep.subr.mxu0 %v2449
        %2538 = vmatpush2.msra.mxu0 %v2448
        %2539 = vmatprep.subr.mxu0 %v2447
        %2540 = vmatpush2.msra.mxu0 %v2446
        %2541 = vmatprep.subr.mxu0 %v2445
        %2542 = vmatpush2.msra.mxu0 %v2444
        %2543 = vmatprep.subr.mxu0 %v2443
        %2544 = vmatpush2.msra.mxu0 %v2442
        %2545 = vmatprep.subr.mxu0 %v2441
        %2546 = vmatpush2.msra.mxu0 %v2440
        %2547 = vmatprep.subr.mxu0 %v2439
        %2548 = vmatpush2.msra.mxu0 %v2438
        %2549 = vmatprep.subr.mxu0 %v2437
        %2550 = vmatpush2.msra.mxu0 %v2436
        %2551 = vmatprep.subr.mxu0 %v2435
        %2552 = vmatpush2.msra.mxu0 %v2434
        %2553 = vmatprep.subr.mxu0 %v2433
        %2554 = vmatpush2.msra.mxu0 %v2432
        %2555 = vmatprep.subr.mxu0 %v2431
        %2556 = vmatpush2.msra.mxu0 %v2430
        %2557 = vmatprep.subr.mxu0 %v2429
        %2558 = vmatpush2.msra.mxu0 %v2428
        %2559 = vmatprep.subr.mxu0 %v2427
        %2560 = vmatpush2.msra.mxu0 %v2426
        %2561 = vmatprep.subr.mxu0 %v2425
        %2562 = vmatpush2.msra.mxu0 %v2424
        %2563 = vmatprep.subr.mxu0 %v2423
        %2564 = vmatpush2.msra.mxu0 %v2422
        %2565 = vmatprep.subr.mxu0 %v2421
        %2566 = vmatpush2.msra.mxu0 %v2420
        %2567 = vmatprep.subr.mxu0 %v2419
        %2568 = vmatpush2.msra.mxu0 %v2418
        %2569 = vmatprep.mubr.f32.mxu0 %v2379
        %2570 = vmatmul.mubr.f32.gmra.mxu0 %v2378
        %v2571 = vpop.f32.mrf.mxu0
        %v2572 = vadd.f32 0.0, %v2571
        %v2573 = vpop.f32.mrf.mxu0
        %v2574 = vadd.f32 0.0, %v2573
        %2575 = vmatprep.mubr.f32.mxu0 %v2383
        %2576 = vmatmul.mubr.f32.gmra.mxu0 %v2382
        %v2577 = vpop.f32.mrf.mxu0
        %v2578 = vadd.f32 0.0, %v2577
        %v2579 = vpop.f32.mrf.mxu0
        %v2580 = vadd.f32 0.0, %v2579
        %2581 = vdwg.mxu0
        %2582 = vmatprep.subr.mxu0 %v2481
        %2583 = vmatpush1.msra.mxu0 %v2480
        %2584 = vmatprep.subr.mxu0 %v2479
        %2585 = vmatpush1.msra.mxu0 %v2478
        %2586 = vmatprep.subr.mxu0 %v2477
        %2587 = vmatpush1.msra.mxu0 %v2476
        %2588 = vmatprep.subr.mxu0 %v2475
        %2589 = vmatpush1.msra.mxu0 %v2474
        %2590 = vmatprep.subr.mxu0 %v2473
        %2591 = vmatpush1.msra.mxu0 %v2472
        %2592 = vmatprep.subr.mxu0 %v2471
        %2593 = vmatpush1.msra.mxu0 %v2470
        %2594 = vmatprep.subr.mxu0 %v2469
        %2595 = vmatpush1.msra.mxu0 %v2468
        %2596 = vmatprep.subr.mxu0 %v2467
        %2597 = vmatpush1.msra.mxu0 %v2466
        %2598 = vmatprep.subr.mxu0 %v2465
        %2599 = vmatpush1.msra.mxu0 %v2464
        %2600 = vmatprep.subr.mxu0 %v2463
        %2601 = vmatpush1.msra.mxu0 %v2462
        %2602 = vmatprep.subr.mxu0 %v2461
        %2603 = vmatpush1.msra.mxu0 %v2460
        %2604 = vmatprep.subr.mxu0 %v2459
        %2605 = vmatpush1.msra.mxu0 %v2458
        %2606 = vmatprep.subr.mxu0 %v2457
        %2607 = vmatpush1.msra.mxu0 %v2456
        %2608 = vmatprep.subr.mxu0 %v2455
        %2609 = vmatpush1.msra.mxu0 %v2454
        %2610 = vmatprep.subr.mxu0 %v2453
        %2611 = vmatpush1.msra.mxu0 %v2452
        %2612 = vmatprep.subr.mxu0 %v2451
        %2613 = vmatpush1.msra.mxu0 %v2450
        %2614 = vmatprep.subr.mxu0 0.0
        %2615 = vmatpush2.msra.mxu0 0.0
        %2616 = vmatprep.subr.mxu0 0.0
        %2617 = vmatpush2.msra.mxu0 0.0
        %2618 = vmatprep.subr.mxu0 0.0
        %2619 = vmatpush2.msra.mxu0 0.0
        %2620 = vmatprep.subr.mxu0 0.0
        %2621 = vmatpush2.msra.mxu0 0.0
        %2622 = vmatprep.subr.mxu0 0.0
        %2623 = vmatpush2.msra.mxu0 0.0
        %2624 = vmatprep.subr.mxu0 0.0
        %2625 = vmatpush2.msra.mxu0 0.0
        %2626 = vmatprep.subr.mxu0 0.0
        %2627 = vmatpush2.msra.mxu0 0.0
        %2628 = vmatprep.subr.mxu0 0.0
        %2629 = vmatpush2.msra.mxu0 0.0
        %2630 = vmatprep.subr.mxu0 %v2497
        %2631 = vmatpush2.msra.mxu0 %v2496
        %2632 = vmatprep.subr.mxu0 %v2495
        %2633 = vmatpush2.msra.mxu0 %v2494
        %2634 = vmatprep.subr.mxu0 %v2493
        %2635 = vmatpush2.msra.mxu0 %v2492
        %2636 = vmatprep.subr.mxu0 %v2491
        %2637 = vmatpush2.msra.mxu0 %v2490
        %2638 = vmatprep.subr.mxu0 %v2489
        %2639 = vmatpush2.msra.mxu0 %v2488
        %2640 = vmatprep.subr.mxu0 %v2487
        %2641 = vmatpush2.msra.mxu0 %v2486
        %2642 = vmatprep.subr.mxu0 %v2485
        %2643 = vmatpush2.msra.mxu0 %v2484
        %2644 = vmatprep.subr.mxu0 %v2483
        %2645 = vmatpush2.msra.mxu0 %v2482
        %2646 = vmatprep.mubr.f32.mxu0 %v2500
        %2647 = vmatmul.mubr.f32.gmra.mxu0 %v2380
        %v2648 = vpop.f32.mrf.mxu0
        %v2649 = vadd.f32 %v2572, %v2648
        %v2650 = vpop.f32.mrf.mxu0
        %v2651 = vadd.f32 %v2574, %v2650
        %2652 = vmatprep.mubr.f32.mxu0 %v2503
        %2653 = vmatmul.mubr.f32.gmra.mxu0 %v2384
        %v2654 = vpop.f32.mrf.mxu0
        %v2655 = vadd.f32 %v2578, %v2654
        %v2656 = vpop.f32.mrf.mxu0
        %v2657 = vadd.f32 %v2580, %v2656
        %2658 = vdwg.mxu0
        %s2659 = scalar_lea.vmem %s8, 896
        %v2660 = vld [vmem:[%s2659] sm:$0xff]
        %v2661 = vld [vmem:[%s2659 + $0x8] sm:$0xff]
        %v2662 = vld [vmem:[%s2659 + $0x10] sm:$0xff]
        %v2663 = vld [vmem:[%s2659 + $0x18] sm:$0xff]
        %v2664 = vld [vmem:[%s2659 + $0x20] sm:$0xff]
        %v2665 = vld [vmem:[%s2659 + $0x28] sm:$0xff]
        %v2666 = vld [vmem:[%s2659 + $0x30] sm:$0xff]
        %v2667 = vld [vmem:[%s2659 + $0x38] sm:$0xff]
        %v2668 = vld [vmem:[%s2659 + $0x40] sm:$0xff]
        %v2669 = vld [vmem:[%s2659 + $0x48] sm:$0xff]
        %v2670 = vld [vmem:[%s2659 + $0x50] sm:$0xff]
        %v2671 = vld [vmem:[%s2659 + $0x58] sm:$0xff]
        %v2672 = vld [vmem:[%s2659 + $0x60] sm:$0xff]
        %v2673 = vld [vmem:[%s2659 + $0x68] sm:$0xff]
        %v2674 = vld [vmem:[%s2659 + $0x70] sm:$0xff]
        %v2675 = vld [vmem:[%s2659 + $0x78] sm:$0xff]
        %v2676 = vld [vmem:[%s2659 + $0x80] sm:$0xff]
        %v2677 = vld [vmem:[%s2659 + $0x88] sm:$0xff]
        %v2678 = vld [vmem:[%s2659 + $0x90] sm:$0xff]
        %v2679 = vld [vmem:[%s2659 + $0x98] sm:$0xff]
        %v2680 = vld [vmem:[%s2659 + $0xa0] sm:$0xff]
        %v2681 = vld [vmem:[%s2659 + $0xa8] sm:$0xff]
        %v2682 = vld [vmem:[%s2659 + $0xb0] sm:$0xff]
        %v2683 = vld [vmem:[%s2659 + $0xb8] sm:$0xff]
        %v2684 = vld [vmem:[%s2659 + $0xc0] sm:$0xff]
        %v2685 = vld [vmem:[%s2659 + $0xc8] sm:$0xff]
        %v2686 = vld [vmem:[%s2659 + $0xd0] sm:$0xff]
        %v2687 = vld [vmem:[%s2659 + $0xd8] sm:$0xff]
        %v2688 = vld [vmem:[%s2659 + $0xe0] sm:$0xff]
        %v2689 = vld [vmem:[%s2659 + $0xe8] sm:$0xff]
        %v2690 = vld [vmem:[%s2659 + $0xf0] sm:$0xff]
        %v2691 = vld [vmem:[%s2659 + $0xf8] sm:$0xff]
        %v2692 = vld [vmem:[%s2659 + $0x100] sm:$0xff]
        %v2693 = vld [vmem:[%s2659 + $0x108] sm:$0xff]
        %v2694 = vld [vmem:[%s2659 + $0x110] sm:$0xff]
        %v2695 = vld [vmem:[%s2659 + $0x118] sm:$0xff]
        %v2696 = vld [vmem:[%s2659 + $0x120] sm:$0xff]
        %v2697 = vld [vmem:[%s2659 + $0x128] sm:$0xff]
        %v2698 = vld [vmem:[%s2659 + $0x130] sm:$0xff]
        %v2699 = vld [vmem:[%s2659 + $0x138] sm:$0xff]
        %v2700 = vld [vmem:[%s2659 + $0x140] sm:$0xff]
        %v2701 = vld [vmem:[%s2659 + $0x148] sm:$0xff]
        %v2702 = vld [vmem:[%s2659 + $0x150] sm:$0xff]
        %v2703 = vld [vmem:[%s2659 + $0x158] sm:$0xff]
        %v2704 = vld [vmem:[%s2659 + $0x160] sm:$0xff]
        %v2705 = vld [vmem:[%s2659 + $0x168] sm:$0xff]
        %v2706 = vld [vmem:[%s2659 + $0x170] sm:$0xff]
        %v2707 = vld [vmem:[%s2659 + $0x178] sm:$0xff]
        %v2708 = vld [vmem:[%s2659 + $0x180] sm:$0xff]
        %v2709 = vld [vmem:[%s2659 + $0x188] sm:$0xff]
        %v2710 = vld [vmem:[%s2659 + $0x190] sm:$0xff]
        %v2711 = vld [vmem:[%s2659 + $0x198] sm:$0xff]
        %v2712 = vld [vmem:[%s2659 + $0x1a0] sm:$0xff]
        %v2713 = vld [vmem:[%s2659 + $0x1a8] sm:$0xff]
        %v2714 = vld [vmem:[%s2659 + $0x1b0] sm:$0xff]
        %v2715 = vld [vmem:[%s2659 + $0x1b8] sm:$0xff]
        %v2716 = vld [vmem:[%s2659 + $0x1c0] sm:$0xff]
        %v2717 = vld [vmem:[%s2659 + $0x1c8] sm:$0xff]
        %v2718 = vld [vmem:[%s2659 + $0x1d0] sm:$0xff]
        %v2719 = vld [vmem:[%s2659 + $0x1d8] sm:$0xff]
        %v2720 = vld [vmem:[%s2659 + $0x1e0] sm:$0xff]
        %v2721 = vld [vmem:[%s2659 + $0x1e8] sm:$0xff]
        %v2722 = vld [vmem:[%s2659 + $0x1f0] sm:$0xff]
        %v2723 = vld [vmem:[%s2659 + $0x1f8] sm:$0xff]
        %v2724 = vld [vmem:[%s2659 + $0x200] sm:$0xff]
        %v2725 = vld [vmem:[%s2659 + $0x208] sm:$0xff]
        %v2726 = vld [vmem:[%s2659 + $0x210] sm:$0xff]
        %v2727 = vld [vmem:[%s2659 + $0x218] sm:$0xff]
        %v2728 = vld [vmem:[%s2659 + $0x220] sm:$0xff]
        %v2729 = vld [vmem:[%s2659 + $0x228] sm:$0xff]
        %v2730 = vld [vmem:[%s2659 + $0x230] sm:$0xff]
        %v2731 = vld [vmem:[%s2659 + $0x238] sm:$0xff]
        %v2732 = vld [vmem:[%s2659 + $0x240] sm:$0xff]
        %v2733 = vld [vmem:[%s2659 + $0x248] sm:$0xff]
        %v2734 = vld [vmem:[%s2659 + $0x250] sm:$0xff]
        %v2735 = vld [vmem:[%s2659 + $0x258] sm:$0xff]
        %v2736 = vld [vmem:[%s2659 + $0x260] sm:$0xff]
        %v2737 = vld [vmem:[%s2659 + $0x268] sm:$0xff]
        %v2738 = vld [vmem:[%s2659 + $0x270] sm:$0xff]
        %v2739 = vld [vmem:[%s2659 + $0x278] sm:$0xff]
        %v2740 = vld [vmem:[%s2659 + $0x280] sm:$0xff]
        %v2741 = vld [vmem:[%s2659 + $0x288] sm:$0xff]
        %v2742 = vld [vmem:[%s2659 + $0x290] sm:$0xff]
        %v2743 = vld [vmem:[%s2659 + $0x298] sm:$0xff]
        %v2744 = vld [vmem:[%s2659 + $0x2a0] sm:$0xff]
        %v2745 = vld [vmem:[%s2659 + $0x2a8] sm:$0xff]
        %v2746 = vld [vmem:[%s2659 + $0x2b0] sm:$0xff]
        %v2747 = vld [vmem:[%s2659 + $0x2b8] sm:$0xff]
        %v2748 = vld [vmem:[%s2659 + $0x2c0] sm:$0xff]
        %v2749 = vld [vmem:[%s2659 + $0x2c8] sm:$0xff]
        %v2750 = vld [vmem:[%s2659 + $0x2d0] sm:$0xff]
        %v2751 = vld [vmem:[%s2659 + $0x2d8] sm:$0xff]
        %v2752 = vld [vmem:[%s2659 + $0x2e0] sm:$0xff]
        %v2753 = vld [vmem:[%s2659 + $0x2e8] sm:$0xff]
        %v2754 = vld [vmem:[%s2659 + $0x2f0] sm:$0xff]
        %v2755 = vld [vmem:[%s2659 + $0x2f8] sm:$0xff]
        %v2756 = vld [vmem:[%s2659 + $0x300] sm:$0xff]
        %v2757 = vld [vmem:[%s2659 + $0x308] sm:$0xff]
        %v2758 = vld [vmem:[%s2659 + $0x310] sm:$0xff]
        %v2759 = vld [vmem:[%s2659 + $0x318] sm:$0xff]
        %v2760 = vld [vmem:[%s2659 + $0x320] sm:$0xff]
        %v2761 = vld [vmem:[%s2659 + $0x328] sm:$0xff]
        %v2762 = vld [vmem:[%s2659 + $0x330] sm:$0xff]
        %v2763 = vld [vmem:[%s2659 + $0x338] sm:$0xff]
        %v2764 = vld [vmem:[%s2659 + $0x340] sm:$0xff]
        %v2765 = vld [vmem:[%s2659 + $0x348] sm:$0xff]
        %v2766 = vld [vmem:[%s2659 + $0x350] sm:$0xff]
        %v2767 = vld [vmem:[%s2659 + $0x358] sm:$0xff]
        %v2768 = vld [vmem:[%s2659 + $0x360] sm:$0xff]
        %v2769 = vld [vmem:[%s2659 + $0x368] sm:$0xff]
        %v2770 = vld [vmem:[%s2659 + $0x370] sm:$0xff]
        %v2771 = vld [vmem:[%s2659 + $0x378] sm:$0xff]
        %2772 = vmatprep.subr.mxu0 %v2691
        %2773 = vmatpush1.msra.mxu0 %v2690
        %2774 = vmatprep.subr.mxu0 %v2689
        %2775 = vmatpush1.msra.mxu0 %v2688
        %2776 = vmatprep.subr.mxu0 %v2687
        %2777 = vmatpush1.msra.mxu0 %v2686
        %2778 = vmatprep.subr.mxu0 %v2685
        %2779 = vmatpush1.msra.mxu0 %v2684
        %2780 = vmatprep.subr.mxu0 %v2683
        %2781 = vmatpush1.msra.mxu0 %v2682
        %2782 = vmatprep.subr.mxu0 %v2681
        %2783 = vmatpush1.msra.mxu0 %v2680
        %2784 = vmatprep.subr.mxu0 %v2679
        %2785 = vmatpush1.msra.mxu0 %v2678
        %2786 = vmatprep.subr.mxu0 %v2677
        %2787 = vmatpush1.msra.mxu0 %v2676
        %2788 = vmatprep.subr.mxu0 %v2675
        %2789 = vmatpush1.msra.mxu0 %v2674
        %2790 = vmatprep.subr.mxu0 %v2673
        %2791 = vmatpush1.msra.mxu0 %v2672
        %2792 = vmatprep.subr.mxu0 %v2671
        %2793 = vmatpush1.msra.mxu0 %v2670
        %2794 = vmatprep.subr.mxu0 %v2669
        %2795 = vmatpush1.msra.mxu0 %v2668
        %2796 = vmatprep.subr.mxu0 %v2667
        %2797 = vmatpush1.msra.mxu0 %v2666
        %2798 = vmatprep.subr.mxu0 %v2665
        %2799 = vmatpush1.msra.mxu0 %v2664
        %2800 = vmatprep.subr.mxu0 %v2663
        %2801 = vmatpush1.msra.mxu0 %v2662
        %2802 = vmatprep.subr.mxu0 %v2661
        %2803 = vmatpush1.msra.mxu0 %v2660
        %2804 = vmatprep.subr.mxu0 %v2723
        %2805 = vmatpush2.msra.mxu0 %v2722
        %2806 = vmatprep.subr.mxu0 %v2721
        %2807 = vmatpush2.msra.mxu0 %v2720
        %2808 = vmatprep.subr.mxu0 %v2719
        %2809 = vmatpush2.msra.mxu0 %v2718
        %2810 = vmatprep.subr.mxu0 %v2717
        %2811 = vmatpush2.msra.mxu0 %v2716
        %2812 = vmatprep.subr.mxu0 %v2715
        %2813 = vmatpush2.msra.mxu0 %v2714
        %2814 = vmatprep.subr.mxu0 %v2713
        %2815 = vmatpush2.msra.mxu0 %v2712
        %2816 = vmatprep.subr.mxu0 %v2711
        %2817 = vmatpush2.msra.mxu0 %v2710
        %2818 = vmatprep.subr.mxu0 %v2709
        %2819 = vmatpush2.msra.mxu0 %v2708
        %2820 = vmatprep.subr.mxu0 %v2707
        %2821 = vmatpush2.msra.mxu0 %v2706
        %2822 = vmatprep.subr.mxu0 %v2705
        %2823 = vmatpush2.msra.mxu0 %v2704
        %2824 = vmatprep.subr.mxu0 %v2703
        %2825 = vmatpush2.msra.mxu0 %v2702
        %2826 = vmatprep.subr.mxu0 %v2701
        %2827 = vmatpush2.msra.mxu0 %v2700
        %2828 = vmatprep.subr.mxu0 %v2699
        %2829 = vmatpush2.msra.mxu0 %v2698
        %2830 = vmatprep.subr.mxu0 %v2697
        %2831 = vmatpush2.msra.mxu0 %v2696
        %2832 = vmatprep.subr.mxu0 %v2695
        %2833 = vmatpush2.msra.mxu0 %v2694
        %2834 = vmatprep.subr.mxu0 %v2693
        %2835 = vmatpush2.msra.mxu0 %v2692
        %2836 = vmatprep.mubr.f32.mxu0 %v2379
        %2837 = vmatmul.mubr.f32.gmra.mxu0 %v2378
        %v2838 = vpop.f32.mrf.mxu0
        %v2839 = vadd.f32 0.0, %v2838
        %v2840 = vpop.f32.mrf.mxu0
        %v2841 = vadd.f32 0.0, %v2840
        %2842 = vmatprep.mubr.f32.mxu0 %v2383
        %2843 = vmatmul.mubr.f32.gmra.mxu0 %v2382
        %v2844 = vpop.f32.mrf.mxu0
        %v2845 = vadd.f32 0.0, %v2844
        %v2846 = vpop.f32.mrf.mxu0
        %v2847 = vadd.f32 0.0, %v2846
        %2848 = vdwg.mxu0
        %2849 = vmatprep.subr.mxu0 %v2755
        %2850 = vmatpush1.msra.mxu0 %v2754
        %2851 = vmatprep.subr.mxu0 %v2753
        %2852 = vmatpush1.msra.mxu0 %v2752
        %2853 = vmatprep.subr.mxu0 %v2751
        %2854 = vmatpush1.msra.mxu0 %v2750
        %2855 = vmatprep.subr.mxu0 %v2749
        %2856 = vmatpush1.msra.mxu0 %v2748
        %2857 = vmatprep.subr.mxu0 %v2747
        %2858 = vmatpush1.msra.mxu0 %v2746
        %2859 = vmatprep.subr.mxu0 %v2745
        %2860 = vmatpush1.msra.mxu0 %v2744
        %2861 = vmatprep.subr.mxu0 %v2743
        %2862 = vmatpush1.msra.mxu0 %v2742
        %2863 = vmatprep.subr.mxu0 %v2741
        %2864 = vmatpush1.msra.mxu0 %v2740
        %2865 = vmatprep.subr.mxu0 %v2739
        %2866 = vmatpush1.msra.mxu0 %v2738
        %2867 = vmatprep.subr.mxu0 %v2737
        %2868 = vmatpush1.msra.mxu0 %v2736
        %2869 = vmatprep.subr.mxu0 %v2735
        %2870 = vmatpush1.msra.mxu0 %v2734
        %2871 = vmatprep.subr.mxu0 %v2733
        %2872 = vmatpush1.msra.mxu0 %v2732
        %2873 = vmatprep.subr.mxu0 %v2731
        %2874 = vmatpush1.msra.mxu0 %v2730
        %2875 = vmatprep.subr.mxu0 %v2729
        %2876 = vmatpush1.msra.mxu0 %v2728
        %2877 = vmatprep.subr.mxu0 %v2727
        %2878 = vmatpush1.msra.mxu0 %v2726
        %2879 = vmatprep.subr.mxu0 %v2725
        %2880 = vmatpush1.msra.mxu0 %v2724
        %2881 = vmatprep.subr.mxu0 0.0
        %2882 = vmatpush2.msra.mxu0 0.0
        %2883 = vmatprep.subr.mxu0 0.0
        %2884 = vmatpush2.msra.mxu0 0.0
        %2885 = vmatprep.subr.mxu0 0.0
        %2886 = vmatpush2.msra.mxu0 0.0
        %2887 = vmatprep.subr.mxu0 0.0
        %2888 = vmatpush2.msra.mxu0 0.0
        %2889 = vmatprep.subr.mxu0 0.0
        %2890 = vmatpush2.msra.mxu0 0.0
        %2891 = vmatprep.subr.mxu0 0.0
        %2892 = vmatpush2.msra.mxu0 0.0
        %2893 = vmatprep.subr.mxu0 0.0
        %2894 = vmatpush2.msra.mxu0 0.0
        %2895 = vmatprep.subr.mxu0 0.0
        %2896 = vmatpush2.msra.mxu0 0.0
        %2897 = vmatprep.subr.mxu0 %v2771
        %2898 = vmatpush2.msra.mxu0 %v2770
        %2899 = vmatprep.subr.mxu0 %v2769
        %2900 = vmatpush2.msra.mxu0 %v2768
        %2901 = vmatprep.subr.mxu0 %v2767
        %2902 = vmatpush2.msra.mxu0 %v2766
        %2903 = vmatprep.subr.mxu0 %v2765
        %2904 = vmatpush2.msra.mxu0 %v2764
        %2905 = vmatprep.subr.mxu0 %v2763
        %2906 = vmatpush2.msra.mxu0 %v2762
        %2907 = vmatprep.subr.mxu0 %v2761
        %2908 = vmatpush2.msra.mxu0 %v2760
        %2909 = vmatprep.subr.mxu0 %v2759
        %2910 = vmatpush2.msra.mxu0 %v2758
        %2911 = vmatprep.subr.mxu0 %v2757
        %2912 = vmatpush2.msra.mxu0 %v2756
        %2913 = vmatprep.mubr.f32.mxu0 %v2500
        %2914 = vmatmul.mubr.f32.gmra.mxu0 %v2380
        %v2915 = vpop.f32.mrf.mxu0
        %v2916 = vadd.f32 %v2839, %v2915
        %v2917 = vpop.f32.mrf.mxu0
        %v2918 = vadd.f32 %v2841, %v2917
        %2919 = vmatprep.mubr.f32.mxu0 %v2503
        %2920 = vmatmul.mubr.f32.gmra.mxu0 %v2384
        %v2921 = vpop.f32.mrf.mxu0
        %v2922 = vadd.f32 %v2845, %v2921
        %v2923 = vpop.f32.mrf.mxu0
        %v2924 = vadd.f32 %v2847, %v2923
        %2925 = vdwg.mxu0
        %v2926 = vmax.f32 %v2649, %v2916
        %v2927 = vmax.f32 %v2651, %v2918
        %v2928 = vmax.f32 %v2655, %v2922
        %v2929 = vmax.f32 %v2657, %v2924
        %2930 = vst.msk [vmem:[#allocation4] ss:$8 sm:$0x3] %vm959, 0.0
        %2931 = vst.msk [vmem:[#allocation4] ss:$8 sm:$0x0] %vm959, 0.0
        %s2932 = scalar_lea.vmem [#allocation4], 23
        %2933 = vst.msk [vmem:[%s2932] ss:$8 sm:$0x3] %vm959, 0.0
        %2934 = vst.msk [vmem:[%s2932] ss:$8 sm:$0x0] %vm959, 0.0
        %v2939 = vrot.slane %v2926, 7
        %v2940 = vrot.slane %v2927, 7
        %v2941 = vrot.slane %v2928, 7
        %v2942 = vsel %vm973, %v2939, %v2941
        %v2943 = vrot.slane %v2929, 7
        %v2944 = vsel %vm973, %v2940, %v2943
        %2949 = vst [vmem:[#allocation4] sm:$0xfe] %v2939
        %2950 = vst.msk [vmem:[#allocation4 + $0x8] sm:$0xfe] %vm997, %v2940
        %2951 = vst [vmem:[#allocation4 + $0x10] sm:$0x7f] %v2942
        %vm2952 = vcmask 784384
        %2953 = vst.msk [vmem:[#allocation4 + $0x18] sm:$0x7f] %vm2952, %v2944
        %v2954 = vld [vmem:[#allocation4] sm:$0xff]
        %v2955 = vld [vmem:[#allocation4 + $0x8] sm:$0xff]
        %v2956 = vld [vmem:[#allocation4 + $0x10] sm:$0x3f]
        %v2957 = vld [vmem:[#allocation4 + $0x18] sm:$0x3f]
        %v2958 = vld [vmem:[#allocation11] sm:$0xff]
        %v2959 = vld [vmem:[#allocation11 + $0x8] sm:$0xff]
        %v2960 = vld [vmem:[#allocation11 + $0x10] sm:$0xff]
        %v2961 = vld [vmem:[#allocation11 + $0x18] sm:$0xff]
        %v2962 = vld [vmem:[#allocation11 + $0x20] sm:$0xff]
        %v2963 = vld [vmem:[#allocation11 + $0x28] sm:$0xff]
        %v2964 = vld [vmem:[#allocation11 + $0x30] sm:$0xff]
        %v2965 = vld [vmem:[#allocation11 + $0x38] sm:$0xff]
        %v2966 = vld [vmem:[#allocation11 + $0x40] sm:$0xff]
        %v2967 = vld [vmem:[#allocation11 + $0x48] sm:$0xff]
        %v2968 = vld [vmem:[#allocation11 + $0x50] sm:$0xff]
        %v2969 = vld [vmem:[#allocation11 + $0x58] sm:$0xff]
        %v2970 = vld [vmem:[#allocation11 + $0x60] sm:$0xff]
        %v2971 = vld [vmem:[#allocation11 + $0x68] sm:$0xff]
        %v2972 = vld [vmem:[#allocation11 + $0x70] sm:$0xff]
        %v2973 = vld [vmem:[#allocation11 + $0x78] sm:$0xff]
        %v2974 = vld [vmem:[#allocation11 + $0x80] sm:$0xff]
        %v2975 = vld [vmem:[#allocation11 + $0x88] sm:$0xff]
        %v2976 = vld [vmem:[#allocation11 + $0x90] sm:$0xff]
        %v2977 = vld [vmem:[#allocation11 + $0x98] sm:$0xff]
        %v2978 = vld [vmem:[#allocation11 + $0xa0] sm:$0xff]
        %v2979 = vld [vmem:[#allocation11 + $0xa8] sm:$0xff]
        %v2980 = vld [vmem:[#allocation11 + $0xb0] sm:$0xff]
        %v2981 = vld [vmem:[#allocation11 + $0xb8] sm:$0xff]
        %v2982 = vld [vmem:[#allocation11 + $0xc0] sm:$0xff]
        %v2983 = vld [vmem:[#allocation11 + $0xc8] sm:$0xff]
        %v2984 = vld [vmem:[#allocation11 + $0xd0] sm:$0xff]
        %v2985 = vld [vmem:[#allocation11 + $0xd8] sm:$0xff]
        %v2986 = vld [vmem:[#allocation11 + $0xe0] sm:$0xff]
        %v2987 = vld [vmem:[#allocation11 + $0xe8] sm:$0xff]
        %v2988 = vld [vmem:[#allocation11 + $0xf0] sm:$0xff]
        %v2989 = vld [vmem:[#allocation11 + $0xf8] sm:$0xff]
        %v2990 = vld [vmem:[#allocation11 + $0x100] sm:$0xff]
        %v2991 = vld [vmem:[#allocation11 + $0x108] sm:$0xff]
        %v2992 = vld [vmem:[#allocation11 + $0x110] sm:$0xff]
        %v2993 = vld [vmem:[#allocation11 + $0x118] sm:$0xff]
        %v2994 = vld [vmem:[#allocation11 + $0x120] sm:$0xff]
        %v2995 = vld [vmem:[#allocation11 + $0x128] sm:$0xff]
        %v2996 = vld [vmem:[#allocation11 + $0x130] sm:$0xff]
        %v2997 = vld [vmem:[#allocation11 + $0x138] sm:$0xff]
        %v2998 = vld [vmem:[#allocation11 + $0x140] sm:$0xff]
        %v2999 = vld [vmem:[#allocation11 + $0x148] sm:$0xff]
        %v3000 = vld [vmem:[#allocation11 + $0x150] sm:$0xff]
        %v3001 = vld [vmem:[#allocation11 + $0x158] sm:$0xff]
        %v3002 = vld [vmem:[#allocation11 + $0x160] sm:$0xff]
        %v3003 = vld [vmem:[#allocation11 + $0x168] sm:$0xff]
        %v3004 = vld [vmem:[#allocation11 + $0x170] sm:$0xff]
        %v3005 = vld [vmem:[#allocation11 + $0x178] sm:$0xff]
        %v3006 = vld [vmem:[#allocation11 + $0x180] sm:$0xff]
        %v3007 = vld [vmem:[#allocation11 + $0x188] sm:$0xff]
        %v3008 = vld [vmem:[#allocation11 + $0x190] sm:$0xff]
        %v3009 = vld [vmem:[#allocation11 + $0x198] sm:$0xff]
        %v3010 = vld [vmem:[#allocation11 + $0x1a0] sm:$0xff]
        %v3011 = vld [vmem:[#allocation11 + $0x1a8] sm:$0xff]
        %v3012 = vld [vmem:[#allocation11 + $0x1b0] sm:$0xff]
        %v3013 = vld [vmem:[#allocation11 + $0x1b8] sm:$0xff]
        %v3014 = vld [vmem:[#allocation11 + $0x1c0] sm:$0xff]
        %v3015 = vld [vmem:[#allocation11 + $0x1c8] sm:$0xff]
        %v3016 = vld [vmem:[#allocation11 + $0x1d0] sm:$0xff]
        %v3017 = vld [vmem:[#allocation11 + $0x1d8] sm:$0xff]
        %v3018 = vld [vmem:[#allocation11 + $0x1e0] sm:$0xff]
        %v3019 = vld [vmem:[#allocation11 + $0x1e8] sm:$0xff]
        %v3020 = vld [vmem:[#allocation11 + $0x1f0] sm:$0xff]
        %v3021 = vld [vmem:[#allocation11 + $0x1f8] sm:$0xff]
        %v3022 = vld [vmem:[#allocation11 + $0x200] sm:$0xff]
        %v3023 = vld [vmem:[#allocation11 + $0x208] sm:$0xff]
        %v3024 = vld [vmem:[#allocation11 + $0x210] sm:$0xff]
        %v3025 = vld [vmem:[#allocation11 + $0x218] sm:$0xff]
        %v3026 = vld [vmem:[#allocation11 + $0x220] sm:$0xff]
        %v3027 = vld [vmem:[#allocation11 + $0x228] sm:$0xff]
        %v3028 = vld [vmem:[#allocation11 + $0x230] sm:$0xff]
        %v3029 = vld [vmem:[#allocation11 + $0x238] sm:$0xff]
        %v3030 = vld [vmem:[#allocation11 + $0x240] sm:$0xff]
        %v3031 = vld [vmem:[#allocation11 + $0x248] sm:$0xff]
        %v3032 = vld [vmem:[#allocation11 + $0x250] sm:$0xff]
        %v3033 = vld [vmem:[#allocation11 + $0x258] sm:$0xff]
        %v3034 = vld [vmem:[#allocation11 + $0x260] sm:$0xff]
        %v3035 = vld [vmem:[#allocation11 + $0x268] sm:$0xff]
        %v3036 = vld [vmem:[#allocation11 + $0x270] sm:$0xff]
        %v3037 = vld [vmem:[#allocation11 + $0x278] sm:$0xff]
        %v3038 = vld [vmem:[#allocation11 + $0x280] sm:$0xff]
        %v3039 = vld [vmem:[#allocation11 + $0x288] sm:$0xff]
        %v3040 = vld [vmem:[#allocation11 + $0x290] sm:$0xff]
        %v3041 = vld [vmem:[#allocation11 + $0x298] sm:$0xff]
        %v3042 = vld [vmem:[#allocation11 + $0x2a0] sm:$0xff]
        %v3043 = vld [vmem:[#allocation11 + $0x2a8] sm:$0xff]
        %v3044 = vld [vmem:[#allocation11 + $0x2b0] sm:$0xff]
        %v3045 = vld [vmem:[#allocation11 + $0x2b8] sm:$0xff]
        %v3046 = vld [vmem:[#allocation11 + $0x2c0] sm:$0xff]
        %v3047 = vld [vmem:[#allocation11 + $0x2c8] sm:$0xff]
        %v3048 = vld [vmem:[#allocation11 + $0x2d0] sm:$0xff]
        %v3049 = vld [vmem:[#allocation11 + $0x2d8] sm:$0xff]
        %v3050 = vld [vmem:[#allocation11 + $0x2e0] sm:$0xff]
        %v3051 = vld [vmem:[#allocation11 + $0x2e8] sm:$0xff]
        %v3052 = vld [vmem:[#allocation11 + $0x2f0] sm:$0xff]
        %v3053 = vld [vmem:[#allocation11 + $0x2f8] sm:$0xff]
        %v3054 = vld [vmem:[#allocation11 + $0x300] sm:$0xff]
        %v3055 = vld [vmem:[#allocation11 + $0x308] sm:$0xff]
        %v3056 = vld [vmem:[#allocation11 + $0x310] sm:$0xff]
        %v3057 = vld [vmem:[#allocation11 + $0x318] sm:$0xff]
        %v3058 = vld [vmem:[#allocation11 + $0x320] sm:$0xff]
        %v3059 = vld [vmem:[#allocation11 + $0x328] sm:$0xff]
        %v3060 = vld [vmem:[#allocation11 + $0x330] sm:$0xff]
        %v3061 = vld [vmem:[#allocation11 + $0x338] sm:$0xff]
        %v3062 = vld [vmem:[#allocation11 + $0x340] sm:$0xff]
        %v3063 = vld [vmem:[#allocation11 + $0x348] sm:$0xff]
        %v3064 = vld [vmem:[#allocation11 + $0x350] sm:$0xff]
        %v3065 = vld [vmem:[#allocation11 + $0x358] sm:$0xff]
        %v3066 = vld [vmem:[#allocation11 + $0x360] sm:$0xff]
        %v3067 = vld [vmem:[#allocation11 + $0x368] sm:$0xff]
        %v3068 = vld [vmem:[#allocation11 + $0x370] sm:$0xff]
        %v3069 = vld [vmem:[#allocation11 + $0x378] sm:$0xff]
        %v3070 = vld [vmem:[#allocation4] sm:$0xfe]
        %v3071 = vld [vmem:[#allocation4 + $0x8] sm:$0xfe]
        %v3072 = vld [vmem:[#allocation4 + $0x10] sm:$0x7f]
        %v3073 = vld [vmem:[#allocation4 + $0x18] sm:$0x7f]
        %s3074 = scalar_lea.vmem [#allocation11], 896
        %v3075 = vld [vmem:[%s3074] sm:$0xff]
        %v3076 = vld [vmem:[%s3074 + $0x8] sm:$0xff]
        %v3077 = vld [vmem:[%s3074 + $0x10] sm:$0xff]
        %v3078 = vld [vmem:[%s3074 + $0x18] sm:$0xff]
        %v3079 = vld [vmem:[%s3074 + $0x20] sm:$0xff]
        %v3080 = vld [vmem:[%s3074 + $0x28] sm:$0xff]
        %v3081 = vld [vmem:[%s3074 + $0x30] sm:$0xff]
        %v3082 = vld [vmem:[%s3074 + $0x38] sm:$0xff]
        %v3083 = vld [vmem:[%s3074 + $0x40] sm:$0xff]
        %v3084 = vld [vmem:[%s3074 + $0x48] sm:$0xff]
        %v3085 = vld [vmem:[%s3074 + $0x50] sm:$0xff]
        %v3086 = vld [vmem:[%s3074 + $0x58] sm:$0xff]
        %v3087 = vld [vmem:[%s3074 + $0x60] sm:$0xff]
        %v3088 = vld [vmem:[%s3074 + $0x68] sm:$0xff]
        %v3089 = vld [vmem:[%s3074 + $0x70] sm:$0xff]
        %v3090 = vld [vmem:[%s3074 + $0x78] sm:$0xff]
        %v3091 = vld [vmem:[%s3074 + $0x80] sm:$0xff]
        %v3092 = vld [vmem:[%s3074 + $0x88] sm:$0xff]
        %v3093 = vld [vmem:[%s3074 + $0x90] sm:$0xff]
        %v3094 = vld [vmem:[%s3074 + $0x98] sm:$0xff]
        %v3095 = vld [vmem:[%s3074 + $0xa0] sm:$0xff]
        %v3096 = vld [vmem:[%s3074 + $0xa8] sm:$0xff]
        %v3097 = vld [vmem:[%s3074 + $0xb0] sm:$0xff]
        %v3098 = vld [vmem:[%s3074 + $0xb8] sm:$0xff]
        %v3099 = vld [vmem:[%s3074 + $0xc0] sm:$0xff]
        %v3100 = vld [vmem:[%s3074 + $0xc8] sm:$0xff]
        %v3101 = vld [vmem:[%s3074 + $0xd0] sm:$0xff]
        %v3102 = vld [vmem:[%s3074 + $0xd8] sm:$0xff]
        %v3103 = vld [vmem:[%s3074 + $0xe0] sm:$0xff]
        %v3104 = vld [vmem:[%s3074 + $0xe8] sm:$0xff]
        %v3105 = vld [vmem:[%s3074 + $0xf0] sm:$0xff]
        %v3106 = vld [vmem:[%s3074 + $0xf8] sm:$0xff]
        %v3107 = vld [vmem:[%s3074 + $0x100] sm:$0xff]
        %v3108 = vld [vmem:[%s3074 + $0x108] sm:$0xff]
        %v3109 = vld [vmem:[%s3074 + $0x110] sm:$0xff]
        %v3110 = vld [vmem:[%s3074 + $0x118] sm:$0xff]
        %v3111 = vld [vmem:[%s3074 + $0x120] sm:$0xff]
        %v3112 = vld [vmem:[%s3074 + $0x128] sm:$0xff]
        %v3113 = vld [vmem:[%s3074 + $0x130] sm:$0xff]
        %v3114 = vld [vmem:[%s3074 + $0x138] sm:$0xff]
        %v3115 = vld [vmem:[%s3074 + $0x140] sm:$0xff]
        %v3116 = vld [vmem:[%s3074 + $0x148] sm:$0xff]
        %v3117 = vld [vmem:[%s3074 + $0x150] sm:$0xff]
        %v3118 = vld [vmem:[%s3074 + $0x158] sm:$0xff]
        %v3119 = vld [vmem:[%s3074 + $0x160] sm:$0xff]
        %v3120 = vld [vmem:[%s3074 + $0x168] sm:$0xff]
        %v3121 = vld [vmem:[%s3074 + $0x170] sm:$0xff]
        %v3122 = vld [vmem:[%s3074 + $0x178] sm:$0xff]
        %v3123 = vld [vmem:[%s3074 + $0x180] sm:$0xff]
        %v3124 = vld [vmem:[%s3074 + $0x188] sm:$0xff]
        %v3125 = vld [vmem:[%s3074 + $0x190] sm:$0xff]
        %v3126 = vld [vmem:[%s3074 + $0x198] sm:$0xff]
        %v3127 = vld [vmem:[%s3074 + $0x1a0] sm:$0xff]
        %v3128 = vld [vmem:[%s3074 + $0x1a8] sm:$0xff]
        %v3129 = vld [vmem:[%s3074 + $0x1b0] sm:$0xff]
        %v3130 = vld [vmem:[%s3074 + $0x1b8] sm:$0xff]
        %v3131 = vld [vmem:[%s3074 + $0x1c0] sm:$0xff]
        %v3132 = vld [vmem:[%s3074 + $0x1c8] sm:$0xff]
        %v3133 = vld [vmem:[%s3074 + $0x1d0] sm:$0xff]
        %v3134 = vld [vmem:[%s3074 + $0x1d8] sm:$0xff]
        %v3135 = vld [vmem:[%s3074 + $0x1e0] sm:$0xff]
        %v3136 = vld [vmem:[%s3074 + $0x1e8] sm:$0xff]
        %v3137 = vld [vmem:[%s3074 + $0x1f0] sm:$0xff]
        %v3138 = vld [vmem:[%s3074 + $0x1f8] sm:$0xff]
        %v3139 = vld [vmem:[%s3074 + $0x200] sm:$0xff]
        %v3140 = vld [vmem:[%s3074 + $0x208] sm:$0xff]
        %v3141 = vld [vmem:[%s3074 + $0x210] sm:$0xff]
        %v3142 = vld [vmem:[%s3074 + $0x218] sm:$0xff]
        %v3143 = vld [vmem:[%s3074 + $0x220] sm:$0xff]
        %v3144 = vld [vmem:[%s3074 + $0x228] sm:$0xff]
        %v3145 = vld [vmem:[%s3074 + $0x230] sm:$0xff]
        %v3146 = vld [vmem:[%s3074 + $0x238] sm:$0xff]
        %v3147 = vld [vmem:[%s3074 + $0x240] sm:$0xff]
        %v3148 = vld [vmem:[%s3074 + $0x248] sm:$0xff]
        %v3149 = vld [vmem:[%s3074 + $0x250] sm:$0xff]
        %v3150 = vld [vmem:[%s3074 + $0x258] sm:$0xff]
        %v3151 = vld [vmem:[%s3074 + $0x260] sm:$0xff]
        %v3152 = vld [vmem:[%s3074 + $0x268] sm:$0xff]
        %v3153 = vld [vmem:[%s3074 + $0x270] sm:$0xff]
        %v3154 = vld [vmem:[%s3074 + $0x278] sm:$0xff]
        %v3155 = vld [vmem:[%s3074 + $0x280] sm:$0xff]
        %v3156 = vld [vmem:[%s3074 + $0x288] sm:$0xff]
        %v3157 = vld [vmem:[%s3074 + $0x290] sm:$0xff]
        %v3158 = vld [vmem:[%s3074 + $0x298] sm:$0xff]
        %v3159 = vld [vmem:[%s3074 + $0x2a0] sm:$0xff]
        %v3160 = vld [vmem:[%s3074 + $0x2a8] sm:$0xff]
        %v3161 = vld [vmem:[%s3074 + $0x2b0] sm:$0xff]
        %v3162 = vld [vmem:[%s3074 + $0x2b8] sm:$0xff]
        %v3163 = vld [vmem:[%s3074 + $0x2c0] sm:$0xff]
        %v3164 = vld [vmem:[%s3074 + $0x2c8] sm:$0xff]
        %v3165 = vld [vmem:[%s3074 + $0x2d0] sm:$0xff]
        %v3166 = vld [vmem:[%s3074 + $0x2d8] sm:$0xff]
        %v3167 = vld [vmem:[%s3074 + $0x2e0] sm:$0xff]
        %v3168 = vld [vmem:[%s3074 + $0x2e8] sm:$0xff]
        %v3169 = vld [vmem:[%s3074 + $0x2f0] sm:$0xff]
        %v3170 = vld [vmem:[%s3074 + $0x2f8] sm:$0xff]
        %v3171 = vld [vmem:[%s3074 + $0x300] sm:$0xff]
        %v3172 = vld [vmem:[%s3074 + $0x308] sm:$0xff]
        %v3173 = vld [vmem:[%s3074 + $0x310] sm:$0xff]
        %v3174 = vld [vmem:[%s3074 + $0x318] sm:$0xff]
        %v3175 = vld [vmem:[%s3074 + $0x320] sm:$0xff]
        %v3176 = vld [vmem:[%s3074 + $0x328] sm:$0xff]
        %v3177 = vld [vmem:[%s3074 + $0x330] sm:$0xff]
        %v3178 = vld [vmem:[%s3074 + $0x338] sm:$0xff]
        %v3179 = vld [vmem:[%s3074 + $0x340] sm:$0xff]
        %v3180 = vld [vmem:[%s3074 + $0x348] sm:$0xff]
        %v3181 = vld [vmem:[%s3074 + $0x350] sm:$0xff]
        %v3182 = vld [vmem:[%s3074 + $0x358] sm:$0xff]
        %v3183 = vld [vmem:[%s3074 + $0x360] sm:$0xff]
        %v3184 = vld [vmem:[%s3074 + $0x368] sm:$0xff]
        %v3185 = vld [vmem:[%s3074 + $0x370] sm:$0xff]
        %v3186 = vld [vmem:[%s3074 + $0x378] sm:$0xff]
        %v3191 = vrot.slane %v3070, 1
        %v3192 = vrot.slane %v3072, 1
        %v3193 = vsel %vm1252, %v3191, %v3192
        %v3194 = vrot.slane %v3071, 1
        %v3195 = vrot.slane %v3073, 1
        %v3196 = vsel %vm1252, %v3194, %v3195
        %v3199 = vsel %vm1000, %v3196, 0
        %v3201 = vsel %vm1000, %v3195, 0
        %3203 = vmatprep.subr.mxu0 %v3136
        %3204 = vmatpush1.msra.mxu0 %v3135
        %3205 = vmatprep.subr.mxu0 %v3132
        %3206 = vmatpush1.msra.mxu0 %v3131
        %3207 = vmatprep.subr.mxu0 %v3128
        %3208 = vmatpush1.msra.mxu0 %v3127
        %3209 = vmatprep.subr.mxu0 %v3124
        %3210 = vmatpush1.msra.mxu0 %v3123
        %3211 = vmatprep.subr.mxu0 %v3120
        %3212 = vmatpush1.msra.mxu0 %v3119
        %3213 = vmatprep.subr.mxu0 %v3116
        %3214 = vmatpush1.msra.mxu0 %v3115
        %3215 = vmatprep.subr.mxu0 %v3112
        %3216 = vmatpush1.msra.mxu0 %v3111
        %3217 = vmatprep.subr.mxu0 %v3108
        %3218 = vmatpush1.msra.mxu0 %v3107
        %3219 = vmatprep.subr.mxu0 %v3104
        %3220 = vmatpush1.msra.mxu0 %v3103
        %3221 = vmatprep.subr.mxu0 %v3100
        %3222 = vmatpush1.msra.mxu0 %v3099
        %3223 = vmatprep.subr.mxu0 %v3096
        %3224 = vmatpush1.msra.mxu0 %v3095
        %3225 = vmatprep.subr.mxu0 %v3092
        %3226 = vmatpush1.msra.mxu0 %v3091
        %3227 = vmatprep.subr.mxu0 %v3088
        %3228 = vmatpush1.msra.mxu0 %v3087
        %3229 = vmatprep.subr.mxu0 %v3084
        %3230 = vmatpush1.msra.mxu0 %v3083
        %3231 = vmatprep.subr.mxu0 %v3080
        %3232 = vmatpush1.msra.mxu0 %v3079
        %3233 = vmatprep.subr.mxu0 %v3076
        %3234 = vmatpush1.msra.mxu0 %v3075
        %3235 = vmatprep.subr.mxu0 0.0
        %3236 = vmatpush2.msra.mxu0 0.0
        %3237 = vmatprep.subr.mxu0 0.0
        %3238 = vmatpush2.msra.mxu0 0.0
        %3239 = vmatprep.subr.mxu0 0.0
        %3240 = vmatpush2.msra.mxu0 0.0
        %3241 = vmatprep.subr.mxu0 0.0
        %3242 = vmatpush2.msra.mxu0 0.0
        %3243 = vmatprep.subr.mxu0 %v3184
        %3244 = vmatpush2.msra.mxu0 %v3183
        %3245 = vmatprep.subr.mxu0 %v3180
        %3246 = vmatpush2.msra.mxu0 %v3179
        %3247 = vmatprep.subr.mxu0 %v3176
        %3248 = vmatpush2.msra.mxu0 %v3175
        %3249 = vmatprep.subr.mxu0 %v3172
        %3250 = vmatpush2.msra.mxu0 %v3171
        %3251 = vmatprep.subr.mxu0 %v3168
        %3252 = vmatpush2.msra.mxu0 %v3167
        %3253 = vmatprep.subr.mxu0 %v3164
        %3254 = vmatpush2.msra.mxu0 %v3163
        %3255 = vmatprep.subr.mxu0 %v3160
        %3256 = vmatpush2.msra.mxu0 %v3159
        %3257 = vmatprep.subr.mxu0 %v3156
        %3258 = vmatpush2.msra.mxu0 %v3155
        %3259 = vmatprep.subr.mxu0 %v3152
        %3260 = vmatpush2.msra.mxu0 %v3151
        %3261 = vmatprep.subr.mxu0 %v3148
        %3262 = vmatpush2.msra.mxu0 %v3147
        %3263 = vmatprep.subr.mxu0 %v3144
        %3264 = vmatpush2.msra.mxu0 %v3143
        %3265 = vmatprep.subr.mxu0 %v3140
        %3266 = vmatpush2.msra.mxu0 %v3139
        %3267 = vmatprep.mubr.f32.mxu0 %v3199
        %3268 = vmatmul.mubr.f32.gmra.mxu0 %v3193
        %v3269 = vpop.f32.mrf.mxu0
        %v3270 = vadd.f32 0.0, %v3269
        %v3271 = vpop.f32.mrf.mxu0
        %v3272 = vadd.f32 0.0, %v3271
        %3273 = vmatprep.mubr.f32.mxu0 %v3201
        %3274 = vmatmul.mubr.f32.gmra.mxu0 %v3192
        %v3275 = vpop.f32.mrf.mxu0
        %v3276 = vadd.f32 0.0, %v3275
        %v3277 = vpop.f32.mrf.mxu0
        %v3278 = vadd.f32 0.0, %v3277
        %3279 = vdwg.mxu0
        %3280 = vmatprep.subr.mxu0 %v3138
        %3281 = vmatpush1.msra.mxu0 %v3137
        %3282 = vmatprep.subr.mxu0 %v3134
        %3283 = vmatpush1.msra.mxu0 %v3133
        %3284 = vmatprep.subr.mxu0 %v3130
        %3285 = vmatpush1.msra.mxu0 %v3129
        %3286 = vmatprep.subr.mxu0 %v3126
        %3287 = vmatpush1.msra.mxu0 %v3125
        %3288 = vmatprep.subr.mxu0 %v3122
        %3289 = vmatpush1.msra.mxu0 %v3121
        %3290 = vmatprep.subr.mxu0 %v3118
        %3291 = vmatpush1.msra.mxu0 %v3117
        %3292 = vmatprep.subr.mxu0 %v3114
        %3293 = vmatpush1.msra.mxu0 %v3113
        %3294 = vmatprep.subr.mxu0 %v3110
        %3295 = vmatpush1.msra.mxu0 %v3109
        %3296 = vmatprep.subr.mxu0 %v3106
        %3297 = vmatpush1.msra.mxu0 %v3105
        %3298 = vmatprep.subr.mxu0 %v3102
        %3299 = vmatpush1.msra.mxu0 %v3101
        %3300 = vmatprep.subr.mxu0 %v3098
        %3301 = vmatpush1.msra.mxu0 %v3097
        %3302 = vmatprep.subr.mxu0 %v3094
        %3303 = vmatpush1.msra.mxu0 %v3093
        %3304 = vmatprep.subr.mxu0 %v3090
        %3305 = vmatpush1.msra.mxu0 %v3089
        %3306 = vmatprep.subr.mxu0 %v3086
        %3307 = vmatpush1.msra.mxu0 %v3085
        %3308 = vmatprep.subr.mxu0 %v3082
        %3309 = vmatpush1.msra.mxu0 %v3081
        %3310 = vmatprep.subr.mxu0 %v3078
        %3311 = vmatpush1.msra.mxu0 %v3077
        %3312 = vmatprep.subr.mxu0 0.0
        %3313 = vmatpush2.msra.mxu0 0.0
        %3314 = vmatprep.subr.mxu0 0.0
        %3315 = vmatpush2.msra.mxu0 0.0
        %3316 = vmatprep.subr.mxu0 0.0
        %3317 = vmatpush2.msra.mxu0 0.0
        %3318 = vmatprep.subr.mxu0 0.0
        %3319 = vmatpush2.msra.mxu0 0.0
        %3320 = vmatprep.subr.mxu0 %v3186
        %3321 = vmatpush2.msra.mxu0 %v3185
        %3322 = vmatprep.subr.mxu0 %v3182
        %3323 = vmatpush2.msra.mxu0 %v3181
        %3324 = vmatprep.subr.mxu0 %v3178
        %3325 = vmatpush2.msra.mxu0 %v3177
        %3326 = vmatprep.subr.mxu0 %v3174
        %3327 = vmatpush2.msra.mxu0 %v3173
        %3328 = vmatprep.subr.mxu0 %v3170
        %3329 = vmatpush2.msra.mxu0 %v3169
        %3330 = vmatprep.subr.mxu0 %v3166
        %3331 = vmatpush2.msra.mxu0 %v3165
        %3332 = vmatprep.subr.mxu0 %v3162
        %3333 = vmatpush2.msra.mxu0 %v3161
        %3334 = vmatprep.subr.mxu0 %v3158
        %3335 = vmatpush2.msra.mxu0 %v3157
        %3336 = vmatprep.subr.mxu0 %v3154
        %3337 = vmatpush2.msra.mxu0 %v3153
        %3338 = vmatprep.subr.mxu0 %v3150
        %3339 = vmatpush2.msra.mxu0 %v3149
        %3340 = vmatprep.subr.mxu0 %v3146
        %3341 = vmatpush2.msra.mxu0 %v3145
        %3342 = vmatprep.subr.mxu0 %v3142
        %3343 = vmatpush2.msra.mxu0 %v3141
        %3344 = vmatprep.mubr.f32.mxu0 %v3199
        %3345 = vmatmul.mubr.f32.gmra.mxu0 %v3193
        %v3346 = vpop.f32.mrf.mxu0
        %v3347 = vadd.f32 0.0, %v3346
        %v3348 = vpop.f32.mrf.mxu0
        %v3349 = vadd.f32 0.0, %v3348
        %3350 = vmatprep.mubr.f32.mxu0 %v3201
        %3351 = vmatmul.mubr.f32.gmra.mxu0 %v3192
        %v3352 = vpop.f32.mrf.mxu0
        %v3353 = vadd.f32 0.0, %v3352
        %v3354 = vpop.f32.mrf.mxu0
        %v3355 = vadd.f32 0.0, %v3354
        %3356 = vdwg.mxu0
        %v3358 = vsel %vm1000, %v2955, 0
        %v3361 = vsel %vm1000, %v2957, 0
        %3363 = vmatprep.subr.mxu0 %v3019
        %3364 = vmatpush1.msra.mxu0 %v3018
        %3365 = vmatprep.subr.mxu0 %v3015
        %3366 = vmatpush1.msra.mxu0 %v3014
        %3367 = vmatprep.subr.mxu0 %v3011
        %3368 = vmatpush1.msra.mxu0 %v3010
        %3369 = vmatprep.subr.mxu0 %v3007
        %3370 = vmatpush1.msra.mxu0 %v3006
        %3371 = vmatprep.subr.mxu0 %v3003
        %3372 = vmatpush1.msra.mxu0 %v3002
        %3373 = vmatprep.subr.mxu0 %v2999
        %3374 = vmatpush1.msra.mxu0 %v2998
        %3375 = vmatprep.subr.mxu0 %v2995
        %3376 = vmatpush1.msra.mxu0 %v2994
        %3377 = vmatprep.subr.mxu0 %v2991
        %3378 = vmatpush1.msra.mxu0 %v2990
        %3379 = vmatprep.subr.mxu0 %v2987
        %3380 = vmatpush1.msra.mxu0 %v2986
        %3381 = vmatprep.subr.mxu0 %v2983
        %3382 = vmatpush1.msra.mxu0 %v2982
        %3383 = vmatprep.subr.mxu0 %v2979
        %3384 = vmatpush1.msra.mxu0 %v2978
        %3385 = vmatprep.subr.mxu0 %v2975
        %3386 = vmatpush1.msra.mxu0 %v2974
        %3387 = vmatprep.subr.mxu0 %v2971
        %3388 = vmatpush1.msra.mxu0 %v2970
        %3389 = vmatprep.subr.mxu0 %v2967
        %3390 = vmatpush1.msra.mxu0 %v2966
        %3391 = vmatprep.subr.mxu0 %v2963
        %3392 = vmatpush1.msra.mxu0 %v2962
        %3393 = vmatprep.subr.mxu0 %v2959
        %3394 = vmatpush1.msra.mxu0 %v2958
        %3395 = vmatprep.subr.mxu0 0.0
        %3396 = vmatpush2.msra.mxu0 0.0
        %3397 = vmatprep.subr.mxu0 0.0
        %3398 = vmatpush2.msra.mxu0 0.0
        %3399 = vmatprep.subr.mxu0 0.0
        %3400 = vmatpush2.msra.mxu0 0.0
        %3401 = vmatprep.subr.mxu0 0.0
        %3402 = vmatpush2.msra.mxu0 0.0
        %3403 = vmatprep.subr.mxu0 %v3067
        %3404 = vmatpush2.msra.mxu0 %v3066
        %3405 = vmatprep.subr.mxu0 %v3063
        %3406 = vmatpush2.msra.mxu0 %v3062
        %3407 = vmatprep.subr.mxu0 %v3059
        %3408 = vmatpush2.msra.mxu0 %v3058
        %3409 = vmatprep.subr.mxu0 %v3055
        %3410 = vmatpush2.msra.mxu0 %v3054
        %3411 = vmatprep.subr.mxu0 %v3051
        %3412 = vmatpush2.msra.mxu0 %v3050
        %3413 = vmatprep.subr.mxu0 %v3047
        %3414 = vmatpush2.msra.mxu0 %v3046
        %3415 = vmatprep.subr.mxu0 %v3043
        %3416 = vmatpush2.msra.mxu0 %v3042
        %3417 = vmatprep.subr.mxu0 %v3039
        %3418 = vmatpush2.msra.mxu0 %v3038
        %3419 = vmatprep.subr.mxu0 %v3035
        %3420 = vmatpush2.msra.mxu0 %v3034
        %3421 = vmatprep.subr.mxu0 %v3031
        %3422 = vmatpush2.msra.mxu0 %v3030
        %3423 = vmatprep.subr.mxu0 %v3027
        %3424 = vmatpush2.msra.mxu0 %v3026
        %3425 = vmatprep.subr.mxu0 %v3023
        %3426 = vmatpush2.msra.mxu0 %v3022
        %3427 = vmatprep.mubr.f32.mxu0 %v3358
        %3428 = vmatmul.mubr.f32.gmra.mxu0 %v2954
        %v3429 = vpop.f32.mrf.mxu0
        %v3430 = vadd.f32 %v3270, %v3429
        %v3431 = vpop.f32.mrf.mxu0
        %v3432 = vadd.f32 %v3272, %v3431
        %3433 = vmatprep.mubr.f32.mxu0 %v3361
        %3434 = vmatmul.mubr.f32.gmra.mxu0 %v2956
        %v3435 = vpop.f32.mrf.mxu0
        %v3436 = vadd.f32 %v3276, %v3435
        %v3437 = vpop.f32.mrf.mxu0
        %v3438 = vadd.f32 %v3278, %v3437
        %3439 = vdwg.mxu0
        %3440 = vmatprep.subr.mxu0 %v3021
        %3441 = vmatpush1.msra.mxu0 %v3020
        %3442 = vmatprep.subr.mxu0 %v3017
        %3443 = vmatpush1.msra.mxu0 %v3016
        %3444 = vmatprep.subr.mxu0 %v3013
        %3445 = vmatpush1.msra.mxu0 %v3012
        %3446 = vmatprep.subr.mxu0 %v3009
        %3447 = vmatpush1.msra.mxu0 %v3008
        %3448 = vmatprep.subr.mxu0 %v3005
        %3449 = vmatpush1.msra.mxu0 %v3004
        %3450 = vmatprep.subr.mxu0 %v3001
        %3451 = vmatpush1.msra.mxu0 %v3000
        %3452 = vmatprep.subr.mxu0 %v2997
        %3453 = vmatpush1.msra.mxu0 %v2996
        %3454 = vmatprep.subr.mxu0 %v2993
        %3455 = vmatpush1.msra.mxu0 %v2992
        %3456 = vmatprep.subr.mxu0 %v2989
        %3457 = vmatpush1.msra.mxu0 %v2988
        %3458 = vmatprep.subr.mxu0 %v2985
        %3459 = vmatpush1.msra.mxu0 %v2984
        %3460 = vmatprep.subr.mxu0 %v2981
        %3461 = vmatpush1.msra.mxu0 %v2980
        %3462 = vmatprep.subr.mxu0 %v2977
        %3463 = vmatpush1.msra.mxu0 %v2976
        %3464 = vmatprep.subr.mxu0 %v2973
        %3465 = vmatpush1.msra.mxu0 %v2972
        %3466 = vmatprep.subr.mxu0 %v2969
        %3467 = vmatpush1.msra.mxu0 %v2968
        %3468 = vmatprep.subr.mxu0 %v2965
        %3469 = vmatpush1.msra.mxu0 %v2964
        %3470 = vmatprep.subr.mxu0 %v2961
        %3471 = vmatpush1.msra.mxu0 %v2960
        %3472 = vmatprep.subr.mxu0 0.0
        %3473 = vmatpush2.msra.mxu0 0.0
        %3474 = vmatprep.subr.mxu0 0.0
        %3475 = vmatpush2.msra.mxu0 0.0
        %3476 = vmatprep.subr.mxu0 0.0
        %3477 = vmatpush2.msra.mxu0 0.0
        %3478 = vmatprep.subr.mxu0 0.0
        %3479 = vmatpush2.msra.mxu0 0.0
        %3480 = vmatprep.subr.mxu0 %v3069
        %3481 = vmatpush2.msra.mxu0 %v3068
        %3482 = vmatprep.subr.mxu0 %v3065
        %3483 = vmatpush2.msra.mxu0 %v3064
        %3484 = vmatprep.subr.mxu0 %v3061
        %3485 = vmatpush2.msra.mxu0 %v3060
        %3486 = vmatprep.subr.mxu0 %v3057
        %3487 = vmatpush2.msra.mxu0 %v3056
        %3488 = vmatprep.subr.mxu0 %v3053
        %3489 = vmatpush2.msra.mxu0 %v3052
        %3490 = vmatprep.subr.mxu0 %v3049
        %3491 = vmatpush2.msra.mxu0 %v3048
        %3492 = vmatprep.subr.mxu0 %v3045
        %3493 = vmatpush2.msra.mxu0 %v3044
        %3494 = vmatprep.subr.mxu0 %v3041
        %3495 = vmatpush2.msra.mxu0 %v3040
        %3496 = vmatprep.subr.mxu0 %v3037
        %3497 = vmatpush2.msra.mxu0 %v3036
        %3498 = vmatprep.subr.mxu0 %v3033
        %3499 = vmatpush2.msra.mxu0 %v3032
        %3500 = vmatprep.subr.mxu0 %v3029
        %3501 = vmatpush2.msra.mxu0 %v3028
        %3502 = vmatprep.subr.mxu0 %v3025
        %3503 = vmatpush2.msra.mxu0 %v3024
        %3504 = vmatprep.mubr.f32.mxu0 %v3358
        %3505 = vmatmul.mubr.f32.gmra.mxu0 %v2954
        %v3506 = vpop.f32.mrf.mxu0
        %v3507 = vadd.f32 %v3347, %v3506
        %v3508 = vpop.f32.mrf.mxu0
        %v3509 = vadd.f32 %v3349, %v3508
        %3510 = vmatprep.mubr.f32.mxu0 %v3361
        %3511 = vmatmul.mubr.f32.gmra.mxu0 %v2956
        %v3512 = vpop.f32.mrf.mxu0
        %v3513 = vadd.f32 %v3353, %v3512
        %v3514 = vpop.f32.mrf.mxu0
        %v3515 = vadd.f32 %v3355, %v3514
        %3516 = vdwg.mxu0
        %v3517 = vld [vmem:[#allocation4] sm:$0xfc]
        %v3518 = vld [vmem:[#allocation4 + $0x8] sm:$0xfc]
        %v3519 = vld [vmem:[#allocation4 + $0x10] sm:$0xff]
        %v3520 = vld [vmem:[#allocation4 + $0x18] sm:$0xff]
        %s3521 = scalar_lea.vmem [#allocation11], 1792
        %v3522 = vld [vmem:[%s3521] sm:$0xff]
        %v3523 = vld [vmem:[%s3521 + $0x8] sm:$0xff]
        %v3524 = vld [vmem:[%s3521 + $0x10] sm:$0xff]
        %v3525 = vld [vmem:[%s3521 + $0x18] sm:$0xff]
        %v3526 = vld [vmem:[%s3521 + $0x20] sm:$0xff]
        %v3527 = vld [vmem:[%s3521 + $0x28] sm:$0xff]
        %v3528 = vld [vmem:[%s3521 + $0x30] sm:$0xff]
        %v3529 = vld [vmem:[%s3521 + $0x38] sm:$0xff]
        %v3530 = vld [vmem:[%s3521 + $0x40] sm:$0xff]
        %v3531 = vld [vmem:[%s3521 + $0x48] sm:$0xff]
        %v3532 = vld [vmem:[%s3521 + $0x50] sm:$0xff]
        %v3533 = vld [vmem:[%s3521 + $0x58] sm:$0xff]
        %v3534 = vld [vmem:[%s3521 + $0x60] sm:$0xff]
        %v3535 = vld [vmem:[%s3521 + $0x68] sm:$0xff]
        %v3536 = vld [vmem:[%s3521 + $0x70] sm:$0xff]
        %v3537 = vld [vmem:[%s3521 + $0x78] sm:$0xff]
        %v3538 = vld [vmem:[%s3521 + $0x80] sm:$0xff]
        %v3539 = vld [vmem:[%s3521 + $0x88] sm:$0xff]
        %v3540 = vld [vmem:[%s3521 + $0x90] sm:$0xff]
        %v3541 = vld [vmem:[%s3521 + $0x98] sm:$0xff]
        %v3542 = vld [vmem:[%s3521 + $0xa0] sm:$0xff]
        %v3543 = vld [vmem:[%s3521 + $0xa8] sm:$0xff]
        %v3544 = vld [vmem:[%s3521 + $0xb0] sm:$0xff]
        %v3545 = vld [vmem:[%s3521 + $0xb8] sm:$0xff]
        %v3546 = vld [vmem:[%s3521 + $0xc0] sm:$0xff]
        %v3547 = vld [vmem:[%s3521 + $0xc8] sm:$0xff]
        %v3548 = vld [vmem:[%s3521 + $0xd0] sm:$0xff]
        %v3549 = vld [vmem:[%s3521 + $0xd8] sm:$0xff]
        %v3550 = vld [vmem:[%s3521 + $0xe0] sm:$0xff]
        %v3551 = vld [vmem:[%s3521 + $0xe8] sm:$0xff]
        %v3552 = vld [vmem:[%s3521 + $0xf0] sm:$0xff]
        %v3553 = vld [vmem:[%s3521 + $0xf8] sm:$0xff]
        %v3554 = vld [vmem:[%s3521 + $0x100] sm:$0xff]
        %v3555 = vld [vmem:[%s3521 + $0x108] sm:$0xff]
        %v3556 = vld [vmem:[%s3521 + $0x110] sm:$0xff]
        %v3557 = vld [vmem:[%s3521 + $0x118] sm:$0xff]
        %v3558 = vld [vmem:[%s3521 + $0x120] sm:$0xff]
        %v3559 = vld [vmem:[%s3521 + $0x128] sm:$0xff]
        %v3560 = vld [vmem:[%s3521 + $0x130] sm:$0xff]
        %v3561 = vld [vmem:[%s3521 + $0x138] sm:$0xff]
        %v3562 = vld [vmem:[%s3521 + $0x140] sm:$0xff]
        %v3563 = vld [vmem:[%s3521 + $0x148] sm:$0xff]
        %v3564 = vld [vmem:[%s3521 + $0x150] sm:$0xff]
        %v3565 = vld [vmem:[%s3521 + $0x158] sm:$0xff]
        %v3566 = vld [vmem:[%s3521 + $0x160] sm:$0xff]
        %v3567 = vld [vmem:[%s3521 + $0x168] sm:$0xff]
        %v3568 = vld [vmem:[%s3521 + $0x170] sm:$0xff]
        %v3569 = vld [vmem:[%s3521 + $0x178] sm:$0xff]
        %v3570 = vld [vmem:[%s3521 + $0x180] sm:$0xff]
        %v3571 = vld [vmem:[%s3521 + $0x188] sm:$0xff]
        %v3572 = vld [vmem:[%s3521 + $0x190] sm:$0xff]
        %v3573 = vld [vmem:[%s3521 + $0x198] sm:$0xff]
        %v3574 = vld [vmem:[%s3521 + $0x1a0] sm:$0xff]
        %v3575 = vld [vmem:[%s3521 + $0x1a8] sm:$0xff]
        %v3576 = vld [vmem:[%s3521 + $0x1b0] sm:$0xff]
        %v3577 = vld [vmem:[%s3521 + $0x1b8] sm:$0xff]
        %v3578 = vld [vmem:[%s3521 + $0x1c0] sm:$0xff]
        %v3579 = vld [vmem:[%s3521 + $0x1c8] sm:$0xff]
        %v3580 = vld [vmem:[%s3521 + $0x1d0] sm:$0xff]
        %v3581 = vld [vmem:[%s3521 + $0x1d8] sm:$0xff]
        %v3582 = vld [vmem:[%s3521 + $0x1e0] sm:$0xff]
        %v3583 = vld [vmem:[%s3521 + $0x1e8] sm:$0xff]
        %v3584 = vld [vmem:[%s3521 + $0x1f0] sm:$0xff]
        %v3585 = vld [vmem:[%s3521 + $0x1f8] sm:$0xff]
        %v3586 = vld [vmem:[%s3521 + $0x200] sm:$0xff]
        %v3587 = vld [vmem:[%s3521 + $0x208] sm:$0xff]
        %v3588 = vld [vmem:[%s3521 + $0x210] sm:$0xff]
        %v3589 = vld [vmem:[%s3521 + $0x218] sm:$0xff]
        %v3590 = vld [vmem:[%s3521 + $0x220] sm:$0xff]
        %v3591 = vld [vmem:[%s3521 + $0x228] sm:$0xff]
        %v3592 = vld [vmem:[%s3521 + $0x230] sm:$0xff]
        %v3593 = vld [vmem:[%s3521 + $0x238] sm:$0xff]
        %v3594 = vld [vmem:[%s3521 + $0x240] sm:$0xff]
        %v3595 = vld [vmem:[%s3521 + $0x248] sm:$0xff]
        %v3596 = vld [vmem:[%s3521 + $0x250] sm:$0xff]
        %v3597 = vld [vmem:[%s3521 + $0x258] sm:$0xff]
        %v3598 = vld [vmem:[%s3521 + $0x260] sm:$0xff]
        %v3599 = vld [vmem:[%s3521 + $0x268] sm:$0xff]
        %v3600 = vld [vmem:[%s3521 + $0x270] sm:$0xff]
        %v3601 = vld [vmem:[%s3521 + $0x278] sm:$0xff]
        %v3602 = vld [vmem:[%s3521 + $0x280] sm:$0xff]
        %v3603 = vld [vmem:[%s3521 + $0x288] sm:$0xff]
        %v3604 = vld [vmem:[%s3521 + $0x290] sm:$0xff]
        %v3605 = vld [vmem:[%s3521 + $0x298] sm:$0xff]
        %v3606 = vld [vmem:[%s3521 + $0x2a0] sm:$0xff]
        %v3607 = vld [vmem:[%s3521 + $0x2a8] sm:$0xff]
        %v3608 = vld [vmem:[%s3521 + $0x2b0] sm:$0xff]
        %v3609 = vld [vmem:[%s3521 + $0x2b8] sm:$0xff]
        %v3610 = vld [vmem:[%s3521 + $0x2c0] sm:$0xff]
        %v3611 = vld [vmem:[%s3521 + $0x2c8] sm:$0xff]
        %v3612 = vld [vmem:[%s3521 + $0x2d0] sm:$0xff]
        %v3613 = vld [vmem:[%s3521 + $0x2d8] sm:$0xff]
        %v3614 = vld [vmem:[%s3521 + $0x2e0] sm:$0xff]
        %v3615 = vld [vmem:[%s3521 + $0x2e8] sm:$0xff]
        %v3616 = vld [vmem:[%s3521 + $0x2f0] sm:$0xff]
        %v3617 = vld [vmem:[%s3521 + $0x2f8] sm:$0xff]
        %v3618 = vld [vmem:[%s3521 + $0x300] sm:$0xff]
        %v3619 = vld [vmem:[%s3521 + $0x308] sm:$0xff]
        %v3620 = vld [vmem:[%s3521 + $0x310] sm:$0xff]
        %v3621 = vld [vmem:[%s3521 + $0x318] sm:$0xff]
        %v3622 = vld [vmem:[%s3521 + $0x320] sm:$0xff]
        %v3623 = vld [vmem:[%s3521 + $0x328] sm:$0xff]
        %v3624 = vld [vmem:[%s3521 + $0x330] sm:$0xff]
        %v3625 = vld [vmem:[%s3521 + $0x338] sm:$0xff]
        %v3626 = vld [vmem:[%s3521 + $0x340] sm:$0xff]
        %v3627 = vld [vmem:[%s3521 + $0x348] sm:$0xff]
        %v3628 = vld [vmem:[%s3521 + $0x350] sm:$0xff]
        %v3629 = vld [vmem:[%s3521 + $0x358] sm:$0xff]
        %v3630 = vld [vmem:[%s3521 + $0x360] sm:$0xff]
        %v3631 = vld [vmem:[%s3521 + $0x368] sm:$0xff]
        %v3632 = vld [vmem:[%s3521 + $0x370] sm:$0xff]
        %v3633 = vld [vmem:[%s3521 + $0x378] sm:$0xff]
        %v3638 = vrot.slane %v3517, 2
        %v3639 = vrot.slane %v3519, 2
        %v3640 = vsel %vm1766, %v3638, %v3639
        %v3641 = vrot.slane %v3518, 2
        %v3642 = vrot.slane %v3520, 2
        %v3643 = vsel %vm1766, %v3641, %v3642
        %v3646 = vsel %vm1000, %v3643, 0
        %v3648 = vsel %vm1000, %v3642, 0
        %3650 = vmatprep.subr.mxu0 %v3583
        %3651 = vmatpush1.msra.mxu0 %v3582
        %3652 = vmatprep.subr.mxu0 %v3579
        %3653 = vmatpush1.msra.mxu0 %v3578
        %3654 = vmatprep.subr.mxu0 %v3575
        %3655 = vmatpush1.msra.mxu0 %v3574
        %3656 = vmatprep.subr.mxu0 %v3571
        %3657 = vmatpush1.msra.mxu0 %v3570
        %3658 = vmatprep.subr.mxu0 %v3567
        %3659 = vmatpush1.msra.mxu0 %v3566
        %3660 = vmatprep.subr.mxu0 %v3563
        %3661 = vmatpush1.msra.mxu0 %v3562
        %3662 = vmatprep.subr.mxu0 %v3559
        %3663 = vmatpush1.msra.mxu0 %v3558
        %3664 = vmatprep.subr.mxu0 %v3555
        %3665 = vmatpush1.msra.mxu0 %v3554
        %3666 = vmatprep.subr.mxu0 %v3551
        %3667 = vmatpush1.msra.mxu0 %v3550
        %3668 = vmatprep.subr.mxu0 %v3547
        %3669 = vmatpush1.msra.mxu0 %v3546
        %3670 = vmatprep.subr.mxu0 %v3543
        %3671 = vmatpush1.msra.mxu0 %v3542
        %3672 = vmatprep.subr.mxu0 %v3539
        %3673 = vmatpush1.msra.mxu0 %v3538
        %3674 = vmatprep.subr.mxu0 %v3535
        %3675 = vmatpush1.msra.mxu0 %v3534
        %3676 = vmatprep.subr.mxu0 %v3531
        %3677 = vmatpush1.msra.mxu0 %v3530
        %3678 = vmatprep.subr.mxu0 %v3527
        %3679 = vmatpush1.msra.mxu0 %v3526
        %3680 = vmatprep.subr.mxu0 %v3523
        %3681 = vmatpush1.msra.mxu0 %v3522
        %3682 = vmatprep.subr.mxu0 0.0
        %3683 = vmatpush2.msra.mxu0 0.0
        %3684 = vmatprep.subr.mxu0 0.0
        %3685 = vmatpush2.msra.mxu0 0.0
        %3686 = vmatprep.subr.mxu0 0.0
        %3687 = vmatpush2.msra.mxu0 0.0
        %3688 = vmatprep.subr.mxu0 0.0
        %3689 = vmatpush2.msra.mxu0 0.0
        %3690 = vmatprep.subr.mxu0 %v3631
        %3691 = vmatpush2.msra.mxu0 %v3630
        %3692 = vmatprep.subr.mxu0 %v3627
        %3693 = vmatpush2.msra.mxu0 %v3626
        %3694 = vmatprep.subr.mxu0 %v3623
        %3695 = vmatpush2.msra.mxu0 %v3622
        %3696 = vmatprep.subr.mxu0 %v3619
        %3697 = vmatpush2.msra.mxu0 %v3618
        %3698 = vmatprep.subr.mxu0 %v3615
        %3699 = vmatpush2.msra.mxu0 %v3614
        %3700 = vmatprep.subr.mxu0 %v3611
        %3701 = vmatpush2.msra.mxu0 %v3610
        %3702 = vmatprep.subr.mxu0 %v3607
        %3703 = vmatpush2.msra.mxu0 %v3606
        %3704 = vmatprep.subr.mxu0 %v3603
        %3705 = vmatpush2.msra.mxu0 %v3602
        %3706 = vmatprep.subr.mxu0 %v3599
        %3707 = vmatpush2.msra.mxu0 %v3598
        %3708 = vmatprep.subr.mxu0 %v3595
        %3709 = vmatpush2.msra.mxu0 %v3594
        %3710 = vmatprep.subr.mxu0 %v3591
        %3711 = vmatpush2.msra.mxu0 %v3590
        %3712 = vmatprep.subr.mxu0 %v3587
        %3713 = vmatpush2.msra.mxu0 %v3586
        %3714 = vmatprep.mubr.f32.mxu0 %v3646
        %3715 = vmatmul.mubr.f32.gmra.mxu0 %v3640
        %v3716 = vpop.f32.mrf.mxu0
        %v3717 = vadd.f32 0.0, %v3716
        %v3718 = vpop.f32.mrf.mxu0
        %v3719 = vadd.f32 0.0, %v3718
        %3720 = vmatprep.mubr.f32.mxu0 %v3648
        %3721 = vmatmul.mubr.f32.gmra.mxu0 %v3639
        %v3722 = vpop.f32.mrf.mxu0
        %v3723 = vadd.f32 0.0, %v3722
        %v3724 = vpop.f32.mrf.mxu0
        %v3725 = vadd.f32 0.0, %v3724
        %3726 = vdwg.mxu0
        %3727 = vmatprep.subr.mxu0 %v3585
        %3728 = vmatpush1.msra.mxu0 %v3584
        %3729 = vmatprep.subr.mxu0 %v3581
        %3730 = vmatpush1.msra.mxu0 %v3580
        %3731 = vmatprep.subr.mxu0 %v3577
        %3732 = vmatpush1.msra.mxu0 %v3576
        %3733 = vmatprep.subr.mxu0 %v3573
        %3734 = vmatpush1.msra.mxu0 %v3572
        %3735 = vmatprep.subr.mxu0 %v3569
        %3736 = vmatpush1.msra.mxu0 %v3568
        %3737 = vmatprep.subr.mxu0 %v3565
        %3738 = vmatpush1.msra.mxu0 %v3564
        %3739 = vmatprep.subr.mxu0 %v3561
        %3740 = vmatpush1.msra.mxu0 %v3560
        %3741 = vmatprep.subr.mxu0 %v3557
        %3742 = vmatpush1.msra.mxu0 %v3556
        %3743 = vmatprep.subr.mxu0 %v3553
        %3744 = vmatpush1.msra.mxu0 %v3552
        %3745 = vmatprep.subr.mxu0 %v3549
        %3746 = vmatpush1.msra.mxu0 %v3548
        %3747 = vmatprep.subr.mxu0 %v3545
        %3748 = vmatpush1.msra.mxu0 %v3544
        %3749 = vmatprep.subr.mxu0 %v3541
        %3750 = vmatpush1.msra.mxu0 %v3540
        %3751 = vmatprep.subr.mxu0 %v3537
        %3752 = vmatpush1.msra.mxu0 %v3536
        %3753 = vmatprep.subr.mxu0 %v3533
        %3754 = vmatpush1.msra.mxu0 %v3532
        %3755 = vmatprep.subr.mxu0 %v3529
        %3756 = vmatpush1.msra.mxu0 %v3528
        %3757 = vmatprep.subr.mxu0 %v3525
        %3758 = vmatpush1.msra.mxu0 %v3524
        %3759 = vmatprep.subr.mxu0 0.0
        %3760 = vmatpush2.msra.mxu0 0.0
        %3761 = vmatprep.subr.mxu0 0.0
        %3762 = vmatpush2.msra.mxu0 0.0
        %3763 = vmatprep.subr.mxu0 0.0
        %3764 = vmatpush2.msra.mxu0 0.0
        %3765 = vmatprep.subr.mxu0 0.0
        %3766 = vmatpush2.msra.mxu0 0.0
        %3767 = vmatprep.subr.mxu0 %v3633
        %3768 = vmatpush2.msra.mxu0 %v3632
        %3769 = vmatprep.subr.mxu0 %v3629
        %3770 = vmatpush2.msra.mxu0 %v3628
        %3771 = vmatprep.subr.mxu0 %v3625
        %3772 = vmatpush2.msra.mxu0 %v3624
        %3773 = vmatprep.subr.mxu0 %v3621
        %3774 = vmatpush2.msra.mxu0 %v3620
        %3775 = vmatprep.subr.mxu0 %v3617
        %3776 = vmatpush2.msra.mxu0 %v3616
        %3777 = vmatprep.subr.mxu0 %v3613
        %3778 = vmatpush2.msra.mxu0 %v3612
        %3779 = vmatprep.subr.mxu0 %v3609
        %3780 = vmatpush2.msra.mxu0 %v3608
        %3781 = vmatprep.subr.mxu0 %v3605
        %3782 = vmatpush2.msra.mxu0 %v3604
        %3783 = vmatprep.subr.mxu0 %v3601
        %3784 = vmatpush2.msra.mxu0 %v3600
        %3785 = vmatprep.subr.mxu0 %v3597
        %3786 = vmatpush2.msra.mxu0 %v3596
        %3787 = vmatprep.subr.mxu0 %v3593
        %3788 = vmatpush2.msra.mxu0 %v3592
        %3789 = vmatprep.subr.mxu0 %v3589
        %3790 = vmatpush2.msra.mxu0 %v3588
        %3791 = vmatprep.mubr.f32.mxu0 %v3646
        %3792 = vmatmul.mubr.f32.gmra.mxu0 %v3640
        %v3793 = vpop.f32.mrf.mxu0
        %v3794 = vadd.f32 0.0, %v3793
        %v3795 = vpop.f32.mrf.mxu0
        %v3796 = vadd.f32 0.0, %v3795
        %3797 = vmatprep.mubr.f32.mxu0 %v3648
        %3798 = vmatmul.mubr.f32.gmra.mxu0 %v3639
        %v3799 = vpop.f32.mrf.mxu0
        %v3800 = vadd.f32 0.0, %v3799
        %v3801 = vpop.f32.mrf.mxu0
        %v3802 = vadd.f32 0.0, %v3801
        %3803 = vdwg.mxu0
        %v3804 = vadd.f32 %v3430, %v3717
        %v3805 = vadd.f32 %v3432, %v3719
        %v3806 = vadd.f32 %v3507, %v3794
        %v3807 = vadd.f32 %v3509, %v3796
        %v3808 = vadd.f32 %v3436, %v3723
        %v3809 = vadd.f32 %v3438, %v3725
        %v3810 = vadd.f32 %v3513, %v3800
        %v3811 = vadd.f32 %v3515, %v3802
        %v3812 = vld [vmem:[#allocation15] sm:$0xf]
        %v3814 = vlaneseq
        %v3815 = vshrl.u32 %v3814, 7
        %v3816 = vsub.s32 0, %v3815
        %v3817 = vrot.slane %v3812, %v3816
        %v3818 = vlaneseq
        %v3819 = vshrl.u32 %v3818, 7
        %v3820 = vsub.s32 1, %v3819
        %v3821 = vrot.slane %v3812, %v3820
        %v3822 = vlaneseq
        %v3823 = vshrl.u32 %v3822, 7
        %v3824 = vsub.s32 2, %v3823
        %v3825 = vrot.slane %v3812, %v3824
        %v3826 = vlaneseq
        %v3827 = vshrl.u32 %v3826, 7
        %v3828 = vsub.s32 3, %v3827
        %v3829 = vrot.slane %v3812, %v3828
        %v3834 = vadd.f32 %v3804, %v3817
        %v3835 = vadd.f32 %v3805, %v3821
        %v3836 = vadd.f32 %v3806, %v3825
        %v3837 = vadd.f32 %v3807, %v3829
        %v3838 = vadd.f32 %v3808, %v3817
        %v3839 = vadd.f32 %v3809, %v3821
        %v3840 = vadd.f32 %v3810, %v3825
        %v3841 = vadd.f32 %v3811, %v3829
        %v3842 = vmax.f32 %v3834, 0.0
        %v3843 = vmax.f32 %v3835, 0.0
        %v3844 = vmax.f32 %v3836, 0.0
        %v3845 = vmax.f32 %v3837, 0.0
        %v3846 = vmax.f32 %v3838, 0.0
        %v3847 = vmax.f32 %v3839, 0.0
        %v3848 = vmax.f32 %v3840, 0.0
        %v3849 = vmax.f32 %v3841, 0.0
        %v3850 = vld [vmem:[%s9] sm:$0x7f]
        %vm3851 = vcmask 113664
        %v3853 = vsel %vm3851, %v3850, 0
        %v3856 = vsel %vm1766, %v3846, 0
        %v3859 = vsel %vm1766, %v3847, 0
        %v3862 = vsel %vm1766, %v3848, 0
        %v3865 = vsel %vm1766, %v3849, 0
        %3867 = vmatprep.subr.mxu0 0.0
        %3868 = vmatpush1.msra.mxu0 0.0
        %3869 = vmatprep.subr.mxu0 0.0
        %3870 = vmatpush1.msra.mxu0 0.0
        %3871 = vmatprep.subr.mxu0 0.0
        %3872 = vmatpush1.msra.mxu0 0.0
        %3873 = vmatprep.subr.mxu0 0.0
        %3874 = vmatpush1.msra.mxu0 0.0
        %3875 = vmatprep.subr.mxu0 0.0
        %3876 = vmatpush1.msra.mxu0 0.0
        %3877 = vmatprep.subr.mxu0 0.0
        %3878 = vmatpush1.msra.mxu0 0.0
        %3879 = vmatprep.subr.mxu0 0.0
        %3880 = vmatpush1.msra.mxu0 0.0
        %3881 = vmatprep.subr.mxu0 0.0
        %3882 = vmatpush1.msra.mxu0 0.0
        %3883 = vmatprep.subr.mxu0 0.0
        %3884 = vmatpush1.msra.mxu0 0.0
        %3885 = vmatprep.subr.mxu0 0.0
        %3886 = vmatpush1.msra.mxu0 0.0
        %3887 = vmatprep.subr.mxu0 0.0
        %3888 = vmatpush1.msra.mxu0 0.0
        %3889 = vmatprep.subr.mxu0 0.0
        %3890 = vmatpush1.msra.mxu0 0.0
        %3891 = vmatprep.subr.mxu0 0.0
        %3892 = vmatpush1.msra.mxu0 0.0
        %3893 = vmatprep.subr.mxu0 0.0
        %3894 = vmatpush1.msra.mxu0 0.0
        %3895 = vmatprep.subr.mxu0 %v3859
        %3896 = vmatpush1.msra.mxu0 %v3856
        %3897 = vmatprep.subr.mxu0 %v3843
        %3898 = vmatpush1.msra.mxu0 %v3842
        %3899 = vmatprep.subr.mxu0 0.0
        %3900 = vmatpush2.msra.mxu0 0.0
        %3901 = vmatprep.subr.mxu0 0.0
        %3902 = vmatpush2.msra.mxu0 0.0
        %3903 = vmatprep.subr.mxu0 0.0
        %3904 = vmatpush2.msra.mxu0 0.0
        %3905 = vmatprep.subr.mxu0 0.0
        %3906 = vmatpush2.msra.mxu0 0.0
        %3907 = vmatprep.subr.mxu0 0.0
        %3908 = vmatpush2.msra.mxu0 0.0
        %3909 = vmatprep.subr.mxu0 0.0
        %3910 = vmatpush2.msra.mxu0 0.0
        %3911 = vmatprep.subr.mxu0 0.0
        %3912 = vmatpush2.msra.mxu0 0.0
        %3913 = vmatprep.subr.mxu0 0.0
        %3914 = vmatpush2.msra.mxu0 0.0
        %3915 = vmatprep.subr.mxu0 0.0
        %3916 = vmatpush2.msra.mxu0 0.0
        %3917 = vmatprep.subr.mxu0 0.0
        %3918 = vmatpush2.msra.mxu0 0.0
        %3919 = vmatprep.subr.mxu0 0.0
        %3920 = vmatpush2.msra.mxu0 0.0
        %3921 = vmatprep.subr.mxu0 0.0
        %3922 = vmatpush2.msra.mxu0 0.0
        %3923 = vmatprep.subr.mxu0 0.0
        %3924 = vmatpush2.msra.mxu0 0.0
        %3925 = vmatprep.subr.mxu0 0.0
        %3926 = vmatpush2.msra.mxu0 0.0
        %3927 = vmatprep.subr.mxu0 0.0
        %3928 = vmatpush2.msra.mxu0 0.0
        %3929 = vmatprep.subr.mxu0 0.0
        %3930 = vmatpush2.msra.mxu0 0.0
        %3931 = vmatprep.mubr.f32.mxu0 0.0
        %3932 = vmatmul.mubr.f32.gmra.mxu0 %v3853
        %v3933 = vpop.f32.mrf.mxu0
        %v3934 = vadd.f32 0.0, %v3933
        %v3935 = vpop.f32.mrf.mxu0
        %v3936 = vadd.f32 0.0, %v3935
        %3937 = vdwg.mxu0
        %3938 = vmatprep.subr.mxu0 0.0
        %3939 = vmatpush1.msra.mxu0 0.0
        %3940 = vmatprep.subr.mxu0 0.0
        %3941 = vmatpush1.msra.mxu0 0.0
        %3942 = vmatprep.subr.mxu0 0.0
        %3943 = vmatpush1.msra.mxu0 0.0
        %3944 = vmatprep.subr.mxu0 0.0
        %3945 = vmatpush1.msra.mxu0 0.0
        %3946 = vmatprep.subr.mxu0 0.0
        %3947 = vmatpush1.msra.mxu0 0.0
        %3948 = vmatprep.subr.mxu0 0.0
        %3949 = vmatpush1.msra.mxu0 0.0
        %3950 = vmatprep.subr.mxu0 0.0
        %3951 = vmatpush1.msra.mxu0 0.0
        %3952 = vmatprep.subr.mxu0 0.0
        %3953 = vmatpush1.msra.mxu0 0.0
        %3954 = vmatprep.subr.mxu0 0.0
        %3955 = vmatpush1.msra.mxu0 0.0
        %3956 = vmatprep.subr.mxu0 0.0
        %3957 = vmatpush1.msra.mxu0 0.0
        %3958 = vmatprep.subr.mxu0 0.0
        %3959 = vmatpush1.msra.mxu0 0.0
        %3960 = vmatprep.subr.mxu0 0.0
        %3961 = vmatpush1.msra.mxu0 0.0
        %3962 = vmatprep.subr.mxu0 0.0
        %3963 = vmatpush1.msra.mxu0 0.0
        %3964 = vmatprep.subr.mxu0 0.0
        %3965 = vmatpush1.msra.mxu0 0.0
        %3966 = vmatprep.subr.mxu0 %v3865
        %3967 = vmatpush1.msra.mxu0 %v3862
        %3968 = vmatprep.subr.mxu0 %v3845
        %3969 = vmatpush1.msra.mxu0 %v3844
        %3970 = vmatprep.subr.mxu0 0.0
        %3971 = vmatpush2.msra.mxu0 0.0
        %3972 = vmatprep.subr.mxu0 0.0
        %3973 = vmatpush2.msra.mxu0 0.0
        %3974 = vmatprep.subr.mxu0 0.0
        %3975 = vmatpush2.msra.mxu0 0.0
        %3976 = vmatprep.subr.mxu0 0.0
        %3977 = vmatpush2.msra.mxu0 0.0
        %3978 = vmatprep.subr.mxu0 0.0
        %3979 = vmatpush2.msra.mxu0 0.0
        %3980 = vmatprep.subr.mxu0 0.0
        %3981 = vmatpush2.msra.mxu0 0.0
        %3982 = vmatprep.subr.mxu0 0.0
        %3983 = vmatpush2.msra.mxu0 0.0
        %3984 = vmatprep.subr.mxu0 0.0
        %3985 = vmatpush2.msra.mxu0 0.0
        %3986 = vmatprep.subr.mxu0 0.0
        %3987 = vmatpush2.msra.mxu0 0.0
        %3988 = vmatprep.subr.mxu0 0.0
        %3989 = vmatpush2.msra.mxu0 0.0
        %3990 = vmatprep.subr.mxu0 0.0
        %3991 = vmatpush2.msra.mxu0 0.0
        %3992 = vmatprep.subr.mxu0 0.0
        %3993 = vmatpush2.msra.mxu0 0.0
        %3994 = vmatprep.subr.mxu0 0.0
        %3995 = vmatpush2.msra.mxu0 0.0
        %3996 = vmatprep.subr.mxu0 0.0
        %3997 = vmatpush2.msra.mxu0 0.0
        %3998 = vmatprep.subr.mxu0 0.0
        %3999 = vmatpush2.msra.mxu0 0.0
        %4000 = vmatprep.subr.mxu0 0.0
        %4001 = vmatpush2.msra.mxu0 0.0
        %4002 = vmatprep.mubr.f32.mxu0 0.0
        %4003 = vmatmul.mubr.f32.gmra.mxu0 %v3853
        %v4004 = vpop.f32.mrf.mxu0
        %v4005 = vadd.f32 0.0, %v4004
        %v4006 = vpop.f32.mrf.mxu0
        %v4007 = vadd.f32 0.0, %v4006
        %4008 = vdwg.mxu0
        %s4009 = scalar_lea.vmem %s9, 8
        %v4010 = vld [vmem:[%s4009] sm:$0x7f]
        %v4012 = vsel %vm3851, %v4010, 0
        %4014 = vmatprep.subr.mxu0 0.0
        %4015 = vmatpush1.msra.mxu0 0.0
        %4016 = vmatprep.subr.mxu0 0.0
        %4017 = vmatpush1.msra.mxu0 0.0
        %4018 = vmatprep.subr.mxu0 0.0
        %4019 = vmatpush1.msra.mxu0 0.0
        %4020 = vmatprep.subr.mxu0 0.0
        %4021 = vmatpush1.msra.mxu0 0.0
        %4022 = vmatprep.subr.mxu0 0.0
        %4023 = vmatpush1.msra.mxu0 0.0
        %4024 = vmatprep.subr.mxu0 0.0
        %4025 = vmatpush1.msra.mxu0 0.0
        %4026 = vmatprep.subr.mxu0 0.0
        %4027 = vmatpush1.msra.mxu0 0.0
        %4028 = vmatprep.subr.mxu0 0.0
        %4029 = vmatpush1.msra.mxu0 0.0
        %4030 = vmatprep.subr.mxu0 0.0
        %4031 = vmatpush1.msra.mxu0 0.0
        %4032 = vmatprep.subr.mxu0 0.0
        %4033 = vmatpush1.msra.mxu0 0.0
        %4034 = vmatprep.subr.mxu0 0.0
        %4035 = vmatpush1.msra.mxu0 0.0
        %4036 = vmatprep.subr.mxu0 0.0
        %4037 = vmatpush1.msra.mxu0 0.0
        %4038 = vmatprep.subr.mxu0 0.0
        %4039 = vmatpush1.msra.mxu0 0.0
        %4040 = vmatprep.subr.mxu0 0.0
        %4041 = vmatpush1.msra.mxu0 0.0
        %4042 = vmatprep.subr.mxu0 %v3859
        %4043 = vmatpush1.msra.mxu0 %v3856
        %4044 = vmatprep.subr.mxu0 %v3843
        %4045 = vmatpush1.msra.mxu0 %v3842
        %4046 = vmatprep.subr.mxu0 0.0
        %4047 = vmatpush2.msra.mxu0 0.0
        %4048 = vmatprep.subr.mxu0 0.0
        %4049 = vmatpush2.msra.mxu0 0.0
        %4050 = vmatprep.subr.mxu0 0.0
        %4051 = vmatpush2.msra.mxu0 0.0
        %4052 = vmatprep.subr.mxu0 0.0
        %4053 = vmatpush2.msra.mxu0 0.0
        %4054 = vmatprep.subr.mxu0 0.0
        %4055 = vmatpush2.msra.mxu0 0.0
        %4056 = vmatprep.subr.mxu0 0.0
        %4057 = vmatpush2.msra.mxu0 0.0
        %4058 = vmatprep.subr.mxu0 0.0
        %4059 = vmatpush2.msra.mxu0 0.0
        %4060 = vmatprep.subr.mxu0 0.0
        %4061 = vmatpush2.msra.mxu0 0.0
        %4062 = vmatprep.subr.mxu0 0.0
        %4063 = vmatpush2.msra.mxu0 0.0
        %4064 = vmatprep.subr.mxu0 0.0
        %4065 = vmatpush2.msra.mxu0 0.0
        %4066 = vmatprep.subr.mxu0 0.0
        %4067 = vmatpush2.msra.mxu0 0.0
        %4068 = vmatprep.subr.mxu0 0.0
        %4069 = vmatpush2.msra.mxu0 0.0
        %4070 = vmatprep.subr.mxu0 0.0
        %4071 = vmatpush2.msra.mxu0 0.0
        %4072 = vmatprep.subr.mxu0 0.0
        %4073 = vmatpush2.msra.mxu0 0.0
        %4074 = vmatprep.subr.mxu0 0.0
        %4075 = vmatpush2.msra.mxu0 0.0
        %4076 = vmatprep.subr.mxu0 0.0
        %4077 = vmatpush2.msra.mxu0 0.0
        %4078 = vmatprep.mubr.f32.mxu0 0.0
        %4079 = vmatmul.mubr.f32.gmra.mxu0 %v4012
        %v4080 = vpop.f32.mrf.mxu0
        %v4081 = vadd.f32 0.0, %v4080
        %v4082 = vpop.f32.mrf.mxu0
        %v4083 = vadd.f32 0.0, %v4082
        %4084 = vdwg.mxu0
        %4085 = vmatprep.subr.mxu0 0.0
        %4086 = vmatpush1.msra.mxu0 0.0
        %4087 = vmatprep.subr.mxu0 0.0
        %4088 = vmatpush1.msra.mxu0 0.0
        %4089 = vmatprep.subr.mxu0 0.0
        %4090 = vmatpush1.msra.mxu0 0.0
        %4091 = vmatprep.subr.mxu0 0.0
        %4092 = vmatpush1.msra.mxu0 0.0
        %4093 = vmatprep.subr.mxu0 0.0
        %4094 = vmatpush1.msra.mxu0 0.0
        %4095 = vmatprep.subr.mxu0 0.0
        %4096 = vmatpush1.msra.mxu0 0.0
        %4097 = vmatprep.subr.mxu0 0.0
        %4098 = vmatpush1.msra.mxu0 0.0
        %4099 = vmatprep.subr.mxu0 0.0
        %4100 = vmatpush1.msra.mxu0 0.0
        %4101 = vmatprep.subr.mxu0 0.0
        %4102 = vmatpush1.msra.mxu0 0.0
        %4103 = vmatprep.subr.mxu0 0.0
        %4104 = vmatpush1.msra.mxu0 0.0
        %4105 = vmatprep.subr.mxu0 0.0
        %4106 = vmatpush1.msra.mxu0 0.0
        %4107 = vmatprep.subr.mxu0 0.0
        %4108 = vmatpush1.msra.mxu0 0.0
        %4109 = vmatprep.subr.mxu0 0.0
        %4110 = vmatpush1.msra.mxu0 0.0
        %4111 = vmatprep.subr.mxu0 0.0
        %4112 = vmatpush1.msra.mxu0 0.0
        %4113 = vmatprep.subr.mxu0 %v3865
        %4114 = vmatpush1.msra.mxu0 %v3862
        %4115 = vmatprep.subr.mxu0 %v3845
        %4116 = vmatpush1.msra.mxu0 %v3844
        %4117 = vmatprep.subr.mxu0 0.0
        %4118 = vmatpush2.msra.mxu0 0.0
        %4119 = vmatprep.subr.mxu0 0.0
        %4120 = vmatpush2.msra.mxu0 0.0
        %4121 = vmatprep.subr.mxu0 0.0
        %4122 = vmatpush2.msra.mxu0 0.0
        %4123 = vmatprep.subr.mxu0 0.0
        %4124 = vmatpush2.msra.mxu0 0.0
        %4125 = vmatprep.subr.mxu0 0.0
        %4126 = vmatpush2.msra.mxu0 0.0
        %4127 = vmatprep.subr.mxu0 0.0
        %4128 = vmatpush2.msra.mxu0 0.0
        %4129 = vmatprep.subr.mxu0 0.0
        %4130 = vmatpush2.msra.mxu0 0.0
        %4131 = vmatprep.subr.mxu0 0.0
        %4132 = vmatpush2.msra.mxu0 0.0
        %4133 = vmatprep.subr.mxu0 0.0
        %4134 = vmatpush2.msra.mxu0 0.0
        %4135 = vmatprep.subr.mxu0 0.0
        %4136 = vmatpush2.msra.mxu0 0.0
        %4137 = vmatprep.subr.mxu0 0.0
        %4138 = vmatpush2.msra.mxu0 0.0
        %4139 = vmatprep.subr.mxu0 0.0
        %4140 = vmatpush2.msra.mxu0 0.0
        %4141 = vmatprep.subr.mxu0 0.0
        %4142 = vmatpush2.msra.mxu0 0.0
        %4143 = vmatprep.subr.mxu0 0.0
        %4144 = vmatpush2.msra.mxu0 0.0
        %4145 = vmatprep.subr.mxu0 0.0
        %4146 = vmatpush2.msra.mxu0 0.0
        %4147 = vmatprep.subr.mxu0 0.0
        %4148 = vmatpush2.msra.mxu0 0.0
        %4149 = vmatprep.mubr.f32.mxu0 0.0
        %4150 = vmatmul.mubr.f32.gmra.mxu0 %v4012
        %v4151 = vpop.f32.mrf.mxu0
        %v4152 = vadd.f32 0.0, %v4151
        %v4153 = vpop.f32.mrf.mxu0
        %v4154 = vadd.f32 0.0, %v4153
        %4155 = vdwg.mxu0
        %v4156 = vmax.f32 %v3934, %v4081
        %v4157 = vmax.f32 %v3936, %v4083
        %v4158 = vmax.f32 %v4005, %v4152
        %v4159 = vmax.f32 %v4007, %v4154
        %v4160 = vld [vmem:[#allocation17] sm:$0xff]
        %v4161 = vld [vmem:[#allocation17 + $0x8] sm:$0xff]
        %v4162 = vld [vmem:[#allocation17 + $0x10] sm:$0xff]
        %v4163 = vld [vmem:[#allocation17 + $0x18] sm:$0xff]
        %v4164 = vld [vmem:[#allocation17 + $0x20] sm:$0xff]
        %v4165 = vld [vmem:[#allocation17 + $0x28] sm:$0xff]
        %v4166 = vld [vmem:[#allocation17 + $0x30] sm:$0xff]
        %v4167 = vld [vmem:[#allocation17 + $0x38] sm:$0xff]
        %v4168 = vld [vmem:[#allocation17 + $0x40] sm:$0xff]
        %v4169 = vld [vmem:[#allocation17 + $0x48] sm:$0xff]
        %v4170 = vld [vmem:[#allocation17 + $0x50] sm:$0xff]
        %v4171 = vld [vmem:[#allocation17 + $0x58] sm:$0xff]
        %v4172 = vld [vmem:[#allocation17 + $0x60] sm:$0xff]
        %v4173 = vld [vmem:[#allocation17 + $0x68] sm:$0xff]
        %v4174 = vld [vmem:[#allocation17 + $0x70] sm:$0xff]
        %v4175 = vld [vmem:[#allocation17 + $0x78] sm:$0xff]
        %v4176 = vld [vmem:[#allocation17 + $0x80] sm:$0xff]
        %v4177 = vld [vmem:[#allocation17 + $0x88] sm:$0xff]
        %v4178 = vld [vmem:[#allocation17 + $0x90] sm:$0xff]
        %v4179 = vld [vmem:[#allocation17 + $0x98] sm:$0xff]
        %v4180 = vld [vmem:[#allocation17 + $0xa0] sm:$0xff]
        %v4181 = vld [vmem:[#allocation17 + $0xa8] sm:$0xff]
        %v4182 = vld [vmem:[#allocation17 + $0xb0] sm:$0xff]
        %v4183 = vld [vmem:[#allocation17 + $0xb8] sm:$0xff]
        %v4184 = vld [vmem:[#allocation17 + $0xc0] sm:$0xff]
        %v4185 = vld [vmem:[#allocation17 + $0xc8] sm:$0xff]
        %v4186 = vld [vmem:[#allocation17 + $0xd0] sm:$0xff]
        %v4187 = vld [vmem:[#allocation17 + $0xd8] sm:$0xff]
        %v4188 = vld [vmem:[#allocation17 + $0xe0] sm:$0xff]
        %v4189 = vld [vmem:[#allocation17 + $0xe8] sm:$0xff]
        %v4190 = vld [vmem:[#allocation17 + $0xf0] sm:$0xff]
        %v4191 = vld [vmem:[#allocation17 + $0xf8] sm:$0xff]
        %v4192 = vld [vmem:[#allocation17 + $0x100] sm:$0xff]
        %v4193 = vld [vmem:[#allocation17 + $0x108] sm:$0xff]
        %v4194 = vld [vmem:[#allocation17 + $0x110] sm:$0xff]
        %v4195 = vld [vmem:[#allocation17 + $0x118] sm:$0xff]
        %v4196 = vld [vmem:[#allocation17 + $0x120] sm:$0xff]
        %v4197 = vld [vmem:[#allocation17 + $0x128] sm:$0xff]
        %v4198 = vld [vmem:[#allocation17 + $0x130] sm:$0xff]
        %v4199 = vld [vmem:[#allocation17 + $0x138] sm:$0xff]
        %v4200 = vld [vmem:[#allocation17 + $0x140] sm:$0xff]
        %v4201 = vld [vmem:[#allocation17 + $0x148] sm:$0xff]
        %v4202 = vld [vmem:[#allocation17 + $0x150] sm:$0xff]
        %v4203 = vld [vmem:[#allocation17 + $0x158] sm:$0xff]
        %v4204 = vld [vmem:[#allocation17 + $0x160] sm:$0xff]
        %v4205 = vld [vmem:[#allocation17 + $0x168] sm:$0xff]
        %v4206 = vld [vmem:[#allocation17 + $0x170] sm:$0xff]
        %v4207 = vld [vmem:[#allocation17 + $0x178] sm:$0xff]
        %v4208 = vld [vmem:[#allocation17 + $0x180] sm:$0xff]
        %v4209 = vld [vmem:[#allocation17 + $0x188] sm:$0xff]
        %v4210 = vld [vmem:[#allocation17 + $0x190] sm:$0xff]
        %v4211 = vld [vmem:[#allocation17 + $0x198] sm:$0xff]
        %v4212 = vld [vmem:[#allocation17 + $0x1a0] sm:$0xff]
        %v4213 = vld [vmem:[#allocation17 + $0x1a8] sm:$0xff]
        %v4214 = vld [vmem:[#allocation17 + $0x1b0] sm:$0xff]
        %v4215 = vld [vmem:[#allocation17 + $0x1b8] sm:$0xff]
        %v4216 = vld [vmem:[#allocation17 + $0x1c0] sm:$0xff]
        %v4217 = vld [vmem:[#allocation17 + $0x1c8] sm:$0xff]
        %v4218 = vld [vmem:[#allocation17 + $0x1d0] sm:$0xff]
        %v4219 = vld [vmem:[#allocation17 + $0x1d8] sm:$0xff]
        %v4220 = vld [vmem:[#allocation17 + $0x1e0] sm:$0xff]
        %v4221 = vld [vmem:[#allocation17 + $0x1e8] sm:$0xff]
        %v4222 = vld [vmem:[#allocation17 + $0x1f0] sm:$0xff]
        %v4223 = vld [vmem:[#allocation17 + $0x1f8] sm:$0xff]
        %v4224 = vld [vmem:[#allocation17 + $0x200] sm:$0xff]
        %v4225 = vld [vmem:[#allocation17 + $0x208] sm:$0xff]
        %v4226 = vld [vmem:[#allocation17 + $0x210] sm:$0xff]
        %v4227 = vld [vmem:[#allocation17 + $0x218] sm:$0xff]
        %v4228 = vld [vmem:[#allocation17 + $0x220] sm:$0xff]
        %v4229 = vld [vmem:[#allocation17 + $0x228] sm:$0xff]
        %v4230 = vld [vmem:[#allocation17 + $0x230] sm:$0xff]
        %v4231 = vld [vmem:[#allocation17 + $0x238] sm:$0xff]
        %v4232 = vld [vmem:[#allocation17 + $0x240] sm:$0xff]
        %v4233 = vld [vmem:[#allocation17 + $0x248] sm:$0xff]
        %v4234 = vld [vmem:[#allocation17 + $0x250] sm:$0xff]
        %v4235 = vld [vmem:[#allocation17 + $0x258] sm:$0xff]
        %v4236 = vld [vmem:[#allocation17 + $0x260] sm:$0xff]
        %v4237 = vld [vmem:[#allocation17 + $0x268] sm:$0xff]
        %v4238 = vld [vmem:[#allocation17 + $0x270] sm:$0xff]
        %v4239 = vld [vmem:[#allocation17 + $0x278] sm:$0xff]
        %v4240 = vld [vmem:[#allocation17 + $0x280] sm:$0xff]
        %v4241 = vld [vmem:[#allocation17 + $0x288] sm:$0xff]
        %v4242 = vld [vmem:[#allocation17 + $0x290] sm:$0xff]
        %v4243 = vld [vmem:[#allocation17 + $0x298] sm:$0xff]
        %v4244 = vld [vmem:[#allocation17 + $0x2a0] sm:$0xff]
        %v4245 = vld [vmem:[#allocation17 + $0x2a8] sm:$0xff]
        %v4246 = vld [vmem:[#allocation17 + $0x2b0] sm:$0xff]
        %v4247 = vld [vmem:[#allocation17 + $0x2b8] sm:$0xff]
        %v4248 = vld [vmem:[#allocation17 + $0x2c0] sm:$0xff]
        %v4249 = vld [vmem:[#allocation17 + $0x2c8] sm:$0xff]
        %v4250 = vld [vmem:[#allocation17 + $0x2d0] sm:$0xff]
        %v4251 = vld [vmem:[#allocation17 + $0x2d8] sm:$0xff]
        %v4252 = vld [vmem:[#allocation17 + $0x2e0] sm:$0xff]
        %v4253 = vld [vmem:[#allocation17 + $0x2e8] sm:$0xff]
        %v4254 = vld [vmem:[#allocation17 + $0x2f0] sm:$0xff]
        %v4255 = vld [vmem:[#allocation17 + $0x2f8] sm:$0xff]
        %v4256 = vld [vmem:[#allocation17 + $0x300] sm:$0xff]
        %v4257 = vld [vmem:[#allocation17 + $0x308] sm:$0xff]
        %v4258 = vld [vmem:[#allocation17 + $0x310] sm:$0xff]
        %v4259 = vld [vmem:[#allocation17 + $0x318] sm:$0xff]
        %v4260 = vld [vmem:[#allocation17 + $0x320] sm:$0xff]
        %v4261 = vld [vmem:[#allocation17 + $0x328] sm:$0xff]
        %v4262 = vld [vmem:[#allocation17 + $0x330] sm:$0xff]
        %v4263 = vld [vmem:[#allocation17 + $0x338] sm:$0xff]
        %v4264 = vld [vmem:[#allocation17 + $0x340] sm:$0xff]
        %v4265 = vld [vmem:[#allocation17 + $0x348] sm:$0xff]
        %v4266 = vld [vmem:[#allocation17 + $0x350] sm:$0xff]
        %v4267 = vld [vmem:[#allocation17 + $0x358] sm:$0xff]
        %v4268 = vld [vmem:[#allocation17 + $0x360] sm:$0xff]
        %v4269 = vld [vmem:[#allocation17 + $0x368] sm:$0xff]
        %v4270 = vld [vmem:[#allocation17 + $0x370] sm:$0xff]
        %v4271 = vld [vmem:[#allocation17 + $0x378] sm:$0xff]
        %v4273 = vsel %vm2498, %v4159, 0
        %4275 = vmatprep.subr.mxu0 %v4191
        %4276 = vmatpush1.msra.mxu0 %v4190
        %4277 = vmatprep.subr.mxu0 %v4189
        %4278 = vmatpush1.msra.mxu0 %v4188
        %4279 = vmatprep.subr.mxu0 %v4187
        %4280 = vmatpush1.msra.mxu0 %v4186
        %4281 = vmatprep.subr.mxu0 %v4185
        %4282 = vmatpush1.msra.mxu0 %v4184
        %4283 = vmatprep.subr.mxu0 %v4183
        %4284 = vmatpush1.msra.mxu0 %v4182
        %4285 = vmatprep.subr.mxu0 %v4181
        %4286 = vmatpush1.msra.mxu0 %v4180
        %4287 = vmatprep.subr.mxu0 %v4179
        %4288 = vmatpush1.msra.mxu0 %v4178
        %4289 = vmatprep.subr.mxu0 %v4177
        %4290 = vmatpush1.msra.mxu0 %v4176
        %4291 = vmatprep.subr.mxu0 %v4175
        %4292 = vmatpush1.msra.mxu0 %v4174
        %4293 = vmatprep.subr.mxu0 %v4173
        %4294 = vmatpush1.msra.mxu0 %v4172
        %4295 = vmatprep.subr.mxu0 %v4171
        %4296 = vmatpush1.msra.mxu0 %v4170
        %4297 = vmatprep.subr.mxu0 %v4169
        %4298 = vmatpush1.msra.mxu0 %v4168
        %4299 = vmatprep.subr.mxu0 %v4167
        %4300 = vmatpush1.msra.mxu0 %v4166
        %4301 = vmatprep.subr.mxu0 %v4165
        %4302 = vmatpush1.msra.mxu0 %v4164
        %4303 = vmatprep.subr.mxu0 %v4163
        %4304 = vmatpush1.msra.mxu0 %v4162
        %4305 = vmatprep.subr.mxu0 %v4161
        %4306 = vmatpush1.msra.mxu0 %v4160
        %4307 = vmatprep.subr.mxu0 %v4223
        %4308 = vmatpush2.msra.mxu0 %v4222
        %4309 = vmatprep.subr.mxu0 %v4221
        %4310 = vmatpush2.msra.mxu0 %v4220
        %4311 = vmatprep.subr.mxu0 %v4219
        %4312 = vmatpush2.msra.mxu0 %v4218
        %4313 = vmatprep.subr.mxu0 %v4217
        %4314 = vmatpush2.msra.mxu0 %v4216
        %4315 = vmatprep.subr.mxu0 %v4215
        %4316 = vmatpush2.msra.mxu0 %v4214
        %4317 = vmatprep.subr.mxu0 %v4213
        %4318 = vmatpush2.msra.mxu0 %v4212
        %4319 = vmatprep.subr.mxu0 %v4211
        %4320 = vmatpush2.msra.mxu0 %v4210
        %4321 = vmatprep.subr.mxu0 %v4209
        %4322 = vmatpush2.msra.mxu0 %v4208
        %4323 = vmatprep.subr.mxu0 %v4207
        %4324 = vmatpush2.msra.mxu0 %v4206
        %4325 = vmatprep.subr.mxu0 %v4205
        %4326 = vmatpush2.msra.mxu0 %v4204
        %4327 = vmatprep.subr.mxu0 %v4203
        %4328 = vmatpush2.msra.mxu0 %v4202
        %4329 = vmatprep.subr.mxu0 %v4201
        %4330 = vmatpush2.msra.mxu0 %v4200
        %4331 = vmatprep.subr.mxu0 %v4199
        %4332 = vmatpush2.msra.mxu0 %v4198
        %4333 = vmatprep.subr.mxu0 %v4197
        %4334 = vmatpush2.msra.mxu0 %v4196
        %4335 = vmatprep.subr.mxu0 %v4195
        %4336 = vmatpush2.msra.mxu0 %v4194
        %4337 = vmatprep.subr.mxu0 %v4193
        %4338 = vmatpush2.msra.mxu0 %v4192
        %4339 = vmatprep.mubr.f32.mxu0 %v4157
        %4340 = vmatmul.mubr.f32.gmra.mxu0 %v4156
        %v4341 = vpop.f32.mrf.mxu0
        %v4342 = vadd.f32 0.0, %v4341
        %v4343 = vpop.f32.mrf.mxu0
        %v4344 = vadd.f32 0.0, %v4343
        %4345 = vdwg.mxu0
        %4346 = vmatprep.subr.mxu0 %v4255
        %4347 = vmatpush1.msra.mxu0 %v4254
        %4348 = vmatprep.subr.mxu0 %v4253
        %4349 = vmatpush1.msra.mxu0 %v4252
        %4350 = vmatprep.subr.mxu0 %v4251
        %4351 = vmatpush1.msra.mxu0 %v4250
        %4352 = vmatprep.subr.mxu0 %v4249
        %4353 = vmatpush1.msra.mxu0 %v4248
        %4354 = vmatprep.subr.mxu0 %v4247
        %4355 = vmatpush1.msra.mxu0 %v4246
        %4356 = vmatprep.subr.mxu0 %v4245
        %4357 = vmatpush1.msra.mxu0 %v4244
        %4358 = vmatprep.subr.mxu0 %v4243
        %4359 = vmatpush1.msra.mxu0 %v4242
        %4360 = vmatprep.subr.mxu0 %v4241
        %4361 = vmatpush1.msra.mxu0 %v4240
        %4362 = vmatprep.subr.mxu0 %v4239
        %4363 = vmatpush1.msra.mxu0 %v4238
        %4364 = vmatprep.subr.mxu0 %v4237
        %4365 = vmatpush1.msra.mxu0 %v4236
        %4366 = vmatprep.subr.mxu0 %v4235
        %4367 = vmatpush1.msra.mxu0 %v4234
        %4368 = vmatprep.subr.mxu0 %v4233
        %4369 = vmatpush1.msra.mxu0 %v4232
        %4370 = vmatprep.subr.mxu0 %v4231
        %4371 = vmatpush1.msra.mxu0 %v4230
        %4372 = vmatprep.subr.mxu0 %v4229
        %4373 = vmatpush1.msra.mxu0 %v4228
        %4374 = vmatprep.subr.mxu0 %v4227
        %4375 = vmatpush1.msra.mxu0 %v4226
        %4376 = vmatprep.subr.mxu0 %v4225
        %4377 = vmatpush1.msra.mxu0 %v4224
        %4378 = vmatprep.subr.mxu0 0.0
        %4379 = vmatpush2.msra.mxu0 0.0
        %4380 = vmatprep.subr.mxu0 0.0
        %4381 = vmatpush2.msra.mxu0 0.0
        %4382 = vmatprep.subr.mxu0 0.0
        %4383 = vmatpush2.msra.mxu0 0.0
        %4384 = vmatprep.subr.mxu0 0.0
        %4385 = vmatpush2.msra.mxu0 0.0
        %4386 = vmatprep.subr.mxu0 0.0
        %4387 = vmatpush2.msra.mxu0 0.0
        %4388 = vmatprep.subr.mxu0 0.0
        %4389 = vmatpush2.msra.mxu0 0.0
        %4390 = vmatprep.subr.mxu0 0.0
        %4391 = vmatpush2.msra.mxu0 0.0
        %4392 = vmatprep.subr.mxu0 0.0
        %4393 = vmatpush2.msra.mxu0 0.0
        %4394 = vmatprep.subr.mxu0 %v4271
        %4395 = vmatpush2.msra.mxu0 %v4270
        %4396 = vmatprep.subr.mxu0 %v4269
        %4397 = vmatpush2.msra.mxu0 %v4268
        %4398 = vmatprep.subr.mxu0 %v4267
        %4399 = vmatpush2.msra.mxu0 %v4266
        %4400 = vmatprep.subr.mxu0 %v4265
        %4401 = vmatpush2.msra.mxu0 %v4264
        %4402 = vmatprep.subr.mxu0 %v4263
        %4403 = vmatpush2.msra.mxu0 %v4262
        %4404 = vmatprep.subr.mxu0 %v4261
        %4405 = vmatpush2.msra.mxu0 %v4260
        %4406 = vmatprep.subr.mxu0 %v4259
        %4407 = vmatpush2.msra.mxu0 %v4258
        %4408 = vmatprep.subr.mxu0 %v4257
        %4409 = vmatpush2.msra.mxu0 %v4256
        %4410 = vmatprep.mubr.f32.mxu0 %v4273
        %4411 = vmatmul.mubr.f32.gmra.mxu0 %v4158
        %v4412 = vpop.f32.mrf.mxu0
        %v4413 = vadd.f32 %v4342, %v4412
        %v4414 = vpop.f32.mrf.mxu0
        %v4415 = vadd.f32 %v4344, %v4414
        %4416 = vdwg.mxu0
        %s4417 = scalar_lea.vmem [#allocation17], 896
        %v4418 = vld [vmem:[%s4417] sm:$0xff]
        %v4419 = vld [vmem:[%s4417 + $0x8] sm:$0xff]
        %v4420 = vld [vmem:[%s4417 + $0x10] sm:$0xff]
        %v4421 = vld [vmem:[%s4417 + $0x18] sm:$0xff]
        %v4422 = vld [vmem:[%s4417 + $0x20] sm:$0xff]
        %v4423 = vld [vmem:[%s4417 + $0x28] sm:$0xff]
        %v4424 = vld [vmem:[%s4417 + $0x30] sm:$0xff]
        %v4425 = vld [vmem:[%s4417 + $0x38] sm:$0xff]
        %v4426 = vld [vmem:[%s4417 + $0x40] sm:$0xff]
        %v4427 = vld [vmem:[%s4417 + $0x48] sm:$0xff]
        %v4428 = vld [vmem:[%s4417 + $0x50] sm:$0xff]
        %v4429 = vld [vmem:[%s4417 + $0x58] sm:$0xff]
        %v4430 = vld [vmem:[%s4417 + $0x60] sm:$0xff]
        %v4431 = vld [vmem:[%s4417 + $0x68] sm:$0xff]
        %v4432 = vld [vmem:[%s4417 + $0x70] sm:$0xff]
        %v4433 = vld [vmem:[%s4417 + $0x78] sm:$0xff]
        %v4434 = vld [vmem:[%s4417 + $0x80] sm:$0xff]
        %v4435 = vld [vmem:[%s4417 + $0x88] sm:$0xff]
        %v4436 = vld [vmem:[%s4417 + $0x90] sm:$0xff]
        %v4437 = vld [vmem:[%s4417 + $0x98] sm:$0xff]
        %v4438 = vld [vmem:[%s4417 + $0xa0] sm:$0xff]
        %v4439 = vld [vmem:[%s4417 + $0xa8] sm:$0xff]
        %v4440 = vld [vmem:[%s4417 + $0xb0] sm:$0xff]
        %v4441 = vld [vmem:[%s4417 + $0xb8] sm:$0xff]
        %v4442 = vld [vmem:[%s4417 + $0xc0] sm:$0xff]
        %v4443 = vld [vmem:[%s4417 + $0xc8] sm:$0xff]
        %v4444 = vld [vmem:[%s4417 + $0xd0] sm:$0xff]
        %v4445 = vld [vmem:[%s4417 + $0xd8] sm:$0xff]
        %v4446 = vld [vmem:[%s4417 + $0xe0] sm:$0xff]
        %v4447 = vld [vmem:[%s4417 + $0xe8] sm:$0xff]
        %v4448 = vld [vmem:[%s4417 + $0xf0] sm:$0xff]
        %v4449 = vld [vmem:[%s4417 + $0xf8] sm:$0xff]
        %v4450 = vld [vmem:[%s4417 + $0x100] sm:$0xff]
        %v4451 = vld [vmem:[%s4417 + $0x108] sm:$0xff]
        %v4452 = vld [vmem:[%s4417 + $0x110] sm:$0xff]
        %v4453 = vld [vmem:[%s4417 + $0x118] sm:$0xff]
        %v4454 = vld [vmem:[%s4417 + $0x120] sm:$0xff]
        %v4455 = vld [vmem:[%s4417 + $0x128] sm:$0xff]
        %v4456 = vld [vmem:[%s4417 + $0x130] sm:$0xff]
        %v4457 = vld [vmem:[%s4417 + $0x138] sm:$0xff]
        %v4458 = vld [vmem:[%s4417 + $0x140] sm:$0xff]
        %v4459 = vld [vmem:[%s4417 + $0x148] sm:$0xff]
        %v4460 = vld [vmem:[%s4417 + $0x150] sm:$0xff]
        %v4461 = vld [vmem:[%s4417 + $0x158] sm:$0xff]
        %v4462 = vld [vmem:[%s4417 + $0x160] sm:$0xff]
        %v4463 = vld [vmem:[%s4417 + $0x168] sm:$0xff]
        %v4464 = vld [vmem:[%s4417 + $0x170] sm:$0xff]
        %v4465 = vld [vmem:[%s4417 + $0x178] sm:$0xff]
        %v4466 = vld [vmem:[%s4417 + $0x180] sm:$0xff]
        %v4467 = vld [vmem:[%s4417 + $0x188] sm:$0xff]
        %v4468 = vld [vmem:[%s4417 + $0x190] sm:$0xff]
        %v4469 = vld [vmem:[%s4417 + $0x198] sm:$0xff]
        %v4470 = vld [vmem:[%s4417 + $0x1a0] sm:$0xff]
        %v4471 = vld [vmem:[%s4417 + $0x1a8] sm:$0xff]
        %v4472 = vld [vmem:[%s4417 + $0x1b0] sm:$0xff]
        %v4473 = vld [vmem:[%s4417 + $0x1b8] sm:$0xff]
        %v4474 = vld [vmem:[%s4417 + $0x1c0] sm:$0xff]
        %v4475 = vld [vmem:[%s4417 + $0x1c8] sm:$0xff]
        %v4476 = vld [vmem:[%s4417 + $0x1d0] sm:$0xff]
        %v4477 = vld [vmem:[%s4417 + $0x1d8] sm:$0xff]
        %v4478 = vld [vmem:[%s4417 + $0x1e0] sm:$0xff]
        %v4479 = vld [vmem:[%s4417 + $0x1e8] sm:$0xff]
        %v4480 = vld [vmem:[%s4417 + $0x1f0] sm:$0xff]
        %v4481 = vld [vmem:[%s4417 + $0x1f8] sm:$0xff]
        %v4482 = vld [vmem:[%s4417 + $0x200] sm:$0xff]
        %v4483 = vld [vmem:[%s4417 + $0x208] sm:$0xff]
        %v4484 = vld [vmem:[%s4417 + $0x210] sm:$0xff]
        %v4485 = vld [vmem:[%s4417 + $0x218] sm:$0xff]
        %v4486 = vld [vmem:[%s4417 + $0x220] sm:$0xff]
        %v4487 = vld [vmem:[%s4417 + $0x228] sm:$0xff]
        %v4488 = vld [vmem:[%s4417 + $0x230] sm:$0xff]
        %v4489 = vld [vmem:[%s4417 + $0x238] sm:$0xff]
        %v4490 = vld [vmem:[%s4417 + $0x240] sm:$0xff]
        %v4491 = vld [vmem:[%s4417 + $0x248] sm:$0xff]
        %v4492 = vld [vmem:[%s4417 + $0x250] sm:$0xff]
        %v4493 = vld [vmem:[%s4417 + $0x258] sm:$0xff]
        %v4494 = vld [vmem:[%s4417 + $0x260] sm:$0xff]
        %v4495 = vld [vmem:[%s4417 + $0x268] sm:$0xff]
        %v4496 = vld [vmem:[%s4417 + $0x270] sm:$0xff]
        %v4497 = vld [vmem:[%s4417 + $0x278] sm:$0xff]
        %v4498 = vld [vmem:[%s4417 + $0x280] sm:$0xff]
        %v4499 = vld [vmem:[%s4417 + $0x288] sm:$0xff]
        %v4500 = vld [vmem:[%s4417 + $0x290] sm:$0xff]
        %v4501 = vld [vmem:[%s4417 + $0x298] sm:$0xff]
        %v4502 = vld [vmem:[%s4417 + $0x2a0] sm:$0xff]
        %v4503 = vld [vmem:[%s4417 + $0x2a8] sm:$0xff]
        %v4504 = vld [vmem:[%s4417 + $0x2b0] sm:$0xff]
        %v4505 = vld [vmem:[%s4417 + $0x2b8] sm:$0xff]
        %v4506 = vld [vmem:[%s4417 + $0x2c0] sm:$0xff]
        %v4507 = vld [vmem:[%s4417 + $0x2c8] sm:$0xff]
        %v4508 = vld [vmem:[%s4417 + $0x2d0] sm:$0xff]
        %v4509 = vld [vmem:[%s4417 + $0x2d8] sm:$0xff]
        %v4510 = vld [vmem:[%s4417 + $0x2e0] sm:$0xff]
        %v4511 = vld [vmem:[%s4417 + $0x2e8] sm:$0xff]
        %v4512 = vld [vmem:[%s4417 + $0x2f0] sm:$0xff]
        %v4513 = vld [vmem:[%s4417 + $0x2f8] sm:$0xff]
        %v4514 = vld [vmem:[%s4417 + $0x300] sm:$0xff]
        %v4515 = vld [vmem:[%s4417 + $0x308] sm:$0xff]
        %v4516 = vld [vmem:[%s4417 + $0x310] sm:$0xff]
        %v4517 = vld [vmem:[%s4417 + $0x318] sm:$0xff]
        %v4518 = vld [vmem:[%s4417 + $0x320] sm:$0xff]
        %v4519 = vld [vmem:[%s4417 + $0x328] sm:$0xff]
        %v4520 = vld [vmem:[%s4417 + $0x330] sm:$0xff]
        %v4521 = vld [vmem:[%s4417 + $0x338] sm:$0xff]
        %v4522 = vld [vmem:[%s4417 + $0x340] sm:$0xff]
        %v4523 = vld [vmem:[%s4417 + $0x348] sm:$0xff]
        %v4524 = vld [vmem:[%s4417 + $0x350] sm:$0xff]
        %v4525 = vld [vmem:[%s4417 + $0x358] sm:$0xff]
        %v4526 = vld [vmem:[%s4417 + $0x360] sm:$0xff]
        %v4527 = vld [vmem:[%s4417 + $0x368] sm:$0xff]
        %v4528 = vld [vmem:[%s4417 + $0x370] sm:$0xff]
        %v4529 = vld [vmem:[%s4417 + $0x378] sm:$0xff]
        %4530 = vmatprep.subr.mxu0 %v4449
        %4531 = vmatpush1.msra.mxu0 %v4448
        %4532 = vmatprep.subr.mxu0 %v4447
        %4533 = vmatpush1.msra.mxu0 %v4446
        %4534 = vmatprep.subr.mxu0 %v4445
        %4535 = vmatpush1.msra.mxu0 %v4444
        %4536 = vmatprep.subr.mxu0 %v4443
        %4537 = vmatpush1.msra.mxu0 %v4442
        %4538 = vmatprep.subr.mxu0 %v4441
        %4539 = vmatpush1.msra.mxu0 %v4440
        %4540 = vmatprep.subr.mxu0 %v4439
        %4541 = vmatpush1.msra.mxu0 %v4438
        %4542 = vmatprep.subr.mxu0 %v4437
        %4543 = vmatpush1.msra.mxu0 %v4436
        %4544 = vmatprep.subr.mxu0 %v4435
        %4545 = vmatpush1.msra.mxu0 %v4434
        %4546 = vmatprep.subr.mxu0 %v4433
        %4547 = vmatpush1.msra.mxu0 %v4432
        %4548 = vmatprep.subr.mxu0 %v4431
        %4549 = vmatpush1.msra.mxu0 %v4430
        %4550 = vmatprep.subr.mxu0 %v4429
        %4551 = vmatpush1.msra.mxu0 %v4428
        %4552 = vmatprep.subr.mxu0 %v4427
        %4553 = vmatpush1.msra.mxu0 %v4426
        %4554 = vmatprep.subr.mxu0 %v4425
        %4555 = vmatpush1.msra.mxu0 %v4424
        %4556 = vmatprep.subr.mxu0 %v4423
        %4557 = vmatpush1.msra.mxu0 %v4422
        %4558 = vmatprep.subr.mxu0 %v4421
        %4559 = vmatpush1.msra.mxu0 %v4420
        %4560 = vmatprep.subr.mxu0 %v4419
        %4561 = vmatpush1.msra.mxu0 %v4418
        %4562 = vmatprep.subr.mxu0 %v4481
        %4563 = vmatpush2.msra.mxu0 %v4480
        %4564 = vmatprep.subr.mxu0 %v4479
        %4565 = vmatpush2.msra.mxu0 %v4478
        %4566 = vmatprep.subr.mxu0 %v4477
        %4567 = vmatpush2.msra.mxu0 %v4476
        %4568 = vmatprep.subr.mxu0 %v4475
        %4569 = vmatpush2.msra.mxu0 %v4474
        %4570 = vmatprep.subr.mxu0 %v4473
        %4571 = vmatpush2.msra.mxu0 %v4472
        %4572 = vmatprep.subr.mxu0 %v4471
        %4573 = vmatpush2.msra.mxu0 %v4470
        %4574 = vmatprep.subr.mxu0 %v4469
        %4575 = vmatpush2.msra.mxu0 %v4468
        %4576 = vmatprep.subr.mxu0 %v4467
        %4577 = vmatpush2.msra.mxu0 %v4466
        %4578 = vmatprep.subr.mxu0 %v4465
        %4579 = vmatpush2.msra.mxu0 %v4464
        %4580 = vmatprep.subr.mxu0 %v4463
        %4581 = vmatpush2.msra.mxu0 %v4462
        %4582 = vmatprep.subr.mxu0 %v4461
        %4583 = vmatpush2.msra.mxu0 %v4460
        %4584 = vmatprep.subr.mxu0 %v4459
        %4585 = vmatpush2.msra.mxu0 %v4458
        %4586 = vmatprep.subr.mxu0 %v4457
        %4587 = vmatpush2.msra.mxu0 %v4456
        %4588 = vmatprep.subr.mxu0 %v4455
        %4589 = vmatpush2.msra.mxu0 %v4454
        %4590 = vmatprep.subr.mxu0 %v4453
        %4591 = vmatpush2.msra.mxu0 %v4452
        %4592 = vmatprep.subr.mxu0 %v4451
        %4593 = vmatpush2.msra.mxu0 %v4450
        %4594 = vmatprep.mubr.f32.mxu0 %v4157
        %4595 = vmatmul.mubr.f32.gmra.mxu0 %v4156
        %v4596 = vpop.f32.mrf.mxu0
        %v4597 = vadd.f32 0.0, %v4596
        %v4598 = vpop.f32.mrf.mxu0
        %v4599 = vadd.f32 0.0, %v4598
        %4600 = vdwg.mxu0
        %4601 = vmatprep.subr.mxu0 %v4513
        %4602 = vmatpush1.msra.mxu0 %v4512
        %4603 = vmatprep.subr.mxu0 %v4511
        %4604 = vmatpush1.msra.mxu0 %v4510
        %4605 = vmatprep.subr.mxu0 %v4509
        %4606 = vmatpush1.msra.mxu0 %v4508
        %4607 = vmatprep.subr.mxu0 %v4507
        %4608 = vmatpush1.msra.mxu0 %v4506
        %4609 = vmatprep.subr.mxu0 %v4505
        %4610 = vmatpush1.msra.mxu0 %v4504
        %4611 = vmatprep.subr.mxu0 %v4503
        %4612 = vmatpush1.msra.mxu0 %v4502
        %4613 = vmatprep.subr.mxu0 %v4501
        %4614 = vmatpush1.msra.mxu0 %v4500
        %4615 = vmatprep.subr.mxu0 %v4499
        %4616 = vmatpush1.msra.mxu0 %v4498
        %4617 = vmatprep.subr.mxu0 %v4497
        %4618 = vmatpush1.msra.mxu0 %v4496
        %4619 = vmatprep.subr.mxu0 %v4495
        %4620 = vmatpush1.msra.mxu0 %v4494
        %4621 = vmatprep.subr.mxu0 %v4493
        %4622 = vmatpush1.msra.mxu0 %v4492
        %4623 = vmatprep.subr.mxu0 %v4491
        %4624 = vmatpush1.msra.mxu0 %v4490
        %4625 = vmatprep.subr.mxu0 %v4489
        %4626 = vmatpush1.msra.mxu0 %v4488
        %4627 = vmatprep.subr.mxu0 %v4487
        %4628 = vmatpush1.msra.mxu0 %v4486
        %4629 = vmatprep.subr.mxu0 %v4485
        %4630 = vmatpush1.msra.mxu0 %v4484
        %4631 = vmatprep.subr.mxu0 %v4483
        %4632 = vmatpush1.msra.mxu0 %v4482
        %4633 = vmatprep.subr.mxu0 0.0
        %4634 = vmatpush2.msra.mxu0 0.0
        %4635 = vmatprep.subr.mxu0 0.0
        %4636 = vmatpush2.msra.mxu0 0.0
        %4637 = vmatprep.subr.mxu0 0.0
        %4638 = vmatpush2.msra.mxu0 0.0
        %4639 = vmatprep.subr.mxu0 0.0
        %4640 = vmatpush2.msra.mxu0 0.0
        %4641 = vmatprep.subr.mxu0 0.0
        %4642 = vmatpush2.msra.mxu0 0.0
        %4643 = vmatprep.subr.mxu0 0.0
        %4644 = vmatpush2.msra.mxu0 0.0
        %4645 = vmatprep.subr.mxu0 0.0
        %4646 = vmatpush2.msra.mxu0 0.0
        %4647 = vmatprep.subr.mxu0 0.0
        %4648 = vmatpush2.msra.mxu0 0.0
        %4649 = vmatprep.subr.mxu0 %v4529
        %4650 = vmatpush2.msra.mxu0 %v4528
        %4651 = vmatprep.subr.mxu0 %v4527
        %4652 = vmatpush2.msra.mxu0 %v4526
        %4653 = vmatprep.subr.mxu0 %v4525
        %4654 = vmatpush2.msra.mxu0 %v4524
        %4655 = vmatprep.subr.mxu0 %v4523
        %4656 = vmatpush2.msra.mxu0 %v4522
        %4657 = vmatprep.subr.mxu0 %v4521
        %4658 = vmatpush2.msra.mxu0 %v4520
        %4659 = vmatprep.subr.mxu0 %v4519
        %4660 = vmatpush2.msra.mxu0 %v4518
        %4661 = vmatprep.subr.mxu0 %v4517
        %4662 = vmatpush2.msra.mxu0 %v4516
        %4663 = vmatprep.subr.mxu0 %v4515
        %4664 = vmatpush2.msra.mxu0 %v4514
        %4665 = vmatprep.mubr.f32.mxu0 %v4273
        %4666 = vmatmul.mubr.f32.gmra.mxu0 %v4158
        %v4667 = vpop.f32.mrf.mxu0
        %v4668 = vadd.f32 %v4597, %v4667
        %v4669 = vpop.f32.mrf.mxu0
        %v4670 = vadd.f32 %v4599, %v4669
        %4671 = vdwg.mxu0
        %v4672 = vmax.f32 %v4413, %v4668
        %v4673 = vmax.f32 %v4415, %v4670
        %4674 = vst [vmem:[#allocation5] sm:$0x7f] %v4672
        %4675 = vst.msk [vmem:[#allocation5 + $0x8] sm:$0x7f] %vm2952, %v4673
        %v4676 = vld [vmem:[#allocation18] sm:$0x1]
        %v4677 = vld [vmem:[#allocation5] ss:$8 sm:$0x3]
        %v4678 = vld [vmem:[%s11] sm:$0xff]
        %v4679 = vld [vmem:[%s11 + $0x8] sm:$0xff]
        %v4680 = vld [vmem:[%s11 + $0x10] sm:$0xff]
        %v4681 = vld [vmem:[%s11 + $0x18] sm:$0xff]
        %v4682 = vld [vmem:[%s11 + $0x20] sm:$0xff]
        %v4683 = vld [vmem:[%s11 + $0x28] sm:$0xff]
        %v4684 = vld [vmem:[%s11 + $0x30] sm:$0xff]
        %v4685 = vld [vmem:[%s11 + $0x38] sm:$0xff]
        %v4686 = vld [vmem:[%s11 + $0x40] sm:$0xff]
        %v4687 = vld [vmem:[%s11 + $0x48] sm:$0xff]
        %v4688 = vld [vmem:[%s11 + $0x50] sm:$0xff]
        %v4689 = vld [vmem:[%s11 + $0x58] sm:$0xff]
        %v4690 = vld [vmem:[%s11 + $0x60] sm:$0xff]
        %v4691 = vld [vmem:[%s11 + $0x68] sm:$0xff]
        %v4692 = vld [vmem:[%s11 + $0x70] sm:$0xff]
        %v4693 = vld [vmem:[%s11 + $0x78] sm:$0xff]
        %v4694 = vld [vmem:[%s11 + $0x80] sm:$0xff]
        %v4695 = vld [vmem:[%s11 + $0x88] sm:$0xff]
        %v4696 = vld [vmem:[%s11 + $0x90] sm:$0xff]
        %v4697 = vld [vmem:[%s11 + $0x98] sm:$0xff]
        %v4698 = vld [vmem:[%s11 + $0xa0] sm:$0xff]
        %v4699 = vld [vmem:[%s11 + $0xa8] sm:$0xff]
        %v4700 = vld [vmem:[%s11 + $0xb0] sm:$0xff]
        %v4701 = vld [vmem:[%s11 + $0xb8] sm:$0xff]
        %v4702 = vld [vmem:[%s11 + $0xc0] sm:$0xff]
        %v4703 = vld [vmem:[%s11 + $0xc8] sm:$0xff]
        %v4704 = vld [vmem:[%s11 + $0xd0] sm:$0xff]
        %v4705 = vld [vmem:[%s11 + $0xd8] sm:$0xff]
        %v4707 = vlaneseq
        %v4708 = vshrl.u32 %v4707, 7
        %v4709 = vsub.s32 0, %v4708
        %v4710 = vrot.slane %v4677, %v4709
        %v4711 = vlaneseq
        %v4712 = vshrl.u32 %v4711, 7
        %v4713 = vsub.s32 1, %v4712
        %v4714 = vrot.slane %v4677, %v4713
        %v4716 = vsel %vm1000, %v4714, 0
        %4718 = vmatprep.subr.mxu0 0.0
        %4719 = vmatpush1.msra.mxu0 %v4693
        %4720 = vmatprep.subr.mxu0 0.0
        %4721 = vmatpush1.msra.mxu0 %v4692
        %4722 = vmatprep.subr.mxu0 0.0
        %4723 = vmatpush1.msra.mxu0 %v4691
        %4724 = vmatprep.subr.mxu0 0.0
        %4725 = vmatpush1.msra.mxu0 %v4690
        %4726 = vmatprep.subr.mxu0 0.0
        %4727 = vmatpush1.msra.mxu0 %v4689
        %4728 = vmatprep.subr.mxu0 0.0
        %4729 = vmatpush1.msra.mxu0 %v4688
        %4730 = vmatprep.subr.mxu0 0.0
        %4731 = vmatpush1.msra.mxu0 %v4687
        %4732 = vmatprep.subr.mxu0 0.0
        %4733 = vmatpush1.msra.mxu0 %v4686
        %4734 = vmatprep.subr.mxu0 0.0
        %4735 = vmatpush1.msra.mxu0 %v4685
        %4736 = vmatprep.subr.mxu0 0.0
        %4737 = vmatpush1.msra.mxu0 %v4684
        %4738 = vmatprep.subr.mxu0 0.0
        %4739 = vmatpush1.msra.mxu0 %v4683
        %4740 = vmatprep.subr.mxu0 0.0
        %4741 = vmatpush1.msra.mxu0 %v4682
        %4742 = vmatprep.subr.mxu0 0.0
        %4743 = vmatpush1.msra.mxu0 %v4681
        %4744 = vmatprep.subr.mxu0 0.0
        %4745 = vmatpush1.msra.mxu0 %v4680
        %4746 = vmatprep.subr.mxu0 0.0
        %4747 = vmatpush1.msra.mxu0 %v4679
        %4748 = vmatprep.subr.mxu0 0.0
        %4749 = vmatpush1.msra.mxu0 %v4678
        %4750 = vmatprep.subr.mxu0 0.0
        %4751 = vmatpush2.msra.mxu0 0.0
        %4752 = vmatprep.subr.mxu0 0.0
        %4753 = vmatpush2.msra.mxu0 0.0
        %4754 = vmatprep.subr.mxu0 0.0
        %4755 = vmatpush2.msra.mxu0 0.0
        %4756 = vmatprep.subr.mxu0 0.0
        %4757 = vmatpush2.msra.mxu0 0.0
        %4758 = vmatprep.subr.mxu0 0.0
        %4759 = vmatpush2.msra.mxu0 %v4705
        %4760 = vmatprep.subr.mxu0 0.0
        %4761 = vmatpush2.msra.mxu0 %v4704
        %4762 = vmatprep.subr.mxu0 0.0
        %4763 = vmatpush2.msra.mxu0 %v4703
        %4764 = vmatprep.subr.mxu0 0.0
        %4765 = vmatpush2.msra.mxu0 %v4702
        %4766 = vmatprep.subr.mxu0 0.0
        %4767 = vmatpush2.msra.mxu0 %v4701
        %4768 = vmatprep.subr.mxu0 0.0
        %4769 = vmatpush2.msra.mxu0 %v4700
        %4770 = vmatprep.subr.mxu0 0.0
        %4771 = vmatpush2.msra.mxu0 %v4699
        %4772 = vmatprep.subr.mxu0 0.0
        %4773 = vmatpush2.msra.mxu0 %v4698
        %4774 = vmatprep.subr.mxu0 0.0
        %4775 = vmatpush2.msra.mxu0 %v4697
        %4776 = vmatprep.subr.mxu0 0.0
        %4777 = vmatpush2.msra.mxu0 %v4696
        %4778 = vmatprep.subr.mxu0 0.0
        %4779 = vmatpush2.msra.mxu0 %v4695
        %4780 = vmatprep.subr.mxu0 0.0
        %4781 = vmatpush2.msra.mxu0 %v4694
        %4782 = vmatprep.mubr.f32.mxu0 %v4716
        %4783 = vmatmul.mubr.f32.gmra.mxu0 %v4710
        %v4784 = vpop.f32.mrf.mxu0
        %v4785 = vadd.f32 0.0, %v4784
        %v4786 = vpop.f32.mrf.mxu0
        %4787 = vdwg.mxu0
        %v4788 = vadd.f32 %v4676, %v4785
        %s4789 = scalar_lea.vmem [#allocation5], 1
        %v4790 = vld [vmem:[%s4789] ss:$8 sm:$0x3]
        %s4791 = scalar_lea.vmem %s11, 224
        %v4792 = vld [vmem:[%s4791] sm:$0xff]
        %v4793 = vld [vmem:[%s4791 + $0x8] sm:$0xff]
        %v4794 = vld [vmem:[%s4791 + $0x10] sm:$0xff]
        %v4795 = vld [vmem:[%s4791 + $0x18] sm:$0xff]
        %v4796 = vld [vmem:[%s4791 + $0x20] sm:$0xff]
        %v4797 = vld [vmem:[%s4791 + $0x28] sm:$0xff]
        %v4798 = vld [vmem:[%s4791 + $0x30] sm:$0xff]
        %v4799 = vld [vmem:[%s4791 + $0x38] sm:$0xff]
        %v4800 = vld [vmem:[%s4791 + $0x40] sm:$0xff]
        %v4801 = vld [vmem:[%s4791 + $0x48] sm:$0xff]
        %v4802 = vld [vmem:[%s4791 + $0x50] sm:$0xff]
        %v4803 = vld [vmem:[%s4791 + $0x58] sm:$0xff]
        %v4804 = vld [vmem:[%s4791 + $0x60] sm:$0xff]
        %v4805 = vld [vmem:[%s4791 + $0x68] sm:$0xff]
        %v4806 = vld [vmem:[%s4791 + $0x70] sm:$0xff]
        %v4807 = vld [vmem:[%s4791 + $0x78] sm:$0xff]
        %v4808 = vld [vmem:[%s4791 + $0x80] sm:$0xff]
        %v4809 = vld [vmem:[%s4791 + $0x88] sm:$0xff]
        %v4810 = vld [vmem:[%s4791 + $0x90] sm:$0xff]
        %v4811 = vld [vmem:[%s4791 + $0x98] sm:$0xff]
        %v4812 = vld [vmem:[%s4791 + $0xa0] sm:$0xff]
        %v4813 = vld [vmem:[%s4791 + $0xa8] sm:$0xff]
        %v4814 = vld [vmem:[%s4791 + $0xb0] sm:$0xff]
        %v4815 = vld [vmem:[%s4791 + $0xb8] sm:$0xff]
        %v4816 = vld [vmem:[%s4791 + $0xc0] sm:$0xff]
        %v4817 = vld [vmem:[%s4791 + $0xc8] sm:$0xff]
        %v4818 = vld [vmem:[%s4791 + $0xd0] sm:$0xff]
        %v4819 = vld [vmem:[%s4791 + $0xd8] sm:$0xff]
        %v4821 = vlaneseq
        %v4822 = vshrl.u32 %v4821, 7
        %v4823 = vsub.s32 0, %v4822
        %v4824 = vrot.slane %v4790, %v4823
        %v4825 = vlaneseq
        %v4826 = vshrl.u32 %v4825, 7
        %v4827 = vsub.s32 1, %v4826
        %v4828 = vrot.slane %v4790, %v4827
        %v4830 = vsel %vm1000, %v4828, 0
        %4832 = vmatprep.subr.mxu0 0.0
        %4833 = vmatpush1.msra.mxu0 %v4807
        %4834 = vmatprep.subr.mxu0 0.0
        %4835 = vmatpush1.msra.mxu0 %v4806
        %4836 = vmatprep.subr.mxu0 0.0
        %4837 = vmatpush1.msra.mxu0 %v4805
        %4838 = vmatprep.subr.mxu0 0.0
        %4839 = vmatpush1.msra.mxu0 %v4804
        %4840 = vmatprep.subr.mxu0 0.0
        %4841 = vmatpush1.msra.mxu0 %v4803
        %4842 = vmatprep.subr.mxu0 0.0
        %4843 = vmatpush1.msra.mxu0 %v4802
        %4844 = vmatprep.subr.mxu0 0.0
        %4845 = vmatpush1.msra.mxu0 %v4801
        %4846 = vmatprep.subr.mxu0 0.0
        %4847 = vmatpush1.msra.mxu0 %v4800
        %4848 = vmatprep.subr.mxu0 0.0
        %4849 = vmatpush1.msra.mxu0 %v4799
        %4850 = vmatprep.subr.mxu0 0.0
        %4851 = vmatpush1.msra.mxu0 %v4798
        %4852 = vmatprep.subr.mxu0 0.0
        %4853 = vmatpush1.msra.mxu0 %v4797
        %4854 = vmatprep.subr.mxu0 0.0
        %4855 = vmatpush1.msra.mxu0 %v4796
        %4856 = vmatprep.subr.mxu0 0.0
        %4857 = vmatpush1.msra.mxu0 %v4795
        %4858 = vmatprep.subr.mxu0 0.0
        %4859 = vmatpush1.msra.mxu0 %v4794
        %4860 = vmatprep.subr.mxu0 0.0
        %4861 = vmatpush1.msra.mxu0 %v4793
        %4862 = vmatprep.subr.mxu0 0.0
        %4863 = vmatpush1.msra.mxu0 %v4792
        %4864 = vmatprep.subr.mxu0 0.0
        %4865 = vmatpush2.msra.mxu0 0.0
        %4866 = vmatprep.subr.mxu0 0.0
        %4867 = vmatpush2.msra.mxu0 0.0
        %4868 = vmatprep.subr.mxu0 0.0
        %4869 = vmatpush2.msra.mxu0 0.0
        %4870 = vmatprep.subr.mxu0 0.0
        %4871 = vmatpush2.msra.mxu0 0.0
        %4872 = vmatprep.subr.mxu0 0.0
        %4873 = vmatpush2.msra.mxu0 %v4819
        %4874 = vmatprep.subr.mxu0 0.0
        %4875 = vmatpush2.msra.mxu0 %v4818
        %4876 = vmatprep.subr.mxu0 0.0
        %4877 = vmatpush2.msra.mxu0 %v4817
        %4878 = vmatprep.subr.mxu0 0.0
        %4879 = vmatpush2.msra.mxu0 %v4816
        %4880 = vmatprep.subr.mxu0 0.0
        %4881 = vmatpush2.msra.mxu0 %v4815
        %4882 = vmatprep.subr.mxu0 0.0
        %4883 = vmatpush2.msra.mxu0 %v4814
        %4884 = vmatprep.subr.mxu0 0.0
        %4885 = vmatpush2.msra.mxu0 %v4813
        %4886 = vmatprep.subr.mxu0 0.0
        %4887 = vmatpush2.msra.mxu0 %v4812
        %4888 = vmatprep.subr.mxu0 0.0
        %4889 = vmatpush2.msra.mxu0 %v4811
        %4890 = vmatprep.subr.mxu0 0.0
        %4891 = vmatpush2.msra.mxu0 %v4810
        %4892 = vmatprep.subr.mxu0 0.0
        %4893 = vmatpush2.msra.mxu0 %v4809
        %4894 = vmatprep.subr.mxu0 0.0
        %4895 = vmatpush2.msra.mxu0 %v4808
        %4896 = vmatprep.mubr.f32.mxu0 %v4830
        %4897 = vmatmul.mubr.f32.gmra.mxu0 %v4824
        %v4898 = vpop.f32.mrf.mxu0
        %v4899 = vadd.f32 0.0, %v4898
        %v4900 = vpop.f32.mrf.mxu0
        %4901 = vdwg.mxu0
        %v4902 = vadd.f32 %v4788, %v4899
        %s4903 = scalar_lea.vmem [#allocation5], 2
        %v4904 = vld [vmem:[%s4903] ss:$8 sm:$0x3]
        %s4905 = scalar_lea.vmem %s11, 448
        %v4906 = vld [vmem:[%s4905] sm:$0xff]
        %v4907 = vld [vmem:[%s4905 + $0x8] sm:$0xff]
        %v4908 = vld [vmem:[%s4905 + $0x10] sm:$0xff]
        %v4909 = vld [vmem:[%s4905 + $0x18] sm:$0xff]
        %v4910 = vld [vmem:[%s4905 + $0x20] sm:$0xff]
        %v4911 = vld [vmem:[%s4905 + $0x28] sm:$0xff]
        %v4912 = vld [vmem:[%s4905 + $0x30] sm:$0xff]
        %v4913 = vld [vmem:[%s4905 + $0x38] sm:$0xff]
        %v4914 = vld [vmem:[%s4905 + $0x40] sm:$0xff]
        %v4915 = vld [vmem:[%s4905 + $0x48] sm:$0xff]
        %v4916 = vld [vmem:[%s4905 + $0x50] sm:$0xff]
        %v4917 = vld [vmem:[%s4905 + $0x58] sm:$0xff]
        %v4918 = vld [vmem:[%s4905 + $0x60] sm:$0xff]
        %v4919 = vld [vmem:[%s4905 + $0x68] sm:$0xff]
        %v4920 = vld [vmem:[%s4905 + $0x70] sm:$0xff]
        %v4921 = vld [vmem:[%s4905 + $0x78] sm:$0xff]
        %v4922 = vld [vmem:[%s4905 + $0x80] sm:$0xff]
        %v4923 = vld [vmem:[%s4905 + $0x88] sm:$0xff]
        %v4924 = vld [vmem:[%s4905 + $0x90] sm:$0xff]
        %v4925 = vld [vmem:[%s4905 + $0x98] sm:$0xff]
        %v4926 = vld [vmem:[%s4905 + $0xa0] sm:$0xff]
        %v4927 = vld [vmem:[%s4905 + $0xa8] sm:$0xff]
        %v4928 = vld [vmem:[%s4905 + $0xb0] sm:$0xff]
        %v4929 = vld [vmem:[%s4905 + $0xb8] sm:$0xff]
        %v4930 = vld [vmem:[%s4905 + $0xc0] sm:$0xff]
        %v4931 = vld [vmem:[%s4905 + $0xc8] sm:$0xff]
        %v4932 = vld [vmem:[%s4905 + $0xd0] sm:$0xff]
        %v4933 = vld [vmem:[%s4905 + $0xd8] sm:$0xff]
        %v4935 = vlaneseq
        %v4936 = vshrl.u32 %v4935, 7
        %v4937 = vsub.s32 0, %v4936
        %v4938 = vrot.slane %v4904, %v4937
        %v4939 = vlaneseq
        %v4940 = vshrl.u32 %v4939, 7
        %v4941 = vsub.s32 1, %v4940
        %v4942 = vrot.slane %v4904, %v4941
        %v4944 = vsel %vm1000, %v4942, 0
        %4946 = vmatprep.subr.mxu0 0.0
        %4947 = vmatpush1.msra.mxu0 %v4921
        %4948 = vmatprep.subr.mxu0 0.0
        %4949 = vmatpush1.msra.mxu0 %v4920
        %4950 = vmatprep.subr.mxu0 0.0
        %4951 = vmatpush1.msra.mxu0 %v4919
        %4952 = vmatprep.subr.mxu0 0.0
        %4953 = vmatpush1.msra.mxu0 %v4918
        %4954 = vmatprep.subr.mxu0 0.0
        %4955 = vmatpush1.msra.mxu0 %v4917
        %4956 = vmatprep.subr.mxu0 0.0
        %4957 = vmatpush1.msra.mxu0 %v4916
        %4958 = vmatprep.subr.mxu0 0.0
        %4959 = vmatpush1.msra.mxu0 %v4915
        %4960 = vmatprep.subr.mxu0 0.0
        %4961 = vmatpush1.msra.mxu0 %v4914
        %4962 = vmatprep.subr.mxu0 0.0
        %4963 = vmatpush1.msra.mxu0 %v4913
        %4964 = vmatprep.subr.mxu0 0.0
        %4965 = vmatpush1.msra.mxu0 %v4912
        %4966 = vmatprep.subr.mxu0 0.0
        %4967 = vmatpush1.msra.mxu0 %v4911
        %4968 = vmatprep.subr.mxu0 0.0
        %4969 = vmatpush1.msra.mxu0 %v4910
        %4970 = vmatprep.subr.mxu0 0.0
        %4971 = vmatpush1.msra.mxu0 %v4909
        %4972 = vmatprep.subr.mxu0 0.0
        %4973 = vmatpush1.msra.mxu0 %v4908
        %4974 = vmatprep.subr.mxu0 0.0
        %4975 = vmatpush1.msra.mxu0 %v4907
        %4976 = vmatprep.subr.mxu0 0.0
        %4977 = vmatpush1.msra.mxu0 %v4906
        %4978 = vmatprep.subr.mxu0 0.0
        %4979 = vmatpush2.msra.mxu0 0.0
        %4980 = vmatprep.subr.mxu0 0.0
        %4981 = vmatpush2.msra.mxu0 0.0
        %4982 = vmatprep.subr.mxu0 0.0
        %4983 = vmatpush2.msra.mxu0 0.0
        %4984 = vmatprep.subr.mxu0 0.0
        %4985 = vmatpush2.msra.mxu0 0.0
        %4986 = vmatprep.subr.mxu0 0.0
        %4987 = vmatpush2.msra.mxu0 %v4933
        %4988 = vmatprep.subr.mxu0 0.0
        %4989 = vmatpush2.msra.mxu0 %v4932
        %4990 = vmatprep.subr.mxu0 0.0
        %4991 = vmatpush2.msra.mxu0 %v4931
        %4992 = vmatprep.subr.mxu0 0.0
        %4993 = vmatpush2.msra.mxu0 %v4930
        %4994 = vmatprep.subr.mxu0 0.0
        %4995 = vmatpush2.msra.mxu0 %v4929
        %4996 = vmatprep.subr.mxu0 0.0
        %4997 = vmatpush2.msra.mxu0 %v4928
        %4998 = vmatprep.subr.mxu0 0.0
        %4999 = vmatpush2.msra.mxu0 %v4927
        %5000 = vmatprep.subr.mxu0 0.0
        %5001 = vmatpush2.msra.mxu0 %v4926
        %5002 = vmatprep.subr.mxu0 0.0
        %5003 = vmatpush2.msra.mxu0 %v4925
        %5004 = vmatprep.subr.mxu0 0.0
        %5005 = vmatpush2.msra.mxu0 %v4924
        %5006 = vmatprep.subr.mxu0 0.0
        %5007 = vmatpush2.msra.mxu0 %v4923
        %5008 = vmatprep.subr.mxu0 0.0
        %5009 = vmatpush2.msra.mxu0 %v4922
        %5010 = vmatprep.mubr.f32.mxu0 %v4944
        %5011 = vmatmul.mubr.f32.gmra.mxu0 %v4938
        %v5012 = vpop.f32.mrf.mxu0
        %v5013 = vadd.f32 0.0, %v5012
        %v5014 = vpop.f32.mrf.mxu0
        %5015 = vdwg.mxu0
        %v5016 = vadd.f32 %v4902, %v5013
        %s5017 = scalar_lea.vmem [#allocation5], 3
        %v5018 = vld [vmem:[%s5017] ss:$8 sm:$0x3]
        %s5019 = scalar_lea.vmem %s11, 672
        %v5020 = vld [vmem:[%s5019] sm:$0xff]
        %v5021 = vld [vmem:[%s5019 + $0x8] sm:$0xff]
        %v5022 = vld [vmem:[%s5019 + $0x10] sm:$0xff]
        %v5023 = vld [vmem:[%s5019 + $0x18] sm:$0xff]
        %v5024 = vld [vmem:[%s5019 + $0x20] sm:$0xff]
        %v5025 = vld [vmem:[%s5019 + $0x28] sm:$0xff]
        %v5026 = vld [vmem:[%s5019 + $0x30] sm:$0xff]
        %v5027 = vld [vmem:[%s5019 + $0x38] sm:$0xff]
        %v5028 = vld [vmem:[%s5019 + $0x40] sm:$0xff]
        %v5029 = vld [vmem:[%s5019 + $0x48] sm:$0xff]
        %v5030 = vld [vmem:[%s5019 + $0x50] sm:$0xff]
        %v5031 = vld [vmem:[%s5019 + $0x58] sm:$0xff]
        %v5032 = vld [vmem:[%s5019 + $0x60] sm:$0xff]
        %v5033 = vld [vmem:[%s5019 + $0x68] sm:$0xff]
        %v5034 = vld [vmem:[%s5019 + $0x70] sm:$0xff]
        %v5035 = vld [vmem:[%s5019 + $0x78] sm:$0xff]
        %v5036 = vld [vmem:[%s5019 + $0x80] sm:$0xff]
        %v5037 = vld [vmem:[%s5019 + $0x88] sm:$0xff]
        %v5038 = vld [vmem:[%s5019 + $0x90] sm:$0xff]
        %v5039 = vld [vmem:[%s5019 + $0x98] sm:$0xff]
        %v5040 = vld [vmem:[%s5019 + $0xa0] sm:$0xff]
        %v5041 = vld [vmem:[%s5019 + $0xa8] sm:$0xff]
        %v5042 = vld [vmem:[%s5019 + $0xb0] sm:$0xff]
        %v5043 = vld [vmem:[%s5019 + $0xb8] sm:$0xff]
        %v5044 = vld [vmem:[%s5019 + $0xc0] sm:$0xff]
        %v5045 = vld [vmem:[%s5019 + $0xc8] sm:$0xff]
        %v5046 = vld [vmem:[%s5019 + $0xd0] sm:$0xff]
        %v5047 = vld [vmem:[%s5019 + $0xd8] sm:$0xff]
        %v5049 = vlaneseq
        %v5050 = vshrl.u32 %v5049, 7
        %v5051 = vsub.s32 0, %v5050
        %v5052 = vrot.slane %v5018, %v5051
        %v5053 = vlaneseq
        %v5054 = vshrl.u32 %v5053, 7
        %v5055 = vsub.s32 1, %v5054
        %v5056 = vrot.slane %v5018, %v5055
        %v5058 = vsel %vm1000, %v5056, 0
        %5060 = vmatprep.subr.mxu0 0.0
        %5061 = vmatpush1.msra.mxu0 %v5035
        %5062 = vmatprep.subr.mxu0 0.0
        %5063 = vmatpush1.msra.mxu0 %v5034
        %5064 = vmatprep.subr.mxu0 0.0
        %5065 = vmatpush1.msra.mxu0 %v5033
        %5066 = vmatprep.subr.mxu0 0.0
        %5067 = vmatpush1.msra.mxu0 %v5032
        %5068 = vmatprep.subr.mxu0 0.0
        %5069 = vmatpush1.msra.mxu0 %v5031
        %5070 = vmatprep.subr.mxu0 0.0
        %5071 = vmatpush1.msra.mxu0 %v5030
        %5072 = vmatprep.subr.mxu0 0.0
        %5073 = vmatpush1.msra.mxu0 %v5029
        %5074 = vmatprep.subr.mxu0 0.0
        %5075 = vmatpush1.msra.mxu0 %v5028
        %5076 = vmatprep.subr.mxu0 0.0
        %5077 = vmatpush1.msra.mxu0 %v5027
        %5078 = vmatprep.subr.mxu0 0.0
        %5079 = vmatpush1.msra.mxu0 %v5026
        %5080 = vmatprep.subr.mxu0 0.0
        %5081 = vmatpush1.msra.mxu0 %v5025
        %5082 = vmatprep.subr.mxu0 0.0
        %5083 = vmatpush1.msra.mxu0 %v5024
        %5084 = vmatprep.subr.mxu0 0.0
        %5085 = vmatpush1.msra.mxu0 %v5023
        %5086 = vmatprep.subr.mxu0 0.0
        %5087 = vmatpush1.msra.mxu0 %v5022
        %5088 = vmatprep.subr.mxu0 0.0
        %5089 = vmatpush1.msra.mxu0 %v5021
        %5090 = vmatprep.subr.mxu0 0.0
        %5091 = vmatpush1.msra.mxu0 %v5020
        %5092 = vmatprep.subr.mxu0 0.0
        %5093 = vmatpush2.msra.mxu0 0.0
        %5094 = vmatprep.subr.mxu0 0.0
        %5095 = vmatpush2.msra.mxu0 0.0
        %5096 = vmatprep.subr.mxu0 0.0
        %5097 = vmatpush2.msra.mxu0 0.0
        %5098 = vmatprep.subr.mxu0 0.0
        %5099 = vmatpush2.msra.mxu0 0.0
        %5100 = vmatprep.subr.mxu0 0.0
        %5101 = vmatpush2.msra.mxu0 %v5047
        %5102 = vmatprep.subr.mxu0 0.0
        %5103 = vmatpush2.msra.mxu0 %v5046
        %5104 = vmatprep.subr.mxu0 0.0
        %5105 = vmatpush2.msra.mxu0 %v5045
        %5106 = vmatprep.subr.mxu0 0.0
        %5107 = vmatpush2.msra.mxu0 %v5044
        %5108 = vmatprep.subr.mxu0 0.0
        %5109 = vmatpush2.msra.mxu0 %v5043
        %5110 = vmatprep.subr.mxu0 0.0
        %5111 = vmatpush2.msra.mxu0 %v5042
        %5112 = vmatprep.subr.mxu0 0.0
        %5113 = vmatpush2.msra.mxu0 %v5041
        %5114 = vmatprep.subr.mxu0 0.0
        %5115 = vmatpush2.msra.mxu0 %v5040
        %5116 = vmatprep.subr.mxu0 0.0
        %5117 = vmatpush2.msra.mxu0 %v5039
        %5118 = vmatprep.subr.mxu0 0.0
        %5119 = vmatpush2.msra.mxu0 %v5038
        %5120 = vmatprep.subr.mxu0 0.0
        %5121 = vmatpush2.msra.mxu0 %v5037
        %5122 = vmatprep.subr.mxu0 0.0
        %5123 = vmatpush2.msra.mxu0 %v5036
        %5124 = vmatprep.mubr.f32.mxu0 %v5058
        %5125 = vmatmul.mubr.f32.gmra.mxu0 %v5052
        %v5126 = vpop.f32.mrf.mxu0
        %v5127 = vadd.f32 0.0, %v5126
        %v5128 = vpop.f32.mrf.mxu0
        %5129 = vdwg.mxu0
        %v5130 = vadd.f32 %v5016, %v5127
        %s5131 = scalar_lea.vmem [#allocation5], 4
        %v5132 = vld [vmem:[%s5131] ss:$8 sm:$0x3]
        %s5133 = scalar_lea.vmem %s11, 896
        %v5134 = vld [vmem:[%s5133] sm:$0xff]
        %v5135 = vld [vmem:[%s5133 + $0x8] sm:$0xff]
        %v5136 = vld [vmem:[%s5133 + $0x10] sm:$0xff]
        %v5137 = vld [vmem:[%s5133 + $0x18] sm:$0xff]
        %v5138 = vld [vmem:[%s5133 + $0x20] sm:$0xff]
        %v5139 = vld [vmem:[%s5133 + $0x28] sm:$0xff]
        %v5140 = vld [vmem:[%s5133 + $0x30] sm:$0xff]
        %v5141 = vld [vmem:[%s5133 + $0x38] sm:$0xff]
        %v5142 = vld [vmem:[%s5133 + $0x40] sm:$0xff]
        %v5143 = vld [vmem:[%s5133 + $0x48] sm:$0xff]
        %v5144 = vld [vmem:[%s5133 + $0x50] sm:$0xff]
        %v5145 = vld [vmem:[%s5133 + $0x58] sm:$0xff]
        %v5146 = vld [vmem:[%s5133 + $0x60] sm:$0xff]
        %v5147 = vld [vmem:[%s5133 + $0x68] sm:$0xff]
        %v5148 = vld [vmem:[%s5133 + $0x70] sm:$0xff]
        %v5149 = vld [vmem:[%s5133 + $0x78] sm:$0xff]
        %v5150 = vld [vmem:[%s5133 + $0x80] sm:$0xff]
        %v5151 = vld [vmem:[%s5133 + $0x88] sm:$0xff]
        %v5152 = vld [vmem:[%s5133 + $0x90] sm:$0xff]
        %v5153 = vld [vmem:[%s5133 + $0x98] sm:$0xff]
        %v5154 = vld [vmem:[%s5133 + $0xa0] sm:$0xff]
        %v5155 = vld [vmem:[%s5133 + $0xa8] sm:$0xff]
        %v5156 = vld [vmem:[%s5133 + $0xb0] sm:$0xff]
        %v5157 = vld [vmem:[%s5133 + $0xb8] sm:$0xff]
        %v5158 = vld [vmem:[%s5133 + $0xc0] sm:$0xff]
        %v5159 = vld [vmem:[%s5133 + $0xc8] sm:$0xff]
        %v5160 = vld [vmem:[%s5133 + $0xd0] sm:$0xff]
        %v5161 = vld [vmem:[%s5133 + $0xd8] sm:$0xff]
        %v5163 = vlaneseq
        %v5164 = vshrl.u32 %v5163, 7
        %v5165 = vsub.s32 0, %v5164
        %v5166 = vrot.slane %v5132, %v5165
        %v5167 = vlaneseq
        %v5168 = vshrl.u32 %v5167, 7
        %v5169 = vsub.s32 1, %v5168
        %v5170 = vrot.slane %v5132, %v5169
        %v5172 = vsel %vm1000, %v5170, 0
        %5174 = vmatprep.subr.mxu0 0.0
        %5175 = vmatpush1.msra.mxu0 %v5149
        %5176 = vmatprep.subr.mxu0 0.0
        %5177 = vmatpush1.msra.mxu0 %v5148
        %5178 = vmatprep.subr.mxu0 0.0
        %5179 = vmatpush1.msra.mxu0 %v5147
        %5180 = vmatprep.subr.mxu0 0.0
        %5181 = vmatpush1.msra.mxu0 %v5146
        %5182 = vmatprep.subr.mxu0 0.0
        %5183 = vmatpush1.msra.mxu0 %v5145
        %5184 = vmatprep.subr.mxu0 0.0
        %5185 = vmatpush1.msra.mxu0 %v5144
        %5186 = vmatprep.subr.mxu0 0.0
        %5187 = vmatpush1.msra.mxu0 %v5143
        %5188 = vmatprep.subr.mxu0 0.0
        %5189 = vmatpush1.msra.mxu0 %v5142
        %5190 = vmatprep.subr.mxu0 0.0
        %5191 = vmatpush1.msra.mxu0 %v5141
        %5192 = vmatprep.subr.mxu0 0.0
        %5193 = vmatpush1.msra.mxu0 %v5140
        %5194 = vmatprep.subr.mxu0 0.0
        %5195 = vmatpush1.msra.mxu0 %v5139
        %5196 = vmatprep.subr.mxu0 0.0
        %5197 = vmatpush1.msra.mxu0 %v5138
        %5198 = vmatprep.subr.mxu0 0.0
        %5199 = vmatpush1.msra.mxu0 %v5137
        %5200 = vmatprep.subr.mxu0 0.0
        %5201 = vmatpush1.msra.mxu0 %v5136
        %5202 = vmatprep.subr.mxu0 0.0
        %5203 = vmatpush1.msra.mxu0 %v5135
        %5204 = vmatprep.subr.mxu0 0.0
        %5205 = vmatpush1.msra.mxu0 %v5134
        %5206 = vmatprep.subr.mxu0 0.0
        %5207 = vmatpush2.msra.mxu0 0.0
        %5208 = vmatprep.subr.mxu0 0.0
        %5209 = vmatpush2.msra.mxu0 0.0
        %5210 = vmatprep.subr.mxu0 0.0
        %5211 = vmatpush2.msra.mxu0 0.0
        %5212 = vmatprep.subr.mxu0 0.0
        %5213 = vmatpush2.msra.mxu0 0.0
        %5214 = vmatprep.subr.mxu0 0.0
        %5215 = vmatpush2.msra.mxu0 %v5161
        %5216 = vmatprep.subr.mxu0 0.0
        %5217 = vmatpush2.msra.mxu0 %v5160
        %5218 = vmatprep.subr.mxu0 0.0
        %5219 = vmatpush2.msra.mxu0 %v5159
        %5220 = vmatprep.subr.mxu0 0.0
        %5221 = vmatpush2.msra.mxu0 %v5158
        %5222 = vmatprep.subr.mxu0 0.0
        %5223 = vmatpush2.msra.mxu0 %v5157
        %5224 = vmatprep.subr.mxu0 0.0
        %5225 = vmatpush2.msra.mxu0 %v5156
        %5226 = vmatprep.subr.mxu0 0.0
        %5227 = vmatpush2.msra.mxu0 %v5155
        %5228 = vmatprep.subr.mxu0 0.0
        %5229 = vmatpush2.msra.mxu0 %v5154
        %5230 = vmatprep.subr.mxu0 0.0
        %5231 = vmatpush2.msra.mxu0 %v5153
        %5232 = vmatprep.subr.mxu0 0.0
        %5233 = vmatpush2.msra.mxu0 %v5152
        %5234 = vmatprep.subr.mxu0 0.0
        %5235 = vmatpush2.msra.mxu0 %v5151
        %5236 = vmatprep.subr.mxu0 0.0
        %5237 = vmatpush2.msra.mxu0 %v5150
        %5238 = vmatprep.mubr.f32.mxu0 %v5172
        %5239 = vmatmul.mubr.f32.gmra.mxu0 %v5166
        %v5240 = vpop.f32.mrf.mxu0
        %v5241 = vadd.f32 0.0, %v5240
        %v5242 = vpop.f32.mrf.mxu0
        %5243 = vdwg.mxu0
        %v5244 = vadd.f32 %v5130, %v5241
        %s5245 = scalar_lea.vmem [#allocation5], 5
        %v5246 = vld [vmem:[%s5245] ss:$8 sm:$0x3]
        %s5247 = scalar_lea.vmem %s11, 1120
        %v5248 = vld [vmem:[%s5247] sm:$0xff]
        %v5249 = vld [vmem:[%s5247 + $0x8] sm:$0xff]
        %v5250 = vld [vmem:[%s5247 + $0x10] sm:$0xff]
        %v5251 = vld [vmem:[%s5247 + $0x18] sm:$0xff]
        %v5252 = vld [vmem:[%s5247 + $0x20] sm:$0xff]
        %v5253 = vld [vmem:[%s5247 + $0x28] sm:$0xff]
        %v5254 = vld [vmem:[%s5247 + $0x30] sm:$0xff]
        %v5255 = vld [vmem:[%s5247 + $0x38] sm:$0xff]
        %v5256 = vld [vmem:[%s5247 + $0x40] sm:$0xff]
        %v5257 = vld [vmem:[%s5247 + $0x48] sm:$0xff]
        %v5258 = vld [vmem:[%s5247 + $0x50] sm:$0xff]
        %v5259 = vld [vmem:[%s5247 + $0x58] sm:$0xff]
        %v5260 = vld [vmem:[%s5247 + $0x60] sm:$0xff]
        %v5261 = vld [vmem:[%s5247 + $0x68] sm:$0xff]
        %v5262 = vld [vmem:[%s5247 + $0x70] sm:$0xff]
        %v5263 = vld [vmem:[%s5247 + $0x78] sm:$0xff]
        %v5264 = vld [vmem:[%s5247 + $0x80] sm:$0xff]
        %v5265 = vld [vmem:[%s5247 + $0x88] sm:$0xff]
        %v5266 = vld [vmem:[%s5247 + $0x90] sm:$0xff]
        %v5267 = vld [vmem:[%s5247 + $0x98] sm:$0xff]
        %v5268 = vld [vmem:[%s5247 + $0xa0] sm:$0xff]
        %v5269 = vld [vmem:[%s5247 + $0xa8] sm:$0xff]
        %v5270 = vld [vmem:[%s5247 + $0xb0] sm:$0xff]
        %v5271 = vld [vmem:[%s5247 + $0xb8] sm:$0xff]
        %v5272 = vld [vmem:[%s5247 + $0xc0] sm:$0xff]
        %v5273 = vld [vmem:[%s5247 + $0xc8] sm:$0xff]
        %v5274 = vld [vmem:[%s5247 + $0xd0] sm:$0xff]
        %v5275 = vld [vmem:[%s5247 + $0xd8] sm:$0xff]
        %v5277 = vlaneseq
        %v5278 = vshrl.u32 %v5277, 7
        %v5279 = vsub.s32 0, %v5278
        %v5280 = vrot.slane %v5246, %v5279
        %v5281 = vlaneseq
        %v5282 = vshrl.u32 %v5281, 7
        %v5283 = vsub.s32 1, %v5282
        %v5284 = vrot.slane %v5246, %v5283
        %v5286 = vsel %vm1000, %v5284, 0
        %5288 = vmatprep.subr.mxu0 0.0
        %5289 = vmatpush1.msra.mxu0 %v5263
        %5290 = vmatprep.subr.mxu0 0.0
        %5291 = vmatpush1.msra.mxu0 %v5262
        %5292 = vmatprep.subr.mxu0 0.0
        %5293 = vmatpush1.msra.mxu0 %v5261
        %5294 = vmatprep.subr.mxu0 0.0
        %5295 = vmatpush1.msra.mxu0 %v5260
        %5296 = vmatprep.subr.mxu0 0.0
        %5297 = vmatpush1.msra.mxu0 %v5259
        %5298 = vmatprep.subr.mxu0 0.0
        %5299 = vmatpush1.msra.mxu0 %v5258
        %5300 = vmatprep.subr.mxu0 0.0
        %5301 = vmatpush1.msra.mxu0 %v5257
        %5302 = vmatprep.subr.mxu0 0.0
        %5303 = vmatpush1.msra.mxu0 %v5256
        %5304 = vmatprep.subr.mxu0 0.0
        %5305 = vmatpush1.msra.mxu0 %v5255
        %5306 = vmatprep.subr.mxu0 0.0
        %5307 = vmatpush1.msra.mxu0 %v5254
        %5308 = vmatprep.subr.mxu0 0.0
        %5309 = vmatpush1.msra.mxu0 %v5253
        %5310 = vmatprep.subr.mxu0 0.0
        %5311 = vmatpush1.msra.mxu0 %v5252
        %5312 = vmatprep.subr.mxu0 0.0
        %5313 = vmatpush1.msra.mxu0 %v5251
        %5314 = vmatprep.subr.mxu0 0.0
        %5315 = vmatpush1.msra.mxu0 %v5250
        %5316 = vmatprep.subr.mxu0 0.0
        %5317 = vmatpush1.msra.mxu0 %v5249
        %5318 = vmatprep.subr.mxu0 0.0
        %5319 = vmatpush1.msra.mxu0 %v5248
        %5320 = vmatprep.subr.mxu0 0.0
        %5321 = vmatpush2.msra.mxu0 0.0
        %5322 = vmatprep.subr.mxu0 0.0
        %5323 = vmatpush2.msra.mxu0 0.0
        %5324 = vmatprep.subr.mxu0 0.0
        %5325 = vmatpush2.msra.mxu0 0.0
        %5326 = vmatprep.subr.mxu0 0.0
        %5327 = vmatpush2.msra.mxu0 0.0
        %5328 = vmatprep.subr.mxu0 0.0
        %5329 = vmatpush2.msra.mxu0 %v5275
        %5330 = vmatprep.subr.mxu0 0.0
        %5331 = vmatpush2.msra.mxu0 %v5274
        %5332 = vmatprep.subr.mxu0 0.0
        %5333 = vmatpush2.msra.mxu0 %v5273
        %5334 = vmatprep.subr.mxu0 0.0
        %5335 = vmatpush2.msra.mxu0 %v5272
        %5336 = vmatprep.subr.mxu0 0.0
        %5337 = vmatpush2.msra.mxu0 %v5271
        %5338 = vmatprep.subr.mxu0 0.0
        %5339 = vmatpush2.msra.mxu0 %v5270
        %5340 = vmatprep.subr.mxu0 0.0
        %5341 = vmatpush2.msra.mxu0 %v5269
        %5342 = vmatprep.subr.mxu0 0.0
        %5343 = vmatpush2.msra.mxu0 %v5268
        %5344 = vmatprep.subr.mxu0 0.0
        %5345 = vmatpush2.msra.mxu0 %v5267
        %5346 = vmatprep.subr.mxu0 0.0
        %5347 = vmatpush2.msra.mxu0 %v5266
        %5348 = vmatprep.subr.mxu0 0.0
        %5349 = vmatpush2.msra.mxu0 %v5265
        %5350 = vmatprep.subr.mxu0 0.0
        %5351 = vmatpush2.msra.mxu0 %v5264
        %5352 = vmatprep.mubr.f32.mxu0 %v5286
        %5353 = vmatmul.mubr.f32.gmra.mxu0 %v5280
        %v5354 = vpop.f32.mrf.mxu0
        %v5355 = vadd.f32 0.0, %v5354
        %v5356 = vpop.f32.mrf.mxu0
        %5357 = vdwg.mxu0
        %v5358 = vadd.f32 %v5244, %v5355
        %s5359 = scalar_lea.vmem [#allocation5], 6
        %v5360 = vld [vmem:[%s5359] ss:$8 sm:$0x3]
        %s5361 = scalar_lea.vmem %s11, 1344
        %v5362 = vld [vmem:[%s5361] sm:$0xff]
        %v5363 = vld [vmem:[%s5361 + $0x8] sm:$0xff]
        %v5364 = vld [vmem:[%s5361 + $0x10] sm:$0xff]
        %v5365 = vld [vmem:[%s5361 + $0x18] sm:$0xff]
        %v5366 = vld [vmem:[%s5361 + $0x20] sm:$0xff]
        %v5367 = vld [vmem:[%s5361 + $0x28] sm:$0xff]
        %v5368 = vld [vmem:[%s5361 + $0x30] sm:$0xff]
        %v5369 = vld [vmem:[%s5361 + $0x38] sm:$0xff]
        %v5370 = vld [vmem:[%s5361 + $0x40] sm:$0xff]
        %v5371 = vld [vmem:[%s5361 + $0x48] sm:$0xff]
        %v5372 = vld [vmem:[%s5361 + $0x50] sm:$0xff]
        %v5373 = vld [vmem:[%s5361 + $0x58] sm:$0xff]
        %v5374 = vld [vmem:[%s5361 + $0x60] sm:$0xff]
        %v5375 = vld [vmem:[%s5361 + $0x68] sm:$0xff]
        %v5376 = vld [vmem:[%s5361 + $0x70] sm:$0xff]
        %v5377 = vld [vmem:[%s5361 + $0x78] sm:$0xff]
        %v5378 = vld [vmem:[%s5361 + $0x80] sm:$0xff]
        %v5379 = vld [vmem:[%s5361 + $0x88] sm:$0xff]
        %v5380 = vld [vmem:[%s5361 + $0x90] sm:$0xff]
        %v5381 = vld [vmem:[%s5361 + $0x98] sm:$0xff]
        %v5382 = vld [vmem:[%s5361 + $0xa0] sm:$0xff]
        %v5383 = vld [vmem:[%s5361 + $0xa8] sm:$0xff]
        %v5384 = vld [vmem:[%s5361 + $0xb0] sm:$0xff]
        %v5385 = vld [vmem:[%s5361 + $0xb8] sm:$0xff]
        %v5386 = vld [vmem:[%s5361 + $0xc0] sm:$0xff]
        %v5387 = vld [vmem:[%s5361 + $0xc8] sm:$0xff]
        %v5388 = vld [vmem:[%s5361 + $0xd0] sm:$0xff]
        %v5389 = vld [vmem:[%s5361 + $0xd8] sm:$0xff]
        %v5391 = vlaneseq
        %v5392 = vshrl.u32 %v5391, 7
        %v5393 = vsub.s32 0, %v5392
        %v5394 = vrot.slane %v5360, %v5393
        %v5395 = vlaneseq
        %v5396 = vshrl.u32 %v5395, 7
        %v5397 = vsub.s32 1, %v5396
        %v5398 = vrot.slane %v5360, %v5397
        %v5400 = vsel %vm1000, %v5398, 0
        %5402 = vmatprep.subr.mxu0 0.0
        %5403 = vmatpush1.msra.mxu0 %v5377
        %5404 = vmatprep.subr.mxu0 0.0
        %5405 = vmatpush1.msra.mxu0 %v5376
        %5406 = vmatprep.subr.mxu0 0.0
        %5407 = vmatpush1.msra.mxu0 %v5375
        %5408 = vmatprep.subr.mxu0 0.0
        %5409 = vmatpush1.msra.mxu0 %v5374
        %5410 = vmatprep.subr.mxu0 0.0
        %5411 = vmatpush1.msra.mxu0 %v5373
        %5412 = vmatprep.subr.mxu0 0.0
        %5413 = vmatpush1.msra.mxu0 %v5372
        %5414 = vmatprep.subr.mxu0 0.0
        %5415 = vmatpush1.msra.mxu0 %v5371
        %5416 = vmatprep.subr.mxu0 0.0
        %5417 = vmatpush1.msra.mxu0 %v5370
        %5418 = vmatprep.subr.mxu0 0.0
        %5419 = vmatpush1.msra.mxu0 %v5369
        %5420 = vmatprep.subr.mxu0 0.0
        %5421 = vmatpush1.msra.mxu0 %v5368
        %5422 = vmatprep.subr.mxu0 0.0
        %5423 = vmatpush1.msra.mxu0 %v5367
        %5424 = vmatprep.subr.mxu0 0.0
        %5425 = vmatpush1.msra.mxu0 %v5366
        %5426 = vmatprep.subr.mxu0 0.0
        %5427 = vmatpush1.msra.mxu0 %v5365
        %5428 = vmatprep.subr.mxu0 0.0
        %5429 = vmatpush1.msra.mxu0 %v5364
        %5430 = vmatprep.subr.mxu0 0.0
        %5431 = vmatpush1.msra.mxu0 %v5363
        %5432 = vmatprep.subr.mxu0 0.0
        %5433 = vmatpush1.msra.mxu0 %v5362
        %5434 = vmatprep.subr.mxu0 0.0
        %5435 = vmatpush2.msra.mxu0 0.0
        %5436 = vmatprep.subr.mxu0 0.0
        %5437 = vmatpush2.msra.mxu0 0.0
        %5438 = vmatprep.subr.mxu0 0.0
        %5439 = vmatpush2.msra.mxu0 0.0
        %5440 = vmatprep.subr.mxu0 0.0
        %5441 = vmatpush2.msra.mxu0 0.0
        %5442 = vmatprep.subr.mxu0 0.0
        %5443 = vmatpush2.msra.mxu0 %v5389
        %5444 = vmatprep.subr.mxu0 0.0
        %5445 = vmatpush2.msra.mxu0 %v5388
        %5446 = vmatprep.subr.mxu0 0.0
        %5447 = vmatpush2.msra.mxu0 %v5387
        %5448 = vmatprep.subr.mxu0 0.0
        %5449 = vmatpush2.msra.mxu0 %v5386
        %5450 = vmatprep.subr.mxu0 0.0
        %5451 = vmatpush2.msra.mxu0 %v5385
        %5452 = vmatprep.subr.mxu0 0.0
        %5453 = vmatpush2.msra.mxu0 %v5384
        %5454 = vmatprep.subr.mxu0 0.0
        %5455 = vmatpush2.msra.mxu0 %v5383
        %5456 = vmatprep.subr.mxu0 0.0
        %5457 = vmatpush2.msra.mxu0 %v5382
        %5458 = vmatprep.subr.mxu0 0.0
        %5459 = vmatpush2.msra.mxu0 %v5381
        %5460 = vmatprep.subr.mxu0 0.0
        %5461 = vmatpush2.msra.mxu0 %v5380
        %5462 = vmatprep.subr.mxu0 0.0
        %5463 = vmatpush2.msra.mxu0 %v5379
        %5464 = vmatprep.subr.mxu0 0.0
        %5465 = vmatpush2.msra.mxu0 %v5378
        %5466 = vmatprep.mubr.f32.mxu0 %v5400
        %5467 = vmatmul.mubr.f32.gmra.mxu0 %v5394
        %v5468 = vpop.f32.mrf.mxu0
        %v5469 = vadd.f32 0.0, %v5468
        %v5470 = vpop.f32.mrf.mxu0
        %5471 = vdwg.mxu0
        %v5472 = vadd.f32 %v5358, %v5469
        %vm5473 = vcmask 73728
        %5474 = vst.msk [vmem:[%s541] sm:$0x1] %vm5473, %v5472
        %s5475 = sand.u32 %s318, 1
        %s5476 = scalar_lea.sflag [#allocation8], %s5475
        %s5477 = sand.u32 %s318, 1
        %s5478 = scalar_lea.vmem [#allocation20], %s5477
        // Predicated region
        $region105: #{cnn_forward_pallas.1} parent=71 // pred_check
          %p5479 = pneg %p328
        $region106: #{cnn_forward_pallas.1} parent=71 // pred_check_branch
          %5481 = sbr.rel (%p5479) target = $region108
        $region107: #{cnn_forward_pallas.1} parent=71 // pred_region
          %s5483 = ssub.s32 16, 16
          %5484 = vsyncadd %s5476, %s5483
          %s5485 = smul.addr %s32, 16
          %s5486 = scalar_lea.hbm %s13, %s5485
          %s5488 = sshll.u32 %s5478, 4
          %s5489 = int_to_ptr.vmem [resolvable:$true] %s5488
          %5491 = dma.vmem_to_hbm [thread:$0]  %s5489, 16, %s5486, %s5476
        $region108: #{cnn_forward_pallas.1} parent=71 // pred_fallthru
          _
      $region72: #{cnn_forward_pallas.1} parent=5 // pred_fallthru
        _
      %p5492 = scmp.le.s32.totalorder 2, %s27
      // Predicated region
      $region109: #{cnn_forward_pallas.1} parent=5 // pred_check
        %p5493 = pneg %p5492
      $region110: #{cnn_forward_pallas.1} parent=5 // pred_check_branch
        %5495 = sbr.rel (%p5493) target = $region112
      $region111: #{cnn_forward_pallas.1} parent=5 // pred_region
        %s5496 = ssub.s32 %s27, 2
        // Predicated region
        $region113: #{cnn_forward_pallas.1} parent=111 // pred_check
          %p5497 = pneg %p334
        $region114: #{cnn_forward_pallas.1} parent=111 // pred_check_branch
          %5499 = sbr.rel (%p5497) target = $region116
        $region115: #{cnn_forward_pallas.1} parent=111 // pred_region
          %s5500 = sand.u32 %s319, 1
          %s5501 = scalar_lea.sflag [#allocation8], %s5500
          %s5502 = sand.u32 %s319, 1
          %s5503 = scalar_lea.vmem [#allocation20], %s5502
          %5504 = dma.done %s5501, 16
        $region116: #{cnn_forward_pallas.1} parent=111 // pred_fallthru
          _
      $region112: #{cnn_forward_pallas.1} parent=5 // pred_fallthru
        _
    $region6: #{cnn_forward_pallas.1} parent=1 // loop_footer
      %s31 = sadd.s32 1, %s27
    $region7: #{cnn_forward_pallas.1} parent=1 // loop_footer_branch
      %26 = sbr.rel target = $region3
    $region8: #{cnn_forward_pallas.1} parent=1 // loop_exit
      _
    %5505 = vsyncpa [#allocation7], 1
    %s5506 = scalar_lea.sflag [#allocation7], 1
    %5507 = vsyncpa %s5506, 1
    %5508 = vsyncpa [#allocation10], 1
    %5509 = vsyncpa [#allocation13], 1
    %5510 = vsyncpa [#allocation16], 1
    %5511 = vsyncpa [#allocation19], 1
    %5512 = vsyncpa [#allocation8], 1
    %s5513 = scalar_lea.sflag [#allocation8], 1
    %5514 = vsyncpa %s5513, 1

</llo_original>
